<compile_context>
chip_gen: v7x
topology: tpu7x:2x2x1
jax: 0.10.0
libtpu: 0.0.40
codegen_flags: <defaults>
</compile_context>

<pallas_src>
import numpy as np
import jax
import jax.numpy as jnp
from jax.experimental import pallas as pl
from jax.experimental.pallas import tpu as pltpu

N_FFT = 512
HOP = 128
F_BINS = N_FFT // 2 + 1             # 257
PAD_HALF = 320                      # per-channel padded spectrum width
SPEC_W = 2 * PAD_HALF               # 640 = 5*128 lanes -> unmasked stores
HID = 144                           # GRU / attention embed dim
EPS_BN = 1e-5
MXU_DTYPE = jnp.bfloat16            # MXU operand dtype (f32 accumulation)
MAX_ROW_TILE = 512                  # HBM-roofline friendly row tile

_HANN = 0.5 * (1.0 - np.cos(2.0 * np.pi * np.arange(N_FFT) / N_FFT))   # periodic hann


def _vmem_limit_bytes():
    # generation-aware: ~3/4 of physical VMEM, never more than 96 MiB.
    try:
        cap = int(getattr(pltpu.get_tpu_info(), "vmem_capacity_bytes", 0))
    except Exception:
        cap = 0
    if cap <= 0:
        cap = 64 * 1024 * 1024      # conservative fallback (v7x-sized)
    return min(96 * 1024 * 1024, (cap * 3) // 4)


VMEM_LIMIT = _vmem_limit_bytes()


def _cparams(semantics=("parallel",)):
    return pltpu.CompilerParams(dimension_semantics=semantics,
                                vmem_limit_bytes=VMEM_LIMIT)


def _row_tile(m):
    return m if m <= MAX_ROW_TILE else MAX_ROW_TILE


# ----------------------------------------------------------------------------
# Pallas kernels
# ----------------------------------------------------------------------------
def _stft_kernel(xc_ref, w_ref, spec_ref):
    # xc_ref: (1, T+3, 128) bf16 hop-chunked padded signal; w_ref: (512, 640) bf16
    # windowed DFT; spec_ref: (1, T, 640) bf16.  frame[t] = concat(chunks[t:t+4]),
    # so spec = sum_j shift_j(chunks) @ W[j*128:(j+1)*128]  (no frame array in HBM).
    t_frames = spec_ref.shape[1]
    xc = xc_ref[0]
    acc = jnp.zeros((t_frames, SPEC_W), jnp.float32)
    for j in range(N_FFT // HOP):
        acc = acc + jnp.dot(xc[j:j + t_frames, :],
                            w_ref[j * HOP:(j + 1) * HOP, :],
                            preferred_element_type=jnp.float32)
    spec_ref[0] = acc.astype(spec_ref.dtype)


def _enc_gi_kernel(spec_ref, w1_ref, b1_ref, alpha_ref, w2_ref, b2_ref, gi_ref):
    # fused: block-diagonal Conv2d(7,1)/s(7,1)+BN matmul (640-row weight reads the
    # padded spectrum directly), PReLU, then the GRU input projection gi = z@Wih+bih.
    z = jnp.dot(spec_ref[...], w1_ref[...],
                preferred_element_type=jnp.float32) + b1_ref[...]
    alpha = alpha_ref[0]                                   # scalar from SMEM
    z = jnp.where(z >= 0.0, z, alpha * z)
    gi_ref[...] = (jnp.dot(z.astype(MXU_DTYPE), w2_ref[...],
                           preferred_element_type=jnp.float32) + b2_ref[...])


def _mm_bias_kernel(a_ref, b_ref, bias_ref, o_ref):
    o_ref[...] = (jnp.dot(a_ref[...], b_ref[...],
                          preferred_element_type=jnp.float32)
                  + bias_ref[...]).astype(o_ref.dtype)


def _gru_kernel(gi_ref, whh_ref, bhh_ref, h0_ref, y_ref, hn_ref, h_scr):
    # gi (input projection + b_ih) precomputed; C timesteps per grid step.
    c = pl.program_id(0)
    C = gi_ref.shape[1]
    H = h_scr.shape[-1]

    @pl.when(c == 0)
    def _():
        h_scr[...] = h0_ref[...]

    for i in range(C):                                     # unrolled recurrence chunk
        h_prev = h_scr[...]
        gi = gi_ref[:, i, :]                               # (B, 3H) f32
        gh = jnp.dot(h_prev.astype(MXU_DTYPE), whh_ref[...],
                     preferred_element_type=jnp.float32) + bhh_ref[...]
        r = jax.nn.sigmoid(gi[:, 0:H] + gh[:, 0:H])
        z = jax.nn.sigmoid(gi[:, H:2 * H] + gh[:, H:2 * H])
        n = jnp.tanh(gi[:, 2 * H:3 * H] + r * gh[:, 2 * H:3 * H])
        h_new = (1.0 - z) * n + z * h_prev
        h_scr[...] = h_new
        y_ref[:, i, :] = h_new.astype(y_ref.dtype)

    @pl.when(c == pl.num_programs(0) - 1)
    def _():
        hn_ref[...] = h_scr[...]


def _attn_kernel(qkv_ref, o_ref):
    # MultiheadAttention with head_dim == 1 (embed 144, 144 heads), one batch per
    # grid step.  E stays in lanes, T in sublanes; exact per-(t,head) score max via
    # the rank-1 trick, so no O(T^2) cube is materialized.
    T = o_ref.shape[1]
    E = o_ref.shape[2]
    qkv = qkv_ref[0]                                       # (T, 3E) f32
    q = qkv[:, 0:E]
    k = qkv[:, E:2 * E]
    v = qkv[:, 2 * E:3 * E]
    kmax = jnp.max(k, axis=0, keepdims=True)               # (1, E)
    kmin = jnp.min(k, axis=0, keepdims=True)
    m = jnp.where(q >= 0.0, q * kmax, q * kmin)            # exact row max of q[t]*k[s]
    l = jnp.zeros((T, E), jnp.float32)
    acc = jnp.zeros((T, E), jnp.float32)
    # TODO(synk): for very long T make this a grid axis with online accumulators.
    for s in range(T):
        ks = k[s:s + 1, :]                                 # (1, E)
        vs = v[s:s + 1, :]
        p = jnp.exp(q * ks - m)                            # (T, E), args <= 0
        l = l + p
        acc = acc + p * vs
    o_ref[0] = (acc * pl.reciprocal(l, approx=True)).astype(o_ref.dtype)


def _outdec_istft_kernel(o_ref, w1_ref, b1_ref, w2_ref, b2_ref, x_ref, w3_ref, fr_ref):
    # fused: MHA out_proj -> block-diag ConvTranspose2d+BN matmul -> tanh -> *X
    # -> windowed inverse-DFT (ISTFT frames), all in one row tile.
    u = jnp.dot(o_ref[...], w1_ref[...],
                preferred_element_type=jnp.float32) + b1_ref[...]
    y = jnp.tanh(jnp.dot(u.astype(MXU_DTYPE), w2_ref[...],
                         preferred_element_type=jnp.float32) + b2_ref[...])
    y = y * x_ref[...].astype(jnp.float32)
    fr_ref[...] = jnp.dot(y.astype(MXU_DTYPE), w3_ref[...],
                          preferred_element_type=jnp.float32)


# ----------------------------------------------------------------------------
# Pallas wrappers
# ----------------------------------------------------------------------------
def stft_pallas(chunks, fwd_dft):
    B, n_chunks, _ = chunks.shape
    T = n_chunks - (N_FFT // HOP - 1)
    return pl.pallas_call(
        _stft_kernel,
        out_shape=jax.ShapeDtypeStruct((B, T, SPEC_W), MXU_DTYPE),
        grid=(B,),
        in_specs=[pl.BlockSpec((1, n_chunks, HOP), lambda b: (b, 0, 0)),
                  pl.BlockSpec((N_FFT, SPEC_W), lambda b: (0, 0))],
        out_specs=pl.BlockSpec((1, T, SPEC_W), lambda b: (b, 0, 0)),
        compiler_params=_cparams(),
    )(chunks, fwd_dft)


def enc_gi_pallas(spec2, p):
    M = spec2.shape[0]
    tm = _row_tile(M)
    return pl.pallas_call(
        _enc_gi_kernel,
        out_shape=jax.ShapeDtypeStruct((M, 3 * HID), jnp.float32),
        grid=(pl.cdiv(M, tm),),
        in_specs=[pl.BlockSpec((tm, SPEC_W), lambda i: (i, 0)),
                  pl.BlockSpec((SPEC_W, HID), lambda i: (0, 0)),
                  pl.BlockSpec((1, HID), lambda i: (0, 0)),
                  pl.BlockSpec(memory_space=pltpu.MemorySpace.SMEM),
                  pl.BlockSpec((HID, 3 * HID), lambda i: (0, 0)),
                  pl.BlockSpec((1, 3 * HID), lambda i: (0, 0))],
        out_specs=pl.BlockSpec((tm, 3 * HID), lambda i: (i, 0)),
        compiler_params=_cparams(),
    )(spec2, p["enc_w"], p["enc_b"], p["prelu_a"], p["gru_wih_t"], p["gru_bih"])


def matmul_bias(a, b, bias, out_dtype=jnp.float32):
    M, K = a.shape
    _, N = b.shape
    tm = _row_tile(M)
    return pl.pallas_call(
        _mm_bias_kernel,
        out_shape=jax.ShapeDtypeStruct((M, N), out_dtype),
        grid=(pl.cdiv(M, tm),),
        in_specs=[pl.BlockSpec((tm, K), lambda i: (i, 0)),
                  pl.BlockSpec((K, N), lambda i: (0, 0)),
                  pl.BlockSpec((1, N), lambda i: (0, 0))],
        out_specs=pl.BlockSpec((tm, N), lambda i: (i, 0)),
        compiler_params=_cparams(),
    )(a, b, bias)


def gru_pallas(gi3, p, h0):
    B, T, H3 = gi3.shape
    H = H3 // 3
    C = min(T, 16)                          # timesteps per grid step (divisor of T)
    while T % C:
        C -= 1
    y, hn = pl.pallas_call(
        _gru_kernel,
        out_shape=(jax.ShapeDtypeStruct((B, T, H), MXU_DTYPE),
                   jax.ShapeDtypeStruct((B, H), jnp.float32)),
        grid=(T // C,),
        in_specs=[pl.BlockSpec((B, C, H3), lambda c: (0, c, 0)),
                  pl.BlockSpec((H, H3), lambda c: (0, 0)),
                  pl.BlockSpec((1, H3), lambda c: (0, 0)),
                  pl.BlockSpec((B, H), lambda c: (0, 0))],
        out_specs=(pl.BlockSpec((B, C, H), lambda c: (0, c, 0)),
                   pl.BlockSpec((B, H), lambda c: (0, 0))),
        scratch_shapes=[pltpu.VMEM((B, H), jnp.float32)],
        compiler_params=_cparams(("arbitrary",)),
    )(gi3, p["gru_whh_t"], p["gru_bhh"], h0)
    return y, hn


def attn_pallas(qkv3):
    B, T, E3 = qkv3.shape
    E = E3 // 3
    return pl.pallas_call(
        _attn_kernel,
        out_shape=jax.ShapeDtypeStruct((B, T, E), MXU_DTYPE),
        grid=(B,),
        in_specs=[pl.BlockSpec((1, T, E3), lambda b: (b, 0, 0))],
        out_specs=pl.BlockSpec((1, T, E), lambda b: (b, 0, 0)),
        compiler_params=_cparams(),
    )(qkv3)


def outdec_istft_pallas(o2, spec2, p):
    M = o2.shape[0]
    tm = _row_tile(M)
    return pl.pallas_call(
        _outdec_istft_kernel,
        out_shape=jax.ShapeDtypeStruct((M, N_FFT), jnp.float32),
        grid=(pl.cdiv(M, tm),),
        in_specs=[pl.BlockSpec((tm, HID), lambda i: (i, 0)),
                  pl.BlockSpec((HID, HID), lambda i: (0, 0)),
                  pl.BlockSpec((1, HID), lambda i: (0, 0)),
                  pl.BlockSpec((HID, SPEC_W), lambda i: (0, 0)),
                  pl.BlockSpec((1, SPEC_W), lambda i: (0, 0)),
                  pl.BlockSpec((tm, SPEC_W), lambda i: (i, 0)),
                  pl.BlockSpec((SPEC_W, N_FFT), lambda i: (0, 0))],
        out_specs=pl.BlockSpec((tm, N_FFT), lambda i: (i, 0)),
        compiler_params=_cparams(),
    )(o2, p["attn_out_w"], p["attn_out_b"], p["dec_w"], p["dec_b"], spec2, p["inv_dft"])


# ----------------------------------------------------------------------------
# Parameter / constant setup (deterministic; PyTorch-shape equivalents, folded)
# ----------------------------------------------------------------------------
def make_dft_matrices():
    n = N_FFT
    w = _HANN
    k = np.arange(F_BINS)[None, :]
    nn_ = np.arange(n)[:, None]
    ang = 2.0 * np.pi * k * nn_ / n                               # [n, F]
    cosm, sinm = np.cos(ang), np.sin(ang)
    # forward (analysis window folded), padded to 640 lanes: re @ [0,257), im @ [320,577)
    fwd = np.zeros((n, SPEC_W), np.float32)
    fwd[:, :F_BINS] = w[:, None] * cosm
    fwd[:, PAD_HALF:PAD_HALF + F_BINS] = -(w[:, None] * sinm)
    # inverse rDFT (irfft) with synthesis window folded; zero rows at the lane pads
    c = np.full((F_BINS,), 2.0)
    c[0] = 1.0
    c[-1] = 1.0
    inv = np.zeros((SPEC_W, n), np.float32)
    inv[:F_BINS, :] = (c[:, None] * cosm.T) / n * w[None, :]
    inv[PAD_HALF:PAD_HALF + F_BINS, :] = (-c[:, None] * sinm.T) / n * w[None, :]
    return jnp.asarray(fwd), jnp.asarray(inv)


def init_params(key):
    ks = jax.random.split(key, 12)
    s = 0.1
    bn_scale = float(1.0 / np.sqrt(1.0 + EPS_BN))     # eval-mode BN, gamma=1, beta=0

    # encoder Conv2d(2->4, k=(7,1), s=(7,1)) + BN folded, laid out over the padded
    # 640-wide spectrum so the kernel consumes spec directly (row = ci*320 + fo*7 + k).
    conv_w = np.asarray(jax.random.normal(ks[0], (4, 2, 7), jnp.float32)) * s   # [co,ci,k]
    conv_b = np.asarray(jax.random.normal(ks[1], (4,), jnp.float32)) * s
    enc_w = np.zeros((SPEC_W, HID), np.float32)
    for co in range(4):
        for ci in range(2):
            for fo in range(36):
                for k in range(7):
                    enc_w[ci * PAD_HALF + fo * 7 + k, co * 36 + fo] = conv_w[co, ci, k]
    enc_w *= bn_scale
    enc_b = (np.repeat(conv_b, 36) * bn_scale).reshape(1, HID).astype(np.float32)
    prelu_a = jnp.full((1,), 0.25, jnp.float32)

    # GRU(144, 144), gate order [r; z; n]
    w_ih = jax.random.normal(ks[2], (3 * HID, HID), jnp.float32) * s
    w_hh = jax.random.normal(ks[3], (3 * HID, HID), jnp.float32) * s
    b_ih = jax.random.normal(ks[4], (3 * HID,), jnp.float32) * s
    b_hh = jax.random.normal(ks[5], (3 * HID,), jnp.float32) * s

    # MultiheadAttention(144, num_heads=144 -> head_dim=1)
    in_proj_w = jax.random.normal(ks[6], (3 * HID, HID), jnp.float32) * s
    in_proj_b = jax.random.normal(ks[7], (3 * HID,), jnp.float32) * s
    out_proj_w = jax.random.normal(ks[8], (HID, HID), jnp.float32) * s
    out_proj_b = jax.random.normal(ks[9], (HID,), jnp.float32) * s

    # decoder ConvTranspose2d(4->2, k=(7,1), s=(7,1), output_padding=(5,0)) + BN folded,
    # block-diagonal, in the padded 640-wide spectrum layout (col = co*320 + fi*7 + k).
    deconv_w = np.asarray(jax.random.normal(ks[10], (4, 2, 7), jnp.float32)) * s  # [ci,co,k]
    deconv_b = np.asarray(jax.random.normal(ks[11], (2,), jnp.float32)) * s
    dec_w = np.zeros((HID, SPEC_W), np.float32)
    for ci in range(4):
        for fi in range(36):
            for co in range(2):
                for k in range(7):
                    dec_w[ci * 36 + fi, co * PAD_HALF + fi * 7 + k] = deconv_w[ci, co, k]
    dec_w *= bn_scale
    dec_b = np.zeros((SPEC_W,), np.float32)
    for co in range(2):
        dec_b[co * PAD_HALF: co * PAD_HALF + F_BINS] = deconv_b[co] * bn_scale
    dec_b = dec_b.reshape(1, SPEC_W)

    fwd_dft, inv_dft = make_dft_matrices()

    return dict(
        enc_w=jnp.asarray(enc_w, MXU_DTYPE),
        enc_b=jnp.asarray(enc_b, jnp.float32),
        prelu_a=prelu_a,
        gru_wih_t=w_ih.T.astype(MXU_DTYPE),
        gru_whh_t=w_hh.T.astype(MXU_DTYPE),
        gru_bih=b_ih.reshape(1, -1).astype(jnp.float32),
        gru_bhh=b_hh.reshape(1, -1).astype(jnp.float32),
        attn_in_w=in_proj_w.T.astype(MXU_DTYPE),
        attn_in_b=in_proj_b.reshape(1, -1).astype(jnp.float32),
        attn_out_w=out_proj_w.T.astype(MXU_DTYPE),
        attn_out_b=out_proj_b.reshape(1, -1).astype(jnp.float32),
        dec_w=jnp.asarray(dec_w, MXU_DTYPE),
        dec_b=jnp.asarray(dec_b, jnp.float32),
        fwd_dft=fwd_dft.astype(MXU_DTYPE),
        inv_dft=inv_dft.astype(MXU_DTYPE))


# ----------------------------------------------------------------------------
# Forward pass (everything stays (b, t)-row-major between Pallas calls)
# ----------------------------------------------------------------------------
def overlap_add_normalize(frames, B, T):
    # TODO(synk): 4-way overlap-add fold + window-square normalization stay XLA glue.
    frames = frames.reshape(B, T, N_FFT // HOP, HOP)
    total = N_FFT + HOP * (T - 1)
    acc = jnp.zeros((B, total // HOP, HOP), jnp.float32)
    for j in range(N_FFT // HOP):
        acc = acc.at[:, j:j + T].add(frames[:, :, j, :])
    y = acc.reshape(B, total)
    wsq = np.zeros((total,), np.float64)
    w2 = _HANN.astype(np.float64) ** 2
    for t in range(T):
        wsq[t * HOP:t * HOP + N_FFT] += w2
    start, stop = N_FFT // 2, total - N_FFT // 2
    inv_wsq = jnp.asarray(1.0 / np.maximum(wsq[start:stop], 1e-8), jnp.float32)
    return y[:, start:stop] * inv_wsq[None, :]              # length (T-1)*HOP


def net_helper_forward(x, params, state=None):
    B, L = x.shape
    T = 1 + L // HOP
    n_chunks = T + (N_FFT // HOP) - 1                        # T + 3 hop-sized chunks

    # STFT: reflect pad, chunk by hop, DFT inside the Pallas kernel (no frame gather)
    xp = jnp.pad(x, ((0, 0), (N_FFT // 2, N_FFT // 2)), mode="reflect")
    chunks = xp[:, :n_chunks * HOP].reshape(B, n_chunks, HOP).astype(MXU_DTYPE)
    spec = stft_pallas(chunks, params["fwd_dft"])            # (B, T, 640) bf16
    spec2 = spec.reshape(B * T, SPEC_W)

    # fused encoder (Conv+BN+PReLU) + GRU input projection
    gi = enc_gi_pallas(spec2, params)                        # (B*T, 432) f32

    # GRU recurrence (chunked over time, bf16 W_hh on the MXU, f32 gates)
    h0 = (jnp.zeros((B, HID), jnp.float32) if state is None
          else state.reshape(B, HID).astype(jnp.float32))
    y_gru, hn = gru_pallas(gi.reshape(B, T, 3 * HID), params, h0)   # bf16 y, f32 hn
    h1 = hn[None]                                            # (1, B, 144)

    # MHA (head_dim = 1): row-tiled in_proj, per-batch rank-1 attention
    qkv = matmul_bias(y_gru.reshape(B * T, HID), params["attn_in_w"],
                      params["attn_in_b"])                   # (B*T, 432) f32
    o = attn_pallas(qkv.reshape(B, T, 3 * HID))              # (B, T, 144) bf16

    # fused out_proj + ConvTranspose+BN+Tanh + (*X) + inverse DFT -> ISTFT frames
    frames = outdec_istft_pallas(o.reshape(B * T, HID), spec2, params)  # (B*T, 512) f32

    y = overlap_add_normalize(frames, B, T)                  # (B, (T-1)*HOP)
    return y, h1


if __name__ == "__main__":
    key = jax.random.PRNGKey(0)
    pkey, xkey = jax.random.split(key)
    params = init_params(pkey)

    B, L = 2, 896                       # -> T = 1 + L // 128 = 8 frames
    x = jax.random.normal(xkey, (B, L), dtype=jnp.float32)

    fwd = jax.jit(net_helper_forward)
    y, h = fwd(x, params)
    jax.block_until_ready((y, h))

    assert y.shape == (B, L), y.shape
    assert h.shape == (1, B, HID), h.shape
    assert bool(jnp.all(jnp.isfinite(y))) and bool(jnp.all(jnp.isfinite(h)))
    print("KERNEL_OK")
</pallas_src>

<mosaic_0001>
module attributes {stable_mosaic.version = 11 : i64} {
  func.func @_stft_kernel(%arg0: i32, %arg1: memref<1x11x128xbf16, #tpu.memory_space<vmem>>, %arg2: memref<512x640xbf16, #tpu.memory_space<vmem>>, %arg3: memref<1x8x640xbf16, #tpu.memory_space<vmem>>) attributes {dimension_semantics = [#tpu.dimension_semantics<parallel>], iteration_bounds = array<i64: 2>, scalar_prefetch = 0 : i64, scratch_operands = 0 : i64, tpu.core_type = #tpu.core_type<tc>, window_params = [{transform_indices = @transform_0, window_bounds = array<i64: 1, 11, 128>}, {pipeline_mode = #tpu.pipeline_mode<synchronous>, transform_indices = @transform_1, window_bounds = array<i64: 512, 640>}, {transform_indices = @transform_2, window_bounds = array<i64: 1, 8, 640>}]} {
    %c0 = arith.constant 0 : index
    %c0_0 = arith.constant 0 : index
    %c0_1 = arith.constant 0 : index
    %0 = vector.load %arg1[%c0, %c0_0, %c0_1] : memref<1x11x128xbf16, #tpu.memory_space<vmem>>, vector<1x11x128xbf16>
    %1 = vector.shape_cast %0 : vector<1x11x128xbf16> to vector<11x128xbf16>
    %cst = arith.constant 0.000000e+00 : f32
    %2 = vector.broadcast %cst : f32 to vector<8x640xf32>
    %3 = vector.extract_strided_slice %1 {offsets = [0, 0], sizes = [8, 128], strides = [1, 1]} : vector<11x128xbf16> to vector<8x128xbf16>
    %c0_2 = arith.constant 0 : index
    %c0_3 = arith.constant 0 : index
    %4 = vector.load %arg2[%c0_2, %c0_3] : memref<512x640xbf16, #tpu.memory_space<vmem>>, vector<128x640xbf16>
    %cst_4 = arith.constant dense<0.000000e+00> : vector<8x640xf32>
    %5 = tpu.matmul %3, %4, %cst_4 {dimension_numbers = #tpu.dot_dimension_numbers<[1], [0], [0], [1], [0, 0, 1, 1], [], []>} : vector<8x128xbf16>, vector<128x640xbf16>, vector<8x640xf32> -> vector<8x640xf32>
    %6 = arith.addf %2, %5 : vector<8x640xf32>
    %7 = vector.extract_strided_slice %1 {offsets = [1, 0], sizes = [8, 128], strides = [1, 1]} : vector<11x128xbf16> to vector<8x128xbf16>
    %c128 = arith.constant 128 : index
    %c0_5 = arith.constant 0 : index
    %8 = vector.load %arg2[%c128, %c0_5] : memref<512x640xbf16, #tpu.memory_space<vmem>>, vector<128x640xbf16>
    %cst_6 = arith.constant dense<0.000000e+00> : vector<8x640xf32>
    %9 = tpu.matmul %7, %8, %cst_6 {dimension_numbers = #tpu.dot_dimension_numbers<[1], [0], [0], [1], [0, 0, 1, 1], [], []>} : vector<8x128xbf16>, vector<128x640xbf16>, vector<8x640xf32> -> vector<8x640xf32>
    %10 = arith.addf %6, %9 : vector<8x640xf32>
    %11 = vector.extract_strided_slice %1 {offsets = [2, 0], sizes = [8, 128], strides = [1, 1]} : vector<11x128xbf16> to vector<8x128xbf16>
    %c256 = arith.constant 256 : index
    %c0_7 = arith.constant 0 : index
    %12 = vector.load %arg2[%c256, %c0_7] : memref<512x640xbf16, #tpu.memory_space<vmem>>, vector<128x640xbf16>
    %cst_8 = arith.constant dense<0.000000e+00> : vector<8x640xf32>
    %13 = tpu.matmul %11, %12, %cst_8 {dimension_numbers = #tpu.dot_dimension_numbers<[1], [0], [0], [1], [0, 0, 1, 1], [], []>} : vector<8x128xbf16>, vector<128x640xbf16>, vector<8x640xf32> -> vector<8x640xf32>
    %14 = arith.addf %10, %13 : vector<8x640xf32>
    %15 = vector.extract_strided_slice %1 {offsets = [3, 0], sizes = [8, 128], strides = [1, 1]} : vector<11x128xbf16> to vector<8x128xbf16>
    %c384 = arith.constant 384 : index
    %c0_9 = arith.constant 0 : index
    %16 = vector.load %arg2[%c384, %c0_9] : memref<512x640xbf16, #tpu.memory_space<vmem>>, vector<128x640xbf16>
    %cst_10 = arith.constant dense<0.000000e+00> : vector<8x640xf32>
    %17 = tpu.matmul %15, %16, %cst_10 {dimension_numbers = #tpu.dot_dimension_numbers<[1], [0], [0], [1], [0, 0, 1, 1], [], []>} : vector<8x128xbf16>, vector<128x640xbf16>, vector<8x640xf32> -> vector<8x640xf32>
    %18 = arith.addf %14, %17 : vector<8x640xf32>
    %19 = arith.truncf %18 : vector<8x640xf32> to vector<8x640xbf16>
    %c0_11 = arith.constant 0 : index
    %c0_12 = arith.constant 0 : index
    %c0_13 = arith.constant 0 : index
    %20 = vector.load %arg3[%c0_11, %c0_12, %c0_13] : memref<1x8x640xbf16, #tpu.memory_space<vmem>>, vector<1x8x640xbf16>
    %21 = vector.shape_cast %20 : vector<1x8x640xbf16> to vector<8x640xbf16>
    %22 = vector.shape_cast %19 : vector<8x640xbf16> to vector<1x8x640xbf16>
    tpu.vector_store %arg3[%c0_11, %c0_12, %c0_13], %22 {strides = array<i32>} : memref<1x8x640xbf16, #tpu.memory_space<vmem>>, vector<1x8x640xbf16>,
    return
  }
  func.func @transform_0(%arg0: i32) -> (i32, i32, i32) {
    %c0_i32 = arith.constant 0 : i32
    %c0_i32_0 = arith.constant 0 : i32
    %c0_i32_1 = arith.constant 0 : i32
    return %arg0, %c0_i32, %c0_i32_0 : i32, i32, i32
  }
  func.func @transform_1(%arg0: i32) -> (i32, i32) {
    %c0_i32 = arith.constant 0 : i32
    %c0_i32_0 = arith.constant 0 : i32
    %c0_i32_1 = arith.constant 0 : i32
    return %c0_i32, %c0_i32_0 : i32, i32
  }
  func.func @transform_2(%arg0: i32) -> (i32, i32, i32) {
    %c0_i32 = arith.constant 0 : i32
    %c0_i32_0 = arith.constant 0 : i32
    %c0_i32_1 = arith.constant 0 : i32
    return %arg0, %c0_i32, %c0_i32_0 : i32, i32, i32
  }
}

module attributes {stable_mosaic.version = 11 : i64} {
  func.func @_enc_gi_kernel(%arg0: i32, %arg1: memref<16x640xbf16, #tpu.memory_space<vmem>>, %arg2: memref<640x144xbf16, #tpu.memory_space<vmem>>, %arg3: memref<1x144xf32, #tpu.memory_space<vmem>>, %arg4: memref<1xf32, #tpu.memory_space<smem>>, %arg5: memref<144x432xbf16, #tpu.memory_space<vmem>>, %arg6: memref<1x432xf32, #tpu.memory_space<vmem>>, %arg7: memref<16x432xf32, #tpu.memory_space<vmem>>) attributes {dimension_semantics = [#tpu.dimension_semantics<parallel>], iteration_bounds = array<i64: 1>, scalar_prefetch = 0 : i64, scratch_operands = 0 : i64, tpu.core_type = #tpu.core_type<tc>, window_params = [{transform_indices = @transform_0, window_bounds = array<i64: 16, 640>}, {pipeline_mode = #tpu.pipeline_mode<synchronous>, transform_indices = @transform_1, window_bounds = array<i64: 640, 144>}, {pipeline_mode = #tpu.pipeline_mode<synchronous>, transform_indices = @transform_2, window_bounds = array<i64: 1, 144>}, {transform_indices = @transform_3, window_bounds = array<i64: 1>}, {pipeline_mode = #tpu.pipeline_mode<synchronous>, transform_indices = @transform_4, window_bounds = array<i64: 144, 432>}, {pipeline_mode = #tpu.pipeline_mode<synchronous>, transform_indices = @transform_5, window_bounds = array<i64: 1, 432>}, {transform_indices = @transform_6, window_bounds = array<i64: 16, 432>}]} {
    %c0 = arith.constant 0 : index
    %c0_0 = arith.constant 0 : index
    %0 = vector.load %arg1[%c0, %c0_0] : memref<16x640xbf16, #tpu.memory_space<vmem>>, vector<16x640xbf16>
    %c0_1 = arith.constant 0 : index
    %c0_2 = arith.constant 0 : index
    %1 = vector.load %arg2[%c0_1, %c0_2] : memref<640x144xbf16, #tpu.memory_space<vmem>>, vector<640x144xbf16>
    %cst = arith.constant dense<0.000000e+00> : vector<16x144xf32>
    %2 = tpu.matmul %0, %1, %cst {dimension_numbers = #tpu.dot_dimension_numbers<[1], [0], [0], [1], [0, 0, 1, 1], [], []>} : vector<16x640xbf16>, vector<640x144xbf16>, vector<16x144xf32> -> vector<16x144xf32>
    %c0_3 = arith.constant 0 : index
    %c0_4 = arith.constant 0 : index
    %3 = vector.load %arg3[%c0_3, %c0_4] : memref<1x144xf32, #tpu.memory_space<vmem>>, vector<1x144xf32>
    %4 = vector.broadcast %3 : vector<1x144xf32> to vector<16x144xf32>
    %5 = arith.addf %2, %4 : vector<16x144xf32>
    %c0_5 = arith.constant 0 : index
    %6 = memref.load %arg4[%c0_5] : memref<1xf32, #tpu.memory_space<smem>>
    %cst_6 = arith.constant 0.000000e+00 : f32
    %7 = vector.broadcast %cst_6 : f32 to vector<16x144xf32>
    %8 = arith.cmpf oge, %5, %7 : vector<16x144xf32>
    %9 = vector.broadcast %6 : f32 to vector<16x144xf32>
    %10 = arith.mulf %9, %5 : vector<16x144xf32>
    %11 = arith.select %8, %5, %10 : vector<16x144xi1>, vector<16x144xf32>
    %12 = arith.truncf %11 : vector<16x144xf32> to vector<16x144xbf16>
    %c0_7 = arith.constant 0 : index
    %c0_8 = arith.constant 0 : index
    %13 = vector.load %arg5[%c0_7, %c0_8] : memref<144x432xbf16, #tpu.memory_space<vmem>>, vector<144x432xbf16>
    %cst_9 = arith.constant dense<0.000000e+00> : vector<16x432xf32>
    %14 = tpu.matmul %12, %13, %cst_9 {dimension_numbers = #tpu.dot_dimension_numbers<[1], [0], [0], [1], [0, 0, 1, 1], [], []>} : vector<16x144xbf16>, vector<144x432xbf16>, vector<16x432xf32> -> vector<16x432xf32>
    %c0_10 = arith.constant 0 : index
    %c0_11 = arith.constant 0 : index
    %15 = vector.load %arg6[%c0_10, %c0_11] : memref<1x432xf32, #tpu.memory_space<vmem>>, vector<1x432xf32>
    %16 = vector.broadcast %15 : vector<1x432xf32> to vector<16x432xf32>
    %17 = arith.addf %14, %16 : vector<16x432xf32>
    %c0_12 = arith.constant 0 : index
    %c0_13 = arith.constant 0 : index
    %18 = vector.load %arg7[%c0_12, %c0_13] : memref<16x432xf32, #tpu.memory_space<vmem>>, vector<16x432xf32>
    tpu.vector_store %arg7[%c0_12, %c0_13], %17 {strides = array<i32>} : memref<16x432xf32, #tpu.memory_space<vmem>>, vector<16x432xf32>,
    return
  }
  func.func @transform_0(%arg0: i32) -> (i32, i32) {
    %c0_i32 = arith.constant 0 : i32
    %c0_i32_0 = arith.constant 0 : i32
    return %arg0, %c0_i32 : i32, i32
  }
  func.func @transform_1(%arg0: i32) -> (i32, i32) {
    %c0_i32 = arith.constant 0 : i32
    %c0_i32_0 = arith.constant 0 : i32
    %c0_i32_1 = arith.constant 0 : i32
    return %c0_i32, %c0_i32_0 : i32, i32
  }
  func.func @transform_2(%arg0: i32) -> (i32, i32) {
    %c0_i32 = arith.constant 0 : i32
    %c0_i32_0 = arith.constant 0 : i32
    %c0_i32_1 = arith.constant 0 : i32
    return %c0_i32, %c0_i32_0 : i32, i32
  }
  func.func @transform_3(%arg0: i32) -> i32 {
    %c0_i32 = arith.constant 0 : i32
    %c0_i32_0 = arith.constant 0 : i32
    return %c0_i32 : i32
  }
  func.func @transform_4(%arg0: i32) -> (i32, i32) {
    %c0_i32 = arith.constant 0 : i32
    %c0_i32_0 = arith.constant 0 : i32
    %c0_i32_1 = arith.constant 0 : i32
    return %c0_i32, %c0_i32_0 : i32, i32
  }
  func.func @transform_5(%arg0: i32) -> (i32, i32) {
    %c0_i32 = arith.constant 0 : i32
    %c0_i32_0 = arith.constant 0 : i32
    %c0_i32_1 = arith.constant 0 : i32
    return %c0_i32, %c0_i32_0 : i32, i32
  }
  func.func @transform_6(%arg0: i32) -> (i32, i32) {
    %c0_i32 = arith.constant 0 : i32
    %c0_i32_0 = arith.constant 0 : i32
    return %arg0, %c0_i32 : i32, i32
  }
}

module attributes {stable_mosaic.version = 11 : i64} {
  func.func @_gru_kernel(%arg0: i32, %arg1: memref<2x8x432xf32, #tpu.memory_space<vmem>>, %arg2: memref<144x432xbf16, #tpu.memory_space<vmem>>, %arg3: memref<1x432xf32, #tpu.memory_space<vmem>>, %arg4: memref<2x144xf32, #tpu.memory_space<vmem>>, %arg5: memref<2x8x144xbf16, #tpu.memory_space<vmem>>, %arg6: memref<2x144xf32, #tpu.memory_space<vmem>>, %arg7: memref<2x144xf32, #tpu.memory_space<vmem>>) attributes {dimension_semantics = [#tpu.dimension_semantics<arbitrary>], iteration_bounds = array<i64: 1>, scalar_prefetch = 0 : i64, scratch_operands = 1 : i64, tpu.core_type = #tpu.core_type<tc>, window_params = [{transform_indices = @transform_0, window_bounds = array<i64: 2, 8, 432>}, {pipeline_mode = #tpu.pipeline_mode<synchronous>, transform_indices = @transform_1, window_bounds = array<i64: 144, 432>}, {pipeline_mode = #tpu.pipeline_mode<synchronous>, transform_indices = @transform_2, window_bounds = array<i64: 1, 432>}, {pipeline_mode = #tpu.pipeline_mode<synchronous>, transform_indices = @transform_3, window_bounds = array<i64: 2, 144>}, {transform_indices = @transform_4, window_bounds = array<i64: 2, 8, 144>}, {pipeline_mode = #tpu.pipeline_mode<synchronous>, transform_indices = @transform_5, window_bounds = array<i64: 2, 144>}]} {
    %c0_i32 = arith.constant 0 : i32
    %0 = arith.cmpi eq, %arg0, %c0_i32 : i32
    %1 = arith.extui %0 : i1 to i32
    %c0_i32_0 = arith.constant 0 : i32
    %2 = arith.cmpi ne, %1, %c0_i32_0 : i32
    scf.if %2 {
      %c0_138 = arith.constant 0 : index
      %c0_139 = arith.constant 0 : index
      %326 = vector.load %arg4[%c0_138, %c0_139] : memref<2x144xf32, #tpu.memory_space<vmem>>, vector<2x144xf32>
      %c0_140 = arith.constant 0 : index
      %c0_141 = arith.constant 0 : index
      %327 = vector.load %arg7[%c0_140, %c0_141] : memref<2x144xf32, #tpu.memory_space<vmem>>, vector<2x144xf32>
      tpu.vector_store %arg7[%c0_140, %c0_141], %326 {strides = array<i32>} : memref<2x144xf32, #tpu.memory_space<vmem>>, vector<2x144xf32>,
    } else {
    }
    %c0 = arith.constant 0 : index
    %c0_1 = arith.constant 0 : index
    %3 = vector.load %arg7[%c0, %c0_1] : memref<2x144xf32, #tpu.memory_space<vmem>>, vector<2x144xf32>
    %c0_2 = arith.constant 0 : index
    %c0_3 = arith.constant 0 : index
    %c0_4 = arith.constant 0 : index
    %4 = vector.load %arg1[%c0_2, %c0_3, %c0_4] : memref<2x8x432xf32, #tpu.memory_space<vmem>>, vector<2x1x432xf32>
    %5 = vector.shape_cast %4 : vector<2x1x432xf32> to vector<2x432xf32>
    %6 = arith.truncf %3 : vector<2x144xf32> to vector<2x144xbf16>
    %c0_5 = arith.constant 0 : index
    %c0_6 = arith.constant 0 : index
    %7 = vector.load %arg2[%c0_5, %c0_6] : memref<144x432xbf16, #tpu.memory_space<vmem>>, vector<144x432xbf16>
    %cst = arith.constant dense<0.000000e+00> : vector<2x432xf32>
    %8 = tpu.matmul %6, %7, %cst {dimension_numbers = #tpu.dot_dimension_numbers<[1], [0], [0], [1], [0, 0, 1, 1], [], []>} : vector<2x144xbf16>, vector<144x432xbf16>, vector<2x432xf32> -> vector<2x432xf32>
    %c0_7 = arith.constant 0 : index
    %c0_8 = arith.constant 0 : index
    %9 = vector.load %arg3[%c0_7, %c0_8] : memref<1x432xf32, #tpu.memory_space<vmem>>, vector<1x432xf32>
    %10 = vector.broadcast %9 : vector<1x432xf32> to vector<2x432xf32>
    %11 = arith.addf %8, %10 : vector<2x432xf32>
    %12 = vector.extract_strided_slice %5 {offsets = [0, 0], sizes = [2, 144], strides = [1, 1]} : vector<2x432xf32> to vector<2x144xf32>
    %13 = vector.extract_strided_slice %11 {offsets = [0, 0], sizes = [2, 144], strides = [1, 1]} : vector<2x432xf32> to vector<2x144xf32>
    %14 = arith.addf %12, %13 : vector<2x144xf32>
    %15 = arith.negf %14 : vector<2x144xf32>
    %16 = math.exp %15 : vector<2x144xf32>
    %cst_9 = arith.constant 1.000000e+00 : f32
    %17 = vector.broadcast %cst_9 : f32 to vector<2x144xf32>
    %18 = arith.addf %17, %16 : vector<2x144xf32>
    %19 = arith.divf %17, %18 : vector<2x144xf32>
    %20 = vector.extract_strided_slice %5 {offsets = [0, 144], sizes = [2, 144], strides = [1, 1]} : vector<2x432xf32> to vector<2x144xf32>
    %21 = vector.extract_strided_slice %11 {offsets = [0, 144], sizes = [2, 144], strides = [1, 1]} : vector<2x432xf32> to vector<2x144xf32>
    %22 = arith.addf %20, %21 : vector<2x144xf32>
    %23 = arith.negf %22 : vector<2x144xf32>
    %24 = math.exp %23 : vector<2x144xf32>
    %cst_10 = arith.constant 1.000000e+00 : f32
    %25 = vector.broadcast %cst_10 : f32 to vector<2x144xf32>
    %26 = arith.addf %25, %24 : vector<2x144xf32>
    %27 = arith.divf %25, %26 : vector<2x144xf32>
    %28 = vector.extract_strided_slice %5 {offsets = [0, 288], sizes = [2, 144], strides = [1, 1]} : vector<2x432xf32> to vector<2x144xf32>
    %29 = vector.extract_strided_slice %11 {offsets = [0, 288], sizes = [2, 144], strides = [1, 1]} : vector<2x432xf32> to vector<2x144xf32>
    %30 = arith.mulf %19, %29 : vector<2x144xf32>
    %31 = arith.addf %28, %30 : vector<2x144xf32>
    %32 = math.tanh %31 : vector<2x144xf32>
    %cst_11 = arith.constant 1.000000e+00 : f32
    %33 = vector.broadcast %cst_11 : f32 to vector<2x144xf32>
    %34 = arith.subf %33, %27 : vector<2x144xf32>
    %35 = arith.mulf %34, %32 : vector<2x144xf32>
    %36 = arith.mulf %27, %3 : vector<2x144xf32>
    %37 = arith.addf %35, %36 : vector<2x144xf32>
    %c0_12 = arith.constant 0 : index
    %c0_13 = arith.constant 0 : index
    %38 = vector.load %arg7[%c0_12, %c0_13] : memref<2x144xf32, #tpu.memory_space<vmem>>, vector<2x144xf32>
    tpu.vector_store %arg7[%c0_12, %c0_13], %37 {strides = array<i32>} : memref<2x144xf32, #tpu.memory_space<vmem>>, vector<2x144xf32>,
    %39 = arith.truncf %37 : vector<2x144xf32> to vector<2x144xbf16>
    %c0_14 = arith.constant 0 : index
    %c0_15 = arith.constant 0 : index
    %c0_16 = arith.constant 0 : index
    %40 = vector.load %arg5[%c0_14, %c0_15, %c0_16] : memref<2x8x144xbf16, #tpu.memory_space<vmem>>, vector<2x1x144xbf16>
    %41 = vector.shape_cast %40 : vector<2x1x144xbf16> to vector<2x144xbf16>
    %42 = vector.shape_cast %39 : vector<2x144xbf16> to vector<2x1x144xbf16>
    tpu.vector_store %arg5[%c0_14, %c0_15, %c0_16], %42 {strides = array<i32>} : memref<2x8x144xbf16, #tpu.memory_space<vmem>>, vector<2x1x144xbf16>,
    %c0_17 = arith.constant 0 : index
    %c0_18 = arith.constant 0 : index
    %43 = vector.load %arg7[%c0_17, %c0_18] : memref<2x144xf32, #tpu.memory_space<vmem>>, vector<2x144xf32>
    %c0_19 = arith.constant 0 : index
    %c1 = arith.constant 1 : index
    %c0_20 = arith.constant 0 : index
    %44 = vector.load %arg1[%c0_19, %c1, %c0_20] : memref<2x8x432xf32, #tpu.memory_space<vmem>>, vector<2x1x432xf32>
    %45 = vector.shape_cast %44 : vector<2x1x432xf32> to vector<2x432xf32>
    %46 = arith.truncf %43 : vector<2x144xf32> to vector<2x144xbf16>
    %c0_21 = arith.constant 0 : index
    %c0_22 = arith.constant 0 : index
    %47 = vector.load %arg2[%c0_21, %c0_22] : memref<144x432xbf16, #tpu.memory_space<vmem>>, vector<144x432xbf16>
    %cst_23 = arith.constant dense<0.000000e+00> : vector<2x432xf32>
    %48 = tpu.matmul %46, %47, %cst_23 {dimension_numbers = #tpu.dot_dimension_numbers<[1], [0], [0], [1], [0, 0, 1, 1], [], []>} : vector<2x144xbf16>, vector<144x432xbf16>, vector<2x432xf32> -> vector<2x432xf32>
    %c0_24 = arith.constant 0 : index
    %c0_25 = arith.constant 0 : index
    %49 = vector.load %arg3[%c0_24, %c0_25] : memref<1x432xf32, #tpu.memory_space<vmem>>, vector<1x432xf32>
    %50 = vector.broadcast %49 : vector<1x432xf32> to vector<2x432xf32>
    %51 = arith.addf %48, %50 : vector<2x432xf32>
    %52 = vector.extract_strided_slice %45 {offsets = [0, 0], sizes = [2, 144], strides = [1, 1]} : vector<2x432xf32> to vector<2x144xf32>
    %53 = vector.extract_strided_slice %51 {offsets = [0, 0], sizes = [2, 144], strides = [1, 1]} : vector<2x432xf32> to vector<2x144xf32>
    %54 = arith.addf %52, %53 : vector<2x144xf32>
    %55 = arith.negf %54 : vector<2x144xf32>
    %56 = math.exp %55 : vector<2x144xf32>
    %cst_26 = arith.constant 1.000000e+00 : f32
    %57 = vector.broadcast %cst_26 : f32 to vector<2x144xf32>
    %58 = arith.addf %57, %56 : vector<2x144xf32>
    %59 = arith.divf %57, %58 : vector<2x144xf32>
    %60 = vector.extract_strided_slice %45 {offsets = [0, 144], sizes = [2, 144], strides = [1, 1]} : vector<2x432xf32> to vector<2x144xf32>
    %61 = vector.extract_strided_slice %51 {offsets = [0, 144], sizes = [2, 144], strides = [1, 1]} : vector<2x432xf32> to vector<2x144xf32>
    %62 = arith.addf %60, %61 : vector<2x144xf32>
    %63 = arith.negf %62 : vector<2x144xf32>
    %64 = math.exp %63 : vector<2x144xf32>
    %cst_27 = arith.constant 1.000000e+00 : f32
    %65 = vector.broadcast %cst_27 : f32 to vector<2x144xf32>
    %66 = arith.addf %65, %64 : vector<2x144xf32>
    %67 = arith.divf %65, %66 : vector<2x144xf32>
    %68 = vector.extract_strided_slice %45 {offsets = [0, 288], sizes = [2, 144], strides = [1, 1]} : vector<2x432xf32> to vector<2x144xf32>
    %69 = vector.extract_strided_slice %51 {offsets = [0, 288], sizes = [2, 144], strides = [1, 1]} : vector<2x432xf32> to vector<2x144xf32>
    %70 = arith.mulf %59, %69 : vector<2x144xf32>
    %71 = arith.addf %68, %70 : vector<2x144xf32>
    %72 = math.tanh %71 : vector<2x144xf32>
    %cst_28 = arith.constant 1.000000e+00 : f32
    %73 = vector.broadcast %cst_28 : f32 to vector<2x144xf32>
    %74 = arith.subf %73, %67 : vector<2x144xf32>
    %75 = arith.mulf %74, %72 : vector<2x144xf32>
    %76 = arith.mulf %67, %43 : vector<2x144xf32>
    %77 = arith.addf %75, %76 : vector<2x144xf32>
    %c0_29 = arith.constant 0 : index
    %c0_30 = arith.constant 0 : index
    %78 = vector.load %arg7[%c0_29, %c0_30] : memref<2x144xf32, #tpu.memory_space<vmem>>, vector<2x144xf32>
    tpu.vector_store %arg7[%c0_29, %c0_30], %77 {strides = array<i32>} : memref<2x144xf32, #tpu.memory_space<vmem>>, vector<2x144xf32>,
    %79 = arith.truncf %77 : vector<2x144xf32> to vector<2x144xbf16>
    %c0_31 = arith.constant 0 : index
    %c1_32 = arith.constant 1 : index
    %c0_33 = arith.constant 0 : index
    %80 = vector.load %arg5[%c0_31, %c1_32, %c0_33] : memref<2x8x144xbf16, #tpu.memory_space<vmem>>, vector<2x1x144xbf16>
    %81 = vector.shape_cast %80 : vector<2x1x144xbf16> to vector<2x144xbf16>
    %82 = vector.shape_cast %79 : vector<2x144xbf16> to vector<2x1x144xbf16>
    tpu.vector_store %arg5[%c0_31, %c1_32, %c0_33], %82 {strides = array<i32>} : memref<2x8x144xbf16, #tpu.memory_space<vmem>>, vector<2x1x144xbf16>,
    %c0_34 = arith.constant 0 : index
    %c0_35 = arith.constant 0 : index
    %83 = vector.load %arg7[%c0_34, %c0_35] : memref<2x144xf32, #tpu.memory_space<vmem>>, vector<2x144xf32>
    %c0_36 = arith.constant 0 : index
    %c2 = arith.constant 2 : index
    %c0_37 = arith.constant 0 : index
    %84 = vector.load %arg1[%c0_36, %c2, %c0_37] : memref<2x8x432xf32, #tpu.memory_space<vmem>>, vector<2x1x432xf32>
    %85 = vector.shape_cast %84 : vector<2x1x432xf32> to vector<2x432xf32>
    %86 = arith.truncf %83 : vector<2x144xf32> to vector<2x144xbf16>
    %c0_38 = arith.constant 0 : index
    %c0_39 = arith.constant 0 : index
    %87 = vector.load %arg2[%c0_38, %c0_39] : memref<144x432xbf16, #tpu.memory_space<vmem>>, vector<144x432xbf16>
    %cst_40 = arith.constant dense<0.000000e+00> : vector<2x432xf32>
    %88 = tpu.matmul %86, %87, %cst_40 {dimension_numbers = #tpu.dot_dimension_numbers<[1], [0], [0], [1], [0, 0, 1, 1], [], []>} : vector<2x144xbf16>, vector<144x432xbf16>, vector<2x432xf32> -> vector<2x432xf32>
    %c0_41 = arith.constant 0 : index
    %c0_42 = arith.constant 0 : index
    %89 = vector.load %arg3[%c0_41, %c0_42] : memref<1x432xf32, #tpu.memory_space<vmem>>, vector<1x432xf32>
    %90 = vector.broadcast %89 : vector<1x432xf32> to vector<2x432xf32>
    %91 = arith.addf %88, %90 : vector<2x432xf32>
    %92 = vector.extract_strided_slice %85 {offsets = [0, 0], sizes = [2, 144], strides = [1, 1]} : vector<2x432xf32> to vector<2x144xf32>
    %93 = vector.extract_strided_slice %91 {offsets = [0, 0], sizes = [2, 144], strides = [1, 1]} : vector<2x432xf32> to vector<2x144xf32>
    %94 = arith.addf %92, %93 : vector<2x144xf32>
    %95 = arith.negf %94 : vector<2x144xf32>
    %96 = math.exp %95 : vector<2x144xf32>
    %cst_43 = arith.constant 1.000000e+00 : f32
    %97 = vector.broadcast %cst_43 : f32 to vector<2x144xf32>
    %98 = arith.addf %97, %96 : vector<2x144xf32>
    %99 = arith.divf %97, %98 : vector<2x144xf32>
    %100 = vector.extract_strided_slice %85 {offsets = [0, 144], sizes = [2, 144], strides = [1, 1]} : vector<2x432xf32> to vector<2x144xf32>
    %101 = vector.extract_strided_slice %91 {offsets = [0, 144], sizes = [2, 144], strides = [1, 1]} : vector<2x432xf32> to vector<2x144xf32>
    %102 = arith.addf %100, %101 : vector<2x144xf32>
    %103 = arith.negf %102 : vector<2x144xf32>
    %104 = math.exp %103 : vector<2x144xf32>
    %cst_44 = arith.constant 1.000000e+00 : f32
    %105 = vector.broadcast %cst_44 : f32 to vector<2x144xf32>
    %106 = arith.addf %105, %104 : vector<2x144xf32>
    %107 = arith.divf %105, %106 : vector<2x144xf32>
    %108 = vector.extract_strided_slice %85 {offsets = [0, 288], sizes = [2, 144], strides = [1, 1]} : vector<2x432xf32> to vector<2x144xf32>
    %109 = vector.extract_strided_slice %91 {offsets = [0, 288], sizes = [2, 144], strides = [1, 1]} : vector<2x432xf32> to vector<2x144xf32>
    %110 = arith.mulf %99, %109 : vector<2x144xf32>
    %111 = arith.addf %108, %110 : vector<2x144xf32>
    %112 = math.tanh %111 : vector<2x144xf32>
    %cst_45 = arith.constant 1.000000e+00 : f32
    %113 = vector.broadcast %cst_45 : f32 to vector<2x144xf32>
    %114 = arith.subf %113, %107 : vector<2x144xf32>
    %115 = arith.mulf %114, %112 : vector<2x144xf32>
    %116 = arith.mulf %107, %83 : vector<2x144xf32>
    %117 = arith.addf %115, %116 : vector<2x144xf32>
    %c0_46 = arith.constant 0 : index
    %c0_47 = arith.constant 0 : index
    %118 = vector.load %arg7[%c0_46, %c0_47] : memref<2x144xf32, #tpu.memory_space<vmem>>, vector<2x144xf32>
    tpu.vector_store %arg7[%c0_46, %c0_47], %117 {strides = array<i32>} : memref<2x144xf32, #tpu.memory_space<vmem>>, vector<2x144xf32>,
    %119 = arith.truncf %117 : vector<2x144xf32> to vector<2x144xbf16>
    %c0_48 = arith.constant 0 : index
    %c2_49 = arith.constant 2 : index
    %c0_50 = arith.constant 0 : index
    %120 = vector.load %arg5[%c0_48, %c2_49, %c0_50] : memref<2x8x144xbf16, #tpu.memory_space<vmem>>, vector<2x1x144xbf16>
    %121 = vector.shape_cast %120 : vector<2x1x144xbf16> to vector<2x144xbf16>
    %122 = vector.shape_cast %119 : vector<2x144xbf16> to vector<2x1x144xbf16>
    tpu.vector_store %arg5[%c0_48, %c2_49, %c0_50], %122 {strides = array<i32>} : memref<2x8x144xbf16, #tpu.memory_space<vmem>>, vector<2x1x144xbf16>,
    %c0_51 = arith.constant 0 : index
    %c0_52 = arith.constant 0 : index
    %123 = vector.load %arg7[%c0_51, %c0_52] : memref<2x144xf32, #tpu.memory_space<vmem>>, vector<2x144xf32>
    %c0_53 = arith.constant 0 : index
    %c3 = arith.constant 3 : index
    %c0_54 = arith.constant 0 : index
    %124 = vector.load %arg1[%c0_53, %c3, %c0_54] : memref<2x8x432xf32, #tpu.memory_space<vmem>>, vector<2x1x432xf32>
    %125 = vector.shape_cast %124 : vector<2x1x432xf32> to vector<2x432xf32>
    %126 = arith.truncf %123 : vector<2x144xf32> to vector<2x144xbf16>
    %c0_55 = arith.constant 0 : index
    %c0_56 = arith.constant 0 : index
    %127 = vector.load %arg2[%c0_55, %c0_56] : memref<144x432xbf16, #tpu.memory_space<vmem>>, vector<144x432xbf16>
    %cst_57 = arith.constant dense<0.000000e+00> : vector<2x432xf32>
    %128 = tpu.matmul %126, %127, %cst_57 {dimension_numbers = #tpu.dot_dimension_numbers<[1], [0], [0], [1], [0, 0, 1, 1], [], []>} : vector<2x144xbf16>, vector<144x432xbf16>, vector<2x432xf32> -> vector<2x432xf32>
    %c0_58 = arith.constant 0 : index
    %c0_59 = arith.constant 0 : index
    %129 = vector.load %arg3[%c0_58, %c0_59] : memref<1x432xf32, #tpu.memory_space<vmem>>, vector<1x432xf32>
    %130 = vector.broadcast %129 : vector<1x432xf32> to vector<2x432xf32>
    %131 = arith.addf %128, %130 : vector<2x432xf32>
    %132 = vector.extract_strided_slice %125 {offsets = [0, 0], sizes = [2, 144], strides = [1, 1]} : vector<2x432xf32> to vector<2x144xf32>
    %133 = vector.extract_strided_slice %131 {offsets = [0, 0], sizes = [2, 144], strides = [1, 1]} : vector<2x432xf32> to vector<2x144xf32>
    %134 = arith.addf %132, %133 : vector<2x144xf32>
    %135 = arith.negf %134 : vector<2x144xf32>
    %136 = math.exp %135 : vector<2x144xf32>
    %cst_60 = arith.constant 1.000000e+00 : f32
    %137 = vector.broadcast %cst_60 : f32 to vector<2x144xf32>
    %138 = arith.addf %137, %136 : vector<2x144xf32>
    %139 = arith.divf %137, %138 : vector<2x144xf32>
    %140 = vector.extract_strided_slice %125 {offsets = [0, 144], sizes = [2, 144], strides = [1, 1]} : vector<2x432xf32> to vector<2x144xf32>
    %141 = vector.extract_strided_slice %131 {offsets = [0, 144], sizes = [2, 144], strides = [1, 1]} : vector<2x432xf32> to vector<2x144xf32>
    %142 = arith.addf %140, %141 : vector<2x144xf32>
    %143 = arith.negf %142 : vector<2x144xf32>
    %144 = math.exp %143 : vector<2x144xf32>
    %cst_61 = arith.constant 1.000000e+00 : f32
    %145 = vector.broadcast %cst_61 : f32 to vector<2x144xf32>
    %146 = arith.addf %145, %144 : vector<2x144xf32>
    %147 = arith.divf %145, %146 : vector<2x144xf32>
    %148 = vector.extract_strided_slice %125 {offsets = [0, 288], sizes = [2, 144], strides = [1, 1]} : vector<2x432xf32> to vector<2x144xf32>
    %149 = vector.extract_strided_slice %131 {offsets = [0, 288], sizes = [2, 144], strides = [1, 1]} : vector<2x432xf32> to vector<2x144xf32>
    %150 = arith.mulf %139, %149 : vector<2x144xf32>
    %151 = arith.addf %148, %150 : vector<2x144xf32>
    %152 = math.tanh %151 : vector<2x144xf32>
    %cst_62 = arith.constant 1.000000e+00 : f32
    %153 = vector.broadcast %cst_62 : f32 to vector<2x144xf32>
    %154 = arith.subf %153, %147 : vector<2x144xf32>
    %155 = arith.mulf %154, %152 : vector<2x144xf32>
    %156 = arith.mulf %147, %123 : vector<2x144xf32>
    %157 = arith.addf %155, %156 : vector<2x144xf32>
    %c0_63 = arith.constant 0 : index
    %c0_64 = arith.constant 0 : index
    %158 = vector.load %arg7[%c0_63, %c0_64] : memref<2x144xf32, #tpu.memory_space<vmem>>, vector<2x144xf32>
    tpu.vector_store %arg7[%c0_63, %c0_64], %157 {strides = array<i32>} : memref<2x144xf32, #tpu.memory_space<vmem>>, vector<2x144xf32>,
    %159 = arith.truncf %157 : vector<2x144xf32> to vector<2x144xbf16>
    %c0_65 = arith.constant 0 : index
    %c3_66 = arith.constant 3 : index
    %c0_67 = arith.constant 0 : index
    %160 = vector.load %arg5[%c0_65, %c3_66, %c0_67] : memref<2x8x144xbf16, #tpu.memory_space<vmem>>, vector<2x1x144xbf16>
    %161 = vector.shape_cast %160 : vector<2x1x144xbf16> to vector<2x144xbf16>
    %162 = vector.shape_cast %159 : vector<2x144xbf16> to vector<2x1x144xbf16>
    tpu.vector_store %arg5[%c0_65, %c3_66, %c0_67], %162 {strides = array<i32>} : memref<2x8x144xbf16, #tpu.memory_space<vmem>>, vector<2x1x144xbf16>,
    %c0_68 = arith.constant 0 : index
    %c0_69 = arith.constant 0 : index
    %163 = vector.load %arg7[%c0_68, %c0_69] : memref<2x144xf32, #tpu.memory_space<vmem>>, vector<2x144xf32>
    %c0_70 = arith.constant 0 : index
    %c4 = arith.constant 4 : index
    %c0_71 = arith.constant 0 : index
    %164 = vector.load %arg1[%c0_70, %c4, %c0_71] : memref<2x8x432xf32, #tpu.memory_space<vmem>>, vector<2x1x432xf32>
    %165 = vector.shape_cast %164 : vector<2x1x432xf32> to vector<2x432xf32>
    %166 = arith.truncf %163 : vector<2x144xf32> to vector<2x144xbf16>
    %c0_72 = arith.constant 0 : index
    %c0_73 = arith.constant 0 : index
    %167 = vector.load %arg2[%c0_72, %c0_73] : memref<144x432xbf16, #tpu.memory_space<vmem>>, vector<144x432xbf16>
    %cst_74 = arith.constant dense<0.000000e+00> : vector<2x432xf32>
    %168 = tpu.matmul %166, %167, %cst_74 {dimension_numbers = #tpu.dot_dimension_numbers<[1], [0], [0], [1], [0, 0, 1, 1], [], []>} : vector<2x144xbf16>, vector<144x432xbf16>, vector<2x432xf32> -> vector<2x432xf32>
    %c0_75 = arith.constant 0 : index
    %c0_76 = arith.constant 0 : index
    %169 = vector.load %arg3[%c0_75, %c0_76] : memref<1x432xf32, #tpu.memory_space<vmem>>, vector<1x432xf32>
    %170 = vector.broadcast %169 : vector<1x432xf32> to vector<2x432xf32>
    %171 = arith.addf %168, %170 : vector<2x432xf32>
    %172 = vector.extract_strided_slice %165 {offsets = [0, 0], sizes = [2, 144], strides = [1, 1]} : vector<2x432xf32> to vector<2x144xf32>
    %173 = vector.extract_strided_slice %171 {offsets = [0, 0], sizes = [2, 144], strides = [1, 1]} : vector<2x432xf32> to vector<2x144xf32>
    %174 = arith.addf %172, %173 : vector<2x144xf32>
    %175 = arith.negf %174 : vector<2x144xf32>
    %176 = math.exp %175 : vector<2x144xf32>
    %cst_77 = arith.constant 1.000000e+00 : f32
    %177 = vector.broadcast %cst_77 : f32 to vector<2x144xf32>
    %178 = arith.addf %177, %176 : vector<2x144xf32>
    %179 = arith.divf %177, %178 : vector<2x144xf32>
    %180 = vector.extract_strided_slice %165 {offsets = [0, 144], sizes = [2, 144], strides = [1, 1]} : vector<2x432xf32> to vector<2x144xf32>
    %181 = vector.extract_strided_slice %171 {offsets = [0, 144], sizes = [2, 144], strides = [1, 1]} : vector<2x432xf32> to vector<2x144xf32>
    %182 = arith.addf %180, %181 : vector<2x144xf32>
    %183 = arith.negf %182 : vector<2x144xf32>
    %184 = math.exp %183 : vector<2x144xf32>
    %cst_78 = arith.constant 1.000000e+00 : f32
    %185 = vector.broadcast %cst_78 : f32 to vector<2x144xf32>
    %186 = arith.addf %185, %184 : vector<2x144xf32>
    %187 = arith.divf %185, %186 : vector<2x144xf32>
    %188 = vector.extract_strided_slice %165 {offsets = [0, 288], sizes = [2, 144], strides = [1, 1]} : vector<2x432xf32> to vector<2x144xf32>
    %189 = vector.extract_strided_slice %171 {offsets = [0, 288], sizes = [2, 144], strides = [1, 1]} : vector<2x432xf32> to vector<2x144xf32>
    %190 = arith.mulf %179, %189 : vector<2x144xf32>
    %191 = arith.addf %188, %190 : vector<2x144xf32>
    %192 = math.tanh %191 : vector<2x144xf32>
    %cst_79 = arith.constant 1.000000e+00 : f32
    %193 = vector.broadcast %cst_79 : f32 to vector<2x144xf32>
    %194 = arith.subf %193, %187 : vector<2x144xf32>
    %195 = arith.mulf %194, %192 : vector<2x144xf32>
    %196 = arith.mulf %187, %163 : vector<2x144xf32>
    %197 = arith.addf %195, %196 : vector<2x144xf32>
    %c0_80 = arith.constant 0 : index
    %c0_81 = arith.constant 0 : index
    %198 = vector.load %arg7[%c0_80, %c0_81] : memref<2x144xf32, #tpu.memory_space<vmem>>, vector<2x144xf32>
    tpu.vector_store %arg7[%c0_80, %c0_81], %197 {strides = array<i32>} : memref<2x144xf32, #tpu.memory_space<vmem>>, vector<2x144xf32>,
    %199 = arith.truncf %197 : vector<2x144xf32> to vector<2x144xbf16>
    %c0_82 = arith.constant 0 : index
    %c4_83 = arith.constant 4 : index
    %c0_84 = arith.constant 0 : index
    %200 = vector.load %arg5[%c0_82, %c4_83, %c0_84] : memref<2x8x144xbf16, #tpu.memory_space<vmem>>, vector<2x1x144xbf16>
    %201 = vector.shape_cast %200 : vector<2x1x144xbf16> to vector<2x144xbf16>
    %202 = vector.shape_cast %199 : vector<2x144xbf16> to vector<2x1x144xbf16>
    tpu.vector_store %arg5[%c0_82, %c4_83, %c0_84], %202 {strides = array<i32>} : memref<2x8x144xbf16, #tpu.memory_space<vmem>>, vector<2x1x144xbf16>,
    %c0_85 = arith.constant 0 : index
    %c0_86 = arith.constant 0 : index
    %203 = vector.load %arg7[%c0_85, %c0_86] : memref<2x144xf32, #tpu.memory_space<vmem>>, vector<2x144xf32>
    %c0_87 = arith.constant 0 : index
    %c5 = arith.constant 5 : index
    %c0_88 = arith.constant 0 : index
    %204 = vector.load %arg1[%c0_87, %c5, %c0_88] : memref<2x8x432xf32, #tpu.memory_space<vmem>>, vector<2x1x432xf32>
    %205 = vector.shape_cast %204 : vector<2x1x432xf32> to vector<2x432xf32>
    %206 = arith.truncf %203 : vector<2x144xf32> to vector<2x144xbf16>
    %c0_89 = arith.constant 0 : index
    %c0_90 = arith.constant 0 : index
    %207 = vector.load %arg2[%c0_89, %c0_90] : memref<144x432xbf16, #tpu.memory_space<vmem>>, vector<144x432xbf16>
    %cst_91 = arith.constant dense<0.000000e+00> : vector<2x432xf32>
    %208 = tpu.matmul %206, %207, %cst_91 {dimension_numbers = #tpu.dot_dimension_numbers<[1], [0], [0], [1], [0, 0, 1, 1], [], []>} : vector<2x144xbf16>, vector<144x432xbf16>, vector<2x432xf32> -> vector<2x432xf32>
    %c0_92 = arith.constant 0 : index
    %c0_93 = arith.constant 0 : index
    %209 = vector.load %arg3[%c0_92, %c0_93] : memref<1x432xf32, #tpu.memory_space<vmem>>, vector<1x432xf32>
    %210 = vector.broadcast %209 : vector<1x432xf32> to vector<2x432xf32>
    %211 = arith.addf %208, %210 : vector<2x432xf32>
    %212 = vector.extract_strided_slice %205 {offsets = [0, 0], sizes = [2, 144], strides = [1, 1]} : vector<2x432xf32> to vector<2x144xf32>
    %213 = vector.extract_strided_slice %211 {offsets = [0, 0], sizes = [2, 144], strides = [1, 1]} : vector<2x432xf32> to vector<2x144xf32>
    %214 = arith.addf %212, %213 : vector<2x144xf32>
    %215 = arith.negf %214 : vector<2x144xf32>
    %216 = math.exp %215 : vector<2x144xf32>
    %cst_94 = arith.constant 1.000000e+00 : f32
    %217 = vector.broadcast %cst_94 : f32 to vector<2x144xf32>
    %218 = arith.addf %217, %216 : vector<2x144xf32>
    %219 = arith.divf %217, %218 : vector<2x144xf32>
    %220 = vector.extract_strided_slice %205 {offsets = [0, 144], sizes = [2, 144], strides = [1, 1]} : vector<2x432xf32> to vector<2x144xf32>
    %221 = vector.extract_strided_slice %211 {offsets = [0, 144], sizes = [2, 144], strides = [1, 1]} : vector<2x432xf32> to vector<2x144xf32>
    %222 = arith.addf %220, %221 : vector<2x144xf32>
    %223 = arith.negf %222 : vector<2x144xf32>
    %224 = math.exp %223 : vector<2x144xf32>
    %cst_95 = arith.constant 1.000000e+00 : f32
    %225 = vector.broadcast %cst_95 : f32 to vector<2x144xf32>
    %226 = arith.addf %225, %224 : vector<2x144xf32>
    %227 = arith.divf %225, %226 : vector<2x144xf32>
    %228 = vector.extract_strided_slice %205 {offsets = [0, 288], sizes = [2, 144], strides = [1, 1]} : vector<2x432xf32> to vector<2x144xf32>
    %229 = vector.extract_strided_slice %211 {offsets = [0, 288], sizes = [2, 144], strides = [1, 1]} : vector<2x432xf32> to vector<2x144xf32>
    %230 = arith.mulf %219, %229 : vector<2x144xf32>
    %231 = arith.addf %228, %230 : vector<2x144xf32>
    %232 = math.tanh %231 : vector<2x144xf32>
    %cst_96 = arith.constant 1.000000e+00 : f32
    %233 = vector.broadcast %cst_96 : f32 to vector<2x144xf32>
    %234 = arith.subf %233, %227 : vector<2x144xf32>
    %235 = arith.mulf %234, %232 : vector<2x144xf32>
    %236 = arith.mulf %227, %203 : vector<2x144xf32>
    %237 = arith.addf %235, %236 : vector<2x144xf32>
    %c0_97 = arith.constant 0 : index
    %c0_98 = arith.constant 0 : index
    %238 = vector.load %arg7[%c0_97, %c0_98] : memref<2x144xf32, #tpu.memory_space<vmem>>, vector<2x144xf32>
    tpu.vector_store %arg7[%c0_97, %c0_98], %237 {strides = array<i32>} : memref<2x144xf32, #tpu.memory_space<vmem>>, vector<2x144xf32>,
    %239 = arith.truncf %237 : vector<2x144xf32> to vector<2x144xbf16>
    %c0_99 = arith.constant 0 : index
    %c5_100 = arith.constant 5 : index
    %c0_101 = arith.constant 0 : index
    %240 = vector.load %arg5[%c0_99, %c5_100, %c0_101] : memref<2x8x144xbf16, #tpu.memory_space<vmem>>, vector<2x1x144xbf16>
    %241 = vector.shape_cast %240 : vector<2x1x144xbf16> to vector<2x144xbf16>
    %242 = vector.shape_cast %239 : vector<2x144xbf16> to vector<2x1x144xbf16>
    tpu.vector_store %arg5[%c0_99, %c5_100, %c0_101], %242 {strides = array<i32>} : memref<2x8x144xbf16, #tpu.memory_space<vmem>>, vector<2x1x144xbf16>,
    %c0_102 = arith.constant 0 : index
    %c0_103 = arith.constant 0 : index
    %243 = vector.load %arg7[%c0_102, %c0_103] : memref<2x144xf32, #tpu.memory_space<vmem>>, vector<2x144xf32>
    %c0_104 = arith.constant 0 : index
    %c6 = arith.constant 6 : index
    %c0_105 = arith.constant 0 : index
    %244 = vector.load %arg1[%c0_104, %c6, %c0_105] : memref<2x8x432xf32, #tpu.memory_space<vmem>>, vector<2x1x432xf32>
    %245 = vector.shape_cast %244 : vector<2x1x432xf32> to vector<2x432xf32>
    %246 = arith.truncf %243 : vector<2x144xf32> to vector<2x144xbf16>
    %c0_106 = arith.constant 0 : index
    %c0_107 = arith.constant 0 : index
    %247 = vector.load %arg2[%c0_106, %c0_107] : memref<144x432xbf16, #tpu.memory_space<vmem>>, vector<144x432xbf16>
    %cst_108 = arith.constant dense<0.000000e+00> : vector<2x432xf32>
    %248 = tpu.matmul %246, %247, %cst_108 {dimension_numbers = #tpu.dot_dimension_numbers<[1], [0], [0], [1], [0, 0, 1, 1], [], []>} : vector<2x144xbf16>, vector<144x432xbf16>, vector<2x432xf32> -> vector<2x432xf32>
    %c0_109 = arith.constant 0 : index
    %c0_110 = arith.constant 0 : index
    %249 = vector.load %arg3[%c0_109, %c0_110] : memref<1x432xf32, #tpu.memory_space<vmem>>, vector<1x432xf32>
    %250 = vector.broadcast %249 : vector<1x432xf32> to vector<2x432xf32>
    %251 = arith.addf %248, %250 : vector<2x432xf32>
    %252 = vector.extract_strided_slice %245 {offsets = [0, 0], sizes = [2, 144], strides = [1, 1]} : vector<2x432xf32> to vector<2x144xf32>
    %253 = vector.extract_strided_slice %251 {offsets = [0, 0], sizes = [2, 144], strides = [1, 1]} : vector<2x432xf32> to vector<2x144xf32>
    %254 = arith.addf %252, %253 : vector<2x144xf32>
    %255 = arith.negf %254 : vector<2x144xf32>
    %256 = math.exp %255 : vector<2x144xf32>
    %cst_111 = arith.constant 1.000000e+00 : f32
    %257 = vector.broadcast %cst_111 : f32 to vector<2x144xf32>
    %258 = arith.addf %257, %256 : vector<2x144xf32>
    %259 = arith.divf %257, %258 : vector<2x144xf32>
    %260 = vector.extract_strided_slice %245 {offsets = [0, 144], sizes = [2, 144], strides = [1, 1]} : vector<2x432xf32> to vector<2x144xf32>
    %261 = vector.extract_strided_slice %251 {offsets = [0, 144], sizes = [2, 144], strides = [1, 1]} : vector<2x432xf32> to vector<2x144xf32>
    %262 = arith.addf %260, %261 : vector<2x144xf32>
    %263 = arith.negf %262 : vector<2x144xf32>
    %264 = math.exp %263 : vector<2x144xf32>
    %cst_112 = arith.constant 1.000000e+00 : f32
    %265 = vector.broadcast %cst_112 : f32 to vector<2x144xf32>
    %266 = arith.addf %265, %264 : vector<2x144xf32>
    %267 = arith.divf %265, %266 : vector<2x144xf32>
    %268 = vector.extract_strided_slice %245 {offsets = [0, 288], sizes = [2, 144], strides = [1, 1]} : vector<2x432xf32> to vector<2x144xf32>
    %269 = vector.extract_strided_slice %251 {offsets = [0, 288], sizes = [2, 144], strides = [1, 1]} : vector<2x432xf32> to vector<2x144xf32>
    %270 = arith.mulf %259, %269 : vector<2x144xf32>
    %271 = arith.addf %268, %270 : vector<2x144xf32>
    %272 = math.tanh %271 : vector<2x144xf32>
    %cst_113 = arith.constant 1.000000e+00 : f32
    %273 = vector.broadcast %cst_113 : f32 to vector<2x144xf32>
    %274 = arith.subf %273, %267 : vector<2x144xf32>
    %275 = arith.mulf %274, %272 : vector<2x144xf32>
    %276 = arith.mulf %267, %243 : vector<2x144xf32>
    %277 = arith.addf %275, %276 : vector<2x144xf32>
    %c0_114 = arith.constant 0 : index
    %c0_115 = arith.constant 0 : index
    %278 = vector.load %arg7[%c0_114, %c0_115] : memref<2x144xf32, #tpu.memory_space<vmem>>, vector<2x144xf32>
    tpu.vector_store %arg7[%c0_114, %c0_115], %277 {strides = array<i32>} : memref<2x144xf32, #tpu.memory_space<vmem>>, vector<2x144xf32>,
    %279 = arith.truncf %277 : vector<2x144xf32> to vector<2x144xbf16>
    %c0_116 = arith.constant 0 : index
    %c6_117 = arith.constant 6 : index
    %c0_118 = arith.constant 0 : index
    %280 = vector.load %arg5[%c0_116, %c6_117, %c0_118] : memref<2x8x144xbf16, #tpu.memory_space<vmem>>, vector<2x1x144xbf16>
    %281 = vector.shape_cast %280 : vector<2x1x144xbf16> to vector<2x144xbf16>
    %282 = vector.shape_cast %279 : vector<2x144xbf16> to vector<2x1x144xbf16>
    tpu.vector_store %arg5[%c0_116, %c6_117, %c0_118], %282 {strides = array<i32>} : memref<2x8x144xbf16, #tpu.memory_space<vmem>>, vector<2x1x144xbf16>,
    %c0_119 = arith.constant 0 : index
    %c0_120 = arith.constant 0 : index
    %283 = vector.load %arg7[%c0_119, %c0_120] : memref<2x144xf32, #tpu.memory_space<vmem>>, vector<2x144xf32>
    %c0_121 = arith.constant 0 : index
    %c7 = arith.constant 7 : index
    %c0_122 = arith.constant 0 : index
    %284 = vector.load %arg1[%c0_121, %c7, %c0_122] : memref<2x8x432xf32, #tpu.memory_space<vmem>>, vector<2x1x432xf32>
    %285 = vector.shape_cast %284 : vector<2x1x432xf32> to vector<2x432xf32>
    %286 = arith.truncf %283 : vector<2x144xf32> to vector<2x144xbf16>
    %c0_123 = arith.constant 0 : index
    %c0_124 = arith.constant 0 : index
    %287 = vector.load %arg2[%c0_123, %c0_124] : memref<144x432xbf16, #tpu.memory_space<vmem>>, vector<144x432xbf16>
    %cst_125 = arith.constant dense<0.000000e+00> : vector<2x432xf32>
    %288 = tpu.matmul %286, %287, %cst_125 {dimension_numbers = #tpu.dot_dimension_numbers<[1], [0], [0], [1], [0, 0, 1, 1], [], []>} : vector<2x144xbf16>, vector<144x432xbf16>, vector<2x432xf32> -> vector<2x432xf32>
    %c0_126 = arith.constant 0 : index
    %c0_127 = arith.constant 0 : index
    %289 = vector.load %arg3[%c0_126, %c0_127] : memref<1x432xf32, #tpu.memory_space<vmem>>, vector<1x432xf32>
    %290 = vector.broadcast %289 : vector<1x432xf32> to vector<2x432xf32>
    %291 = arith.addf %288, %290 : vector<2x432xf32>
    %292 = vector.extract_strided_slice %285 {offsets = [0, 0], sizes = [2, 144], strides = [1, 1]} : vector<2x432xf32> to vector<2x144xf32>
    %293 = vector.extract_strided_slice %291 {offsets = [0, 0], sizes = [2, 144], strides = [1, 1]} : vector<2x432xf32> to vector<2x144xf32>
    %294 = arith.addf %292, %293 : vector<2x144xf32>
    %295 = arith.negf %294 : vector<2x144xf32>
    %296 = math.exp %295 : vector<2x144xf32>
    %cst_128 = arith.constant 1.000000e+00 : f32
    %297 = vector.broadcast %cst_128 : f32 to vector<2x144xf32>
    %298 = arith.addf %297, %296 : vector<2x144xf32>
    %299 = arith.divf %297, %298 : vector<2x144xf32>
    %300 = vector.extract_strided_slice %285 {offsets = [0, 144], sizes = [2, 144], strides = [1, 1]} : vector<2x432xf32> to vector<2x144xf32>
    %301 = vector.extract_strided_slice %291 {offsets = [0, 144], sizes = [2, 144], strides = [1, 1]} : vector<2x432xf32> to vector<2x144xf32>
    %302 = arith.addf %300, %301 : vector<2x144xf32>
    %303 = arith.negf %302 : vector<2x144xf32>
    %304 = math.exp %303 : vector<2x144xf32>
    %cst_129 = arith.constant 1.000000e+00 : f32
    %305 = vector.broadcast %cst_129 : f32 to vector<2x144xf32>
    %306 = arith.addf %305, %304 : vector<2x144xf32>
    %307 = arith.divf %305, %306 : vector<2x144xf32>
    %308 = vector.extract_strided_slice %285 {offsets = [0, 288], sizes = [2, 144], strides = [1, 1]} : vector<2x432xf32> to vector<2x144xf32>
    %309 = vector.extract_strided_slice %291 {offsets = [0, 288], sizes = [2, 144], strides = [1, 1]} : vector<2x432xf32> to vector<2x144xf32>
    %310 = arith.mulf %299, %309 : vector<2x144xf32>
    %311 = arith.addf %308, %310 : vector<2x144xf32>
    %312 = math.tanh %311 : vector<2x144xf32>
    %cst_130 = arith.constant 1.000000e+00 : f32
    %313 = vector.broadcast %cst_130 : f32 to vector<2x144xf32>
    %314 = arith.subf %313, %307 : vector<2x144xf32>
    %315 = arith.mulf %314, %312 : vector<2x144xf32>
    %316 = arith.mulf %307, %283 : vector<2x144xf32>
    %317 = arith.addf %315, %316 : vector<2x144xf32>
    %c0_131 = arith.constant 0 : index
    %c0_132 = arith.constant 0 : index
    %318 = vector.load %arg7[%c0_131, %c0_132] : memref<2x144xf32, #tpu.memory_space<vmem>>, vector<2x144xf32>
    tpu.vector_store %arg7[%c0_131, %c0_132], %317 {strides = array<i32>} : memref<2x144xf32, #tpu.memory_space<vmem>>, vector<2x144xf32>,
    %319 = arith.truncf %317 : vector<2x144xf32> to vector<2x144xbf16>
    %c0_133 = arith.constant 0 : index
    %c7_134 = arith.constant 7 : index
    %c0_135 = arith.constant 0 : index
    %320 = vector.load %arg5[%c0_133, %c7_134, %c0_135] : memref<2x8x144xbf16, #tpu.memory_space<vmem>>, vector<2x1x144xbf16>
    %321 = vector.shape_cast %320 : vector<2x1x144xbf16> to vector<2x144xbf16>
    %322 = vector.shape_cast %319 : vector<2x144xbf16> to vector<2x1x144xbf16>
    tpu.vector_store %arg5[%c0_133, %c7_134, %c0_135], %322 {strides = array<i32>} : memref<2x8x144xbf16, #tpu.memory_space<vmem>>, vector<2x1x144xbf16>,
    %c0_i32_136 = arith.constant 0 : i32
    %323 = arith.cmpi eq, %arg0, %c0_i32_136 : i32
    %324 = arith.extui %323 : i1 to i32
    %c0_i32_137 = arith.constant 0 : i32
    %325 = arith.cmpi ne, %324, %c0_i32_137 : i32
    scf.if %325 {
      %c0_138 = arith.constant 0 : index
      %c0_139 = arith.constant 0 : index
      %326 = vector.load %arg7[%c0_138, %c0_139] : memref<2x144xf32, #tpu.memory_space<vmem>>, vector<2x144xf32>
      %c0_140 = arith.constant 0 : index
      %c0_141 = arith.constant 0 : index
      %327 = vector.load %arg6[%c0_140, %c0_141] : memref<2x144xf32, #tpu.memory_space<vmem>>, vector<2x144xf32>
      tpu.vector_store %arg6[%c0_140, %c0_141], %326 {strides = array<i32>} : memref<2x144xf32, #tpu.memory_space<vmem>>, vector<2x144xf32>,
    } else {
    }
    return
  }
  func.func @transform_0(%arg0: i32) -> (i32, i32, i32) {
    %c0_i32 = arith.constant 0 : i32
    %c0_i32_0 = arith.constant 0 : i32
    %c0_i32_1 = arith.constant 0 : i32
    return %c0_i32, %arg0, %c0_i32_0 : i32, i32, i32
  }
  func.func @transform_1(%arg0: i32) -> (i32, i32) {
    %c0_i32 = arith.constant 0 : i32
    %c0_i32_0 = arith.constant 0 : i32
    %c0_i32_1 = arith.constant 0 : i32
    return %c0_i32, %c0_i32_0 : i32, i32
  }
  func.func @transform_2(%arg0: i32) -> (i32, i32) {
    %c0_i32 = arith.constant 0 : i32
    %c0_i32_0 = arith.constant 0 : i32
    %c0_i32_1 = arith.constant 0 : i32
    return %c0_i32, %c0_i32_0 : i32, i32
  }
  func.func @transform_3(%arg0: i32) -> (i32, i32) {
    %c0_i32 = arith.constant 0 : i32
    %c0_i32_0 = arith.constant 0 : i32
    %c0_i32_1 = arith.constant 0 : i32
    return %c0_i32, %c0_i32_0 : i32, i32
  }
  func.func @transform_4(%arg0: i32) -> (i32, i32, i32) {
    %c0_i32 = arith.constant 0 : i32
    %c0_i32_0 = arith.constant 0 : i32
    %c0_i32_1 = arith.constant 0 : i32
    return %c0_i32, %arg0, %c0_i32_0 : i32, i32, i32
  }
  func.func @transform_5(%arg0: i32) -> (i32, i32) {
    %c0_i32 = arith.constant 0 : i32
    %c0_i32_0 = arith.constant 0 : i32
    %c0_i32_1 = arith.constant 0 : i32
    return %c0_i32, %c0_i32_0 : i32, i32
  }
}

module attributes {stable_mosaic.version = 11 : i64} {
  func.func @_mm_bias_kernel(%arg0: i32, %arg1: memref<16x144xbf16, #tpu.memory_space<vmem>>, %arg2: memref<144x432xbf16, #tpu.memory_space<vmem>>, %arg3: memref<1x432xf32, #tpu.memory_space<vmem>>, %arg4: memref<16x432xf32, #tpu.memory_space<vmem>>) attributes {dimension_semantics = [#tpu.dimension_semantics<parallel>], iteration_bounds = array<i64: 1>, scalar_prefetch = 0 : i64, scratch_operands = 0 : i64, tpu.core_type = #tpu.core_type<tc>, window_params = [{transform_indices = @transform_0, window_bounds = array<i64: 16, 144>}, {pipeline_mode = #tpu.pipeline_mode<synchronous>, transform_indices = @transform_1, window_bounds = array<i64: 144, 432>}, {pipeline_mode = #tpu.pipeline_mode<synchronous>, transform_indices = @transform_2, window_bounds = array<i64: 1, 432>}, {transform_indices = @transform_3, window_bounds = array<i64: 16, 432>}]} {
    %c0 = arith.constant 0 : index
    %c0_0 = arith.constant 0 : index
    %0 = vector.load %arg1[%c0, %c0_0] : memref<16x144xbf16, #tpu.memory_space<vmem>>, vector<16x144xbf16>
    %c0_1 = arith.constant 0 : index
    %c0_2 = arith.constant 0 : index
    %1 = vector.load %arg2[%c0_1, %c0_2] : memref<144x432xbf16, #tpu.memory_space<vmem>>, vector<144x432xbf16>
    %cst = arith.constant dense<0.000000e+00> : vector<16x432xf32>
    %2 = tpu.matmul %0, %1, %cst {dimension_numbers = #tpu.dot_dimension_numbers<[1], [0], [0], [1], [0, 0, 1, 1], [], []>} : vector<16x144xbf16>, vector<144x432xbf16>, vector<16x432xf32> -> vector<16x432xf32>
    %c0_3 = arith.constant 0 : index
    %c0_4 = arith.constant 0 : index
    %3 = vector.load %arg3[%c0_3, %c0_4] : memref<1x432xf32, #tpu.memory_space<vmem>>, vector<1x432xf32>
    %4 = vector.broadcast %3 : vector<1x432xf32> to vector<16x432xf32>
    %5 = arith.addf %2, %4 : vector<16x432xf32>
    %c0_5 = arith.constant 0 : index
    %c0_6 = arith.constant 0 : index
    %6 = vector.load %arg4[%c0_5, %c0_6] : memref<16x432xf32, #tpu.memory_space<vmem>>, vector<16x432xf32>
    tpu.vector_store %arg4[%c0_5, %c0_6], %5 {strides = array<i32>} : memref<16x432xf32, #tpu.memory_space<vmem>>, vector<16x432xf32>,
    return
  }
  func.func @transform_0(%arg0: i32) -> (i32, i32) {
    %c0_i32 = arith.constant 0 : i32
    %c0_i32_0 = arith.constant 0 : i32
    return %arg0, %c0_i32 : i32, i32
  }
  func.func @transform_1(%arg0: i32) -> (i32, i32) {
    %c0_i32 = arith.constant 0 : i32
    %c0_i32_0 = arith.constant 0 : i32
    %c0_i32_1 = arith.constant 0 : i32
    return %c0_i32, %c0_i32_0 : i32, i32
  }
  func.func @transform_2(%arg0: i32) -> (i32, i32) {
    %c0_i32 = arith.constant 0 : i32
    %c0_i32_0 = arith.constant 0 : i32
    %c0_i32_1 = arith.constant 0 : i32
    return %c0_i32, %c0_i32_0 : i32, i32
  }
  func.func @transform_3(%arg0: i32) -> (i32, i32) {
    %c0_i32 = arith.constant 0 : i32
    %c0_i32_0 = arith.constant 0 : i32
    return %arg0, %c0_i32 : i32, i32
  }
}

module attributes {stable_mosaic.version = 11 : i64} {
  func.func @_attn_kernel(%arg0: i32, %arg1: memref<1x8x432xf32, #tpu.memory_space<vmem>>, %arg2: memref<1x8x144xbf16, #tpu.memory_space<vmem>>) attributes {dimension_semantics = [#tpu.dimension_semantics<parallel>], iteration_bounds = array<i64: 2>, scalar_prefetch = 0 : i64, scratch_operands = 0 : i64, tpu.core_type = #tpu.core_type<tc>, window_params = [{transform_indices = @transform_0, window_bounds = array<i64: 1, 8, 432>}, {transform_indices = @transform_1, window_bounds = array<i64: 1, 8, 144>}]} {
    %c0 = arith.constant 0 : index
    %c0_0 = arith.constant 0 : index
    %c0_1 = arith.constant 0 : index
    %0 = vector.load %arg1[%c0, %c0_0, %c0_1] : memref<1x8x432xf32, #tpu.memory_space<vmem>>, vector<1x8x432xf32>
    %1 = vector.shape_cast %0 : vector<1x8x432xf32> to vector<8x432xf32>
    %2 = vector.extract_strided_slice %1 {offsets = [0, 0], sizes = [8, 144], strides = [1, 1]} : vector<8x432xf32> to vector<8x144xf32>
    %3 = vector.extract_strided_slice %1 {offsets = [0, 144], sizes = [8, 144], strides = [1, 1]} : vector<8x432xf32> to vector<8x144xf32>
    %4 = vector.extract_strided_slice %1 {offsets = [0, 288], sizes = [8, 144], strides = [1, 1]} : vector<8x432xf32> to vector<8x144xf32>
    %cst = arith.constant dense<0xFF800000> : vector<144xf32>
    %5 = vector.multi_reduction <maximumf>, %3, %cst [0] : vector<8x144xf32> to vector<144xf32>
    %6 = vector.shape_cast %5 : vector<144xf32> to vector<1x144xf32>
    %cst_2 = arith.constant dense<0x7F800000> : vector<144xf32>
    %7 = vector.multi_reduction <minimumf>, %3, %cst_2 [0] : vector<8x144xf32> to vector<144xf32>
    %8 = vector.shape_cast %7 : vector<144xf32> to vector<1x144xf32>
    %cst_3 = arith.constant 0.000000e+00 : f32
    %9 = vector.broadcast %cst_3 : f32 to vector<8x144xf32>
    %10 = arith.cmpf oge, %2, %9 : vector<8x144xf32>
    %11 = vector.broadcast %6 : vector<1x144xf32> to vector<8x144xf32>
    %12 = arith.mulf %2, %11 : vector<8x144xf32>
    %13 = vector.broadcast %8 : vector<1x144xf32> to vector<8x144xf32>
    %14 = arith.mulf %2, %13 : vector<8x144xf32>
    %15 = arith.select %10, %12, %14 : vector<8x144xi1>, vector<8x144xf32>
    %cst_4 = arith.constant 0.000000e+00 : f32
    %16 = vector.broadcast %cst_4 : f32 to vector<8x144xf32>
    %cst_5 = arith.constant 0.000000e+00 : f32
    %17 = vector.broadcast %cst_5 : f32 to vector<8x144xf32>
    %18 = vector.extract_strided_slice %3 {offsets = [0, 0], sizes = [1, 144], strides = [1, 1]} : vector<8x144xf32> to vector<1x144xf32>
    %19 = vector.extract_strided_slice %4 {offsets = [0, 0], sizes = [1, 144], strides = [1, 1]} : vector<8x144xf32> to vector<1x144xf32>
    %20 = vector.broadcast %18 : vector<1x144xf32> to vector<8x144xf32>
    %21 = arith.mulf %2, %20 : vector<8x144xf32>
    %22 = arith.subf %21, %15 : vector<8x144xf32>
    %23 = math.exp %22 : vector<8x144xf32>
    %24 = arith.addf %16, %23 : vector<8x144xf32>
    %25 = vector.broadcast %19 : vector<1x144xf32> to vector<8x144xf32>
    %26 = arith.mulf %23, %25 : vector<8x144xf32>
    %27 = arith.addf %17, %26 : vector<8x144xf32>
    %28 = vector.extract_strided_slice %3 {offsets = [1, 0], sizes = [1, 144], strides = [1, 1]} : vector<8x144xf32> to vector<1x144xf32>
    %29 = vector.extract_strided_slice %4 {offsets = [1, 0], sizes = [1, 144], strides = [1, 1]} : vector<8x144xf32> to vector<1x144xf32>
    %30 = vector.broadcast %28 : vector<1x144xf32> to vector<8x144xf32>
    %31 = arith.mulf %2, %30 : vector<8x144xf32>
    %32 = arith.subf %31, %15 : vector<8x144xf32>
    %33 = math.exp %32 : vector<8x144xf32>
    %34 = arith.addf %24, %33 : vector<8x144xf32>
    %35 = vector.broadcast %29 : vector<1x144xf32> to vector<8x144xf32>
    %36 = arith.mulf %33, %35 : vector<8x144xf32>
    %37 = arith.addf %27, %36 : vector<8x144xf32>
    %38 = vector.extract_strided_slice %3 {offsets = [2, 0], sizes = [1, 144], strides = [1, 1]} : vector<8x144xf32> to vector<1x144xf32>
    %39 = vector.extract_strided_slice %4 {offsets = [2, 0], sizes = [1, 144], strides = [1, 1]} : vector<8x144xf32> to vector<1x144xf32>
    %40 = vector.broadcast %38 : vector<1x144xf32> to vector<8x144xf32>
    %41 = arith.mulf %2, %40 : vector<8x144xf32>
    %42 = arith.subf %41, %15 : vector<8x144xf32>
    %43 = math.exp %42 : vector<8x144xf32>
    %44 = arith.addf %34, %43 : vector<8x144xf32>
    %45 = vector.broadcast %39 : vector<1x144xf32> to vector<8x144xf32>
    %46 = arith.mulf %43, %45 : vector<8x144xf32>
    %47 = arith.addf %37, %46 : vector<8x144xf32>
    %48 = vector.extract_strided_slice %3 {offsets = [3, 0], sizes = [1, 144], strides = [1, 1]} : vector<8x144xf32> to vector<1x144xf32>
    %49 = vector.extract_strided_slice %4 {offsets = [3, 0], sizes = [1, 144], strides = [1, 1]} : vector<8x144xf32> to vector<1x144xf32>
    %50 = vector.broadcast %48 : vector<1x144xf32> to vector<8x144xf32>
    %51 = arith.mulf %2, %50 : vector<8x144xf32>
    %52 = arith.subf %51, %15 : vector<8x144xf32>
    %53 = math.exp %52 : vector<8x144xf32>
    %54 = arith.addf %44, %53 : vector<8x144xf32>
    %55 = vector.broadcast %49 : vector<1x144xf32> to vector<8x144xf32>
    %56 = arith.mulf %53, %55 : vector<8x144xf32>
    %57 = arith.addf %47, %56 : vector<8x144xf32>
    %58 = vector.extract_strided_slice %3 {offsets = [4, 0], sizes = [1, 144], strides = [1, 1]} : vector<8x144xf32> to vector<1x144xf32>
    %59 = vector.extract_strided_slice %4 {offsets = [4, 0], sizes = [1, 144], strides = [1, 1]} : vector<8x144xf32> to vector<1x144xf32>
    %60 = vector.broadcast %58 : vector<1x144xf32> to vector<8x144xf32>
    %61 = arith.mulf %2, %60 : vector<8x144xf32>
    %62 = arith.subf %61, %15 : vector<8x144xf32>
    %63 = math.exp %62 : vector<8x144xf32>
    %64 = arith.addf %54, %63 : vector<8x144xf32>
    %65 = vector.broadcast %59 : vector<1x144xf32> to vector<8x144xf32>
    %66 = arith.mulf %63, %65 : vector<8x144xf32>
    %67 = arith.addf %57, %66 : vector<8x144xf32>
    %68 = vector.extract_strided_slice %3 {offsets = [5, 0], sizes = [1, 144], strides = [1, 1]} : vector<8x144xf32> to vector<1x144xf32>
    %69 = vector.extract_strided_slice %4 {offsets = [5, 0], sizes = [1, 144], strides = [1, 1]} : vector<8x144xf32> to vector<1x144xf32>
    %70 = vector.broadcast %68 : vector<1x144xf32> to vector<8x144xf32>
    %71 = arith.mulf %2, %70 : vector<8x144xf32>
    %72 = arith.subf %71, %15 : vector<8x144xf32>
    %73 = math.exp %72 : vector<8x144xf32>
    %74 = arith.addf %64, %73 : vector<8x144xf32>
    %75 = vector.broadcast %69 : vector<1x144xf32> to vector<8x144xf32>
    %76 = arith.mulf %73, %75 : vector<8x144xf32>
    %77 = arith.addf %67, %76 : vector<8x144xf32>
    %78 = vector.extract_strided_slice %3 {offsets = [6, 0], sizes = [1, 144], strides = [1, 1]} : vector<8x144xf32> to vector<1x144xf32>
    %79 = vector.extract_strided_slice %4 {offsets = [6, 0], sizes = [1, 144], strides = [1, 1]} : vector<8x144xf32> to vector<1x144xf32>
    %80 = vector.broadcast %78 : vector<1x144xf32> to vector<8x144xf32>
    %81 = arith.mulf %2, %80 : vector<8x144xf32>
    %82 = arith.subf %81, %15 : vector<8x144xf32>
    %83 = math.exp %82 : vector<8x144xf32>
    %84 = arith.addf %74, %83 : vector<8x144xf32>
    %85 = vector.broadcast %79 : vector<1x144xf32> to vector<8x144xf32>
    %86 = arith.mulf %83, %85 : vector<8x144xf32>
    %87 = arith.addf %77, %86 : vector<8x144xf32>
    %88 = vector.extract_strided_slice %3 {offsets = [7, 0], sizes = [1, 144], strides = [1, 1]} : vector<8x144xf32> to vector<1x144xf32>
    %89 = vector.extract_strided_slice %4 {offsets = [7, 0], sizes = [1, 144], strides = [1, 1]} : vector<8x144xf32> to vector<1x144xf32>
    %90 = vector.broadcast %88 : vector<1x144xf32> to vector<8x144xf32>
    %91 = arith.mulf %2, %90 : vector<8x144xf32>
    %92 = arith.subf %91, %15 : vector<8x144xf32>
    %93 = math.exp %92 : vector<8x144xf32>
    %94 = arith.addf %84, %93 : vector<8x144xf32>
    %95 = vector.broadcast %89 : vector<1x144xf32> to vector<8x144xf32>
    %96 = arith.mulf %93, %95 : vector<8x144xf32>
    %97 = arith.addf %87, %96 : vector<8x144xf32>
    %98 = tpu.reciprocal %94 {approx = true} : vector<8x144xf32> -> vector<8x144xf32>
    %99 = arith.mulf %97, %98 : vector<8x144xf32>
    %100 = arith.truncf %99 : vector<8x144xf32> to vector<8x144xbf16>
    %c0_6 = arith.constant 0 : index
    %c0_7 = arith.constant 0 : index
    %c0_8 = arith.constant 0 : index
    %101 = vector.load %arg2[%c0_6, %c0_7, %c0_8] : memref<1x8x144xbf16, #tpu.memory_space<vmem>>, vector<1x8x144xbf16>
    %102 = vector.shape_cast %101 : vector<1x8x144xbf16> to vector<8x144xbf16>
    %103 = vector.shape_cast %100 : vector<8x144xbf16> to vector<1x8x144xbf16>
    tpu.vector_store %arg2[%c0_6, %c0_7, %c0_8], %103 {strides = array<i32>} : memref<1x8x144xbf16, #tpu.memory_space<vmem>>, vector<1x8x144xbf16>,
    return
  }
  func.func @transform_0(%arg0: i32) -> (i32, i32, i32) {
    %c0_i32 = arith.constant 0 : i32
    %c0_i32_0 = arith.constant 0 : i32
    %c0_i32_1 = arith.constant 0 : i32
    return %arg0, %c0_i32, %c0_i32_0 : i32, i32, i32
  }
  func.func @transform_1(%arg0: i32) -> (i32, i32, i32) {
    %c0_i32 = arith.constant 0 : i32
    %c0_i32_0 = arith.constant 0 : i32
    %c0_i32_1 = arith.constant 0 : i32
    return %arg0, %c0_i32, %c0_i32_0 : i32, i32, i32
  }
}

module attributes {stable_mosaic.version = 11 : i64} {
  func.func @_outdec_istft_kernel(%arg0: i32, %arg1: memref<16x144xbf16, #tpu.memory_space<vmem>>, %arg2: memref<144x144xbf16, #tpu.memory_space<vmem>>, %arg3: memref<1x144xf32, #tpu.memory_space<vmem>>, %arg4: memref<144x640xbf16, #tpu.memory_space<vmem>>, %arg5: memref<1x640xf32, #tpu.memory_space<vmem>>, %arg6: memref<16x640xbf16, #tpu.memory_space<vmem>>, %arg7: memref<640x512xbf16, #tpu.memory_space<vmem>>, %arg8: memref<16x512xf32, #tpu.memory_space<vmem>>) attributes {dimension_semantics = [#tpu.dimension_semantics<parallel>], iteration_bounds = array<i64: 1>, scalar_prefetch = 0 : i64, scratch_operands = 0 : i64, tpu.core_type = #tpu.core_type<tc>, window_params = [{transform_indices = @transform_0, window_bounds = array<i64: 16, 144>}, {pipeline_mode = #tpu.pipeline_mode<synchronous>, transform_indices = @transform_1, window_bounds = array<i64: 144, 144>}, {pipeline_mode = #tpu.pipeline_mode<synchronous>, transform_indices = @transform_2, window_bounds = array<i64: 1, 144>}, {pipeline_mode = #tpu.pipeline_mode<synchronous>, transform_indices = @transform_3, window_bounds = array<i64: 144, 640>}, {pipeline_mode = #tpu.pipeline_mode<synchronous>, transform_indices = @transform_4, window_bounds = array<i64: 1, 640>}, {transform_indices = @transform_5, window_bounds = array<i64: 16, 640>}, {pipeline_mode = #tpu.pipeline_mode<synchronous>, transform_indices = @transform_6, window_bounds = array<i64: 640, 512>}, {transform_indices = @transform_7, window_bounds = array<i64: 16, 512>}]} {
    %c0 = arith.constant 0 : index
    %c0_0 = arith.constant 0 : index
    %0 = vector.load %arg1[%c0, %c0_0] : memref<16x144xbf16, #tpu.memory_space<vmem>>, vector<16x144xbf16>
    %c0_1 = arith.constant 0 : index
    %c0_2 = arith.constant 0 : index
    %1 = vector.load %arg2[%c0_1, %c0_2] : memref<144x144xbf16, #tpu.memory_space<vmem>>, vector<144x144xbf16>
    %cst = arith.constant dense<0.000000e+00> : vector<16x144xf32>
    %2 = tpu.matmul %0, %1, %cst {dimension_numbers = #tpu.dot_dimension_numbers<[1], [0], [0], [1], [0, 0, 1, 1], [], []>} : vector<16x144xbf16>, vector<144x144xbf16>, vector<16x144xf32> -> vector<16x144xf32>
    %c0_3 = arith.constant 0 : index
    %c0_4 = arith.constant 0 : index
    %3 = vector.load %arg3[%c0_3, %c0_4] : memref<1x144xf32, #tpu.memory_space<vmem>>, vector<1x144xf32>
    %4 = vector.broadcast %3 : vector<1x144xf32> to vector<16x144xf32>
    %5 = arith.addf %2, %4 : vector<16x144xf32>
    %6 = arith.truncf %5 : vector<16x144xf32> to vector<16x144xbf16>
    %c0_5 = arith.constant 0 : index
    %c0_6 = arith.constant 0 : index
    %7 = vector.load %arg4[%c0_5, %c0_6] : memref<144x640xbf16, #tpu.memory_space<vmem>>, vector<144x640xbf16>
    %cst_7 = arith.constant dense<0.000000e+00> : vector<16x640xf32>
    %8 = tpu.matmul %6, %7, %cst_7 {dimension_numbers = #tpu.dot_dimension_numbers<[1], [0], [0], [1], [0, 0, 1, 1], [], []>} : vector<16x144xbf16>, vector<144x640xbf16>, vector<16x640xf32> -> vector<16x640xf32>
    %c0_8 = arith.constant 0 : index
    %c0_9 = arith.constant 0 : index
    %9 = vector.load %arg5[%c0_8, %c0_9] : memref<1x640xf32, #tpu.memory_space<vmem>>, vector<1x640xf32>
    %10 = vector.broadcast %9 : vector<1x640xf32> to vector<16x640xf32>
    %11 = arith.addf %8, %10 : vector<16x640xf32>
    %12 = math.tanh %11 : vector<16x640xf32>
    %c0_10 = arith.constant 0 : index
    %c0_11 = arith.constant 0 : index
    %13 = vector.load %arg6[%c0_10, %c0_11] : memref<16x640xbf16, #tpu.memory_space<vmem>>, vector<16x640xbf16>
    %14 = arith.extf %13 : vector<16x640xbf16> to vector<16x640xf32>
    %15 = arith.mulf %12, %14 : vector<16x640xf32>
    %16 = arith.truncf %15 : vector<16x640xf32> to vector<16x640xbf16>
    %c0_12 = arith.constant 0 : index
    %c0_13 = arith.constant 0 : index
    %17 = vector.load %arg7[%c0_12, %c0_13] : memref<640x512xbf16, #tpu.memory_space<vmem>>, vector<640x512xbf16>
    %cst_14 = arith.constant dense<0.000000e+00> : vector<16x512xf32>
    %18 = tpu.matmul %16, %17, %cst_14 {dimension_numbers = #tpu.dot_dimension_numbers<[1], [0], [0], [1], [0, 0, 1, 1], [], []>} : vector<16x640xbf16>, vector<640x512xbf16>, vector<16x512xf32> -> vector<16x512xf32>
    %c0_15 = arith.constant 0 : index
    %c0_16 = arith.constant 0 : index
    %19 = vector.load %arg8[%c0_15, %c0_16] : memref<16x512xf32, #tpu.memory_space<vmem>>, vector<16x512xf32>
    tpu.vector_store %arg8[%c0_15, %c0_16], %18 {strides = array<i32>} : memref<16x512xf32, #tpu.memory_space<vmem>>, vector<16x512xf32>,
    return
  }
  func.func @transform_0(%arg0: i32) -> (i32, i32) {
    %c0_i32 = arith.constant 0 : i32
    %c0_i32_0 = arith.constant 0 : i32
    return %arg0, %c0_i32 : i32, i32
  }
  func.func @transform_1(%arg0: i32) -> (i32, i32) {
    %c0_i32 = arith.constant 0 : i32
    %c0_i32_0 = arith.constant 0 : i32
    %c0_i32_1 = arith.constant 0 : i32
    return %c0_i32, %c0_i32_0 : i32, i32
  }
  func.func @transform_2(%arg0: i32) -> (i32, i32) {
    %c0_i32 = arith.constant 0 : i32
    %c0_i32_0 = arith.constant 0 : i32
    %c0_i32_1 = arith.constant 0 : i32
    return %c0_i32, %c0_i32_0 : i32, i32
  }
  func.func @transform_3(%arg0: i32) -> (i32, i32) {
    %c0_i32 = arith.constant 0 : i32
    %c0_i32_0 = arith.constant 0 : i32
    %c0_i32_1 = arith.constant 0 : i32
    return %c0_i32, %c0_i32_0 : i32, i32
  }
  func.func @transform_4(%arg0: i32) -> (i32, i32) {
    %c0_i32 = arith.constant 0 : i32
    %c0_i32_0 = arith.constant 0 : i32
    %c0_i32_1 = arith.constant 0 : i32
    return %c0_i32, %c0_i32_0 : i32, i32
  }
  func.func @transform_5(%arg0: i32) -> (i32, i32) {
    %c0_i32 = arith.constant 0 : i32
    %c0_i32_0 = arith.constant 0 : i32
    return %arg0, %c0_i32 : i32, i32
  }
  func.func @transform_6(%arg0: i32) -> (i32, i32) {
    %c0_i32 = arith.constant 0 : i32
    %c0_i32_0 = arith.constant 0 : i32
    %c0_i32_1 = arith.constant 0 : i32
    return %c0_i32, %c0_i32_0 : i32, i32
  }
  func.func @transform_7(%arg0: i32) -> (i32, i32) {
    %c0_i32 = arith.constant 0 : i32
    %c0_i32_0 = arith.constant 0 : i32
    return %arg0, %c0_i32 : i32, i32
  }
}

</mosaic_0001>

<llo_original>
// kernel: net_helper_forward.6
$region0: #{net_helper_forward.6}
  #allocation0 [shape = 'u32[]', space=smem, size = 0x4, offset = 0x4, fixed_abs, tag = 'smem constant byte address 0x4 - core index']
  #allocation1 [shape = 'u32[144,128]{1,0:T(1,128)}', space=vmem, size = 0x12000, scoped, tag = 'internal scratch']
  %s0 = inlined_call_operand.vmem [shape: bf16[2,11,128], index: 0, kind: input, shape index: {}]
  %s1 = inlined_call_operand.hbm [shape: bf16[512,640], index: 1, kind: input, shape index: {}]
  %s2 = inlined_call_operand.vmem [shape: bf16[2,8,640], index: 2, kind: output, shape index: {}]
  %s3 = sld [smem:[#allocation0]]
  $region45: #{net_helper_forward.6} parent=0
    _
  %s5 = ssub.s32 1, %s3
  %s6 = scalar_select 0, %s5, %s3
  $region1: #{net_helper_forward.6} parent=0
    #allocation2 [shape = 'u8[655360]{0}', space=vmem, size = 0xa0000, scoped, tag = 'input window, operand 1, single buffered']
    #allocation3 [shape = 's32[2]{0}', space=sflag, size = 0x8, scoped, tag = 'scoped memory for net_helper_forward.6']
    %7 = vsyncpa [#allocation3], 0
    loop: start=0, step=1, limit=4
    $region2: #{net_helper_forward.6} parent=1 // loop_pre_header
      _
    $region3: #{net_helper_forward.6} parent=1 // loop_header
      %s9 = sphi 0, %s13
      %p10 = scmp.ge.s32.totalorder %s9, 4
      %s19 = sphi 0, %s21
      %s22 = sphi 0, %s19
      %s23 = sphi 0, %s22
      %s39 = sphi 0, %s23
      %s43 = sphi 0, %s43
      %s45 = sphi 0, %s43
      %s46 = sphi 0, %s45
      %s60 = sphi 0, %s46
      %s66 = sphi 0, %s68
      %s69 = sphi 0, %s66
      %s70 = sphi 0, %s69
      %s86 = sphi 0, %s70
    $region4: #{net_helper_forward.6} parent=1 // loop_header_branch
      %12 = sbr.rel (%p10) target = $region8
    $region5: #{net_helper_forward.6} parent=1 // loop_body
      %s14 = ssub.s32 %s9, 1
      %s15 = ssub.s32 %s9, 2
      %s16 = sadd.s32 %s9, 1
      %s17 = ssub.s32 %s9, %s16
      %p18 = scmp.eq.s32.totalorder %s17, 0
      %s20 = sadd.s32 %s19, 1
      %s21 = scalar_select %p18, %s19, %s20
      %p24 = pneg %p18
      %p25 = scmp.eq.s32.totalorder %s9, 1
      %p26 = por %p24, %p25
      %p27 = scmp.ne.s32.totalorder %s19, %s22
      %p28 = scmp.eq.s32.totalorder %s9, 0
      %p29 = por %p27, %p28
      %p30 = scmp.ne.s32.totalorder %s19, %s22
      %p31 = scmp.eq.s32.totalorder %s14, 1
      %p32 = por %p30, %p31
      %p33 = scmp.ne.s32.totalorder %s22, %s23
      %p34 = scmp.eq.s32.totalorder %s14, 0
      %p35 = por %p33, %p34
      %p36 = scmp.ne.s32.totalorder %s22, %s23
      %p37 = scmp.eq.s32.totalorder %s15, 1
      %p38 = por %p36, %p37
      %p40 = scmp.ne.s32.totalorder %s23, %s39
      %p41 = scmp.eq.s32.totalorder %s15, 0
      %p42 = por %p40, %p41
      %s44 = sadd.s32 %s43, 1
      %p47 = scmp.eq.s32.totalorder %s9, 1
      %p48 = scmp.ne.s32.totalorder %s43, %s45
      %p49 = scmp.eq.s32.totalorder %s9, 0
      %p50 = por %p48, %p49
      %p51 = scmp.ne.s32.totalorder %s43, %s45
      %p52 = scmp.eq.s32.totalorder %s14, 1
      %p53 = por %p51, %p52
      %p54 = scmp.ne.s32.totalorder %s45, %s46
      %p55 = scmp.eq.s32.totalorder %s14, 0
      %p56 = por %p54, %p55
      %p57 = scmp.ne.s32.totalorder %s45, %s46
      %p58 = scmp.eq.s32.totalorder %s15, 1
      %p59 = por %p57, %p58
      %p61 = scmp.ne.s32.totalorder %s46, %s60
      %p62 = scmp.eq.s32.totalorder %s15, 0
      %p63 = por %p61, %p62
      %s64 = ssub.s32 %s9, %s16
      %p65 = scmp.eq.s32.totalorder %s64, 0
      %s67 = sadd.s32 %s66, 1
      %s68 = scalar_select %p65, %s66, %s67
      %p71 = pneg %p65
      %p72 = scmp.eq.s32.totalorder %s9, 1
      %p73 = por %p71, %p72
      %p74 = scmp.ne.s32.totalorder %s66, %s69
      %p75 = scmp.eq.s32.totalorder %s9, 0
      %p76 = por %p74, %p75
      %p77 = scmp.ne.s32.totalorder %s66, %s69
      %p78 = scmp.eq.s32.totalorder %s14, 1
      %p79 = por %p77, %p78
      %p80 = scmp.ne.s32.totalorder %s69, %s70
      %p81 = scmp.eq.s32.totalorder %s14, 0
      %p82 = por %p80, %p81
      %p83 = scmp.ne.s32.totalorder %s69, %s70
      %p84 = scmp.eq.s32.totalorder %s15, 1
      %p85 = por %p83, %p84
      %p87 = scmp.ne.s32.totalorder %s70, %s86
      %p88 = scmp.eq.s32.totalorder %s15, 0
      %p89 = por %p87, %p88
      %p90 = scmp.le.s32.totalorder 1, %s9
      %p91 = scmp.lt.s32.totalorder %s9, 3
      %p92 = pnand %p90, %p91
      %p93 = pneg %p92
      // Predicated region
      $region9: #{net_helper_forward.6} parent=5 // pred_check
        _
      $region10: #{net_helper_forward.6} parent=5 // pred_check_branch
        %95 = sbr.rel (%p92) target = $region12
      $region11: #{net_helper_forward.6} parent=5 // pred_region
        %s96 = ssub.s32 %s9, 1
        // Predicated region
        $region13: #{net_helper_forward.6} parent=11 // pred_check
          %p97 = pneg %p56
        $region14: #{net_helper_forward.6} parent=11 // pred_check_branch
          %99 = sbr.rel (%p97) target = $region16
        $region15: #{net_helper_forward.6} parent=11 // pred_region
          %s101 = ssub.s32 20480, 20480
          %102 = vsyncadd [#allocation3], %s101
          %s103 = sshll.u32 [#allocation2], 4
          %s104 = int_to_ptr.vmem [resolvable:$true] %s103
          %109 = dma.hbm_to_vmem [thread:$0]  %s1, 20480, %s104, [#allocation3], 320, 320, 20
        $region16: #{net_helper_forward.6} parent=11 // pred_fallthru
          _
      $region12: #{net_helper_forward.6} parent=5 // pred_fallthru
        _
      %p110 = scmp.lt.s32.totalorder %s9, 2
      // Predicated region
      $region17: #{net_helper_forward.6} parent=5 // pred_check
        %p111 = pneg %p110
      $region18: #{net_helper_forward.6} parent=5 // pred_check_branch
        %113 = sbr.rel (%p111) target = $region20
      $region19: #{net_helper_forward.6} parent=5 // pred_region
        // Predicated region
        $region21: #{net_helper_forward.6} parent=19 // pred_check
          %p114 = pneg %p29
        $region22: #{net_helper_forward.6} parent=19 // pred_check_branch
          %116 = sbr.rel (%p114) target = $region24
        $region23: #{net_helper_forward.6} parent=19 // pred_region
          %p117 = scmp.lt.s32.totalorder %s9, 1
          %s118 = scalar_select %p117, %s9, 1
          %s119 = smul.addr %s118, 2
          %s120 = smul.addr %s119, 4
          %s121 = scalar_lea.vmem %s0, %s120
        $region24: #{net_helper_forward.6} parent=19 // pred_fallthru
          _
      $region20: #{net_helper_forward.6} parent=5 // pred_fallthru
        _
      %p122 = scmp.le.s32.totalorder 1, %s9
      %p123 = scmp.lt.s32.totalorder %s9, 3
      %p124 = pnand %p122, %p123
      %p125 = pneg %p124
      // Predicated region
      $region25: #{net_helper_forward.6} parent=5 // pred_check
        _
      $region26: #{net_helper_forward.6} parent=5 // pred_check_branch
        %127 = sbr.rel (%p124) target = $region28
      $region27: #{net_helper_forward.6} parent=5 // pred_region
        %s128 = ssub.s32 %s9, 1
        // Predicated region
        $region29: #{net_helper_forward.6} parent=27 // pred_check
          %p129 = pneg %p56
        $region30: #{net_helper_forward.6} parent=27 // pred_check_branch
          %131 = sbr.rel (%p129) target = $region32
        $region31: #{net_helper_forward.6} parent=27 // pred_region
          %132 = dma.done [#allocation3], 20480
        $region32: #{net_helper_forward.6} parent=27 // pred_fallthru
          _
        %p133 = scmp.lt.s32.totalorder %s14, 1
        %s134 = scalar_select %p133, %s14, 1
        %s135 = smul.addr %s134, 2
        %s136 = smul.addr %s135, 4
        %s137 = scalar_lea.vmem %s0, %s136
        %p138 = pneg %p35
        %p139 = pneg %p32
        %p140 = pneg %p56
        %p141 = pneg %p53
        %p142 = pneg %p82
        %p143 = pneg %p79
        %p144 = scmp.lt.s32.totalorder %s14, 1
        %s145 = scalar_select %p144, %s14, 1
        %s146 = smul.addr %s145, 5
        %s147 = smul.addr %s146, 4
        %s148 = scalar_lea.vmem %s2, %s147
        %p149 = scmp.lt.s32.totalorder %s14, 1
        %s150 = scalar_select %p149, %s14, 1
        %s151 = smul.addr %s150, 2
        %s152 = smul.addr %s151, 4
        %s153 = scalar_lea.vmem %s0, %s152
        %p154 = scmp.lt.s32.totalorder %s14, 1
        %s155 = scalar_select %p154, %s14, 1
        %s156 = smul.addr %s155, 5
        %s157 = smul.addr %s156, 4
        %s158 = scalar_lea.vmem %s2, %s157
        %v160 = vld [vmem:[%s153] sm:$0xf]
        %v161 = vld [vmem:[%s153 + $0x4] sm:$0x3]
        %v162 = vld [vmem:[#allocation2] sm:$0xff]
        %v163 = vld [vmem:[#allocation2 + $0x8] sm:$0xff]
        %v164 = vld [vmem:[#allocation2 + $0x10] sm:$0xf]
        %v165 = vld [vmem:[#allocation2 + $0x14] sm:$0xff]
        %v166 = vld [vmem:[#allocation2 + $0x1c] sm:$0xff]
        %v167 = vld [vmem:[#allocation2 + $0x24] sm:$0xf]
        %v168 = vld [vmem:[#allocation2 + $0x28] sm:$0xff]
        %v169 = vld [vmem:[#allocation2 + $0x30] sm:$0xff]
        %v170 = vld [vmem:[#allocation2 + $0x38] sm:$0xf]
        %v171 = vld [vmem:[#allocation2 + $0x3c] sm:$0xff]
        %v172 = vld [vmem:[#allocation2 + $0x44] sm:$0xff]
        %v173 = vld [vmem:[#allocation2 + $0x4c] sm:$0xf]
        %v174 = vld [vmem:[#allocation2 + $0x50] sm:$0xff]
        %v175 = vld [vmem:[#allocation2 + $0x58] sm:$0xff]
        %v176 = vld [vmem:[#allocation2 + $0x60] sm:$0xf]
        %v177 = vld [vmem:[#allocation2 + $0x64] sm:$0xff]
        %v178 = vld [vmem:[#allocation2 + $0x6c] sm:$0xff]
        %v179 = vld [vmem:[#allocation2 + $0x74] sm:$0xf]
        %v180 = vld [vmem:[#allocation2 + $0x78] sm:$0xff]
        %v181 = vld [vmem:[#allocation2 + $0x80] sm:$0xff]
        %v182 = vld [vmem:[#allocation2 + $0x88] sm:$0xf]
        %v183 = vld [vmem:[#allocation2 + $0x8c] sm:$0xff]
        %v184 = vld [vmem:[#allocation2 + $0x94] sm:$0xff]
        %v185 = vld [vmem:[#allocation2 + $0x9c] sm:$0xf]
        %v186 = vld [vmem:[#allocation2 + $0xa0] sm:$0xff]
        %v187 = vld [vmem:[#allocation2 + $0xa8] sm:$0xff]
        %v188 = vld [vmem:[#allocation2 + $0xb0] sm:$0xf]
        %v189 = vld [vmem:[#allocation2 + $0xb4] sm:$0xff]
        %v190 = vld [vmem:[#allocation2 + $0xbc] sm:$0xff]
        %v191 = vld [vmem:[#allocation2 + $0xc4] sm:$0xf]
        %v192 = vld [vmem:[#allocation2 + $0xc8] sm:$0xff]
        %v193 = vld [vmem:[#allocation2 + $0xd0] sm:$0xff]
        %v194 = vld [vmem:[#allocation2 + $0xd8] sm:$0xf]
        %v195 = vld [vmem:[#allocation2 + $0xdc] sm:$0xff]
        %v196 = vld [vmem:[#allocation2 + $0xe4] sm:$0xff]
        %v197 = vld [vmem:[#allocation2 + $0xec] sm:$0xf]
        %v198 = vld [vmem:[#allocation2 + $0xf0] sm:$0xff]
        %v199 = vld [vmem:[#allocation2 + $0xf8] sm:$0xff]
        %v200 = vld [vmem:[#allocation2 + $0x100] sm:$0xf]
        %v201 = vld [vmem:[#allocation2 + $0x104] sm:$0xff]
        %v202 = vld [vmem:[#allocation2 + $0x10c] sm:$0xff]
        %v203 = vld [vmem:[#allocation2 + $0x114] sm:$0xf]
        %v204 = vld [vmem:[#allocation2 + $0x118] sm:$0xff]
        %v205 = vld [vmem:[#allocation2 + $0x120] sm:$0xff]
        %v206 = vld [vmem:[#allocation2 + $0x128] sm:$0xf]
        %v207 = vld [vmem:[#allocation2 + $0x12c] sm:$0xff]
        %v208 = vld [vmem:[#allocation2 + $0x134] sm:$0xff]
        %v209 = vld [vmem:[#allocation2 + $0x13c] sm:$0xf]
        %v210 = vld [vmem:[#allocation2 + $0x140] sm:$0xff]
        %v211 = vld [vmem:[#allocation2 + $0x148] sm:$0xff]
        %v212 = vld [vmem:[#allocation2 + $0x150] sm:$0xf]
        %v213 = vld [vmem:[#allocation2 + $0x154] sm:$0xff]
        %v214 = vld [vmem:[#allocation2 + $0x15c] sm:$0xff]
        %v215 = vld [vmem:[#allocation2 + $0x164] sm:$0xf]
        %v216 = vld [vmem:[#allocation2 + $0x168] sm:$0xff]
        %v217 = vld [vmem:[#allocation2 + $0x170] sm:$0xff]
        %v218 = vld [vmem:[#allocation2 + $0x178] sm:$0xf]
        %v219 = vld [vmem:[#allocation2 + $0x17c] sm:$0xff]
        %v220 = vld [vmem:[#allocation2 + $0x184] sm:$0xff]
        %v221 = vld [vmem:[#allocation2 + $0x18c] sm:$0xf]
        %v222 = vld [vmem:[#allocation2 + $0x190] sm:$0xff]
        %v223 = vld [vmem:[#allocation2 + $0x198] sm:$0xff]
        %v224 = vld [vmem:[#allocation2 + $0x1a0] sm:$0xf]
        %v225 = vld [vmem:[#allocation2 + $0x1a4] sm:$0xff]
        %v226 = vld [vmem:[#allocation2 + $0x1ac] sm:$0xff]
        %v227 = vld [vmem:[#allocation2 + $0x1b4] sm:$0xf]
        %v228 = vld [vmem:[#allocation2 + $0x1b8] sm:$0xff]
        %v229 = vld [vmem:[#allocation2 + $0x1c0] sm:$0xff]
        %v230 = vld [vmem:[#allocation2 + $0x1c8] sm:$0xf]
        %v231 = vld [vmem:[#allocation2 + $0x1cc] sm:$0xff]
        %v232 = vld [vmem:[#allocation2 + $0x1d4] sm:$0xff]
        %v233 = vld [vmem:[#allocation2 + $0x1dc] sm:$0xf]
        %v234 = vld [vmem:[#allocation2 + $0x1e0] sm:$0xff]
        %v235 = vld [vmem:[#allocation2 + $0x1e8] sm:$0xff]
        %v236 = vld [vmem:[#allocation2 + $0x1f0] sm:$0xf]
        %v237 = vld [vmem:[#allocation2 + $0x1f4] sm:$0xff]
        %v238 = vld [vmem:[#allocation2 + $0x1fc] sm:$0xff]
        %v239 = vld [vmem:[#allocation2 + $0x204] sm:$0xf]
        %v240 = vld [vmem:[#allocation2 + $0x208] sm:$0xff]
        %v241 = vld [vmem:[#allocation2 + $0x210] sm:$0xff]
        %v242 = vld [vmem:[#allocation2 + $0x218] sm:$0xf]
        %v243 = vld [vmem:[#allocation2 + $0x21c] sm:$0xff]
        %v244 = vld [vmem:[#allocation2 + $0x224] sm:$0xff]
        %v245 = vld [vmem:[#allocation2 + $0x22c] sm:$0xf]
        %v246 = vld [vmem:[#allocation2 + $0x230] sm:$0xff]
        %v247 = vld [vmem:[#allocation2 + $0x238] sm:$0xff]
        %v248 = vld [vmem:[#allocation2 + $0x240] sm:$0xf]
        %v249 = vld [vmem:[#allocation2 + $0x244] sm:$0xff]
        %v250 = vld [vmem:[#allocation2 + $0x24c] sm:$0xff]
        %v251 = vld [vmem:[#allocation2 + $0x254] sm:$0xf]
        %v252 = vld [vmem:[#allocation2 + $0x258] sm:$0xff]
        %v253 = vld [vmem:[#allocation2 + $0x260] sm:$0xff]
        %v254 = vld [vmem:[#allocation2 + $0x268] sm:$0xf]
        %v255 = vld [vmem:[#allocation2 + $0x26c] sm:$0xff]
        %v256 = vld [vmem:[#allocation2 + $0x274] sm:$0xff]
        %v257 = vld [vmem:[#allocation2 + $0x27c] sm:$0xf]
        %v260 = vunpack.c.l.b16 %v160
        %v261 = vunpack.c.l.b16 %v161
        %v262 = vpack.c.b16 %v261, %v260
        %v264 = vshrl.u32 %v262, 16
        %v266 = vshll.u32 %v262, 16
        %v268 = vrot.slane %v266, 1
        %v269 = vor.u32 %v264, %v268
        %v319 = vunpack.c.l.b16 %v210
        %v320 = vunpack.c.h.b16 %v210
        %v321 = vunpack.c.l.b16 %v211
        %v322 = vunpack.c.h.b16 %v211
        %v323 = vunpack.c.l.b16 %v212
        %v324 = vunpack.c.l.b16 %v213
        %v325 = vunpack.c.h.b16 %v213
        %v326 = vunpack.c.l.b16 %v214
        %v327 = vunpack.c.h.b16 %v214
        %v328 = vunpack.c.l.b16 %v215
        %v329 = vunpack.c.l.b16 %v216
        %v330 = vunpack.c.h.b16 %v216
        %v331 = vunpack.c.l.b16 %v217
        %v332 = vunpack.c.h.b16 %v217
        %v333 = vunpack.c.l.b16 %v218
        %v334 = vunpack.c.l.b16 %v219
        %v335 = vunpack.c.h.b16 %v219
        %v336 = vunpack.c.l.b16 %v220
        %v337 = vunpack.c.h.b16 %v220
        %v338 = vunpack.c.l.b16 %v221
        %v339 = vunpack.c.l.b16 %v222
        %v340 = vunpack.c.h.b16 %v222
        %v341 = vunpack.c.l.b16 %v223
        %v342 = vunpack.c.h.b16 %v223
        %v343 = vunpack.c.l.b16 %v224
        %v344 = vunpack.c.l.b16 %v225
        %v345 = vunpack.c.h.b16 %v225
        %v346 = vunpack.c.l.b16 %v226
        %v347 = vunpack.c.h.b16 %v226
        %v348 = vunpack.c.l.b16 %v227
        %v349 = vunpack.c.l.b16 %v228
        %v350 = vunpack.c.h.b16 %v228
        %v351 = vunpack.c.l.b16 %v229
        %v352 = vunpack.c.h.b16 %v229
        %v353 = vunpack.c.l.b16 %v230
        %v354 = vunpack.c.l.b16 %v231
        %v355 = vunpack.c.h.b16 %v231
        %v356 = vunpack.c.l.b16 %v232
        %v357 = vunpack.c.h.b16 %v232
        %v358 = vunpack.c.l.b16 %v233
        %v359 = vunpack.c.l.b16 %v234
        %v360 = vunpack.c.h.b16 %v234
        %v361 = vunpack.c.l.b16 %v235
        %v362 = vunpack.c.h.b16 %v235
        %v363 = vunpack.c.l.b16 %v236
        %v364 = vunpack.c.l.b16 %v237
        %v365 = vunpack.c.h.b16 %v237
        %v366 = vunpack.c.l.b16 %v238
        %v367 = vunpack.c.h.b16 %v238
        %v368 = vunpack.c.l.b16 %v239
        %v369 = vunpack.c.l.b16 %v240
        %v370 = vunpack.c.h.b16 %v240
        %v371 = vunpack.c.l.b16 %v241
        %v372 = vunpack.c.h.b16 %v241
        %v373 = vunpack.c.l.b16 %v242
        %v374 = vunpack.c.l.b16 %v243
        %v375 = vunpack.c.h.b16 %v243
        %v376 = vunpack.c.l.b16 %v244
        %v377 = vunpack.c.h.b16 %v244
        %v378 = vunpack.c.l.b16 %v245
        %v379 = vunpack.c.l.b16 %v246
        %v380 = vunpack.c.h.b16 %v246
        %v381 = vunpack.c.l.b16 %v247
        %v382 = vunpack.c.h.b16 %v247
        %v383 = vunpack.c.l.b16 %v248
        %v384 = vunpack.c.l.b16 %v249
        %v385 = vunpack.c.h.b16 %v249
        %v386 = vunpack.c.l.b16 %v250
        %v387 = vunpack.c.h.b16 %v250
        %v388 = vunpack.c.l.b16 %v251
        %v389 = vunpack.c.l.b16 %v252
        %v390 = vunpack.c.h.b16 %v252
        %v391 = vunpack.c.l.b16 %v253
        %v392 = vunpack.c.h.b16 %v253
        %v393 = vunpack.c.l.b16 %v254
        %v394 = vunpack.c.l.b16 %v255
        %v395 = vunpack.c.h.b16 %v255
        %v396 = vunpack.c.l.b16 %v256
        %v397 = vunpack.c.h.b16 %v256
        %v398 = vunpack.c.l.b16 %v257
        %v399 = vpack.c.b16 %v324, %v319
        %v400 = vpack.c.b16 %v325, %v320
        %v401 = vpack.c.b16 %v326, %v321
        %v402 = vpack.c.b16 %v327, %v322
        %v403 = vpack.c.b16 %v328, %v323
        %v404 = vpack.c.b16 %v334, %v329
        %v405 = vpack.c.b16 %v335, %v330
        %v406 = vpack.c.b16 %v336, %v331
        %v407 = vpack.c.b16 %v337, %v332
        %v408 = vpack.c.b16 %v338, %v333
        %v409 = vpack.c.b16 %v344, %v339
        %v410 = vpack.c.b16 %v345, %v340
        %v411 = vpack.c.b16 %v346, %v341
        %v412 = vpack.c.b16 %v347, %v342
        %v413 = vpack.c.b16 %v348, %v343
        %v414 = vpack.c.b16 %v354, %v349
        %v415 = vpack.c.b16 %v355, %v350
        %v416 = vpack.c.b16 %v356, %v351
        %v417 = vpack.c.b16 %v357, %v352
        %v418 = vpack.c.b16 %v358, %v353
        %v419 = vpack.c.b16 %v364, %v359
        %v420 = vpack.c.b16 %v365, %v360
        %v421 = vpack.c.b16 %v366, %v361
        %v422 = vpack.c.b16 %v367, %v362
        %v423 = vpack.c.b16 %v368, %v363
        %v424 = vpack.c.b16 %v374, %v369
        %v425 = vpack.c.b16 %v375, %v370
        %v426 = vpack.c.b16 %v376, %v371
        %v427 = vpack.c.b16 %v377, %v372
        %v428 = vpack.c.b16 %v378, %v373
        %v429 = vpack.c.b16 %v384, %v379
        %v430 = vpack.c.b16 %v385, %v380
        %v431 = vpack.c.b16 %v386, %v381
        %v432 = vpack.c.b16 %v387, %v382
        %v433 = vpack.c.b16 %v388, %v383
        %v434 = vpack.c.b16 %v394, %v389
        %v435 = vpack.c.b16 %v395, %v390
        %v436 = vpack.c.b16 %v396, %v391
        %v437 = vpack.c.b16 %v397, %v392
        %v438 = vpack.c.b16 %v398, %v393
        %479 = vmatprep.subr.bf16.mxu0 %v400
        %480 = vmatpush1.bf16.msra.mxu0 %v399
        %481 = vmatprep.subr.bf16.mxu0 %v405
        %482 = vmatpush1.bf16.msra.mxu0 %v404
        %483 = vmatprep.subr.bf16.mxu0 %v410
        %484 = vmatpush1.bf16.msra.mxu0 %v409
        %485 = vmatprep.subr.bf16.mxu0 %v415
        %486 = vmatpush1.bf16.msra.mxu0 %v414
        %487 = vmatprep.subr.bf16.mxu0 %v420
        %488 = vmatpush1.bf16.msra.mxu0 %v419
        %489 = vmatprep.subr.bf16.mxu0 %v425
        %490 = vmatpush1.bf16.msra.mxu0 %v424
        %491 = vmatprep.subr.bf16.mxu0 %v430
        %492 = vmatpush1.bf16.msra.mxu0 %v429
        %493 = vmatprep.subr.bf16.mxu0 %v435
        %494 = vmatpush1.bf16.msra.mxu0 %v434
        %495 = vmatprep.subr.bf16.mxu0 0
        %496 = vmatpush1.bf16.msra.mxu0 0
        %497 = vmatprep.subr.bf16.mxu0 0
        %498 = vmatpush1.bf16.msra.mxu0 0
        %499 = vmatprep.subr.bf16.mxu0 0
        %500 = vmatpush1.bf16.msra.mxu0 0
        %501 = vmatprep.subr.bf16.mxu0 0
        %502 = vmatpush1.bf16.msra.mxu0 0
        %503 = vmatprep.subr.bf16.mxu0 0
        %504 = vmatpush1.bf16.msra.mxu0 0
        %505 = vmatprep.subr.bf16.mxu0 0
        %506 = vmatpush1.bf16.msra.mxu0 0
        %507 = vmatprep.subr.bf16.mxu0 0
        %508 = vmatpush1.bf16.msra.mxu0 0
        %509 = vmatprep.subr.bf16.mxu0 0
        %510 = vmatpush1.bf16.msra.mxu0 0
        %511 = vmatprep.mubr.bf16.mxu0 0
        %512 = vmatmul.mubr.bf16.gmra.mrb[0].mxu0 %v269
        %v513 = vpop.f32.mrb[0].mxu0
        %v514 = vadd.f32 0.0, %v513
        %v515 = vpop.f32.mrb[0].mxu0
        %v516 = vadd.f32 0.0, %v515
        %v517 = vpop.f32.mrb[0].mxu0
        %v518 = vpop.f32.mrb[0].mxu0
        %519 = vdwg.mxu0
        %520 = vmatprep.subr.bf16.mxu0 %v402
        %521 = vmatpush1.bf16.msra.mxu0 %v401
        %522 = vmatprep.subr.bf16.mxu0 %v407
        %523 = vmatpush1.bf16.msra.mxu0 %v406
        %524 = vmatprep.subr.bf16.mxu0 %v412
        %525 = vmatpush1.bf16.msra.mxu0 %v411
        %526 = vmatprep.subr.bf16.mxu0 %v417
        %527 = vmatpush1.bf16.msra.mxu0 %v416
        %528 = vmatprep.subr.bf16.mxu0 %v422
        %529 = vmatpush1.bf16.msra.mxu0 %v421
        %530 = vmatprep.subr.bf16.mxu0 %v427
        %531 = vmatpush1.bf16.msra.mxu0 %v426
        %532 = vmatprep.subr.bf16.mxu0 %v432
        %533 = vmatpush1.bf16.msra.mxu0 %v431
        %534 = vmatprep.subr.bf16.mxu0 %v437
        %535 = vmatpush1.bf16.msra.mxu0 %v436
        %536 = vmatprep.subr.bf16.mxu0 0
        %537 = vmatpush1.bf16.msra.mxu0 0
        %538 = vmatprep.subr.bf16.mxu0 0
        %539 = vmatpush1.bf16.msra.mxu0 0
        %540 = vmatprep.subr.bf16.mxu0 0
        %541 = vmatpush1.bf16.msra.mxu0 0
        %542 = vmatprep.subr.bf16.mxu0 0
        %543 = vmatpush1.bf16.msra.mxu0 0
        %544 = vmatprep.subr.bf16.mxu0 0
        %545 = vmatpush1.bf16.msra.mxu0 0
        %546 = vmatprep.subr.bf16.mxu0 0
        %547 = vmatpush1.bf16.msra.mxu0 0
        %548 = vmatprep.subr.bf16.mxu0 0
        %549 = vmatpush1.bf16.msra.mxu0 0
        %550 = vmatprep.subr.bf16.mxu0 0
        %551 = vmatpush1.bf16.msra.mxu0 0
        %552 = vmatprep.mubr.bf16.mxu0 0
        %553 = vmatmul.mubr.bf16.gmra.mrb[0].mxu0 %v269
        %v554 = vpop.f32.mrb[0].mxu0
        %v555 = vadd.f32 0.0, %v554
        %v556 = vpop.f32.mrb[0].mxu0
        %v557 = vadd.f32 0.0, %v556
        %v558 = vpop.f32.mrb[0].mxu0
        %v559 = vpop.f32.mrb[0].mxu0
        %560 = vdwg.mxu0
        %561 = vmatprep.subr.bf16.mxu0 0
        %562 = vmatpush1.bf16.msra.mxu0 %v403
        %563 = vmatprep.subr.bf16.mxu0 0
        %564 = vmatpush1.bf16.msra.mxu0 %v408
        %565 = vmatprep.subr.bf16.mxu0 0
        %566 = vmatpush1.bf16.msra.mxu0 %v413
        %567 = vmatprep.subr.bf16.mxu0 0
        %568 = vmatpush1.bf16.msra.mxu0 %v418
        %569 = vmatprep.subr.bf16.mxu0 0
        %570 = vmatpush1.bf16.msra.mxu0 %v423
        %571 = vmatprep.subr.bf16.mxu0 0
        %572 = vmatpush1.bf16.msra.mxu0 %v428
        %573 = vmatprep.subr.bf16.mxu0 0
        %574 = vmatpush1.bf16.msra.mxu0 %v433
        %575 = vmatprep.subr.bf16.mxu0 0
        %576 = vmatpush1.bf16.msra.mxu0 %v438
        %577 = vmatprep.subr.bf16.mxu0 0
        %578 = vmatpush1.bf16.msra.mxu0 0
        %579 = vmatprep.subr.bf16.mxu0 0
        %580 = vmatpush1.bf16.msra.mxu0 0
        %581 = vmatprep.subr.bf16.mxu0 0
        %582 = vmatpush1.bf16.msra.mxu0 0
        %583 = vmatprep.subr.bf16.mxu0 0
        %584 = vmatpush1.bf16.msra.mxu0 0
        %585 = vmatprep.subr.bf16.mxu0 0
        %586 = vmatpush1.bf16.msra.mxu0 0
        %587 = vmatprep.subr.bf16.mxu0 0
        %588 = vmatpush1.bf16.msra.mxu0 0
        %589 = vmatprep.subr.bf16.mxu0 0
        %590 = vmatpush1.bf16.msra.mxu0 0
        %591 = vmatprep.subr.bf16.mxu0 0
        %592 = vmatpush1.bf16.msra.mxu0 0
        %593 = vmatprep.mubr.bf16.mxu0 0
        %594 = vmatmul.mubr.bf16.gmra.mrb[0].mxu0 %v269
        %v595 = vpop.f32.mrb[0].mxu0
        %v596 = vadd.f32 0.0, %v595
        %v597 = vpop.f32.mrb[0].mxu0
        %v598 = vpop.f32.mrb[0].mxu0
        %v599 = vpop.f32.mrb[0].mxu0
        %600 = vdwg.mxu0
        %v649 = vunpack.c.l.b16 %v162
        %v650 = vunpack.c.h.b16 %v162
        %v651 = vunpack.c.l.b16 %v163
        %v652 = vunpack.c.h.b16 %v163
        %v653 = vunpack.c.l.b16 %v164
        %v654 = vunpack.c.l.b16 %v165
        %v655 = vunpack.c.h.b16 %v165
        %v656 = vunpack.c.l.b16 %v166
        %v657 = vunpack.c.h.b16 %v166
        %v658 = vunpack.c.l.b16 %v167
        %v659 = vunpack.c.l.b16 %v168
        %v660 = vunpack.c.h.b16 %v168
        %v661 = vunpack.c.l.b16 %v169
        %v662 = vunpack.c.h.b16 %v169
        %v663 = vunpack.c.l.b16 %v170
        %v664 = vunpack.c.l.b16 %v171
        %v665 = vunpack.c.h.b16 %v171
        %v666 = vunpack.c.l.b16 %v172
        %v667 = vunpack.c.h.b16 %v172
        %v668 = vunpack.c.l.b16 %v173
        %v669 = vunpack.c.l.b16 %v174
        %v670 = vunpack.c.h.b16 %v174
        %v671 = vunpack.c.l.b16 %v175
        %v672 = vunpack.c.h.b16 %v175
        %v673 = vunpack.c.l.b16 %v176
        %v674 = vunpack.c.l.b16 %v177
        %v675 = vunpack.c.h.b16 %v177
        %v676 = vunpack.c.l.b16 %v178
        %v677 = vunpack.c.h.b16 %v178
        %v678 = vunpack.c.l.b16 %v179
        %v679 = vunpack.c.l.b16 %v180
        %v680 = vunpack.c.h.b16 %v180
        %v681 = vunpack.c.l.b16 %v181
        %v682 = vunpack.c.h.b16 %v181
        %v683 = vunpack.c.l.b16 %v182
        %v684 = vunpack.c.l.b16 %v183
        %v685 = vunpack.c.h.b16 %v183
        %v686 = vunpack.c.l.b16 %v184
        %v687 = vunpack.c.h.b16 %v184
        %v688 = vunpack.c.l.b16 %v185
        %v689 = vunpack.c.l.b16 %v186
        %v690 = vunpack.c.h.b16 %v186
        %v691 = vunpack.c.l.b16 %v187
        %v692 = vunpack.c.h.b16 %v187
        %v693 = vunpack.c.l.b16 %v188
        %v694 = vunpack.c.l.b16 %v189
        %v695 = vunpack.c.h.b16 %v189
        %v696 = vunpack.c.l.b16 %v190
        %v697 = vunpack.c.h.b16 %v190
        %v698 = vunpack.c.l.b16 %v191
        %v699 = vunpack.c.l.b16 %v192
        %v700 = vunpack.c.h.b16 %v192
        %v701 = vunpack.c.l.b16 %v193
        %v702 = vunpack.c.h.b16 %v193
        %v703 = vunpack.c.l.b16 %v194
        %v704 = vunpack.c.l.b16 %v195
        %v705 = vunpack.c.h.b16 %v195
        %v706 = vunpack.c.l.b16 %v196
        %v707 = vunpack.c.h.b16 %v196
        %v708 = vunpack.c.l.b16 %v197
        %v709 = vunpack.c.l.b16 %v198
        %v710 = vunpack.c.h.b16 %v198
        %v711 = vunpack.c.l.b16 %v199
        %v712 = vunpack.c.h.b16 %v199
        %v713 = vunpack.c.l.b16 %v200
        %v714 = vunpack.c.l.b16 %v201
        %v715 = vunpack.c.h.b16 %v201
        %v716 = vunpack.c.l.b16 %v202
        %v717 = vunpack.c.h.b16 %v202
        %v718 = vunpack.c.l.b16 %v203
        %v719 = vunpack.c.l.b16 %v204
        %v720 = vunpack.c.h.b16 %v204
        %v721 = vunpack.c.l.b16 %v205
        %v722 = vunpack.c.h.b16 %v205
        %v723 = vunpack.c.l.b16 %v206
        %v724 = vunpack.c.l.b16 %v207
        %v725 = vunpack.c.h.b16 %v207
        %v726 = vunpack.c.l.b16 %v208
        %v727 = vunpack.c.h.b16 %v208
        %v728 = vunpack.c.l.b16 %v209
        %v729 = vpack.c.b16 %v654, %v649
        %v730 = vpack.c.b16 %v655, %v650
        %v731 = vpack.c.b16 %v656, %v651
        %v732 = vpack.c.b16 %v657, %v652
        %v733 = vpack.c.b16 %v658, %v653
        %v734 = vpack.c.b16 %v664, %v659
        %v735 = vpack.c.b16 %v665, %v660
        %v736 = vpack.c.b16 %v666, %v661
        %v737 = vpack.c.b16 %v667, %v662
        %v738 = vpack.c.b16 %v668, %v663
        %v739 = vpack.c.b16 %v674, %v669
        %v740 = vpack.c.b16 %v675, %v670
        %v741 = vpack.c.b16 %v676, %v671
        %v742 = vpack.c.b16 %v677, %v672
        %v743 = vpack.c.b16 %v678, %v673
        %v744 = vpack.c.b16 %v684, %v679
        %v745 = vpack.c.b16 %v685, %v680
        %v746 = vpack.c.b16 %v686, %v681
        %v747 = vpack.c.b16 %v687, %v682
        %v748 = vpack.c.b16 %v688, %v683
        %v749 = vpack.c.b16 %v694, %v689
        %v750 = vpack.c.b16 %v695, %v690
        %v751 = vpack.c.b16 %v696, %v691
        %v752 = vpack.c.b16 %v697, %v692
        %v753 = vpack.c.b16 %v698, %v693
        %v754 = vpack.c.b16 %v704, %v699
        %v755 = vpack.c.b16 %v705, %v700
        %v756 = vpack.c.b16 %v706, %v701
        %v757 = vpack.c.b16 %v707, %v702
        %v758 = vpack.c.b16 %v708, %v703
        %v759 = vpack.c.b16 %v714, %v709
        %v760 = vpack.c.b16 %v715, %v710
        %v761 = vpack.c.b16 %v716, %v711
        %v762 = vpack.c.b16 %v717, %v712
        %v763 = vpack.c.b16 %v718, %v713
        %v764 = vpack.c.b16 %v724, %v719
        %v765 = vpack.c.b16 %v725, %v720
        %v766 = vpack.c.b16 %v726, %v721
        %v767 = vpack.c.b16 %v727, %v722
        %v768 = vpack.c.b16 %v728, %v723
        %809 = vmatprep.subr.bf16.mxu0 %v730
        %810 = vmatpush1.bf16.msra.mxu0 %v729
        %811 = vmatprep.subr.bf16.mxu0 %v735
        %812 = vmatpush1.bf16.msra.mxu0 %v734
        %813 = vmatprep.subr.bf16.mxu0 %v740
        %814 = vmatpush1.bf16.msra.mxu0 %v739
        %815 = vmatprep.subr.bf16.mxu0 %v745
        %816 = vmatpush1.bf16.msra.mxu0 %v744
        %817 = vmatprep.subr.bf16.mxu0 %v750
        %818 = vmatpush1.bf16.msra.mxu0 %v749
        %819 = vmatprep.subr.bf16.mxu0 %v755
        %820 = vmatpush1.bf16.msra.mxu0 %v754
        %821 = vmatprep.subr.bf16.mxu0 %v760
        %822 = vmatpush1.bf16.msra.mxu0 %v759
        %823 = vmatprep.subr.bf16.mxu0 %v765
        %824 = vmatpush1.bf16.msra.mxu0 %v764
        %825 = vmatprep.subr.bf16.mxu0 0
        %826 = vmatpush1.bf16.msra.mxu0 0
        %827 = vmatprep.subr.bf16.mxu0 0
        %828 = vmatpush1.bf16.msra.mxu0 0
        %829 = vmatprep.subr.bf16.mxu0 0
        %830 = vmatpush1.bf16.msra.mxu0 0
        %831 = vmatprep.subr.bf16.mxu0 0
        %832 = vmatpush1.bf16.msra.mxu0 0
        %833 = vmatprep.subr.bf16.mxu0 0
        %834 = vmatpush1.bf16.msra.mxu0 0
        %835 = vmatprep.subr.bf16.mxu0 0
        %836 = vmatpush1.bf16.msra.mxu0 0
        %837 = vmatprep.subr.bf16.mxu0 0
        %838 = vmatpush1.bf16.msra.mxu0 0
        %839 = vmatprep.subr.bf16.mxu0 0
        %840 = vmatpush1.bf16.msra.mxu0 0
        %841 = vmatprep.mubr.bf16.mxu0 0
        %842 = vmatmul.mubr.bf16.gmra.mrb[0].mxu0 %v160
        %v843 = vpop.f32.mrb[0].mxu0
        %v844 = vadd.f32 %v514, %v843
        %v845 = vpop.f32.mrb[0].mxu0
        %v846 = vadd.f32 %v516, %v845
        %v847 = vpop.f32.mrb[0].mxu0
        %v848 = vpop.f32.mrb[0].mxu0
        %849 = vdwg.mxu0
        %850 = vmatprep.subr.bf16.mxu0 %v732
        %851 = vmatpush1.bf16.msra.mxu0 %v731
        %852 = vmatprep.subr.bf16.mxu0 %v737
        %853 = vmatpush1.bf16.msra.mxu0 %v736
        %854 = vmatprep.subr.bf16.mxu0 %v742
        %855 = vmatpush1.bf16.msra.mxu0 %v741
        %856 = vmatprep.subr.bf16.mxu0 %v747
        %857 = vmatpush1.bf16.msra.mxu0 %v746
        %858 = vmatprep.subr.bf16.mxu0 %v752
        %859 = vmatpush1.bf16.msra.mxu0 %v751
        %860 = vmatprep.subr.bf16.mxu0 %v757
        %861 = vmatpush1.bf16.msra.mxu0 %v756
        %862 = vmatprep.subr.bf16.mxu0 %v762
        %863 = vmatpush1.bf16.msra.mxu0 %v761
        %864 = vmatprep.subr.bf16.mxu0 %v767
        %865 = vmatpush1.bf16.msra.mxu0 %v766
        %866 = vmatprep.subr.bf16.mxu0 0
        %867 = vmatpush1.bf16.msra.mxu0 0
        %868 = vmatprep.subr.bf16.mxu0 0
        %869 = vmatpush1.bf16.msra.mxu0 0
        %870 = vmatprep.subr.bf16.mxu0 0
        %871 = vmatpush1.bf16.msra.mxu0 0
        %872 = vmatprep.subr.bf16.mxu0 0
        %873 = vmatpush1.bf16.msra.mxu0 0
        %874 = vmatprep.subr.bf16.mxu0 0
        %875 = vmatpush1.bf16.msra.mxu0 0
        %876 = vmatprep.subr.bf16.mxu0 0
        %877 = vmatpush1.bf16.msra.mxu0 0
        %878 = vmatprep.subr.bf16.mxu0 0
        %879 = vmatpush1.bf16.msra.mxu0 0
        %880 = vmatprep.subr.bf16.mxu0 0
        %881 = vmatpush1.bf16.msra.mxu0 0
        %882 = vmatprep.mubr.bf16.mxu0 0
        %883 = vmatmul.mubr.bf16.gmra.mrb[0].mxu0 %v160
        %v884 = vpop.f32.mrb[0].mxu0
        %v885 = vadd.f32 %v555, %v884
        %v886 = vpop.f32.mrb[0].mxu0
        %v887 = vadd.f32 %v557, %v886
        %v888 = vpop.f32.mrb[0].mxu0
        %v889 = vpop.f32.mrb[0].mxu0
        %890 = vdwg.mxu0
        %891 = vmatprep.subr.bf16.mxu0 0
        %892 = vmatpush1.bf16.msra.mxu0 %v733
        %893 = vmatprep.subr.bf16.mxu0 0
        %894 = vmatpush1.bf16.msra.mxu0 %v738
        %895 = vmatprep.subr.bf16.mxu0 0
        %896 = vmatpush1.bf16.msra.mxu0 %v743
        %897 = vmatprep.subr.bf16.mxu0 0
        %898 = vmatpush1.bf16.msra.mxu0 %v748
        %899 = vmatprep.subr.bf16.mxu0 0
        %900 = vmatpush1.bf16.msra.mxu0 %v753
        %901 = vmatprep.subr.bf16.mxu0 0
        %902 = vmatpush1.bf16.msra.mxu0 %v758
        %903 = vmatprep.subr.bf16.mxu0 0
        %904 = vmatpush1.bf16.msra.mxu0 %v763
        %905 = vmatprep.subr.bf16.mxu0 0
        %906 = vmatpush1.bf16.msra.mxu0 %v768
        %907 = vmatprep.subr.bf16.mxu0 0
        %908 = vmatpush1.bf16.msra.mxu0 0
        %909 = vmatprep.subr.bf16.mxu0 0
        %910 = vmatpush1.bf16.msra.mxu0 0
        %911 = vmatprep.subr.bf16.mxu0 0
        %912 = vmatpush1.bf16.msra.mxu0 0
        %913 = vmatprep.subr.bf16.mxu0 0
        %914 = vmatpush1.bf16.msra.mxu0 0
        %915 = vmatprep.subr.bf16.mxu0 0
        %916 = vmatpush1.bf16.msra.mxu0 0
        %917 = vmatprep.subr.bf16.mxu0 0
        %918 = vmatpush1.bf16.msra.mxu0 0
        %919 = vmatprep.subr.bf16.mxu0 0
        %920 = vmatpush1.bf16.msra.mxu0 0
        %921 = vmatprep.subr.bf16.mxu0 0
        %922 = vmatpush1.bf16.msra.mxu0 0
        %923 = vmatprep.mubr.bf16.mxu0 0
        %924 = vmatmul.mubr.bf16.gmra.mrb[0].mxu0 %v160
        %v925 = vpop.f32.mrb[0].mxu0
        %v926 = vadd.f32 %v596, %v925
        %v927 = vpop.f32.mrb[0].mxu0
        %v928 = vpop.f32.mrb[0].mxu0
        %v929 = vpop.f32.mrb[0].mxu0
        %930 = vdwg.mxu0
        %v931 = vld [vmem:[#allocation2 + $0x280] sm:$0xff]
        %v932 = vld [vmem:[#allocation2 + $0x288] sm:$0xff]
        %v933 = vld [vmem:[#allocation2 + $0x290] sm:$0xf]
        %v934 = vld [vmem:[#allocation2 + $0x294] sm:$0xff]
        %v935 = vld [vmem:[#allocation2 + $0x29c] sm:$0xff]
        %v936 = vld [vmem:[#allocation2 + $0x2a4] sm:$0xf]
        %v937 = vld [vmem:[#allocation2 + $0x2a8] sm:$0xff]
        %v938 = vld [vmem:[#allocation2 + $0x2b0] sm:$0xff]
        %v939 = vld [vmem:[#allocation2 + $0x2b8] sm:$0xf]
        %v940 = vld [vmem:[#allocation2 + $0x2bc] sm:$0xff]
        %v941 = vld [vmem:[#allocation2 + $0x2c4] sm:$0xff]
        %v942 = vld [vmem:[#allocation2 + $0x2cc] sm:$0xf]
        %v943 = vld [vmem:[#allocation2 + $0x2d0] sm:$0xff]
        %v944 = vld [vmem:[#allocation2 + $0x2d8] sm:$0xff]
        %v945 = vld [vmem:[#allocation2 + $0x2e0] sm:$0xf]
        %v946 = vld [vmem:[#allocation2 + $0x2e4] sm:$0xff]
        %v947 = vld [vmem:[#allocation2 + $0x2ec] sm:$0xff]
        %v948 = vld [vmem:[#allocation2 + $0x2f4] sm:$0xf]
        %v949 = vld [vmem:[#allocation2 + $0x2f8] sm:$0xff]
        %v950 = vld [vmem:[#allocation2 + $0x300] sm:$0xff]
        %v951 = vld [vmem:[#allocation2 + $0x308] sm:$0xf]
        %v952 = vld [vmem:[#allocation2 + $0x30c] sm:$0xff]
        %v953 = vld [vmem:[#allocation2 + $0x314] sm:$0xff]
        %v954 = vld [vmem:[#allocation2 + $0x31c] sm:$0xf]
        %v955 = vld [vmem:[#allocation2 + $0x320] sm:$0xff]
        %v956 = vld [vmem:[#allocation2 + $0x328] sm:$0xff]
        %v957 = vld [vmem:[#allocation2 + $0x330] sm:$0xf]
        %v958 = vld [vmem:[#allocation2 + $0x334] sm:$0xff]
        %v959 = vld [vmem:[#allocation2 + $0x33c] sm:$0xff]
        %v960 = vld [vmem:[#allocation2 + $0x344] sm:$0xf]
        %v961 = vld [vmem:[#allocation2 + $0x348] sm:$0xff]
        %v962 = vld [vmem:[#allocation2 + $0x350] sm:$0xff]
        %v963 = vld [vmem:[#allocation2 + $0x358] sm:$0xf]
        %v964 = vld [vmem:[#allocation2 + $0x35c] sm:$0xff]
        %v965 = vld [vmem:[#allocation2 + $0x364] sm:$0xff]
        %v966 = vld [vmem:[#allocation2 + $0x36c] sm:$0xf]
        %v967 = vld [vmem:[#allocation2 + $0x370] sm:$0xff]
        %v968 = vld [vmem:[#allocation2 + $0x378] sm:$0xff]
        %v969 = vld [vmem:[#allocation2 + $0x380] sm:$0xf]
        %v970 = vld [vmem:[#allocation2 + $0x384] sm:$0xff]
        %v971 = vld [vmem:[#allocation2 + $0x38c] sm:$0xff]
        %v972 = vld [vmem:[#allocation2 + $0x394] sm:$0xf]
        %v973 = vld [vmem:[#allocation2 + $0x398] sm:$0xff]
        %v974 = vld [vmem:[#allocation2 + $0x3a0] sm:$0xff]
        %v975 = vld [vmem:[#allocation2 + $0x3a8] sm:$0xf]
        %v976 = vld [vmem:[#allocation2 + $0x3ac] sm:$0xff]
        %v977 = vld [vmem:[#allocation2 + $0x3b4] sm:$0xff]
        %v978 = vld [vmem:[#allocation2 + $0x3bc] sm:$0xf]
        %v979 = vrot.slane %v262, 1
        %v1029 = vunpack.c.l.b16 %v931
        %v1030 = vunpack.c.h.b16 %v931
        %v1031 = vunpack.c.l.b16 %v932
        %v1032 = vunpack.c.h.b16 %v932
        %v1033 = vunpack.c.l.b16 %v933
        %v1034 = vunpack.c.l.b16 %v934
        %v1035 = vunpack.c.h.b16 %v934
        %v1036 = vunpack.c.l.b16 %v935
        %v1037 = vunpack.c.h.b16 %v935
        %v1038 = vunpack.c.l.b16 %v936
        %v1039 = vunpack.c.l.b16 %v937
        %v1040 = vunpack.c.h.b16 %v937
        %v1041 = vunpack.c.l.b16 %v938
        %v1042 = vunpack.c.h.b16 %v938
        %v1043 = vunpack.c.l.b16 %v939
        %v1044 = vunpack.c.l.b16 %v940
        %v1045 = vunpack.c.h.b16 %v940
        %v1046 = vunpack.c.l.b16 %v941
        %v1047 = vunpack.c.h.b16 %v941
        %v1048 = vunpack.c.l.b16 %v942
        %v1049 = vunpack.c.l.b16 %v943
        %v1050 = vunpack.c.h.b16 %v943
        %v1051 = vunpack.c.l.b16 %v944
        %v1052 = vunpack.c.h.b16 %v944
        %v1053 = vunpack.c.l.b16 %v945
        %v1054 = vunpack.c.l.b16 %v946
        %v1055 = vunpack.c.h.b16 %v946
        %v1056 = vunpack.c.l.b16 %v947
        %v1057 = vunpack.c.h.b16 %v947
        %v1058 = vunpack.c.l.b16 %v948
        %v1059 = vunpack.c.l.b16 %v949
        %v1060 = vunpack.c.h.b16 %v949
        %v1061 = vunpack.c.l.b16 %v950
        %v1062 = vunpack.c.h.b16 %v950
        %v1063 = vunpack.c.l.b16 %v951
        %v1064 = vunpack.c.l.b16 %v952
        %v1065 = vunpack.c.h.b16 %v952
        %v1066 = vunpack.c.l.b16 %v953
        %v1067 = vunpack.c.h.b16 %v953
        %v1068 = vunpack.c.l.b16 %v954
        %v1069 = vunpack.c.l.b16 %v955
        %v1070 = vunpack.c.h.b16 %v955
        %v1071 = vunpack.c.l.b16 %v956
        %v1072 = vunpack.c.h.b16 %v956
        %v1073 = vunpack.c.l.b16 %v957
        %v1074 = vunpack.c.l.b16 %v958
        %v1075 = vunpack.c.h.b16 %v958
        %v1076 = vunpack.c.l.b16 %v959
        %v1077 = vunpack.c.h.b16 %v959
        %v1078 = vunpack.c.l.b16 %v960
        %v1079 = vunpack.c.l.b16 %v961
        %v1080 = vunpack.c.h.b16 %v961
        %v1081 = vunpack.c.l.b16 %v962
        %v1082 = vunpack.c.h.b16 %v962
        %v1083 = vunpack.c.l.b16 %v963
        %v1084 = vunpack.c.l.b16 %v964
        %v1085 = vunpack.c.h.b16 %v964
        %v1086 = vunpack.c.l.b16 %v965
        %v1087 = vunpack.c.h.b16 %v965
        %v1088 = vunpack.c.l.b16 %v966
        %v1089 = vunpack.c.l.b16 %v967
        %v1090 = vunpack.c.h.b16 %v967
        %v1091 = vunpack.c.l.b16 %v968
        %v1092 = vunpack.c.h.b16 %v968
        %v1093 = vunpack.c.l.b16 %v969
        %v1094 = vunpack.c.l.b16 %v970
        %v1095 = vunpack.c.h.b16 %v970
        %v1096 = vunpack.c.l.b16 %v971
        %v1097 = vunpack.c.h.b16 %v971
        %v1098 = vunpack.c.l.b16 %v972
        %v1099 = vunpack.c.l.b16 %v973
        %v1100 = vunpack.c.h.b16 %v973
        %v1101 = vunpack.c.l.b16 %v974
        %v1102 = vunpack.c.h.b16 %v974
        %v1103 = vunpack.c.l.b16 %v975
        %v1104 = vunpack.c.l.b16 %v976
        %v1105 = vunpack.c.h.b16 %v976
        %v1106 = vunpack.c.l.b16 %v977
        %v1107 = vunpack.c.h.b16 %v977
        %v1108 = vunpack.c.l.b16 %v978
        %v1109 = vpack.c.b16 %v1034, %v1029
        %v1110 = vpack.c.b16 %v1035, %v1030
        %v1111 = vpack.c.b16 %v1036, %v1031
        %v1112 = vpack.c.b16 %v1037, %v1032
        %v1113 = vpack.c.b16 %v1038, %v1033
        %v1114 = vpack.c.b16 %v1044, %v1039
        %v1115 = vpack.c.b16 %v1045, %v1040
        %v1116 = vpack.c.b16 %v1046, %v1041
        %v1117 = vpack.c.b16 %v1047, %v1042
        %v1118 = vpack.c.b16 %v1048, %v1043
        %v1119 = vpack.c.b16 %v1054, %v1049
        %v1120 = vpack.c.b16 %v1055, %v1050
        %v1121 = vpack.c.b16 %v1056, %v1051
        %v1122 = vpack.c.b16 %v1057, %v1052
        %v1123 = vpack.c.b16 %v1058, %v1053
        %v1124 = vpack.c.b16 %v1064, %v1059
        %v1125 = vpack.c.b16 %v1065, %v1060
        %v1126 = vpack.c.b16 %v1066, %v1061
        %v1127 = vpack.c.b16 %v1067, %v1062
        %v1128 = vpack.c.b16 %v1068, %v1063
        %v1129 = vpack.c.b16 %v1074, %v1069
        %v1130 = vpack.c.b16 %v1075, %v1070
        %v1131 = vpack.c.b16 %v1076, %v1071
        %v1132 = vpack.c.b16 %v1077, %v1072
        %v1133 = vpack.c.b16 %v1078, %v1073
        %v1134 = vpack.c.b16 %v1084, %v1079
        %v1135 = vpack.c.b16 %v1085, %v1080
        %v1136 = vpack.c.b16 %v1086, %v1081
        %v1137 = vpack.c.b16 %v1087, %v1082
        %v1138 = vpack.c.b16 %v1088, %v1083
        %v1139 = vpack.c.b16 %v1094, %v1089
        %v1140 = vpack.c.b16 %v1095, %v1090
        %v1141 = vpack.c.b16 %v1096, %v1091
        %v1142 = vpack.c.b16 %v1097, %v1092
        %v1143 = vpack.c.b16 %v1098, %v1093
        %v1144 = vpack.c.b16 %v1104, %v1099
        %v1145 = vpack.c.b16 %v1105, %v1100
        %v1146 = vpack.c.b16 %v1106, %v1101
        %v1147 = vpack.c.b16 %v1107, %v1102
        %v1148 = vpack.c.b16 %v1108, %v1103
        %1189 = vmatprep.subr.bf16.mxu0 %v1110
        %1190 = vmatpush1.bf16.msra.mxu0 %v1109
        %1191 = vmatprep.subr.bf16.mxu0 %v1115
        %1192 = vmatpush1.bf16.msra.mxu0 %v1114
        %1193 = vmatprep.subr.bf16.mxu0 %v1120
        %1194 = vmatpush1.bf16.msra.mxu0 %v1119
        %1195 = vmatprep.subr.bf16.mxu0 %v1125
        %1196 = vmatpush1.bf16.msra.mxu0 %v1124
        %1197 = vmatprep.subr.bf16.mxu0 %v1130
        %1198 = vmatpush1.bf16.msra.mxu0 %v1129
        %1199 = vmatprep.subr.bf16.mxu0 %v1135
        %1200 = vmatpush1.bf16.msra.mxu0 %v1134
        %1201 = vmatprep.subr.bf16.mxu0 %v1140
        %1202 = vmatpush1.bf16.msra.mxu0 %v1139
        %1203 = vmatprep.subr.bf16.mxu0 %v1145
        %1204 = vmatpush1.bf16.msra.mxu0 %v1144
        %1205 = vmatprep.subr.bf16.mxu0 0
        %1206 = vmatpush1.bf16.msra.mxu0 0
        %1207 = vmatprep.subr.bf16.mxu0 0
        %1208 = vmatpush1.bf16.msra.mxu0 0
        %1209 = vmatprep.subr.bf16.mxu0 0
        %1210 = vmatpush1.bf16.msra.mxu0 0
        %1211 = vmatprep.subr.bf16.mxu0 0
        %1212 = vmatpush1.bf16.msra.mxu0 0
        %1213 = vmatprep.subr.bf16.mxu0 0
        %1214 = vmatpush1.bf16.msra.mxu0 0
        %1215 = vmatprep.subr.bf16.mxu0 0
        %1216 = vmatpush1.bf16.msra.mxu0 0
        %1217 = vmatprep.subr.bf16.mxu0 0
        %1218 = vmatpush1.bf16.msra.mxu0 0
        %1219 = vmatprep.subr.bf16.mxu0 0
        %1220 = vmatpush1.bf16.msra.mxu0 0
        %1221 = vmatprep.mubr.bf16.mxu0 0
        %1222 = vmatmul.mubr.bf16.gmra.mrb[0].mxu0 %v979
        %v1223 = vpop.f32.mrb[0].mxu0
        %v1224 = vadd.f32 0.0, %v1223
        %v1225 = vpop.f32.mrb[0].mxu0
        %v1226 = vadd.f32 0.0, %v1225
        %v1227 = vpop.f32.mrb[0].mxu0
        %v1228 = vpop.f32.mrb[0].mxu0
        %1229 = vdwg.mxu0
        %1230 = vmatprep.subr.bf16.mxu0 %v1112
        %1231 = vmatpush1.bf16.msra.mxu0 %v1111
        %1232 = vmatprep.subr.bf16.mxu0 %v1117
        %1233 = vmatpush1.bf16.msra.mxu0 %v1116
        %1234 = vmatprep.subr.bf16.mxu0 %v1122
        %1235 = vmatpush1.bf16.msra.mxu0 %v1121
        %1236 = vmatprep.subr.bf16.mxu0 %v1127
        %1237 = vmatpush1.bf16.msra.mxu0 %v1126
        %1238 = vmatprep.subr.bf16.mxu0 %v1132
        %1239 = vmatpush1.bf16.msra.mxu0 %v1131
        %1240 = vmatprep.subr.bf16.mxu0 %v1137
        %1241 = vmatpush1.bf16.msra.mxu0 %v1136
        %1242 = vmatprep.subr.bf16.mxu0 %v1142
        %1243 = vmatpush1.bf16.msra.mxu0 %v1141
        %1244 = vmatprep.subr.bf16.mxu0 %v1147
        %1245 = vmatpush1.bf16.msra.mxu0 %v1146
        %1246 = vmatprep.subr.bf16.mxu0 0
        %1247 = vmatpush1.bf16.msra.mxu0 0
        %1248 = vmatprep.subr.bf16.mxu0 0
        %1249 = vmatpush1.bf16.msra.mxu0 0
        %1250 = vmatprep.subr.bf16.mxu0 0
        %1251 = vmatpush1.bf16.msra.mxu0 0
        %1252 = vmatprep.subr.bf16.mxu0 0
        %1253 = vmatpush1.bf16.msra.mxu0 0
        %1254 = vmatprep.subr.bf16.mxu0 0
        %1255 = vmatpush1.bf16.msra.mxu0 0
        %1256 = vmatprep.subr.bf16.mxu0 0
        %1257 = vmatpush1.bf16.msra.mxu0 0
        %1258 = vmatprep.subr.bf16.mxu0 0
        %1259 = vmatpush1.bf16.msra.mxu0 0
        %1260 = vmatprep.subr.bf16.mxu0 0
        %1261 = vmatpush1.bf16.msra.mxu0 0
        %1262 = vmatprep.mubr.bf16.mxu0 0
        %1263 = vmatmul.mubr.bf16.gmra.mrb[0].mxu0 %v979
        %v1264 = vpop.f32.mrb[0].mxu0
        %v1265 = vadd.f32 0.0, %v1264
        %v1266 = vpop.f32.mrb[0].mxu0
        %v1267 = vadd.f32 0.0, %v1266
        %v1268 = vpop.f32.mrb[0].mxu0
        %v1269 = vpop.f32.mrb[0].mxu0
        %1270 = vdwg.mxu0
        %1271 = vmatprep.subr.bf16.mxu0 0
        %1272 = vmatpush1.bf16.msra.mxu0 %v1113
        %1273 = vmatprep.subr.bf16.mxu0 0
        %1274 = vmatpush1.bf16.msra.mxu0 %v1118
        %1275 = vmatprep.subr.bf16.mxu0 0
        %1276 = vmatpush1.bf16.msra.mxu0 %v1123
        %1277 = vmatprep.subr.bf16.mxu0 0
        %1278 = vmatpush1.bf16.msra.mxu0 %v1128
        %1279 = vmatprep.subr.bf16.mxu0 0
        %1280 = vmatpush1.bf16.msra.mxu0 %v1133
        %1281 = vmatprep.subr.bf16.mxu0 0
        %1282 = vmatpush1.bf16.msra.mxu0 %v1138
        %1283 = vmatprep.subr.bf16.mxu0 0
        %1284 = vmatpush1.bf16.msra.mxu0 %v1143
        %1285 = vmatprep.subr.bf16.mxu0 0
        %1286 = vmatpush1.bf16.msra.mxu0 %v1148
        %1287 = vmatprep.subr.bf16.mxu0 0
        %1288 = vmatpush1.bf16.msra.mxu0 0
        %1289 = vmatprep.subr.bf16.mxu0 0
        %1290 = vmatpush1.bf16.msra.mxu0 0
        %1291 = vmatprep.subr.bf16.mxu0 0
        %1292 = vmatpush1.bf16.msra.mxu0 0
        %1293 = vmatprep.subr.bf16.mxu0 0
        %1294 = vmatpush1.bf16.msra.mxu0 0
        %1295 = vmatprep.subr.bf16.mxu0 0
        %1296 = vmatpush1.bf16.msra.mxu0 0
        %1297 = vmatprep.subr.bf16.mxu0 0
        %1298 = vmatpush1.bf16.msra.mxu0 0
        %1299 = vmatprep.subr.bf16.mxu0 0
        %1300 = vmatpush1.bf16.msra.mxu0 0
        %1301 = vmatprep.subr.bf16.mxu0 0
        %1302 = vmatpush1.bf16.msra.mxu0 0
        %1303 = vmatprep.mubr.bf16.mxu0 0
        %1304 = vmatmul.mubr.bf16.gmra.mrb[0].mxu0 %v979
        %v1305 = vpop.f32.mrb[0].mxu0
        %v1306 = vadd.f32 0.0, %v1305
        %v1307 = vpop.f32.mrb[0].mxu0
        %v1308 = vpop.f32.mrb[0].mxu0
        %v1309 = vpop.f32.mrb[0].mxu0
        %1310 = vdwg.mxu0
        %v1311 = vadd.f32 %v844, %v1224
        %v1312 = vadd.f32 %v846, %v1226
        %v1313 = vadd.f32 %v885, %v1265
        %v1314 = vadd.f32 %v887, %v1267
        %v1315 = vadd.f32 %v926, %v1306
        %v1316 = vld [vmem:[#allocation2 + $0x3c0] sm:$0xff]
        %v1317 = vld [vmem:[#allocation2 + $0x3c8] sm:$0xff]
        %v1318 = vld [vmem:[#allocation2 + $0x3d0] sm:$0xf]
        %v1319 = vld [vmem:[#allocation2 + $0x3d4] sm:$0xff]
        %v1320 = vld [vmem:[#allocation2 + $0x3dc] sm:$0xff]
        %v1321 = vld [vmem:[#allocation2 + $0x3e4] sm:$0xf]
        %v1322 = vld [vmem:[#allocation2 + $0x3e8] sm:$0xff]
        %v1323 = vld [vmem:[#allocation2 + $0x3f0] sm:$0xff]
        %v1324 = vld [vmem:[#allocation2 + $0x3f8] sm:$0xf]
        %v1325 = vld [vmem:[#allocation2 + $0x3fc] sm:$0xff]
        %v1326 = vld [vmem:[#allocation2 + $0x404] sm:$0xff]
        %v1327 = vld [vmem:[#allocation2 + $0x40c] sm:$0xf]
        %v1328 = vld [vmem:[#allocation2 + $0x410] sm:$0xff]
        %v1329 = vld [vmem:[#allocation2 + $0x418] sm:$0xff]
        %v1330 = vld [vmem:[#allocation2 + $0x420] sm:$0xf]
        %v1331 = vld [vmem:[#allocation2 + $0x424] sm:$0xff]
        %v1332 = vld [vmem:[#allocation2 + $0x42c] sm:$0xff]
        %v1333 = vld [vmem:[#allocation2 + $0x434] sm:$0xf]
        %v1334 = vld [vmem:[#allocation2 + $0x438] sm:$0xff]
        %v1335 = vld [vmem:[#allocation2 + $0x440] sm:$0xff]
        %v1336 = vld [vmem:[#allocation2 + $0x448] sm:$0xf]
        %v1337 = vld [vmem:[#allocation2 + $0x44c] sm:$0xff]
        %v1338 = vld [vmem:[#allocation2 + $0x454] sm:$0xff]
        %v1339 = vld [vmem:[#allocation2 + $0x45c] sm:$0xf]
        %v1340 = vld [vmem:[#allocation2 + $0x460] sm:$0xff]
        %v1341 = vld [vmem:[#allocation2 + $0x468] sm:$0xff]
        %v1342 = vld [vmem:[#allocation2 + $0x470] sm:$0xf]
        %v1343 = vld [vmem:[#allocation2 + $0x474] sm:$0xff]
        %v1344 = vld [vmem:[#allocation2 + $0x47c] sm:$0xff]
        %v1345 = vld [vmem:[#allocation2 + $0x484] sm:$0xf]
        %v1346 = vld [vmem:[#allocation2 + $0x488] sm:$0xff]
        %v1347 = vld [vmem:[#allocation2 + $0x490] sm:$0xff]
        %v1348 = vld [vmem:[#allocation2 + $0x498] sm:$0xf]
        %v1349 = vld [vmem:[#allocation2 + $0x49c] sm:$0xff]
        %v1350 = vld [vmem:[#allocation2 + $0x4a4] sm:$0xff]
        %v1351 = vld [vmem:[#allocation2 + $0x4ac] sm:$0xf]
        %v1352 = vld [vmem:[#allocation2 + $0x4b0] sm:$0xff]
        %v1353 = vld [vmem:[#allocation2 + $0x4b8] sm:$0xff]
        %v1354 = vld [vmem:[#allocation2 + $0x4c0] sm:$0xf]
        %v1355 = vld [vmem:[#allocation2 + $0x4c4] sm:$0xff]
        %v1356 = vld [vmem:[#allocation2 + $0x4cc] sm:$0xff]
        %v1357 = vld [vmem:[#allocation2 + $0x4d4] sm:$0xf]
        %v1358 = vld [vmem:[#allocation2 + $0x4d8] sm:$0xff]
        %v1359 = vld [vmem:[#allocation2 + $0x4e0] sm:$0xff]
        %v1360 = vld [vmem:[#allocation2 + $0x4e8] sm:$0xf]
        %v1361 = vld [vmem:[#allocation2 + $0x4ec] sm:$0xff]
        %v1362 = vld [vmem:[#allocation2 + $0x4f4] sm:$0xff]
        %v1363 = vld [vmem:[#allocation2 + $0x4fc] sm:$0xf]
        %v1364 = vrot.slane %v264, 1
        %v1365 = vrot.slane %v266, 2
        %v1366 = vor.u32 %v1364, %v1365
        %v1416 = vunpack.c.l.b16 %v1316
        %v1417 = vunpack.c.h.b16 %v1316
        %v1418 = vunpack.c.l.b16 %v1317
        %v1419 = vunpack.c.h.b16 %v1317
        %v1420 = vunpack.c.l.b16 %v1318
        %v1421 = vunpack.c.l.b16 %v1319
        %v1422 = vunpack.c.h.b16 %v1319
        %v1423 = vunpack.c.l.b16 %v1320
        %v1424 = vunpack.c.h.b16 %v1320
        %v1425 = vunpack.c.l.b16 %v1321
        %v1426 = vunpack.c.l.b16 %v1322
        %v1427 = vunpack.c.h.b16 %v1322
        %v1428 = vunpack.c.l.b16 %v1323
        %v1429 = vunpack.c.h.b16 %v1323
        %v1430 = vunpack.c.l.b16 %v1324
        %v1431 = vunpack.c.l.b16 %v1325
        %v1432 = vunpack.c.h.b16 %v1325
        %v1433 = vunpack.c.l.b16 %v1326
        %v1434 = vunpack.c.h.b16 %v1326
        %v1435 = vunpack.c.l.b16 %v1327
        %v1436 = vunpack.c.l.b16 %v1328
        %v1437 = vunpack.c.h.b16 %v1328
        %v1438 = vunpack.c.l.b16 %v1329
        %v1439 = vunpack.c.h.b16 %v1329
        %v1440 = vunpack.c.l.b16 %v1330
        %v1441 = vunpack.c.l.b16 %v1331
        %v1442 = vunpack.c.h.b16 %v1331
        %v1443 = vunpack.c.l.b16 %v1332
        %v1444 = vunpack.c.h.b16 %v1332
        %v1445 = vunpack.c.l.b16 %v1333
        %v1446 = vunpack.c.l.b16 %v1334
        %v1447 = vunpack.c.h.b16 %v1334
        %v1448 = vunpack.c.l.b16 %v1335
        %v1449 = vunpack.c.h.b16 %v1335
        %v1450 = vunpack.c.l.b16 %v1336
        %v1451 = vunpack.c.l.b16 %v1337
        %v1452 = vunpack.c.h.b16 %v1337
        %v1453 = vunpack.c.l.b16 %v1338
        %v1454 = vunpack.c.h.b16 %v1338
        %v1455 = vunpack.c.l.b16 %v1339
        %v1456 = vunpack.c.l.b16 %v1340
        %v1457 = vunpack.c.h.b16 %v1340
        %v1458 = vunpack.c.l.b16 %v1341
        %v1459 = vunpack.c.h.b16 %v1341
        %v1460 = vunpack.c.l.b16 %v1342
        %v1461 = vunpack.c.l.b16 %v1343
        %v1462 = vunpack.c.h.b16 %v1343
        %v1463 = vunpack.c.l.b16 %v1344
        %v1464 = vunpack.c.h.b16 %v1344
        %v1465 = vunpack.c.l.b16 %v1345
        %v1466 = vunpack.c.l.b16 %v1346
        %v1467 = vunpack.c.h.b16 %v1346
        %v1468 = vunpack.c.l.b16 %v1347
        %v1469 = vunpack.c.h.b16 %v1347
        %v1470 = vunpack.c.l.b16 %v1348
        %v1471 = vunpack.c.l.b16 %v1349
        %v1472 = vunpack.c.h.b16 %v1349
        %v1473 = vunpack.c.l.b16 %v1350
        %v1474 = vunpack.c.h.b16 %v1350
        %v1475 = vunpack.c.l.b16 %v1351
        %v1476 = vunpack.c.l.b16 %v1352
        %v1477 = vunpack.c.h.b16 %v1352
        %v1478 = vunpack.c.l.b16 %v1353
        %v1479 = vunpack.c.h.b16 %v1353
        %v1480 = vunpack.c.l.b16 %v1354
        %v1481 = vunpack.c.l.b16 %v1355
        %v1482 = vunpack.c.h.b16 %v1355
        %v1483 = vunpack.c.l.b16 %v1356
        %v1484 = vunpack.c.h.b16 %v1356
        %v1485 = vunpack.c.l.b16 %v1357
        %v1486 = vunpack.c.l.b16 %v1358
        %v1487 = vunpack.c.h.b16 %v1358
        %v1488 = vunpack.c.l.b16 %v1359
        %v1489 = vunpack.c.h.b16 %v1359
        %v1490 = vunpack.c.l.b16 %v1360
        %v1491 = vunpack.c.l.b16 %v1361
        %v1492 = vunpack.c.h.b16 %v1361
        %v1493 = vunpack.c.l.b16 %v1362
        %v1494 = vunpack.c.h.b16 %v1362
        %v1495 = vunpack.c.l.b16 %v1363
        %v1496 = vpack.c.b16 %v1421, %v1416
        %v1497 = vpack.c.b16 %v1422, %v1417
        %v1498 = vpack.c.b16 %v1423, %v1418
        %v1499 = vpack.c.b16 %v1424, %v1419
        %v1500 = vpack.c.b16 %v1425, %v1420
        %v1501 = vpack.c.b16 %v1431, %v1426
        %v1502 = vpack.c.b16 %v1432, %v1427
        %v1503 = vpack.c.b16 %v1433, %v1428
        %v1504 = vpack.c.b16 %v1434, %v1429
        %v1505 = vpack.c.b16 %v1435, %v1430
        %v1506 = vpack.c.b16 %v1441, %v1436
        %v1507 = vpack.c.b16 %v1442, %v1437
        %v1508 = vpack.c.b16 %v1443, %v1438
        %v1509 = vpack.c.b16 %v1444, %v1439
        %v1510 = vpack.c.b16 %v1445, %v1440
        %v1511 = vpack.c.b16 %v1451, %v1446
        %v1512 = vpack.c.b16 %v1452, %v1447
        %v1513 = vpack.c.b16 %v1453, %v1448
        %v1514 = vpack.c.b16 %v1454, %v1449
        %v1515 = vpack.c.b16 %v1455, %v1450
        %v1516 = vpack.c.b16 %v1461, %v1456
        %v1517 = vpack.c.b16 %v1462, %v1457
        %v1518 = vpack.c.b16 %v1463, %v1458
        %v1519 = vpack.c.b16 %v1464, %v1459
        %v1520 = vpack.c.b16 %v1465, %v1460
        %v1521 = vpack.c.b16 %v1471, %v1466
        %v1522 = vpack.c.b16 %v1472, %v1467
        %v1523 = vpack.c.b16 %v1473, %v1468
        %v1524 = vpack.c.b16 %v1474, %v1469
        %v1525 = vpack.c.b16 %v1475, %v1470
        %v1526 = vpack.c.b16 %v1481, %v1476
        %v1527 = vpack.c.b16 %v1482, %v1477
        %v1528 = vpack.c.b16 %v1483, %v1478
        %v1529 = vpack.c.b16 %v1484, %v1479
        %v1530 = vpack.c.b16 %v1485, %v1480
        %v1531 = vpack.c.b16 %v1491, %v1486
        %v1532 = vpack.c.b16 %v1492, %v1487
        %v1533 = vpack.c.b16 %v1493, %v1488
        %v1534 = vpack.c.b16 %v1494, %v1489
        %v1535 = vpack.c.b16 %v1495, %v1490
        %1576 = vmatprep.subr.bf16.mxu0 %v1497
        %1577 = vmatpush1.bf16.msra.mxu0 %v1496
        %1578 = vmatprep.subr.bf16.mxu0 %v1502
        %1579 = vmatpush1.bf16.msra.mxu0 %v1501
        %1580 = vmatprep.subr.bf16.mxu0 %v1507
        %1581 = vmatpush1.bf16.msra.mxu0 %v1506
        %1582 = vmatprep.subr.bf16.mxu0 %v1512
        %1583 = vmatpush1.bf16.msra.mxu0 %v1511
        %1584 = vmatprep.subr.bf16.mxu0 %v1517
        %1585 = vmatpush1.bf16.msra.mxu0 %v1516
        %1586 = vmatprep.subr.bf16.mxu0 %v1522
        %1587 = vmatpush1.bf16.msra.mxu0 %v1521
        %1588 = vmatprep.subr.bf16.mxu0 %v1527
        %1589 = vmatpush1.bf16.msra.mxu0 %v1526
        %1590 = vmatprep.subr.bf16.mxu0 %v1532
        %1591 = vmatpush1.bf16.msra.mxu0 %v1531
        %1592 = vmatprep.subr.bf16.mxu0 0
        %1593 = vmatpush1.bf16.msra.mxu0 0
        %1594 = vmatprep.subr.bf16.mxu0 0
        %1595 = vmatpush1.bf16.msra.mxu0 0
        %1596 = vmatprep.subr.bf16.mxu0 0
        %1597 = vmatpush1.bf16.msra.mxu0 0
        %1598 = vmatprep.subr.bf16.mxu0 0
        %1599 = vmatpush1.bf16.msra.mxu0 0
        %1600 = vmatprep.subr.bf16.mxu0 0
        %1601 = vmatpush1.bf16.msra.mxu0 0
        %1602 = vmatprep.subr.bf16.mxu0 0
        %1603 = vmatpush1.bf16.msra.mxu0 0
        %1604 = vmatprep.subr.bf16.mxu0 0
        %1605 = vmatpush1.bf16.msra.mxu0 0
        %1606 = vmatprep.subr.bf16.mxu0 0
        %1607 = vmatpush1.bf16.msra.mxu0 0
        %1608 = vmatprep.mubr.bf16.mxu0 0
        %1609 = vmatmul.mubr.bf16.gmra.mrb[0].mxu0 %v1366
        %v1610 = vpop.f32.mrb[0].mxu0
        %v1611 = vadd.f32 0.0, %v1610
        %v1612 = vpop.f32.mrb[0].mxu0
        %v1613 = vadd.f32 0.0, %v1612
        %v1614 = vpop.f32.mrb[0].mxu0
        %v1615 = vpop.f32.mrb[0].mxu0
        %1616 = vdwg.mxu0
        %1617 = vmatprep.subr.bf16.mxu0 %v1499
        %1618 = vmatpush1.bf16.msra.mxu0 %v1498
        %1619 = vmatprep.subr.bf16.mxu0 %v1504
        %1620 = vmatpush1.bf16.msra.mxu0 %v1503
        %1621 = vmatprep.subr.bf16.mxu0 %v1509
        %1622 = vmatpush1.bf16.msra.mxu0 %v1508
        %1623 = vmatprep.subr.bf16.mxu0 %v1514
        %1624 = vmatpush1.bf16.msra.mxu0 %v1513
        %1625 = vmatprep.subr.bf16.mxu0 %v1519
        %1626 = vmatpush1.bf16.msra.mxu0 %v1518
        %1627 = vmatprep.subr.bf16.mxu0 %v1524
        %1628 = vmatpush1.bf16.msra.mxu0 %v1523
        %1629 = vmatprep.subr.bf16.mxu0 %v1529
        %1630 = vmatpush1.bf16.msra.mxu0 %v1528
        %1631 = vmatprep.subr.bf16.mxu0 %v1534
        %1632 = vmatpush1.bf16.msra.mxu0 %v1533
        %1633 = vmatprep.subr.bf16.mxu0 0
        %1634 = vmatpush1.bf16.msra.mxu0 0
        %1635 = vmatprep.subr.bf16.mxu0 0
        %1636 = vmatpush1.bf16.msra.mxu0 0
        %1637 = vmatprep.subr.bf16.mxu0 0
        %1638 = vmatpush1.bf16.msra.mxu0 0
        %1639 = vmatprep.subr.bf16.mxu0 0
        %1640 = vmatpush1.bf16.msra.mxu0 0
        %1641 = vmatprep.subr.bf16.mxu0 0
        %1642 = vmatpush1.bf16.msra.mxu0 0
        %1643 = vmatprep.subr.bf16.mxu0 0
        %1644 = vmatpush1.bf16.msra.mxu0 0
        %1645 = vmatprep.subr.bf16.mxu0 0
        %1646 = vmatpush1.bf16.msra.mxu0 0
        %1647 = vmatprep.subr.bf16.mxu0 0
        %1648 = vmatpush1.bf16.msra.mxu0 0
        %1649 = vmatprep.mubr.bf16.mxu0 0
        %1650 = vmatmul.mubr.bf16.gmra.mrb[0].mxu0 %v1366
        %v1651 = vpop.f32.mrb[0].mxu0
        %v1652 = vadd.f32 0.0, %v1651
        %v1653 = vpop.f32.mrb[0].mxu0
        %v1654 = vadd.f32 0.0, %v1653
        %v1655 = vpop.f32.mrb[0].mxu0
        %v1656 = vpop.f32.mrb[0].mxu0
        %1657 = vdwg.mxu0
        %1658 = vmatprep.subr.bf16.mxu0 0
        %1659 = vmatpush1.bf16.msra.mxu0 %v1500
        %1660 = vmatprep.subr.bf16.mxu0 0
        %1661 = vmatpush1.bf16.msra.mxu0 %v1505
        %1662 = vmatprep.subr.bf16.mxu0 0
        %1663 = vmatpush1.bf16.msra.mxu0 %v1510
        %1664 = vmatprep.subr.bf16.mxu0 0
        %1665 = vmatpush1.bf16.msra.mxu0 %v1515
        %1666 = vmatprep.subr.bf16.mxu0 0
        %1667 = vmatpush1.bf16.msra.mxu0 %v1520
        %1668 = vmatprep.subr.bf16.mxu0 0
        %1669 = vmatpush1.bf16.msra.mxu0 %v1525
        %1670 = vmatprep.subr.bf16.mxu0 0
        %1671 = vmatpush1.bf16.msra.mxu0 %v1530
        %1672 = vmatprep.subr.bf16.mxu0 0
        %1673 = vmatpush1.bf16.msra.mxu0 %v1535
        %1674 = vmatprep.subr.bf16.mxu0 0
        %1675 = vmatpush1.bf16.msra.mxu0 0
        %1676 = vmatprep.subr.bf16.mxu0 0
        %1677 = vmatpush1.bf16.msra.mxu0 0
        %1678 = vmatprep.subr.bf16.mxu0 0
        %1679 = vmatpush1.bf16.msra.mxu0 0
        %1680 = vmatprep.subr.bf16.mxu0 0
        %1681 = vmatpush1.bf16.msra.mxu0 0
        %1682 = vmatprep.subr.bf16.mxu0 0
        %1683 = vmatpush1.bf16.msra.mxu0 0
        %1684 = vmatprep.subr.bf16.mxu0 0
        %1685 = vmatpush1.bf16.msra.mxu0 0
        %1686 = vmatprep.subr.bf16.mxu0 0
        %1687 = vmatpush1.bf16.msra.mxu0 0
        %1688 = vmatprep.subr.bf16.mxu0 0
        %1689 = vmatpush1.bf16.msra.mxu0 0
        %1690 = vmatprep.mubr.bf16.mxu0 0
        %1691 = vmatmul.mubr.bf16.gmra.mrb[0].mxu0 %v1366
        %v1692 = vpop.f32.mrb[0].mxu0
        %v1693 = vadd.f32 0.0, %v1692
        %v1694 = vpop.f32.mrb[0].mxu0
        %v1695 = vpop.f32.mrb[0].mxu0
        %v1696 = vpop.f32.mrb[0].mxu0
        %1697 = vdwg.mxu0
        %v1698 = vadd.f32 %v1311, %v1611
        %v1699 = vadd.f32 %v1312, %v1613
        %v1700 = vadd.f32 %v1313, %v1652
        %v1701 = vadd.f32 %v1314, %v1654
        %v1702 = vadd.f32 %v1315, %v1693
        %v1703 = vpack.c.bf16 %v1698, %v1698
        %v1704 = vpack.c.bf16 %v1699, %v1699
        %v1705 = vpack.c.bf16 %v1700, %v1700
        %v1706 = vpack.c.bf16 %v1701, %v1701
        %v1707 = vpack.c.bf16 %v1702, %v1702
        %v1713 = vunpack.c.l.b16 %v1703
        %v1714 = vunpack.c.l.b16 %v1704
        %v1715 = vunpack.c.l.b16 %v1705
        %v1716 = vunpack.c.l.b16 %v1706
        %v1717 = vunpack.c.l.b16 %v1707
        %v1718 = vpack.c.b16 %v1714, %v1713
        %v1719 = vpack.c.b16 %v1716, %v1715
        %v1720 = vpack.c.b16 %v1717, %v1717
        %1724 = vst [vmem:[%s158] sm:$0xff] %v1718
        %1725 = vst [vmem:[%s158 + $0x8] sm:$0xff] %v1719
        %1726 = vst [vmem:[%s158 + $0x10] sm:$0xf] %v1720
        %p1727 = scmp.lt.s32.totalorder %s14, 1
        %s1728 = scalar_select %p1727, %s14, 1
        %s1729 = smul.addr %s1728, 5
        %s1730 = smul.addr %s1729, 4
        %s1731 = scalar_lea.vmem %s2, %s1730
        // Predicated region
        $region33: #{net_helper_forward.6} parent=27 // pred_check
          %p1732 = pneg %p79
        $region34: #{net_helper_forward.6} parent=27 // pred_check_branch
          %1734 = sbr.rel (%p1732) target = $region36
        $region35: #{net_helper_forward.6} parent=27 // pred_region
          _
        $region36: #{net_helper_forward.6} parent=27 // pred_fallthru
          _
      $region28: #{net_helper_forward.6} parent=5 // pred_fallthru
        _
      %p1735 = scmp.le.s32.totalorder 2, %s9
      // Predicated region
      $region37: #{net_helper_forward.6} parent=5 // pred_check
        %p1736 = pneg %p1735
      $region38: #{net_helper_forward.6} parent=5 // pred_check_branch
        %1738 = sbr.rel (%p1736) target = $region40
      $region39: #{net_helper_forward.6} parent=5 // pred_region
        %s1739 = ssub.s32 %s9, 2
        // Predicated region
        $region41: #{net_helper_forward.6} parent=39 // pred_check
          %p1740 = pneg %p85
        $region42: #{net_helper_forward.6} parent=39 // pred_check_branch
          %1742 = sbr.rel (%p1740) target = $region44
        $region43: #{net_helper_forward.6} parent=39 // pred_region
          %p1743 = scmp.lt.s32.totalorder %s15, 1
          %s1744 = scalar_select %p1743, %s15, 1
          %s1745 = smul.addr %s1744, 5
          %s1746 = smul.addr %s1745, 4
          %s1747 = scalar_lea.vmem %s2, %s1746
        $region44: #{net_helper_forward.6} parent=39 // pred_fallthru
          _
      $region40: #{net_helper_forward.6} parent=5 // pred_fallthru
        _
    $region6: #{net_helper_forward.6} parent=1 // loop_footer
      %s13 = sadd.s32 1, %s9
    $region7: #{net_helper_forward.6} parent=1 // loop_footer_branch
      %8 = sbr.rel target = $region3
    $region8: #{net_helper_forward.6} parent=1 // loop_exit
      _
    %1748 = vsyncpa [#allocation3], 1
    %s1749 = scalar_lea.sflag [#allocation3], 1
    %1750 = vsyncpa %s1749, 1

// kernel: net_helper_forward.7
$region0: #{net_helper_forward.7}
  #allocation0 [shape = 'u32[]', space=smem, size = 0x4, offset = 0x4, fixed_abs, tag = 'smem constant byte address 0x4 - core index']
  #allocation1 [shape = 'u32[144,128]{1,0:T(1,128)}', space=vmem, size = 0x12000, scoped, tag = 'internal scratch']
  #allocation2 [shape = 'f32[1]{0:T(128)S(6)}', space=smem, size = 0x200, scoped, tag = 'scoped memory for net_helper_forward.7']
  %s0 = inlined_call_operand.vmem [shape: bf16[16,640], index: 0, kind: input, shape index: {}]
  %s1 = inlined_call_operand.vmem [shape: bf16[640,144], index: 1, kind: input, shape index: {}]
  %s2 = inlined_call_operand.vmem [shape: f32[1,144], index: 2, kind: input, shape index: {}]
  %s3 = inlined_call_operand.<no memory space> [shape: f32[1], index: 3, kind: input, shape index: {}]
  %s4 = inlined_call_operand.vmem [shape: bf16[144,432], index: 4, kind: input, shape index: {}]
  %s5 = inlined_call_operand.vmem [shape: f32[1,432], index: 5, kind: input, shape index: {}]
  %s6 = inlined_call_operand.vmem [shape: f32[16,432], index: 6, kind: output, shape index: {}]
  %s7 = sld [smem:[#allocation0]]
  $region34: #{net_helper_forward.7} parent=0
    _
  %s9 = ssub.s32 1, %s7
  %s10 = scalar_select 0, %s9, %s7
  %11 = sst [smem:[#allocation2]] %s3
  // Predicated region
  $region2: #{net_helper_forward.7} parent=0 // pred_check
    _
  $region3: #{net_helper_forward.7} parent=0 // pred_check_branch
    %13 = sbr.rel (0) target = $region5
  $region4: #{net_helper_forward.7} parent=0 // pred_region
    _
  $region5: #{net_helper_forward.7} parent=0 // pred_fallthru
    _
  // Predicated region
  $region6: #{net_helper_forward.7} parent=0 // pred_check
    _
  $region7: #{net_helper_forward.7} parent=0 // pred_check_branch
    %15 = sbr.rel (0) target = $region9
  $region8: #{net_helper_forward.7} parent=0 // pred_region
    _
  $region9: #{net_helper_forward.7} parent=0 // pred_fallthru
    _
  // Predicated region
  $region10: #{net_helper_forward.7} parent=0 // pred_check
    _
  $region11: #{net_helper_forward.7} parent=0 // pred_check_branch
    %17 = sbr.rel (0) target = $region13
  $region12: #{net_helper_forward.7} parent=0 // pred_region
    _
  $region13: #{net_helper_forward.7} parent=0 // pred_fallthru
    _
  // Predicated region
  $region14: #{net_helper_forward.7} parent=0 // pred_check
    _
  $region15: #{net_helper_forward.7} parent=0 // pred_check_branch
    %19 = sbr.rel (0) target = $region17
  $region16: #{net_helper_forward.7} parent=0 // pred_region
    _
  $region17: #{net_helper_forward.7} parent=0 // pred_fallthru
    _
  // Predicated region
  $region18: #{net_helper_forward.7} parent=0 // pred_check
    _
  $region19: #{net_helper_forward.7} parent=0 // pred_check_branch
    %21 = sbr.rel (0) target = $region21
  $region20: #{net_helper_forward.7} parent=0 // pred_region
    _
  $region21: #{net_helper_forward.7} parent=0 // pred_fallthru
    _
  // Predicated region
  $region22: #{net_helper_forward.7} parent=0 // pred_check
    _
  $region23: #{net_helper_forward.7} parent=0 // pred_check_branch
    %23 = sbr.rel (0) target = $region25
  $region24: #{net_helper_forward.7} parent=0 // pred_region
    _
  $region25: #{net_helper_forward.7} parent=0 // pred_fallthru
    _
  %v25 = vld [vmem:[%s0] sm:$0xff]
  %v26 = vld [vmem:[%s0 + $0x8] sm:$0xff]
  %v27 = vld [vmem:[%s0 + $0x10] sm:$0xf]
  %v28 = vld [vmem:[%s0 + $0x14] sm:$0xff]
  %v29 = vld [vmem:[%s0 + $0x1c] sm:$0xff]
  %v30 = vld [vmem:[%s0 + $0x24] sm:$0xf]
  %v31 = vld [vmem:[%s1] sm:$0xff]
  %v32 = vld [vmem:[%s1 + $0x8] sm:$0xff]
  %v33 = vld [vmem:[%s1 + $0x10] sm:$0xff]
  %v34 = vld [vmem:[%s1 + $0x18] sm:$0xff]
  %v35 = vld [vmem:[%s1 + $0x20] sm:$0xff]
  %v36 = vld [vmem:[%s1 + $0x28] sm:$0xff]
  %v37 = vld [vmem:[%s1 + $0x30] sm:$0xff]
  %v38 = vld [vmem:[%s1 + $0x38] sm:$0xff]
  %v39 = vld [vmem:[%s1 + $0x40] sm:$0xff]
  %v40 = vld [vmem:[%s1 + $0x48] sm:$0xff]
  %v41 = vld [vmem:[%s1 + $0x50] sm:$0xff]
  %v42 = vld [vmem:[%s1 + $0x58] sm:$0xff]
  %v43 = vld [vmem:[%s1 + $0x60] sm:$0xff]
  %v44 = vld [vmem:[%s1 + $0x68] sm:$0xff]
  %v45 = vld [vmem:[%s1 + $0x70] sm:$0xff]
  %v46 = vld [vmem:[%s1 + $0x78] sm:$0xff]
  %v47 = vld [vmem:[%s1 + $0x80] sm:$0xff]
  %v48 = vld [vmem:[%s1 + $0x88] sm:$0xff]
  %v49 = vld [vmem:[%s1 + $0x90] sm:$0xff]
  %v50 = vld [vmem:[%s1 + $0x98] sm:$0xff]
  %v51 = vld [vmem:[%s1 + $0xa0] sm:$0xff]
  %v52 = vld [vmem:[%s1 + $0xa8] sm:$0xff]
  %v53 = vld [vmem:[%s1 + $0xb0] sm:$0xff]
  %v54 = vld [vmem:[%s1 + $0xb8] sm:$0xff]
  %v55 = vld [vmem:[%s1 + $0xc0] sm:$0xff]
  %v56 = vld [vmem:[%s1 + $0xc8] sm:$0xff]
  %v57 = vld [vmem:[%s1 + $0xd0] sm:$0xff]
  %v58 = vld [vmem:[%s1 + $0xd8] sm:$0xff]
  %v59 = vld [vmem:[%s1 + $0xe0] sm:$0xff]
  %v60 = vld [vmem:[%s1 + $0xe8] sm:$0xff]
  %v61 = vld [vmem:[%s1 + $0xf0] sm:$0xff]
  %v62 = vld [vmem:[%s1 + $0xf8] sm:$0xff]
  %v63 = vld [vmem:[%s1 + $0x100] sm:$0xff]
  %v64 = vld [vmem:[%s1 + $0x108] sm:$0xff]
  %v65 = vld [vmem:[%s1 + $0x110] sm:$0xff]
  %v66 = vld [vmem:[%s1 + $0x118] sm:$0xff]
  %v67 = vld [vmem:[%s1 + $0x120] sm:$0xff]
  %v68 = vld [vmem:[%s1 + $0x128] sm:$0xff]
  %v69 = vld [vmem:[%s1 + $0x130] sm:$0xff]
  %v70 = vld [vmem:[%s1 + $0x138] sm:$0xff]
  %v71 = vld [vmem:[%s1 + $0x140] sm:$0xff]
  %v72 = vld [vmem:[%s1 + $0x148] sm:$0xff]
  %v73 = vld [vmem:[%s1 + $0x150] sm:$0xff]
  %v74 = vld [vmem:[%s1 + $0x158] sm:$0xff]
  %v75 = vld [vmem:[%s1 + $0x160] sm:$0xff]
  %v76 = vld [vmem:[%s1 + $0x168] sm:$0xff]
  %v77 = vld [vmem:[%s1 + $0x170] sm:$0xff]
  %v78 = vld [vmem:[%s1 + $0x178] sm:$0xff]
  %v79 = vld [vmem:[%s1 + $0x180] sm:$0xff]
  %v80 = vld [vmem:[%s1 + $0x188] sm:$0xff]
  %v81 = vld [vmem:[%s1 + $0x190] sm:$0xff]
  %v82 = vld [vmem:[%s1 + $0x198] sm:$0xff]
  %v83 = vld [vmem:[%s1 + $0x1a0] sm:$0xff]
  %v84 = vld [vmem:[%s1 + $0x1a8] sm:$0xff]
  %v85 = vld [vmem:[%s1 + $0x1b0] sm:$0xff]
  %v86 = vld [vmem:[%s1 + $0x1b8] sm:$0xff]
  %v87 = vld [vmem:[%s1 + $0x1c0] sm:$0xff]
  %v88 = vld [vmem:[%s1 + $0x1c8] sm:$0xff]
  %v89 = vld [vmem:[%s1 + $0x1d0] sm:$0xff]
  %v90 = vld [vmem:[%s1 + $0x1d8] sm:$0xff]
  %v91 = vld [vmem:[%s1 + $0x1e0] sm:$0xff]
  %v92 = vld [vmem:[%s1 + $0x1e8] sm:$0xff]
  %v93 = vld [vmem:[%s1 + $0x1f0] sm:$0xff]
  %v94 = vld [vmem:[%s1 + $0x1f8] sm:$0xff]
  %v95 = vld [vmem:[%s1 + $0x200] sm:$0xff]
  %v96 = vld [vmem:[%s1 + $0x208] sm:$0xff]
  %v97 = vld [vmem:[%s1 + $0x210] sm:$0xff]
  %v98 = vld [vmem:[%s1 + $0x218] sm:$0xff]
  %v99 = vld [vmem:[%s1 + $0x220] sm:$0xff]
  %v100 = vld [vmem:[%s1 + $0x228] sm:$0xff]
  %v101 = vld [vmem:[%s1 + $0x230] sm:$0xff]
  %v102 = vld [vmem:[%s1 + $0x238] sm:$0xff]
  %v103 = vld [vmem:[%s1 + $0x240] sm:$0xff]
  %v104 = vld [vmem:[%s1 + $0x248] sm:$0xff]
  %v105 = vld [vmem:[%s1 + $0x250] sm:$0xff]
  %v106 = vld [vmem:[%s1 + $0x258] sm:$0xff]
  %v107 = vld [vmem:[%s1 + $0x260] sm:$0xff]
  %v108 = vld [vmem:[%s1 + $0x268] sm:$0xff]
  %v109 = vld [vmem:[%s1 + $0x270] sm:$0xff]
  %v110 = vld [vmem:[%s1 + $0x278] sm:$0xff]
  %v111 = vld [vmem:[%s2] sm:$0x3]
  %v113 = vlaneseq
  %v114 = vshrl.u32 %v113, 7
  %v115 = vsub.s32 0, %v114
  %v116 = vrot.slane %v111, %v115
  %v117 = vlaneseq
  %v118 = vshrl.u32 %v117, 7
  %v119 = vsub.s32 1, %v118
  %v120 = vrot.slane %v111, %v119
  %v129 = vunpack.c.l.b16 %v25
  %v130 = vunpack.c.h.b16 %v25
  %v131 = vunpack.c.l.b16 %v26
  %v132 = vunpack.c.h.b16 %v26
  %v133 = vunpack.c.l.b16 %v27
  %v134 = vunpack.c.l.b16 %v28
  %v135 = vunpack.c.h.b16 %v28
  %v136 = vunpack.c.l.b16 %v29
  %v137 = vunpack.c.h.b16 %v29
  %v138 = vunpack.c.l.b16 %v30
  %v139 = vpack.c.b16 %v134, %v129
  %v140 = vpack.c.b16 %v135, %v130
  %v141 = vpack.c.b16 %v136, %v131
  %v142 = vpack.c.b16 %v137, %v132
  %v143 = vpack.c.b16 %v138, %v133
  %v229 = vunpack.c.l.b16 %v31
  %v230 = vunpack.c.h.b16 %v31
  %v231 = vunpack.c.l.b16 %v32
  %v232 = vunpack.c.h.b16 %v32
  %v233 = vunpack.c.l.b16 %v33
  %v234 = vunpack.c.h.b16 %v33
  %v235 = vunpack.c.l.b16 %v34
  %v236 = vunpack.c.h.b16 %v34
  %v237 = vunpack.c.l.b16 %v35
  %v238 = vunpack.c.h.b16 %v35
  %v239 = vunpack.c.l.b16 %v36
  %v240 = vunpack.c.h.b16 %v36
  %v241 = vunpack.c.l.b16 %v37
  %v242 = vunpack.c.h.b16 %v37
  %v243 = vunpack.c.l.b16 %v38
  %v244 = vunpack.c.h.b16 %v38
  %v245 = vunpack.c.l.b16 %v39
  %v246 = vunpack.c.h.b16 %v39
  %v247 = vunpack.c.l.b16 %v40
  %v248 = vunpack.c.h.b16 %v40
  %v249 = vunpack.c.l.b16 %v41
  %v250 = vunpack.c.h.b16 %v41
  %v251 = vunpack.c.l.b16 %v42
  %v252 = vunpack.c.h.b16 %v42
  %v253 = vunpack.c.l.b16 %v43
  %v254 = vunpack.c.h.b16 %v43
  %v255 = vunpack.c.l.b16 %v44
  %v256 = vunpack.c.h.b16 %v44
  %v257 = vunpack.c.l.b16 %v45
  %v258 = vunpack.c.h.b16 %v45
  %v259 = vunpack.c.l.b16 %v46
  %v260 = vunpack.c.h.b16 %v46
  %v261 = vunpack.c.l.b16 %v47
  %v262 = vunpack.c.h.b16 %v47
  %v263 = vunpack.c.l.b16 %v48
  %v264 = vunpack.c.h.b16 %v48
  %v265 = vunpack.c.l.b16 %v49
  %v266 = vunpack.c.h.b16 %v49
  %v267 = vunpack.c.l.b16 %v50
  %v268 = vunpack.c.h.b16 %v50
  %v269 = vunpack.c.l.b16 %v51
  %v270 = vunpack.c.h.b16 %v51
  %v271 = vunpack.c.l.b16 %v52
  %v272 = vunpack.c.h.b16 %v52
  %v273 = vunpack.c.l.b16 %v53
  %v274 = vunpack.c.h.b16 %v53
  %v275 = vunpack.c.l.b16 %v54
  %v276 = vunpack.c.h.b16 %v54
  %v277 = vunpack.c.l.b16 %v55
  %v278 = vunpack.c.h.b16 %v55
  %v279 = vunpack.c.l.b16 %v56
  %v280 = vunpack.c.h.b16 %v56
  %v281 = vunpack.c.l.b16 %v57
  %v282 = vunpack.c.h.b16 %v57
  %v283 = vunpack.c.l.b16 %v58
  %v284 = vunpack.c.h.b16 %v58
  %v285 = vunpack.c.l.b16 %v59
  %v286 = vunpack.c.h.b16 %v59
  %v287 = vunpack.c.l.b16 %v60
  %v288 = vunpack.c.h.b16 %v60
  %v289 = vunpack.c.l.b16 %v61
  %v290 = vunpack.c.h.b16 %v61
  %v291 = vunpack.c.l.b16 %v62
  %v292 = vunpack.c.h.b16 %v62
  %v293 = vunpack.c.l.b16 %v63
  %v294 = vunpack.c.h.b16 %v63
  %v295 = vunpack.c.l.b16 %v64
  %v296 = vunpack.c.h.b16 %v64
  %v297 = vunpack.c.l.b16 %v65
  %v298 = vunpack.c.h.b16 %v65
  %v299 = vunpack.c.l.b16 %v66
  %v300 = vunpack.c.h.b16 %v66
  %v301 = vunpack.c.l.b16 %v67
  %v302 = vunpack.c.h.b16 %v67
  %v303 = vunpack.c.l.b16 %v68
  %v304 = vunpack.c.h.b16 %v68
  %v305 = vunpack.c.l.b16 %v69
  %v306 = vunpack.c.h.b16 %v69
  %v307 = vunpack.c.l.b16 %v70
  %v308 = vunpack.c.h.b16 %v70
  %v309 = vunpack.c.l.b16 %v71
  %v310 = vunpack.c.h.b16 %v71
  %v311 = vunpack.c.l.b16 %v72
  %v312 = vunpack.c.h.b16 %v72
  %v313 = vunpack.c.l.b16 %v73
  %v314 = vunpack.c.h.b16 %v73
  %v315 = vunpack.c.l.b16 %v74
  %v316 = vunpack.c.h.b16 %v74
  %v317 = vunpack.c.l.b16 %v75
  %v318 = vunpack.c.h.b16 %v75
  %v319 = vunpack.c.l.b16 %v76
  %v320 = vunpack.c.h.b16 %v76
  %v321 = vunpack.c.l.b16 %v77
  %v322 = vunpack.c.h.b16 %v77
  %v323 = vunpack.c.l.b16 %v78
  %v324 = vunpack.c.h.b16 %v78
  %v325 = vunpack.c.l.b16 %v79
  %v326 = vunpack.c.h.b16 %v79
  %v327 = vunpack.c.l.b16 %v80
  %v328 = vunpack.c.h.b16 %v80
  %v329 = vunpack.c.l.b16 %v81
  %v330 = vunpack.c.h.b16 %v81
  %v331 = vunpack.c.l.b16 %v82
  %v332 = vunpack.c.h.b16 %v82
  %v333 = vunpack.c.l.b16 %v83
  %v334 = vunpack.c.h.b16 %v83
  %v335 = vunpack.c.l.b16 %v84
  %v336 = vunpack.c.h.b16 %v84
  %v337 = vunpack.c.l.b16 %v85
  %v338 = vunpack.c.h.b16 %v85
  %v339 = vunpack.c.l.b16 %v86
  %v340 = vunpack.c.h.b16 %v86
  %v341 = vunpack.c.l.b16 %v87
  %v342 = vunpack.c.h.b16 %v87
  %v343 = vunpack.c.l.b16 %v88
  %v344 = vunpack.c.h.b16 %v88
  %v345 = vunpack.c.l.b16 %v89
  %v346 = vunpack.c.h.b16 %v89
  %v347 = vunpack.c.l.b16 %v90
  %v348 = vunpack.c.h.b16 %v90
  %v349 = vunpack.c.l.b16 %v91
  %v350 = vunpack.c.h.b16 %v91
  %v351 = vunpack.c.l.b16 %v92
  %v352 = vunpack.c.h.b16 %v92
  %v353 = vunpack.c.l.b16 %v93
  %v354 = vunpack.c.h.b16 %v93
  %v355 = vunpack.c.l.b16 %v94
  %v356 = vunpack.c.h.b16 %v94
  %v357 = vunpack.c.l.b16 %v95
  %v358 = vunpack.c.h.b16 %v95
  %v359 = vunpack.c.l.b16 %v96
  %v360 = vunpack.c.h.b16 %v96
  %v361 = vunpack.c.l.b16 %v97
  %v362 = vunpack.c.h.b16 %v97
  %v363 = vunpack.c.l.b16 %v98
  %v364 = vunpack.c.h.b16 %v98
  %v365 = vunpack.c.l.b16 %v99
  %v366 = vunpack.c.h.b16 %v99
  %v367 = vunpack.c.l.b16 %v100
  %v368 = vunpack.c.h.b16 %v100
  %v369 = vunpack.c.l.b16 %v101
  %v370 = vunpack.c.h.b16 %v101
  %v371 = vunpack.c.l.b16 %v102
  %v372 = vunpack.c.h.b16 %v102
  %v373 = vunpack.c.l.b16 %v103
  %v374 = vunpack.c.h.b16 %v103
  %v375 = vunpack.c.l.b16 %v104
  %v376 = vunpack.c.h.b16 %v104
  %v377 = vunpack.c.l.b16 %v105
  %v378 = vunpack.c.h.b16 %v105
  %v379 = vunpack.c.l.b16 %v106
  %v380 = vunpack.c.h.b16 %v106
  %v381 = vunpack.c.l.b16 %v107
  %v382 = vunpack.c.h.b16 %v107
  %v383 = vunpack.c.l.b16 %v108
  %v384 = vunpack.c.h.b16 %v108
  %v385 = vunpack.c.l.b16 %v109
  %v386 = vunpack.c.h.b16 %v109
  %v387 = vunpack.c.l.b16 %v110
  %v388 = vunpack.c.h.b16 %v110
  %v389 = vpack.c.b16 %v231, %v229
  %v390 = vpack.c.b16 %v232, %v230
  %v391 = vpack.c.b16 %v235, %v233
  %v392 = vpack.c.b16 %v236, %v234
  %v393 = vpack.c.b16 %v239, %v237
  %v394 = vpack.c.b16 %v240, %v238
  %v395 = vpack.c.b16 %v243, %v241
  %v396 = vpack.c.b16 %v244, %v242
  %v397 = vpack.c.b16 %v247, %v245
  %v398 = vpack.c.b16 %v248, %v246
  %v399 = vpack.c.b16 %v251, %v249
  %v400 = vpack.c.b16 %v252, %v250
  %v401 = vpack.c.b16 %v255, %v253
  %v402 = vpack.c.b16 %v256, %v254
  %v403 = vpack.c.b16 %v259, %v257
  %v404 = vpack.c.b16 %v260, %v258
  %v405 = vpack.c.b16 %v263, %v261
  %v406 = vpack.c.b16 %v264, %v262
  %v407 = vpack.c.b16 %v267, %v265
  %v408 = vpack.c.b16 %v268, %v266
  %v409 = vpack.c.b16 %v271, %v269
  %v410 = vpack.c.b16 %v272, %v270
  %v411 = vpack.c.b16 %v275, %v273
  %v412 = vpack.c.b16 %v276, %v274
  %v413 = vpack.c.b16 %v279, %v277
  %v414 = vpack.c.b16 %v280, %v278
  %v415 = vpack.c.b16 %v283, %v281
  %v416 = vpack.c.b16 %v284, %v282
  %v417 = vpack.c.b16 %v287, %v285
  %v418 = vpack.c.b16 %v288, %v286
  %v419 = vpack.c.b16 %v291, %v289
  %v420 = vpack.c.b16 %v292, %v290
  %v421 = vpack.c.b16 %v295, %v293
  %v422 = vpack.c.b16 %v296, %v294
  %v423 = vpack.c.b16 %v299, %v297
  %v424 = vpack.c.b16 %v300, %v298
  %v425 = vpack.c.b16 %v303, %v301
  %v426 = vpack.c.b16 %v304, %v302
  %v427 = vpack.c.b16 %v307, %v305
  %v428 = vpack.c.b16 %v308, %v306
  %v429 = vpack.c.b16 %v311, %v309
  %v430 = vpack.c.b16 %v312, %v310
  %v431 = vpack.c.b16 %v315, %v313
  %v432 = vpack.c.b16 %v316, %v314
  %v433 = vpack.c.b16 %v319, %v317
  %v434 = vpack.c.b16 %v320, %v318
  %v435 = vpack.c.b16 %v323, %v321
  %v436 = vpack.c.b16 %v324, %v322
  %v437 = vpack.c.b16 %v327, %v325
  %v438 = vpack.c.b16 %v328, %v326
  %v439 = vpack.c.b16 %v331, %v329
  %v440 = vpack.c.b16 %v332, %v330
  %v441 = vpack.c.b16 %v335, %v333
  %v442 = vpack.c.b16 %v336, %v334
  %v443 = vpack.c.b16 %v339, %v337
  %v444 = vpack.c.b16 %v340, %v338
  %v445 = vpack.c.b16 %v343, %v341
  %v446 = vpack.c.b16 %v344, %v342
  %v447 = vpack.c.b16 %v347, %v345
  %v448 = vpack.c.b16 %v348, %v346
  %v449 = vpack.c.b16 %v351, %v349
  %v450 = vpack.c.b16 %v352, %v350
  %v451 = vpack.c.b16 %v355, %v353
  %v452 = vpack.c.b16 %v356, %v354
  %v453 = vpack.c.b16 %v359, %v357
  %v454 = vpack.c.b16 %v360, %v358
  %v455 = vpack.c.b16 %v363, %v361
  %v456 = vpack.c.b16 %v364, %v362
  %v457 = vpack.c.b16 %v367, %v365
  %v458 = vpack.c.b16 %v368, %v366
  %v459 = vpack.c.b16 %v371, %v369
  %v460 = vpack.c.b16 %v372, %v370
  %v461 = vpack.c.b16 %v375, %v373
  %v462 = vpack.c.b16 %v376, %v374
  %v463 = vpack.c.b16 %v379, %v377
  %v464 = vpack.c.b16 %v380, %v378
  %v465 = vpack.c.b16 %v383, %v381
  %v466 = vpack.c.b16 %v384, %v382
  %v467 = vpack.c.b16 %v387, %v385
  %v468 = vpack.c.b16 %v388, %v386
  %549 = vmatprep.subr.bf16.mxu0 %v390
  %550 = vmatpush1.bf16.msra.mxu0 %v389
  %551 = vmatprep.subr.bf16.mxu0 %v392
  %552 = vmatpush1.bf16.msra.mxu0 %v391
  %553 = vmatprep.subr.bf16.mxu0 %v394
  %554 = vmatpush1.bf16.msra.mxu0 %v393
  %555 = vmatprep.subr.bf16.mxu0 %v396
  %556 = vmatpush1.bf16.msra.mxu0 %v395
  %557 = vmatprep.subr.bf16.mxu0 %v398
  %558 = vmatpush1.bf16.msra.mxu0 %v397
  %559 = vmatprep.subr.bf16.mxu0 %v400
  %560 = vmatpush1.bf16.msra.mxu0 %v399
  %561 = vmatprep.subr.bf16.mxu0 %v402
  %562 = vmatpush1.bf16.msra.mxu0 %v401
  %563 = vmatprep.subr.bf16.mxu0 %v404
  %564 = vmatpush1.bf16.msra.mxu0 %v403
  %565 = vmatprep.subr.bf16.mxu0 %v406
  %566 = vmatpush1.bf16.msra.mxu0 %v405
  %567 = vmatprep.subr.bf16.mxu0 %v408
  %568 = vmatpush1.bf16.msra.mxu0 %v407
  %569 = vmatprep.subr.bf16.mxu0 %v410
  %570 = vmatpush1.bf16.msra.mxu0 %v409
  %571 = vmatprep.subr.bf16.mxu0 %v412
  %572 = vmatpush1.bf16.msra.mxu0 %v411
  %573 = vmatprep.subr.bf16.mxu0 %v414
  %574 = vmatpush1.bf16.msra.mxu0 %v413
  %575 = vmatprep.subr.bf16.mxu0 %v416
  %576 = vmatpush1.bf16.msra.mxu0 %v415
  %577 = vmatprep.subr.bf16.mxu0 %v418
  %578 = vmatpush1.bf16.msra.mxu0 %v417
  %579 = vmatprep.subr.bf16.mxu0 %v420
  %580 = vmatpush1.bf16.msra.mxu0 %v419
  %581 = vmatprep.mubr.bf16.mxu0 %v140
  %582 = vmatmul.mubr.bf16.gmra.mrb[0].mxu0 %v139
  %v583 = vpop.f32.mrb[0].mxu0
  %v584 = vadd.f32 %v116, %v583
  %v585 = vpop.f32.mrb[0].mxu0
  %v586 = vadd.f32 %v120, %v585
  %v587 = vpop.f32.mrb[0].mxu0
  %v588 = vadd.f32 %v116, %v587
  %v589 = vpop.f32.mrb[0].mxu0
  %v590 = vadd.f32 %v120, %v589
  %591 = vdwg.mxu0
  %592 = vmatprep.subr.bf16.mxu0 %v422
  %593 = vmatpush1.bf16.msra.mxu0 %v421
  %594 = vmatprep.subr.bf16.mxu0 %v424
  %595 = vmatpush1.bf16.msra.mxu0 %v423
  %596 = vmatprep.subr.bf16.mxu0 %v426
  %597 = vmatpush1.bf16.msra.mxu0 %v425
  %598 = vmatprep.subr.bf16.mxu0 %v428
  %599 = vmatpush1.bf16.msra.mxu0 %v427
  %600 = vmatprep.subr.bf16.mxu0 %v430
  %601 = vmatpush1.bf16.msra.mxu0 %v429
  %602 = vmatprep.subr.bf16.mxu0 %v432
  %603 = vmatpush1.bf16.msra.mxu0 %v431
  %604 = vmatprep.subr.bf16.mxu0 %v434
  %605 = vmatpush1.bf16.msra.mxu0 %v433
  %606 = vmatprep.subr.bf16.mxu0 %v436
  %607 = vmatpush1.bf16.msra.mxu0 %v435
  %608 = vmatprep.subr.bf16.mxu0 %v438
  %609 = vmatpush1.bf16.msra.mxu0 %v437
  %610 = vmatprep.subr.bf16.mxu0 %v440
  %611 = vmatpush1.bf16.msra.mxu0 %v439
  %612 = vmatprep.subr.bf16.mxu0 %v442
  %613 = vmatpush1.bf16.msra.mxu0 %v441
  %614 = vmatprep.subr.bf16.mxu0 %v444
  %615 = vmatpush1.bf16.msra.mxu0 %v443
  %616 = vmatprep.subr.bf16.mxu0 %v446
  %617 = vmatpush1.bf16.msra.mxu0 %v445
  %618 = vmatprep.subr.bf16.mxu0 %v448
  %619 = vmatpush1.bf16.msra.mxu0 %v447
  %620 = vmatprep.subr.bf16.mxu0 %v450
  %621 = vmatpush1.bf16.msra.mxu0 %v449
  %622 = vmatprep.subr.bf16.mxu0 %v452
  %623 = vmatpush1.bf16.msra.mxu0 %v451
  %624 = vmatprep.mubr.bf16.mxu0 %v142
  %625 = vmatmul.mubr.bf16.gmra.mrb[0].mxu0 %v141
  %v626 = vpop.f32.mrb[0].mxu0
  %v627 = vadd.f32 %v584, %v626
  %v628 = vpop.f32.mrb[0].mxu0
  %v629 = vadd.f32 %v586, %v628
  %v630 = vpop.f32.mrb[0].mxu0
  %v631 = vadd.f32 %v588, %v630
  %v632 = vpop.f32.mrb[0].mxu0
  %v633 = vadd.f32 %v590, %v632
  %634 = vdwg.mxu0
  %635 = vmatprep.subr.bf16.mxu0 %v454
  %636 = vmatpush1.bf16.msra.mxu0 %v453
  %637 = vmatprep.subr.bf16.mxu0 %v456
  %638 = vmatpush1.bf16.msra.mxu0 %v455
  %639 = vmatprep.subr.bf16.mxu0 %v458
  %640 = vmatpush1.bf16.msra.mxu0 %v457
  %641 = vmatprep.subr.bf16.mxu0 %v460
  %642 = vmatpush1.bf16.msra.mxu0 %v459
  %643 = vmatprep.subr.bf16.mxu0 %v462
  %644 = vmatpush1.bf16.msra.mxu0 %v461
  %645 = vmatprep.subr.bf16.mxu0 %v464
  %646 = vmatpush1.bf16.msra.mxu0 %v463
  %647 = vmatprep.subr.bf16.mxu0 %v466
  %648 = vmatpush1.bf16.msra.mxu0 %v465
  %649 = vmatprep.subr.bf16.mxu0 %v468
  %650 = vmatpush1.bf16.msra.mxu0 %v467
  %651 = vmatprep.subr.bf16.mxu0 0
  %652 = vmatpush1.bf16.msra.mxu0 0
  %653 = vmatprep.subr.bf16.mxu0 0
  %654 = vmatpush1.bf16.msra.mxu0 0
  %655 = vmatprep.subr.bf16.mxu0 0
  %656 = vmatpush1.bf16.msra.mxu0 0
  %657 = vmatprep.subr.bf16.mxu0 0
  %658 = vmatpush1.bf16.msra.mxu0 0
  %659 = vmatprep.subr.bf16.mxu0 0
  %660 = vmatpush1.bf16.msra.mxu0 0
  %661 = vmatprep.subr.bf16.mxu0 0
  %662 = vmatpush1.bf16.msra.mxu0 0
  %663 = vmatprep.subr.bf16.mxu0 0
  %664 = vmatpush1.bf16.msra.mxu0 0
  %665 = vmatprep.subr.bf16.mxu0 0
  %666 = vmatpush1.bf16.msra.mxu0 0
  %667 = vmatprep.mubr.bf16.mxu0 0
  %668 = vmatmul.mubr.bf16.gmra.mrb[0].mxu0 %v143
  %v669 = vpop.f32.mrb[0].mxu0
  %v670 = vadd.f32 %v627, %v669
  %v671 = vpop.f32.mrb[0].mxu0
  %v672 = vadd.f32 %v629, %v671
  %v673 = vpop.f32.mrb[0].mxu0
  %v674 = vadd.f32 %v631, %v673
  %v675 = vpop.f32.mrb[0].mxu0
  %v676 = vadd.f32 %v633, %v675
  %677 = vdwg.mxu0
  %s678 = sld [smem:[#allocation2]]
  %vm679 = vcmp.ge.f32.partialorder %v670, 0.0
  %vm680 = vcmp.ge.f32.partialorder %v672, 0.0
  %vm681 = vcmp.ge.f32.partialorder %v674, 0.0
  %vm682 = vcmp.ge.f32.partialorder %v676, 0.0
  %v683 = vstv %s678
  %v684 = vmul.f32 %v683, %v670
  %v685 = vmul.f32 %v683, %v672
  %v686 = vmul.f32 %v683, %v674
  %v687 = vmul.f32 %v683, %v676
  %v688 = vsel %vm679, %v670, %v684
  %v689 = vsel %vm680, %v672, %v685
  %v690 = vsel %vm681, %v674, %v686
  %v691 = vsel %vm682, %v676, %v687
  %v692 = vpack.c.bf16 %v690, %v688
  %v693 = vpack.c.bf16 %v691, %v689
  %v694 = vld [vmem:[%s4] sm:$0xff]
  %v695 = vld [vmem:[%s4 + $0x8] sm:$0xff]
  %v696 = vld [vmem:[%s4 + $0x10] sm:$0xff]
  %v697 = vld [vmem:[%s4 + $0x18] sm:$0xff]
  %v698 = vld [vmem:[%s4 + $0x20] sm:$0xff]
  %v699 = vld [vmem:[%s4 + $0x28] sm:$0xff]
  %v700 = vld [vmem:[%s4 + $0x30] sm:$0xff]
  %v701 = vld [vmem:[%s4 + $0x38] sm:$0xff]
  %v702 = vld [vmem:[%s4 + $0x40] sm:$0xff]
  %v703 = vld [vmem:[%s4 + $0x48] sm:$0xff]
  %v704 = vld [vmem:[%s4 + $0x50] sm:$0xff]
  %v705 = vld [vmem:[%s4 + $0x58] sm:$0xff]
  %v706 = vld [vmem:[%s4 + $0x60] sm:$0xff]
  %v707 = vld [vmem:[%s4 + $0x68] sm:$0xff]
  %v708 = vld [vmem:[%s4 + $0x70] sm:$0xff]
  %v709 = vld [vmem:[%s4 + $0x78] sm:$0xff]
  %v710 = vld [vmem:[%s4 + $0x80] sm:$0xff]
  %v711 = vld [vmem:[%s4 + $0x88] sm:$0xff]
  %v712 = vld [vmem:[%s4 + $0x90] sm:$0xff]
  %v713 = vld [vmem:[%s4 + $0x98] sm:$0xff]
  %v714 = vld [vmem:[%s4 + $0xa0] sm:$0xff]
  %v715 = vld [vmem:[%s4 + $0xa8] sm:$0xff]
  %v716 = vld [vmem:[%s4 + $0xb0] sm:$0xff]
  %v717 = vld [vmem:[%s4 + $0xb8] sm:$0xff]
  %v718 = vld [vmem:[%s4 + $0xc0] sm:$0xff]
  %v719 = vld [vmem:[%s4 + $0xc8] sm:$0xff]
  %v720 = vld [vmem:[%s4 + $0xd0] sm:$0xff]
  %v721 = vld [vmem:[%s4 + $0xd8] sm:$0xff]
  %v722 = vld [vmem:[%s4 + $0xe0] sm:$0xff]
  %v723 = vld [vmem:[%s4 + $0xe8] sm:$0xff]
  %v724 = vld [vmem:[%s4 + $0xf0] sm:$0xff]
  %v725 = vld [vmem:[%s4 + $0xf8] sm:$0xff]
  %v726 = vld [vmem:[%s4 + $0x100] sm:$0xff]
  %v727 = vld [vmem:[%s4 + $0x108] sm:$0xff]
  %v728 = vld [vmem:[%s4 + $0x110] sm:$0xff]
  %v729 = vld [vmem:[%s4 + $0x118] sm:$0xff]
  %v730 = vld [vmem:[%s5] sm:$0xf]
  %v732 = vlaneseq
  %v733 = vshrl.u32 %v732, 7
  %v734 = vsub.s32 0, %v733
  %v735 = vrot.slane %v730, %v734
  %v736 = vlaneseq
  %v737 = vshrl.u32 %v736, 7
  %v738 = vsub.s32 1, %v737
  %v739 = vrot.slane %v730, %v738
  %v740 = vlaneseq
  %v741 = vshrl.u32 %v740, 7
  %v742 = vsub.s32 2, %v741
  %v743 = vrot.slane %v730, %v742
  %v744 = vlaneseq
  %v745 = vshrl.u32 %v744, 7
  %v746 = vsub.s32 3, %v745
  %v747 = vrot.slane %v730, %v746
  %v788 = vunpack.c.l.b16 %v694
  %v789 = vunpack.c.h.b16 %v694
  %v790 = vunpack.c.l.b16 %v695
  %v791 = vunpack.c.h.b16 %v695
  %v792 = vunpack.c.l.b16 %v696
  %v793 = vunpack.c.h.b16 %v696
  %v794 = vunpack.c.l.b16 %v697
  %v795 = vunpack.c.h.b16 %v697
  %v796 = vunpack.c.l.b16 %v698
  %v797 = vunpack.c.h.b16 %v698
  %v798 = vunpack.c.l.b16 %v699
  %v799 = vunpack.c.h.b16 %v699
  %v800 = vunpack.c.l.b16 %v700
  %v801 = vunpack.c.h.b16 %v700
  %v802 = vunpack.c.l.b16 %v701
  %v803 = vunpack.c.h.b16 %v701
  %v804 = vunpack.c.l.b16 %v702
  %v805 = vunpack.c.h.b16 %v702
  %v806 = vunpack.c.l.b16 %v703
  %v807 = vunpack.c.h.b16 %v703
  %v808 = vunpack.c.l.b16 %v704
  %v809 = vunpack.c.h.b16 %v704
  %v810 = vunpack.c.l.b16 %v705
  %v811 = vunpack.c.h.b16 %v705
  %v812 = vunpack.c.l.b16 %v706
  %v813 = vunpack.c.h.b16 %v706
  %v814 = vunpack.c.l.b16 %v707
  %v815 = vunpack.c.h.b16 %v707
  %v816 = vunpack.c.l.b16 %v708
  %v817 = vunpack.c.h.b16 %v708
  %v818 = vunpack.c.l.b16 %v709
  %v819 = vunpack.c.h.b16 %v709
  %v820 = vunpack.c.l.b16 %v710
  %v821 = vunpack.c.h.b16 %v710
  %v822 = vunpack.c.l.b16 %v711
  %v823 = vunpack.c.h.b16 %v711
  %v824 = vunpack.c.l.b16 %v712
  %v825 = vunpack.c.h.b16 %v712
  %v826 = vunpack.c.l.b16 %v713
  %v827 = vunpack.c.h.b16 %v713
  %v828 = vunpack.c.l.b16 %v714
  %v829 = vunpack.c.h.b16 %v714
  %v830 = vunpack.c.l.b16 %v715
  %v831 = vunpack.c.h.b16 %v715
  %v832 = vunpack.c.l.b16 %v716
  %v833 = vunpack.c.h.b16 %v716
  %v834 = vunpack.c.l.b16 %v717
  %v835 = vunpack.c.h.b16 %v717
  %v836 = vunpack.c.l.b16 %v718
  %v837 = vunpack.c.h.b16 %v718
  %v838 = vunpack.c.l.b16 %v719
  %v839 = vunpack.c.h.b16 %v719
  %v840 = vunpack.c.l.b16 %v720
  %v841 = vunpack.c.h.b16 %v720
  %v842 = vunpack.c.l.b16 %v721
  %v843 = vunpack.c.h.b16 %v721
  %v844 = vunpack.c.l.b16 %v722
  %v845 = vunpack.c.h.b16 %v722
  %v846 = vunpack.c.l.b16 %v723
  %v847 = vunpack.c.h.b16 %v723
  %v848 = vunpack.c.l.b16 %v724
  %v849 = vunpack.c.h.b16 %v724
  %v850 = vunpack.c.l.b16 %v725
  %v851 = vunpack.c.h.b16 %v725
  %v852 = vunpack.c.l.b16 %v726
  %v853 = vunpack.c.h.b16 %v726
  %v854 = vunpack.c.l.b16 %v727
  %v855 = vunpack.c.h.b16 %v727
  %v856 = vunpack.c.l.b16 %v728
  %v857 = vunpack.c.h.b16 %v728
  %v858 = vunpack.c.l.b16 %v729
  %v859 = vunpack.c.h.b16 %v729
  %v860 = vpack.c.b16 %v792, %v788
  %v861 = vpack.c.b16 %v793, %v789
  %v862 = vpack.c.b16 %v794, %v790
  %v863 = vpack.c.b16 %v795, %v791
  %v864 = vpack.c.b16 %v800, %v796
  %v865 = vpack.c.b16 %v801, %v797
  %v866 = vpack.c.b16 %v802, %v798
  %v867 = vpack.c.b16 %v803, %v799
  %v868 = vpack.c.b16 %v808, %v804
  %v869 = vpack.c.b16 %v809, %v805
  %v870 = vpack.c.b16 %v810, %v806
  %v871 = vpack.c.b16 %v811, %v807
  %v872 = vpack.c.b16 %v816, %v812
  %v873 = vpack.c.b16 %v817, %v813
  %v874 = vpack.c.b16 %v818, %v814
  %v875 = vpack.c.b16 %v819, %v815
  %v876 = vpack.c.b16 %v824, %v820
  %v877 = vpack.c.b16 %v825, %v821
  %v878 = vpack.c.b16 %v826, %v822
  %v879 = vpack.c.b16 %v827, %v823
  %v880 = vpack.c.b16 %v832, %v828
  %v881 = vpack.c.b16 %v833, %v829
  %v882 = vpack.c.b16 %v834, %v830
  %v883 = vpack.c.b16 %v835, %v831
  %v884 = vpack.c.b16 %v840, %v836
  %v885 = vpack.c.b16 %v841, %v837
  %v886 = vpack.c.b16 %v842, %v838
  %v887 = vpack.c.b16 %v843, %v839
  %v888 = vpack.c.b16 %v848, %v844
  %v889 = vpack.c.b16 %v849, %v845
  %v890 = vpack.c.b16 %v850, %v846
  %v891 = vpack.c.b16 %v851, %v847
  %v892 = vpack.c.b16 %v856, %v852
  %v893 = vpack.c.b16 %v857, %v853
  %v894 = vpack.c.b16 %v858, %v854
  %v895 = vpack.c.b16 %v859, %v855
  %vm932 = vcmask 130048
  %v934 = vsel %vm932, %v693, 0
  %936 = vmatprep.subr.bf16.mxu0 %v861
  %937 = vmatpush1.bf16.msra.mxu0 %v860
  %938 = vmatprep.subr.bf16.mxu0 %v865
  %939 = vmatpush1.bf16.msra.mxu0 %v864
  %940 = vmatprep.subr.bf16.mxu0 %v869
  %941 = vmatpush1.bf16.msra.mxu0 %v868
  %942 = vmatprep.subr.bf16.mxu0 %v873
  %943 = vmatpush1.bf16.msra.mxu0 %v872
  %944 = vmatprep.subr.bf16.mxu0 %v877
  %945 = vmatpush1.bf16.msra.mxu0 %v876
  %946 = vmatprep.subr.bf16.mxu0 %v881
  %947 = vmatpush1.bf16.msra.mxu0 %v880
  %948 = vmatprep.subr.bf16.mxu0 %v885
  %949 = vmatpush1.bf16.msra.mxu0 %v884
  %950 = vmatprep.subr.bf16.mxu0 %v889
  %951 = vmatpush1.bf16.msra.mxu0 %v888
  %952 = vmatprep.subr.bf16.mxu0 %v893
  %953 = vmatpush1.bf16.msra.mxu0 %v892
  %954 = vmatprep.subr.bf16.mxu0 0
  %955 = vmatpush1.bf16.msra.mxu0 0
  %956 = vmatprep.subr.bf16.mxu0 0
  %957 = vmatpush1.bf16.msra.mxu0 0
  %958 = vmatprep.subr.bf16.mxu0 0
  %959 = vmatpush1.bf16.msra.mxu0 0
  %960 = vmatprep.subr.bf16.mxu0 0
  %961 = vmatpush1.bf16.msra.mxu0 0
  %962 = vmatprep.subr.bf16.mxu0 0
  %963 = vmatpush1.bf16.msra.mxu0 0
  %964 = vmatprep.subr.bf16.mxu0 0
  %965 = vmatpush1.bf16.msra.mxu0 0
  %966 = vmatprep.subr.bf16.mxu0 0
  %967 = vmatpush1.bf16.msra.mxu0 0
  %968 = vmatprep.mubr.bf16.mxu0 %v934
  %969 = vmatmul.mubr.bf16.gmra.mrb[0].mxu0 %v692
  %v970 = vpop.f32.mrb[0].mxu0
  %v971 = vadd.f32 %v735, %v970
  %v972 = vpop.f32.mrb[0].mxu0
  %v973 = vadd.f32 %v739, %v972
  %v974 = vpop.f32.mrb[0].mxu0
  %v975 = vadd.f32 %v735, %v974
  %v976 = vpop.f32.mrb[0].mxu0
  %v977 = vadd.f32 %v739, %v976
  %978 = vdwg.mxu0
  %979 = vmatprep.subr.bf16.mxu0 %v863
  %980 = vmatpush1.bf16.msra.mxu0 %v862
  %981 = vmatprep.subr.bf16.mxu0 %v867
  %982 = vmatpush1.bf16.msra.mxu0 %v866
  %983 = vmatprep.subr.bf16.mxu0 %v871
  %984 = vmatpush1.bf16.msra.mxu0 %v870
  %985 = vmatprep.subr.bf16.mxu0 %v875
  %986 = vmatpush1.bf16.msra.mxu0 %v874
  %987 = vmatprep.subr.bf16.mxu0 %v879
  %988 = vmatpush1.bf16.msra.mxu0 %v878
  %989 = vmatprep.subr.bf16.mxu0 %v883
  %990 = vmatpush1.bf16.msra.mxu0 %v882
  %991 = vmatprep.subr.bf16.mxu0 %v887
  %992 = vmatpush1.bf16.msra.mxu0 %v886
  %993 = vmatprep.subr.bf16.mxu0 %v891
  %994 = vmatpush1.bf16.msra.mxu0 %v890
  %995 = vmatprep.subr.bf16.mxu0 %v895
  %996 = vmatpush1.bf16.msra.mxu0 %v894
  %997 = vmatprep.subr.bf16.mxu0 0
  %998 = vmatpush1.bf16.msra.mxu0 0
  %999 = vmatprep.subr.bf16.mxu0 0
  %1000 = vmatpush1.bf16.msra.mxu0 0
  %1001 = vmatprep.subr.bf16.mxu0 0
  %1002 = vmatpush1.bf16.msra.mxu0 0
  %1003 = vmatprep.subr.bf16.mxu0 0
  %1004 = vmatpush1.bf16.msra.mxu0 0
  %1005 = vmatprep.subr.bf16.mxu0 0
  %1006 = vmatpush1.bf16.msra.mxu0 0
  %1007 = vmatprep.subr.bf16.mxu0 0
  %1008 = vmatpush1.bf16.msra.mxu0 0
  %1009 = vmatprep.subr.bf16.mxu0 0
  %1010 = vmatpush1.bf16.msra.mxu0 0
  %1011 = vmatprep.mubr.bf16.mxu0 %v934
  %1012 = vmatmul.mubr.bf16.gmra.mrb[0].mxu0 %v692
  %v1013 = vpop.f32.mrb[0].mxu0
  %v1014 = vadd.f32 %v743, %v1013
  %v1015 = vpop.f32.mrb[0].mxu0
  %v1016 = vadd.f32 %v747, %v1015
  %v1017 = vpop.f32.mrb[0].mxu0
  %v1018 = vadd.f32 %v743, %v1017
  %v1019 = vpop.f32.mrb[0].mxu0
  %v1020 = vadd.f32 %v747, %v1019
  %1021 = vdwg.mxu0
  %1022 = vst [vmem:[%s6] sm:$0xff] %v971
  %1023 = vst [vmem:[%s6 + $0x8] sm:$0xff] %v973
  %1024 = vst [vmem:[%s6 + $0x10] sm:$0xff] %v1014
  %vm1025 = vcmask 392192
  %1026 = vst.msk [vmem:[%s6 + $0x18] sm:$0xff] %vm1025, %v1016
  %1027 = vst [vmem:[%s6 + $0x20] sm:$0xff] %v975
  %1028 = vst [vmem:[%s6 + $0x28] sm:$0xff] %v977
  %1029 = vst [vmem:[%s6 + $0x30] sm:$0xff] %v1018
  %1030 = vst.msk [vmem:[%s6 + $0x38] sm:$0xff] %vm1025, %v1020
  // Predicated region
  $region26: #{net_helper_forward.7} parent=0 // pred_check
    _
  $region27: #{net_helper_forward.7} parent=0 // pred_check_branch
    %1032 = sbr.rel (0) target = $region29
  $region28: #{net_helper_forward.7} parent=0 // pred_region
    _
  $region29: #{net_helper_forward.7} parent=0 // pred_fallthru
    _
  // Predicated region
  $region30: #{net_helper_forward.7} parent=0 // pred_check
    _
  $region31: #{net_helper_forward.7} parent=0 // pred_check_branch
    %1034 = sbr.rel (0) target = $region33
  $region32: #{net_helper_forward.7} parent=0 // pred_region
    _
  $region33: #{net_helper_forward.7} parent=0 // pred_fallthru
    _

// kernel: net_helper_forward.10
$region0: #{net_helper_forward.10}
  #allocation0 [shape = 'u32[]', space=smem, size = 0x4, offset = 0x4, fixed_abs, tag = 'smem constant byte address 0x4 - core index']
  #allocation1 [shape = 'u32[144,128]{1,0:T(1,128)}', space=vmem, size = 0x12000, scoped, tag = 'internal scratch']
  %s0 = inlined_call_operand.vmem [shape: f32[2,8,432], index: 0, kind: input, shape index: {}]
  %s1 = inlined_call_operand.vmem [shape: bf16[2,8,144], index: 1, kind: output, shape index: {}]
  %s2 = sld [smem:[#allocation0]]
  $region37: #{net_helper_forward.10} parent=0
    _
  %s4 = ssub.s32 1, %s2
  %s5 = scalar_select 0, %s4, %s2
  loop: start=0, step=1, limit=4
  $region2: #{net_helper_forward.10} parent=0 // loop_pre_header
    _
  $region3: #{net_helper_forward.10} parent=0 // loop_header
    %s7 = sphi 0, %s11
    %p8 = scmp.ge.s32.totalorder %s7, 4
    %s17 = sphi 0, %s19
    %s20 = sphi 0, %s17
    %s21 = sphi 0, %s20
    %s37 = sphi 0, %s21
    %s43 = sphi 0, %s45
    %s46 = sphi 0, %s43
    %s47 = sphi 0, %s46
    %s63 = sphi 0, %s47
  $region4: #{net_helper_forward.10} parent=0 // loop_header_branch
    %10 = sbr.rel (%p8) target = $region8
  $region5: #{net_helper_forward.10} parent=0 // loop_body
    %s12 = ssub.s32 %s7, 1
    %s13 = ssub.s32 %s7, 2
    %s14 = sadd.s32 %s7, 1
    %s15 = ssub.s32 %s7, %s14
    %p16 = scmp.eq.s32.totalorder %s15, 0
    %s18 = sadd.s32 %s17, 1
    %s19 = scalar_select %p16, %s17, %s18
    %p22 = pneg %p16
    %p23 = scmp.eq.s32.totalorder %s7, 1
    %p24 = por %p22, %p23
    %p25 = scmp.ne.s32.totalorder %s17, %s20
    %p26 = scmp.eq.s32.totalorder %s7, 0
    %p27 = por %p25, %p26
    %p28 = scmp.ne.s32.totalorder %s17, %s20
    %p29 = scmp.eq.s32.totalorder %s12, 1
    %p30 = por %p28, %p29
    %p31 = scmp.ne.s32.totalorder %s20, %s21
    %p32 = scmp.eq.s32.totalorder %s12, 0
    %p33 = por %p31, %p32
    %p34 = scmp.ne.s32.totalorder %s20, %s21
    %p35 = scmp.eq.s32.totalorder %s13, 1
    %p36 = por %p34, %p35
    %p38 = scmp.ne.s32.totalorder %s21, %s37
    %p39 = scmp.eq.s32.totalorder %s13, 0
    %p40 = por %p38, %p39
    %s41 = ssub.s32 %s7, %s14
    %p42 = scmp.eq.s32.totalorder %s41, 0
    %s44 = sadd.s32 %s43, 1
    %s45 = scalar_select %p42, %s43, %s44
    %p48 = pneg %p42
    %p49 = scmp.eq.s32.totalorder %s7, 1
    %p50 = por %p48, %p49
    %p51 = scmp.ne.s32.totalorder %s43, %s46
    %p52 = scmp.eq.s32.totalorder %s7, 0
    %p53 = por %p51, %p52
    %p54 = scmp.ne.s32.totalorder %s43, %s46
    %p55 = scmp.eq.s32.totalorder %s12, 1
    %p56 = por %p54, %p55
    %p57 = scmp.ne.s32.totalorder %s46, %s47
    %p58 = scmp.eq.s32.totalorder %s12, 0
    %p59 = por %p57, %p58
    %p60 = scmp.ne.s32.totalorder %s46, %s47
    %p61 = scmp.eq.s32.totalorder %s13, 1
    %p62 = por %p60, %p61
    %p64 = scmp.ne.s32.totalorder %s47, %s63
    %p65 = scmp.eq.s32.totalorder %s13, 0
    %p66 = por %p64, %p65
    %p67 = scmp.le.s32.totalorder 1, %s7
    %p68 = scmp.lt.s32.totalorder %s7, 3
    %p69 = pnand %p67, %p68
    %p70 = pneg %p69
    // Predicated region
    $region9: #{net_helper_forward.10} parent=5 // pred_check
      _
    $region10: #{net_helper_forward.10} parent=5 // pred_check_branch
      %72 = sbr.rel (%p69) target = $region12
    $region11: #{net_helper_forward.10} parent=5 // pred_region
      %s73 = ssub.s32 %s7, 1
    $region12: #{net_helper_forward.10} parent=5 // pred_fallthru
      _
    %p74 = scmp.lt.s32.totalorder %s7, 2
    // Predicated region
    $region13: #{net_helper_forward.10} parent=5 // pred_check
      %p75 = pneg %p74
    $region14: #{net_helper_forward.10} parent=5 // pred_check_branch
      %77 = sbr.rel (%p75) target = $region16
    $region15: #{net_helper_forward.10} parent=5 // pred_region
      // Predicated region
      $region17: #{net_helper_forward.10} parent=15 // pred_check
        %p78 = pneg %p27
      $region18: #{net_helper_forward.10} parent=15 // pred_check_branch
        %80 = sbr.rel (%p78) target = $region20
      $region19: #{net_helper_forward.10} parent=15 // pred_region
        %p81 = scmp.lt.s32.totalorder %s7, 1
        %s82 = scalar_select %p81, %s7, 1
        %s83 = smul.addr %s82, 4
        %s84 = smul.addr %s83, 8
        %s85 = scalar_lea.vmem %s0, %s84
      $region20: #{net_helper_forward.10} parent=15 // pred_fallthru
        _
    $region16: #{net_helper_forward.10} parent=5 // pred_fallthru
      _
    %p86 = scmp.le.s32.totalorder 1, %s7
    %p87 = scmp.lt.s32.totalorder %s7, 3
    %p88 = pnand %p86, %p87
    %p89 = pneg %p88
    // Predicated region
    $region21: #{net_helper_forward.10} parent=5 // pred_check
      _
    $region22: #{net_helper_forward.10} parent=5 // pred_check_branch
      %91 = sbr.rel (%p88) target = $region24
    $region23: #{net_helper_forward.10} parent=5 // pred_region
      %s92 = ssub.s32 %s7, 1
      %p93 = scmp.lt.s32.totalorder %s12, 1
      %s94 = scalar_select %p93, %s12, 1
      %s95 = smul.addr %s94, 4
      %s96 = smul.addr %s95, 8
      %s97 = scalar_lea.vmem %s0, %s96
      %p98 = pneg %p33
      %p99 = pneg %p30
      %p100 = pneg %p59
      %p101 = pneg %p56
      %p102 = scmp.lt.s32.totalorder %s12, 1
      %s103 = scalar_select %p102, %s12, 1
      %s104 = smul.addr %s103, 2
      %s105 = smul.addr %s104, 4
      %s106 = scalar_lea.vmem %s1, %s105
      %p107 = scmp.lt.s32.totalorder %s12, 1
      %s108 = scalar_select %p107, %s12, 1
      %s109 = smul.addr %s108, 4
      %s110 = smul.addr %s109, 8
      %s111 = scalar_lea.vmem %s0, %s110
      %p112 = scmp.lt.s32.totalorder %s12, 1
      %s113 = scalar_select %p112, %s12, 1
      %s114 = smul.addr %s113, 2
      %s115 = smul.addr %s114, 4
      %s116 = scalar_lea.vmem %s1, %s115
      %v117 = vld [vmem:[%s111] sm:$0xff]
      %v118 = vld [vmem:[%s111 + $0x8] sm:$0xff]
      %v119 = vld [vmem:[%s111 + $0x10] sm:$0xff]
      %v120 = vld [vmem:[%s111 + $0x18] sm:$0xff]
      %vm121 = vcmask 1047680
      %v122 = vsel %vm121, %v118, -inf
      %v123 = vrot.slane %v122, 4
      %v124 = vmax.f32 %v122, %v123
      %v125 = vrot.slane %v124, 2
      %v126 = vmax.f32 %v124, %v125
      %v127 = vrot.slane %v126, 1
      %v128 = vmax.f32 %v126, %v127
      %vm129 = vcmask 261120
      %v130 = vsel %vm129, %v119, -inf
      %v131 = vrot.slane %v130, 4
      %v132 = vmax.f32 %v130, %v131
      %v133 = vrot.slane %v132, 2
      %v134 = vmax.f32 %v132, %v133
      %v135 = vrot.slane %v134, 1
      %v136 = vmax.f32 %v134, %v135
      %v137 = vsel %vm121, %v118, inf
      %v138 = vrot.slane %v137, 4
      %v139 = vmin.f32 %v137, %v138
      %v140 = vrot.slane %v139, 2
      %v141 = vmin.f32 %v139, %v140
      %v142 = vrot.slane %v141, 1
      %v143 = vmin.f32 %v141, %v142
      %v144 = vsel %vm129, %v119, inf
      %v145 = vrot.slane %v144, 4
      %v146 = vmin.f32 %v144, %v145
      %v147 = vrot.slane %v146, 2
      %v148 = vmin.f32 %v146, %v147
      %v149 = vrot.slane %v148, 1
      %v150 = vmin.f32 %v148, %v149
      %vm151 = vcmp.ge.f32.partialorder %v117, 0.0
      %vm152 = vcmp.ge.f32.partialorder %v118, 0.0
      %155 = vrot.lane.b32.xlu0 %v128, 112
      %v156 = vpop.permute.xlu0 %155
      %157 = vrot.lane.b32.xlu0 %v136, 112
      %v158 = vpop.permute.xlu0 %157
      %vm159 = vcmask 916480
      %v160 = vsel %vm159, %v156, %v158
      %v163 = vmul.f32 %v117, %v160
      %v164 = vmul.f32 %v118, %v158
      %167 = vrot.lane.b32.xlu0 %v143, 112
      %v168 = vpop.permute.xlu0 %167
      %169 = vrot.lane.b32.xlu0 %v150, 112
      %v170 = vpop.permute.xlu0 %169
      %v171 = vsel %vm159, %v168, %v170
      %v174 = vmul.f32 %v117, %v171
      %v175 = vmul.f32 %v118, %v170
      %v176 = vsel %vm151, %v163, %v174
      %v177 = vsel %vm152, %v164, %v175
      %v178 = vlaneseq
      %v179 = vshrl.u32 %v178, 7
      %v180 = vsub.s32 0, %v179
      %v181 = vrot.slane %v118, %v180
      %v182 = vlaneseq
      %v183 = vshrl.u32 %v182, 7
      %v184 = vsub.s32 0, %v183
      %v185 = vrot.slane %v119, %v184
      %188 = vrot.lane.b32.xlu0 %v181, 112
      %v189 = vpop.permute.xlu0 %188
      %190 = vrot.lane.b32.xlu0 %v185, 112
      %v191 = vpop.permute.xlu0 %190
      %v192 = vsel %vm159, %v189, %v191
      %v195 = vmul.f32 %v117, %v192
      %v196 = vmul.f32 %v118, %v191
      %v197 = vsub.f32 %v195, %v176
      %v198 = vsub.f32 %v196, %v177
      %v199 = vmul.f32 %v197, 1.442695
      %v200 = vpow.pop %v199
      %v201 = vmul.f32 %v198, 1.442695
      %v202 = vpow.pop %v201
      %v203 = vadd.f32 %v200, 0.0
      %v204 = vadd.f32 %v202, 0.0
      %v205 = vlaneseq
      %v206 = vshrl.u32 %v205, 7
      %v207 = vsub.s32 0, %v206
      %v208 = vrot.slane %v120, %v207
      %210 = vrot.lane.b32.xlu0 %v185, 96
      %v211 = vpop.permute.xlu0 %210
      %212 = vrot.lane.b32.xlu0 %v208, 96
      %v213 = vpop.permute.xlu0 %212
      %vm214 = vcmask 785408
      %v215 = vsel %vm214, %v211, %v213
      %v218 = vmul.f32 %v200, %v215
      %v219 = vmul.f32 %v202, %v213
      %v220 = vadd.f32 %v218, 0.0
      %v221 = vadd.f32 %v219, 0.0
      %v222 = vlaneseq
      %v223 = vshrl.u32 %v222, 7
      %v224 = vsub.s32 1, %v223
      %v225 = vrot.slane %v118, %v224
      %v226 = vlaneseq
      %v227 = vshrl.u32 %v226, 7
      %v228 = vsub.s32 1, %v227
      %v229 = vrot.slane %v119, %v228
      %232 = vrot.lane.b32.xlu0 %v225, 112
      %v233 = vpop.permute.xlu0 %232
      %234 = vrot.lane.b32.xlu0 %v229, 112
      %v235 = vpop.permute.xlu0 %234
      %v236 = vsel %vm159, %v233, %v235
      %v239 = vmul.f32 %v117, %v236
      %v240 = vmul.f32 %v118, %v235
      %v241 = vsub.f32 %v239, %v176
      %v242 = vsub.f32 %v240, %v177
      %v243 = vmul.f32 %v241, 1.442695
      %v244 = vpow.pop %v243
      %v245 = vmul.f32 %v242, 1.442695
      %v246 = vpow.pop %v245
      %v247 = vadd.f32 %v203, %v244
      %v248 = vadd.f32 %v204, %v246
      %v249 = vlaneseq
      %v250 = vshrl.u32 %v249, 7
      %v251 = vsub.s32 1, %v250
      %v252 = vrot.slane %v120, %v251
      %254 = vrot.lane.b32.xlu0 %v229, 96
      %v255 = vpop.permute.xlu0 %254
      %256 = vrot.lane.b32.xlu0 %v252, 96
      %v257 = vpop.permute.xlu0 %256
      %v258 = vsel %vm214, %v255, %v257
      %v261 = vmul.f32 %v244, %v258
      %v262 = vmul.f32 %v246, %v257
      %v263 = vadd.f32 %v220, %v261
      %v264 = vadd.f32 %v221, %v262
      %v265 = vlaneseq
      %v266 = vshrl.u32 %v265, 7
      %v267 = vsub.s32 2, %v266
      %v268 = vrot.slane %v118, %v267
      %v269 = vlaneseq
      %v270 = vshrl.u32 %v269, 7
      %v271 = vsub.s32 2, %v270
      %v272 = vrot.slane %v119, %v271
      %275 = vrot.lane.b32.xlu0 %v268, 112
      %v276 = vpop.permute.xlu0 %275
      %277 = vrot.lane.b32.xlu0 %v272, 112
      %v278 = vpop.permute.xlu0 %277
      %v279 = vsel %vm159, %v276, %v278
      %v282 = vmul.f32 %v117, %v279
      %v283 = vmul.f32 %v118, %v278
      %v284 = vsub.f32 %v282, %v176
      %v285 = vsub.f32 %v283, %v177
      %v286 = vmul.f32 %v284, 1.442695
      %v287 = vpow.pop %v286
      %v288 = vmul.f32 %v285, 1.442695
      %v289 = vpow.pop %v288
      %v290 = vadd.f32 %v247, %v287
      %v291 = vadd.f32 %v248, %v289
      %v292 = vlaneseq
      %v293 = vshrl.u32 %v292, 7
      %v294 = vsub.s32 2, %v293
      %v295 = vrot.slane %v120, %v294
      %297 = vrot.lane.b32.xlu0 %v272, 96
      %v298 = vpop.permute.xlu0 %297
      %299 = vrot.lane.b32.xlu0 %v295, 96
      %v300 = vpop.permute.xlu0 %299
      %v301 = vsel %vm214, %v298, %v300
      %v304 = vmul.f32 %v287, %v301
      %v305 = vmul.f32 %v289, %v300
      %v306 = vadd.f32 %v263, %v304
      %v307 = vadd.f32 %v264, %v305
      %v308 = vlaneseq
      %v309 = vshrl.u32 %v308, 7
      %v310 = vsub.s32 3, %v309
      %v311 = vrot.slane %v118, %v310
      %v312 = vlaneseq
      %v313 = vshrl.u32 %v312, 7
      %v314 = vsub.s32 3, %v313
      %v315 = vrot.slane %v119, %v314
      %318 = vrot.lane.b32.xlu0 %v311, 112
      %v319 = vpop.permute.xlu0 %318
      %320 = vrot.lane.b32.xlu0 %v315, 112
      %v321 = vpop.permute.xlu0 %320
      %v322 = vsel %vm159, %v319, %v321
      %v325 = vmul.f32 %v117, %v322
      %v326 = vmul.f32 %v118, %v321
      %v327 = vsub.f32 %v325, %v176
      %v328 = vsub.f32 %v326, %v177
      %v329 = vmul.f32 %v327, 1.442695
      %v330 = vpow.pop %v329
      %v331 = vmul.f32 %v328, 1.442695
      %v332 = vpow.pop %v331
      %v333 = vadd.f32 %v290, %v330
      %v334 = vadd.f32 %v291, %v332
      %v335 = vlaneseq
      %v336 = vshrl.u32 %v335, 7
      %v337 = vsub.s32 3, %v336
      %v338 = vrot.slane %v120, %v337
      %340 = vrot.lane.b32.xlu0 %v315, 96
      %v341 = vpop.permute.xlu0 %340
      %342 = vrot.lane.b32.xlu0 %v338, 96
      %v343 = vpop.permute.xlu0 %342
      %v344 = vsel %vm214, %v341, %v343
      %v347 = vmul.f32 %v330, %v344
      %v348 = vmul.f32 %v332, %v343
      %v349 = vadd.f32 %v306, %v347
      %v350 = vadd.f32 %v307, %v348
      %v351 = vlaneseq
      %v352 = vshrl.u32 %v351, 7
      %v353 = vsub.s32 4, %v352
      %v354 = vrot.slane %v118, %v353
      %v355 = vlaneseq
      %v356 = vshrl.u32 %v355, 7
      %v357 = vsub.s32 4, %v356
      %v358 = vrot.slane %v119, %v357
      %361 = vrot.lane.b32.xlu0 %v354, 112
      %v362 = vpop.permute.xlu0 %361
      %363 = vrot.lane.b32.xlu0 %v358, 112
      %v364 = vpop.permute.xlu0 %363
      %v365 = vsel %vm159, %v362, %v364
      %v368 = vmul.f32 %v117, %v365
      %v369 = vmul.f32 %v118, %v364
      %v370 = vsub.f32 %v368, %v176
      %v371 = vsub.f32 %v369, %v177
      %v372 = vmul.f32 %v370, 1.442695
      %v373 = vpow.pop %v372
      %v374 = vmul.f32 %v371, 1.442695
      %v375 = vpow.pop %v374
      %v376 = vadd.f32 %v333, %v373
      %v377 = vadd.f32 %v334, %v375
      %v378 = vlaneseq
      %v379 = vshrl.u32 %v378, 7
      %v380 = vsub.s32 4, %v379
      %v381 = vrot.slane %v120, %v380
      %383 = vrot.lane.b32.xlu0 %v358, 96
      %v384 = vpop.permute.xlu0 %383
      %385 = vrot.lane.b32.xlu0 %v381, 96
      %v386 = vpop.permute.xlu0 %385
      %v387 = vsel %vm214, %v384, %v386
      %v390 = vmul.f32 %v373, %v387
      %v391 = vmul.f32 %v375, %v386
      %v392 = vadd.f32 %v349, %v390
      %v393 = vadd.f32 %v350, %v391
      %v394 = vlaneseq
      %v395 = vshrl.u32 %v394, 7
      %v396 = vsub.s32 5, %v395
      %v397 = vrot.slane %v118, %v396
      %v398 = vlaneseq
      %v399 = vshrl.u32 %v398, 7
      %v400 = vsub.s32 5, %v399
      %v401 = vrot.slane %v119, %v400
      %404 = vrot.lane.b32.xlu0 %v397, 112
      %v405 = vpop.permute.xlu0 %404
      %406 = vrot.lane.b32.xlu0 %v401, 112
      %v407 = vpop.permute.xlu0 %406
      %v408 = vsel %vm159, %v405, %v407
      %v411 = vmul.f32 %v117, %v408
      %v412 = vmul.f32 %v118, %v407
      %v413 = vsub.f32 %v411, %v176
      %v414 = vsub.f32 %v412, %v177
      %v415 = vmul.f32 %v413, 1.442695
      %v416 = vpow.pop %v415
      %v417 = vmul.f32 %v414, 1.442695
      %v418 = vpow.pop %v417
      %v419 = vadd.f32 %v376, %v416
      %v420 = vadd.f32 %v377, %v418
      %v421 = vlaneseq
      %v422 = vshrl.u32 %v421, 7
      %v423 = vsub.s32 5, %v422
      %v424 = vrot.slane %v120, %v423
      %426 = vrot.lane.b32.xlu0 %v401, 96
      %v427 = vpop.permute.xlu0 %426
      %428 = vrot.lane.b32.xlu0 %v424, 96
      %v429 = vpop.permute.xlu0 %428
      %v430 = vsel %vm214, %v427, %v429
      %v433 = vmul.f32 %v416, %v430
      %v434 = vmul.f32 %v418, %v429
      %v435 = vadd.f32 %v392, %v433
      %v436 = vadd.f32 %v393, %v434
      %v437 = vlaneseq
      %v438 = vshrl.u32 %v437, 7
      %v439 = vsub.s32 6, %v438
      %v440 = vrot.slane %v118, %v439
      %v441 = vlaneseq
      %v442 = vshrl.u32 %v441, 7
      %v443 = vsub.s32 6, %v442
      %v444 = vrot.slane %v119, %v443
      %447 = vrot.lane.b32.xlu0 %v440, 112
      %v448 = vpop.permute.xlu0 %447
      %449 = vrot.lane.b32.xlu0 %v444, 112
      %v450 = vpop.permute.xlu0 %449
      %v451 = vsel %vm159, %v448, %v450
      %v454 = vmul.f32 %v117, %v451
      %v455 = vmul.f32 %v118, %v450
      %v456 = vsub.f32 %v454, %v176
      %v457 = vsub.f32 %v455, %v177
      %v458 = vmul.f32 %v456, 1.442695
      %v459 = vpow.pop %v458
      %v460 = vmul.f32 %v457, 1.442695
      %v461 = vpow.pop %v460
      %v462 = vadd.f32 %v419, %v459
      %v463 = vadd.f32 %v420, %v461
      %v464 = vlaneseq
      %v465 = vshrl.u32 %v464, 7
      %v466 = vsub.s32 6, %v465
      %v467 = vrot.slane %v120, %v466
      %469 = vrot.lane.b32.xlu0 %v444, 96
      %v470 = vpop.permute.xlu0 %469
      %471 = vrot.lane.b32.xlu0 %v467, 96
      %v472 = vpop.permute.xlu0 %471
      %v473 = vsel %vm214, %v470, %v472
      %v476 = vmul.f32 %v459, %v473
      %v477 = vmul.f32 %v461, %v472
      %v478 = vadd.f32 %v435, %v476
      %v479 = vadd.f32 %v436, %v477
      %v480 = vlaneseq
      %v481 = vshrl.u32 %v480, 7
      %v482 = vsub.s32 7, %v481
      %v483 = vrot.slane %v118, %v482
      %v484 = vlaneseq
      %v485 = vshrl.u32 %v484, 7
      %v486 = vsub.s32 7, %v485
      %v487 = vrot.slane %v119, %v486
      %490 = vrot.lane.b32.xlu0 %v483, 112
      %v491 = vpop.permute.xlu0 %490
      %492 = vrot.lane.b32.xlu0 %v487, 112
      %v493 = vpop.permute.xlu0 %492
      %v494 = vsel %vm159, %v491, %v493
      %v497 = vmul.f32 %v117, %v494
      %v498 = vmul.f32 %v118, %v493
      %v499 = vsub.f32 %v497, %v176
      %v500 = vsub.f32 %v498, %v177
      %v501 = vmul.f32 %v499, 1.442695
      %v502 = vpow.pop %v501
      %v503 = vmul.f32 %v500, 1.442695
      %v504 = vpow.pop %v503
      %v505 = vadd.f32 %v462, %v502
      %v506 = vadd.f32 %v463, %v504
      %v507 = vlaneseq
      %v508 = vshrl.u32 %v507, 7
      %v509 = vsub.s32 7, %v508
      %v510 = vrot.slane %v120, %v509
      %512 = vrot.lane.b32.xlu0 %v487, 96
      %v513 = vpop.permute.xlu0 %512
      %514 = vrot.lane.b32.xlu0 %v510, 96
      %v515 = vpop.permute.xlu0 %514
      %v516 = vsel %vm214, %v513, %v515
      %v519 = vmul.f32 %v502, %v516
      %v520 = vmul.f32 %v504, %v515
      %v521 = vadd.f32 %v478, %v519
      %v522 = vadd.f32 %v479, %v520
      %v523 = vrcp.pop %v505
      %v524 = vrcp.pop %v506
      %v525 = vmul.f32 %v521, %v523
      %v526 = vmul.f32 %v522, %v524
      %v527 = vpack.c.bf16 %v525, %v525
      %v528 = vpack.c.bf16 %v526, %v526
      %v531 = vunpack.c.l.b16 %v527
      %v532 = vunpack.c.l.b16 %v528
      %v533 = vpack.c.b16 %v532, %v531
      %vm535 = vcmask 1043456
      %vm536 = vcmask 130052
      %vm537 = vmor %vm536, %vm535
      %538 = vst.msk [vmem:[%s116] sm:$0xff] %vm537, %v533
      %p539 = scmp.lt.s32.totalorder %s12, 1
      %s540 = scalar_select %p539, %s12, 1
      %s541 = smul.addr %s540, 2
      %s542 = smul.addr %s541, 4
      %s543 = scalar_lea.vmem %s1, %s542
      // Predicated region
      $region25: #{net_helper_forward.10} parent=23 // pred_check
        %p544 = pneg %p56
      $region26: #{net_helper_forward.10} parent=23 // pred_check_branch
        %546 = sbr.rel (%p544) target = $region28
      $region27: #{net_helper_forward.10} parent=23 // pred_region
        _
      $region28: #{net_helper_forward.10} parent=23 // pred_fallthru
        _
    $region24: #{net_helper_forward.10} parent=5 // pred_fallthru
      _
    %p547 = scmp.le.s32.totalorder 2, %s7
    // Predicated region
    $region29: #{net_helper_forward.10} parent=5 // pred_check
      %p548 = pneg %p547
    $region30: #{net_helper_forward.10} parent=5 // pred_check_branch
      %550 = sbr.rel (%p548) target = $region32
    $region31: #{net_helper_forward.10} parent=5 // pred_region
      %s551 = ssub.s32 %s7, 2
      // Predicated region
      $region33: #{net_helper_forward.10} parent=31 // pred_check
        %p552 = pneg %p62
      $region34: #{net_helper_forward.10} parent=31 // pred_check_branch
        %554 = sbr.rel (%p552) target = $region36
      $region35: #{net_helper_forward.10} parent=31 // pred_region
        %p555 = scmp.lt.s32.totalorder %s13, 1
        %s556 = scalar_select %p555, %s13, 1
        %s557 = smul.addr %s556, 2
        %s558 = smul.addr %s557, 4
        %s559 = scalar_lea.vmem %s1, %s558
      $region36: #{net_helper_forward.10} parent=31 // pred_fallthru
        _
    $region32: #{net_helper_forward.10} parent=5 // pred_fallthru
      _
  $region6: #{net_helper_forward.10} parent=0 // loop_footer
    %s11 = sadd.s32 1, %s7
  $region7: #{net_helper_forward.10} parent=0 // loop_footer_branch
    %6 = sbr.rel target = $region3
  $region8: #{net_helper_forward.10} parent=0 // loop_exit
    _

// kernel: net_helper_forward.9
$region0: #{net_helper_forward.9}
  #allocation0 [shape = 'u32[]', space=smem, size = 0x4, offset = 0x4, fixed_abs, tag = 'smem constant byte address 0x4 - core index']
  #allocation1 [shape = 'u32[144,128]{1,0:T(1,128)}', space=vmem, size = 0x12000, scoped, tag = 'internal scratch']
  %s0 = inlined_call_operand.vmem [shape: bf16[16,144], index: 0, kind: input, shape index: {}]
  %s1 = inlined_call_operand.vmem [shape: bf16[144,432], index: 1, kind: input, shape index: {}]
  %s2 = inlined_call_operand.vmem [shape: f32[1,432], index: 2, kind: input, shape index: {}]
  %s3 = inlined_call_operand.vmem [shape: f32[16,432], index: 3, kind: output, shape index: {}]
  %s4 = sld [smem:[#allocation0]]
  $region22: #{net_helper_forward.9} parent=0
    _
  %s6 = ssub.s32 1, %s4
  %s7 = scalar_select 0, %s6, %s4
  // Predicated region
  $region2: #{net_helper_forward.9} parent=0 // pred_check
    _
  $region3: #{net_helper_forward.9} parent=0 // pred_check_branch
    %9 = sbr.rel (0) target = $region5
  $region4: #{net_helper_forward.9} parent=0 // pred_region
    _
  $region5: #{net_helper_forward.9} parent=0 // pred_fallthru
    _
  // Predicated region
  $region6: #{net_helper_forward.9} parent=0 // pred_check
    _
  $region7: #{net_helper_forward.9} parent=0 // pred_check_branch
    %11 = sbr.rel (0) target = $region9
  $region8: #{net_helper_forward.9} parent=0 // pred_region
    _
  $region9: #{net_helper_forward.9} parent=0 // pred_fallthru
    _
  // Predicated region
  $region10: #{net_helper_forward.9} parent=0 // pred_check
    _
  $region11: #{net_helper_forward.9} parent=0 // pred_check_branch
    %13 = sbr.rel (0) target = $region13
  $region12: #{net_helper_forward.9} parent=0 // pred_region
    _
  $region13: #{net_helper_forward.9} parent=0 // pred_fallthru
    _
  %v15 = vld [vmem:[%s0] sm:$0xff]
  %v16 = vld [vmem:[%s0 + $0x8] sm:$0xff]
  %v17 = vld [vmem:[%s1] sm:$0xff]
  %v18 = vld [vmem:[%s1 + $0x8] sm:$0xff]
  %v19 = vld [vmem:[%s1 + $0x10] sm:$0xff]
  %v20 = vld [vmem:[%s1 + $0x18] sm:$0xff]
  %v21 = vld [vmem:[%s1 + $0x20] sm:$0xff]
  %v22 = vld [vmem:[%s1 + $0x28] sm:$0xff]
  %v23 = vld [vmem:[%s1 + $0x30] sm:$0xff]
  %v24 = vld [vmem:[%s1 + $0x38] sm:$0xff]
  %v25 = vld [vmem:[%s1 + $0x40] sm:$0xff]
  %v26 = vld [vmem:[%s1 + $0x48] sm:$0xff]
  %v27 = vld [vmem:[%s1 + $0x50] sm:$0xff]
  %v28 = vld [vmem:[%s1 + $0x58] sm:$0xff]
  %v29 = vld [vmem:[%s1 + $0x60] sm:$0xff]
  %v30 = vld [vmem:[%s1 + $0x68] sm:$0xff]
  %v31 = vld [vmem:[%s1 + $0x70] sm:$0xff]
  %v32 = vld [vmem:[%s1 + $0x78] sm:$0xff]
  %v33 = vld [vmem:[%s1 + $0x80] sm:$0xff]
  %v34 = vld [vmem:[%s1 + $0x88] sm:$0xff]
  %v35 = vld [vmem:[%s1 + $0x90] sm:$0xff]
  %v36 = vld [vmem:[%s1 + $0x98] sm:$0xff]
  %v37 = vld [vmem:[%s1 + $0xa0] sm:$0xff]
  %v38 = vld [vmem:[%s1 + $0xa8] sm:$0xff]
  %v39 = vld [vmem:[%s1 + $0xb0] sm:$0xff]
  %v40 = vld [vmem:[%s1 + $0xb8] sm:$0xff]
  %v41 = vld [vmem:[%s1 + $0xc0] sm:$0xff]
  %v42 = vld [vmem:[%s1 + $0xc8] sm:$0xff]
  %v43 = vld [vmem:[%s1 + $0xd0] sm:$0xff]
  %v44 = vld [vmem:[%s1 + $0xd8] sm:$0xff]
  %v45 = vld [vmem:[%s1 + $0xe0] sm:$0xff]
  %v46 = vld [vmem:[%s1 + $0xe8] sm:$0xff]
  %v47 = vld [vmem:[%s1 + $0xf0] sm:$0xff]
  %v48 = vld [vmem:[%s1 + $0xf8] sm:$0xff]
  %v49 = vld [vmem:[%s1 + $0x100] sm:$0xff]
  %v50 = vld [vmem:[%s1 + $0x108] sm:$0xff]
  %v51 = vld [vmem:[%s1 + $0x110] sm:$0xff]
  %v52 = vld [vmem:[%s1 + $0x118] sm:$0xff]
  %v53 = vld [vmem:[%s2] sm:$0xf]
  %v55 = vlaneseq
  %v56 = vshrl.u32 %v55, 7
  %v57 = vsub.s32 0, %v56
  %v58 = vrot.slane %v53, %v57
  %v59 = vlaneseq
  %v60 = vshrl.u32 %v59, 7
  %v61 = vsub.s32 1, %v60
  %v62 = vrot.slane %v53, %v61
  %v63 = vlaneseq
  %v64 = vshrl.u32 %v63, 7
  %v65 = vsub.s32 2, %v64
  %v66 = vrot.slane %v53, %v65
  %v67 = vlaneseq
  %v68 = vshrl.u32 %v67, 7
  %v69 = vsub.s32 3, %v68
  %v70 = vrot.slane %v53, %v69
  %v77 = vunpack.c.l.b16 %v15
  %v78 = vunpack.c.h.b16 %v15
  %v79 = vunpack.c.l.b16 %v16
  %v80 = vunpack.c.h.b16 %v16
  %v81 = vpack.c.b16 %v79, %v77
  %v82 = vpack.c.b16 %v80, %v78
  %v120 = vunpack.c.l.b16 %v17
  %v121 = vunpack.c.h.b16 %v17
  %v122 = vunpack.c.l.b16 %v18
  %v123 = vunpack.c.h.b16 %v18
  %v124 = vunpack.c.l.b16 %v19
  %v125 = vunpack.c.h.b16 %v19
  %v126 = vunpack.c.l.b16 %v20
  %v127 = vunpack.c.h.b16 %v20
  %v128 = vunpack.c.l.b16 %v21
  %v129 = vunpack.c.h.b16 %v21
  %v130 = vunpack.c.l.b16 %v22
  %v131 = vunpack.c.h.b16 %v22
  %v132 = vunpack.c.l.b16 %v23
  %v133 = vunpack.c.h.b16 %v23
  %v134 = vunpack.c.l.b16 %v24
  %v135 = vunpack.c.h.b16 %v24
  %v136 = vunpack.c.l.b16 %v25
  %v137 = vunpack.c.h.b16 %v25
  %v138 = vunpack.c.l.b16 %v26
  %v139 = vunpack.c.h.b16 %v26
  %v140 = vunpack.c.l.b16 %v27
  %v141 = vunpack.c.h.b16 %v27
  %v142 = vunpack.c.l.b16 %v28
  %v143 = vunpack.c.h.b16 %v28
  %v144 = vunpack.c.l.b16 %v29
  %v145 = vunpack.c.h.b16 %v29
  %v146 = vunpack.c.l.b16 %v30
  %v147 = vunpack.c.h.b16 %v30
  %v148 = vunpack.c.l.b16 %v31
  %v149 = vunpack.c.h.b16 %v31
  %v150 = vunpack.c.l.b16 %v32
  %v151 = vunpack.c.h.b16 %v32
  %v152 = vunpack.c.l.b16 %v33
  %v153 = vunpack.c.h.b16 %v33
  %v154 = vunpack.c.l.b16 %v34
  %v155 = vunpack.c.h.b16 %v34
  %v156 = vunpack.c.l.b16 %v35
  %v157 = vunpack.c.h.b16 %v35
  %v158 = vunpack.c.l.b16 %v36
  %v159 = vunpack.c.h.b16 %v36
  %v160 = vunpack.c.l.b16 %v37
  %v161 = vunpack.c.h.b16 %v37
  %v162 = vunpack.c.l.b16 %v38
  %v163 = vunpack.c.h.b16 %v38
  %v164 = vunpack.c.l.b16 %v39
  %v165 = vunpack.c.h.b16 %v39
  %v166 = vunpack.c.l.b16 %v40
  %v167 = vunpack.c.h.b16 %v40
  %v168 = vunpack.c.l.b16 %v41
  %v169 = vunpack.c.h.b16 %v41
  %v170 = vunpack.c.l.b16 %v42
  %v171 = vunpack.c.h.b16 %v42
  %v172 = vunpack.c.l.b16 %v43
  %v173 = vunpack.c.h.b16 %v43
  %v174 = vunpack.c.l.b16 %v44
  %v175 = vunpack.c.h.b16 %v44
  %v176 = vunpack.c.l.b16 %v45
  %v177 = vunpack.c.h.b16 %v45
  %v178 = vunpack.c.l.b16 %v46
  %v179 = vunpack.c.h.b16 %v46
  %v180 = vunpack.c.l.b16 %v47
  %v181 = vunpack.c.h.b16 %v47
  %v182 = vunpack.c.l.b16 %v48
  %v183 = vunpack.c.h.b16 %v48
  %v184 = vunpack.c.l.b16 %v49
  %v185 = vunpack.c.h.b16 %v49
  %v186 = vunpack.c.l.b16 %v50
  %v187 = vunpack.c.h.b16 %v50
  %v188 = vunpack.c.l.b16 %v51
  %v189 = vunpack.c.h.b16 %v51
  %v190 = vunpack.c.l.b16 %v52
  %v191 = vunpack.c.h.b16 %v52
  %v192 = vpack.c.b16 %v124, %v120
  %v193 = vpack.c.b16 %v125, %v121
  %v194 = vpack.c.b16 %v126, %v122
  %v195 = vpack.c.b16 %v127, %v123
  %v196 = vpack.c.b16 %v132, %v128
  %v197 = vpack.c.b16 %v133, %v129
  %v198 = vpack.c.b16 %v134, %v130
  %v199 = vpack.c.b16 %v135, %v131
  %v200 = vpack.c.b16 %v140, %v136
  %v201 = vpack.c.b16 %v141, %v137
  %v202 = vpack.c.b16 %v142, %v138
  %v203 = vpack.c.b16 %v143, %v139
  %v204 = vpack.c.b16 %v148, %v144
  %v205 = vpack.c.b16 %v149, %v145
  %v206 = vpack.c.b16 %v150, %v146
  %v207 = vpack.c.b16 %v151, %v147
  %v208 = vpack.c.b16 %v156, %v152
  %v209 = vpack.c.b16 %v157, %v153
  %v210 = vpack.c.b16 %v158, %v154
  %v211 = vpack.c.b16 %v159, %v155
  %v212 = vpack.c.b16 %v164, %v160
  %v213 = vpack.c.b16 %v165, %v161
  %v214 = vpack.c.b16 %v166, %v162
  %v215 = vpack.c.b16 %v167, %v163
  %v216 = vpack.c.b16 %v172, %v168
  %v217 = vpack.c.b16 %v173, %v169
  %v218 = vpack.c.b16 %v174, %v170
  %v219 = vpack.c.b16 %v175, %v171
  %v220 = vpack.c.b16 %v180, %v176
  %v221 = vpack.c.b16 %v181, %v177
  %v222 = vpack.c.b16 %v182, %v178
  %v223 = vpack.c.b16 %v183, %v179
  %v224 = vpack.c.b16 %v188, %v184
  %v225 = vpack.c.b16 %v189, %v185
  %v226 = vpack.c.b16 %v190, %v186
  %v227 = vpack.c.b16 %v191, %v187
  %vm264 = vcmask 130048
  %v266 = vsel %vm264, %v82, 0
  %268 = vmatprep.subr.bf16.mxu0 %v193
  %269 = vmatpush1.bf16.msra.mxu0 %v192
  %270 = vmatprep.subr.bf16.mxu0 %v197
  %271 = vmatpush1.bf16.msra.mxu0 %v196
  %272 = vmatprep.subr.bf16.mxu0 %v201
  %273 = vmatpush1.bf16.msra.mxu0 %v200
  %274 = vmatprep.subr.bf16.mxu0 %v205
  %275 = vmatpush1.bf16.msra.mxu0 %v204
  %276 = vmatprep.subr.bf16.mxu0 %v209
  %277 = vmatpush1.bf16.msra.mxu0 %v208
  %278 = vmatprep.subr.bf16.mxu0 %v213
  %279 = vmatpush1.bf16.msra.mxu0 %v212
  %280 = vmatprep.subr.bf16.mxu0 %v217
  %281 = vmatpush1.bf16.msra.mxu0 %v216
  %282 = vmatprep.subr.bf16.mxu0 %v221
  %283 = vmatpush1.bf16.msra.mxu0 %v220
  %284 = vmatprep.subr.bf16.mxu0 %v225
  %285 = vmatpush1.bf16.msra.mxu0 %v224
  %286 = vmatprep.subr.bf16.mxu0 0
  %287 = vmatpush1.bf16.msra.mxu0 0
  %288 = vmatprep.subr.bf16.mxu0 0
  %289 = vmatpush1.bf16.msra.mxu0 0
  %290 = vmatprep.subr.bf16.mxu0 0
  %291 = vmatpush1.bf16.msra.mxu0 0
  %292 = vmatprep.subr.bf16.mxu0 0
  %293 = vmatpush1.bf16.msra.mxu0 0
  %294 = vmatprep.subr.bf16.mxu0 0
  %295 = vmatpush1.bf16.msra.mxu0 0
  %296 = vmatprep.subr.bf16.mxu0 0
  %297 = vmatpush1.bf16.msra.mxu0 0
  %298 = vmatprep.subr.bf16.mxu0 0
  %299 = vmatpush1.bf16.msra.mxu0 0
  %300 = vmatprep.mubr.bf16.mxu0 %v266
  %301 = vmatmul.mubr.bf16.gmra.mrb[0].mxu0 %v81
  %v302 = vpop.f32.mrb[0].mxu0
  %v303 = vadd.f32 %v58, %v302
  %v304 = vpop.f32.mrb[0].mxu0
  %v305 = vadd.f32 %v62, %v304
  %v306 = vpop.f32.mrb[0].mxu0
  %v307 = vadd.f32 %v58, %v306
  %v308 = vpop.f32.mrb[0].mxu0
  %v309 = vadd.f32 %v62, %v308
  %310 = vdwg.mxu0
  %311 = vmatprep.subr.bf16.mxu0 %v195
  %312 = vmatpush1.bf16.msra.mxu0 %v194
  %313 = vmatprep.subr.bf16.mxu0 %v199
  %314 = vmatpush1.bf16.msra.mxu0 %v198
  %315 = vmatprep.subr.bf16.mxu0 %v203
  %316 = vmatpush1.bf16.msra.mxu0 %v202
  %317 = vmatprep.subr.bf16.mxu0 %v207
  %318 = vmatpush1.bf16.msra.mxu0 %v206
  %319 = vmatprep.subr.bf16.mxu0 %v211
  %320 = vmatpush1.bf16.msra.mxu0 %v210
  %321 = vmatprep.subr.bf16.mxu0 %v215
  %322 = vmatpush1.bf16.msra.mxu0 %v214
  %323 = vmatprep.subr.bf16.mxu0 %v219
  %324 = vmatpush1.bf16.msra.mxu0 %v218
  %325 = vmatprep.subr.bf16.mxu0 %v223
  %326 = vmatpush1.bf16.msra.mxu0 %v222
  %327 = vmatprep.subr.bf16.mxu0 %v227
  %328 = vmatpush1.bf16.msra.mxu0 %v226
  %329 = vmatprep.subr.bf16.mxu0 0
  %330 = vmatpush1.bf16.msra.mxu0 0
  %331 = vmatprep.subr.bf16.mxu0 0
  %332 = vmatpush1.bf16.msra.mxu0 0
  %333 = vmatprep.subr.bf16.mxu0 0
  %334 = vmatpush1.bf16.msra.mxu0 0
  %335 = vmatprep.subr.bf16.mxu0 0
  %336 = vmatpush1.bf16.msra.mxu0 0
  %337 = vmatprep.subr.bf16.mxu0 0
  %338 = vmatpush1.bf16.msra.mxu0 0
  %339 = vmatprep.subr.bf16.mxu0 0
  %340 = vmatpush1.bf16.msra.mxu0 0
  %341 = vmatprep.subr.bf16.mxu0 0
  %342 = vmatpush1.bf16.msra.mxu0 0
  %343 = vmatprep.mubr.bf16.mxu0 %v266
  %344 = vmatmul.mubr.bf16.gmra.mrb[0].mxu0 %v81
  %v345 = vpop.f32.mrb[0].mxu0
  %v346 = vadd.f32 %v66, %v345
  %v347 = vpop.f32.mrb[0].mxu0
  %v348 = vadd.f32 %v70, %v347
  %v349 = vpop.f32.mrb[0].mxu0
  %v350 = vadd.f32 %v66, %v349
  %v351 = vpop.f32.mrb[0].mxu0
  %v352 = vadd.f32 %v70, %v351
  %353 = vdwg.mxu0
  %354 = vst [vmem:[%s3] sm:$0xff] %v303
  %355 = vst [vmem:[%s3 + $0x8] sm:$0xff] %v305
  %356 = vst [vmem:[%s3 + $0x10] sm:$0xff] %v346
  %vm357 = vcmask 392192
  %358 = vst.msk [vmem:[%s3 + $0x18] sm:$0xff] %vm357, %v348
  %359 = vst [vmem:[%s3 + $0x20] sm:$0xff] %v307
  %360 = vst [vmem:[%s3 + $0x28] sm:$0xff] %v309
  %361 = vst [vmem:[%s3 + $0x30] sm:$0xff] %v350
  %362 = vst.msk [vmem:[%s3 + $0x38] sm:$0xff] %vm357, %v352
  // Predicated region
  $region14: #{net_helper_forward.9} parent=0 // pred_check
    _
  $region15: #{net_helper_forward.9} parent=0 // pred_check_branch
    %364 = sbr.rel (0) target = $region17
  $region16: #{net_helper_forward.9} parent=0 // pred_region
    _
  $region17: #{net_helper_forward.9} parent=0 // pred_fallthru
    _
  // Predicated region
  $region18: #{net_helper_forward.9} parent=0 // pred_check
    _
  $region19: #{net_helper_forward.9} parent=0 // pred_check_branch
    %366 = sbr.rel (0) target = $region21
  $region20: #{net_helper_forward.9} parent=0 // pred_region
    _
  $region21: #{net_helper_forward.9} parent=0 // pred_fallthru
    _

// kernel: net_helper_forward.11
$region0: #{net_helper_forward.11}
  #allocation0 [shape = 'u32[]', space=smem, size = 0x4, offset = 0x4, fixed_abs, tag = 'smem constant byte address 0x4 - core index']
  #allocation1 [shape = 'u32[144,128]{1,0:T(1,128)}', space=vmem, size = 0x12000, scoped, tag = 'internal scratch']
  %s0 = inlined_call_operand.vmem [shape: bf16[16,144], index: 0, kind: input, shape index: {}]
  %s1 = inlined_call_operand.vmem [shape: bf16[144,144], index: 1, kind: input, shape index: {}]
  %s2 = inlined_call_operand.vmem [shape: f32[1,144], index: 2, kind: input, shape index: {}]
  %s3 = inlined_call_operand.vmem [shape: bf16[144,640], index: 3, kind: input, shape index: {}]
  %s4 = inlined_call_operand.vmem [shape: f32[1,640], index: 4, kind: input, shape index: {}]
  %s5 = inlined_call_operand.vmem [shape: bf16[16,640], index: 5, kind: input, shape index: {}]
  %s6 = inlined_call_operand.vmem [shape: bf16[640,512], index: 6, kind: input, shape index: {}]
  %s7 = inlined_call_operand.vmem [shape: f32[16,512], index: 7, kind: output, shape index: {}]
  %s8 = sld [smem:[#allocation0]]
  $region38: #{net_helper_forward.11} parent=0
    _
  %s10 = ssub.s32 1, %s8
  %s11 = scalar_select 0, %s10, %s8
  // Predicated region
  $region2: #{net_helper_forward.11} parent=0 // pred_check
    _
  $region3: #{net_helper_forward.11} parent=0 // pred_check_branch
    %13 = sbr.rel (0) target = $region5
  $region4: #{net_helper_forward.11} parent=0 // pred_region
    _
  $region5: #{net_helper_forward.11} parent=0 // pred_fallthru
    _
  // Predicated region
  $region6: #{net_helper_forward.11} parent=0 // pred_check
    _
  $region7: #{net_helper_forward.11} parent=0 // pred_check_branch
    %15 = sbr.rel (0) target = $region9
  $region8: #{net_helper_forward.11} parent=0 // pred_region
    _
  $region9: #{net_helper_forward.11} parent=0 // pred_fallthru
    _
  // Predicated region
  $region10: #{net_helper_forward.11} parent=0 // pred_check
    _
  $region11: #{net_helper_forward.11} parent=0 // pred_check_branch
    %17 = sbr.rel (0) target = $region13
  $region12: #{net_helper_forward.11} parent=0 // pred_region
    _
  $region13: #{net_helper_forward.11} parent=0 // pred_fallthru
    _
  // Predicated region
  $region14: #{net_helper_forward.11} parent=0 // pred_check
    _
  $region15: #{net_helper_forward.11} parent=0 // pred_check_branch
    %19 = sbr.rel (0) target = $region17
  $region16: #{net_helper_forward.11} parent=0 // pred_region
    _
  $region17: #{net_helper_forward.11} parent=0 // pred_fallthru
    _
  // Predicated region
  $region18: #{net_helper_forward.11} parent=0 // pred_check
    _
  $region19: #{net_helper_forward.11} parent=0 // pred_check_branch
    %21 = sbr.rel (0) target = $region21
  $region20: #{net_helper_forward.11} parent=0 // pred_region
    _
  $region21: #{net_helper_forward.11} parent=0 // pred_fallthru
    _
  // Predicated region
  $region22: #{net_helper_forward.11} parent=0 // pred_check
    _
  $region23: #{net_helper_forward.11} parent=0 // pred_check_branch
    %23 = sbr.rel (0) target = $region25
  $region24: #{net_helper_forward.11} parent=0 // pred_region
    _
  $region25: #{net_helper_forward.11} parent=0 // pred_fallthru
    _
  // Predicated region
  $region26: #{net_helper_forward.11} parent=0 // pred_check
    _
  $region27: #{net_helper_forward.11} parent=0 // pred_check_branch
    %25 = sbr.rel (0) target = $region29
  $region28: #{net_helper_forward.11} parent=0 // pred_region
    _
  $region29: #{net_helper_forward.11} parent=0 // pred_fallthru
    _
  %v27 = vld [vmem:[%s0] sm:$0xff]
  %v28 = vld [vmem:[%s0 + $0x8] sm:$0xff]
  %v29 = vld [vmem:[%s1] sm:$0xff]
  %v30 = vld [vmem:[%s1 + $0x8] sm:$0xff]
  %v31 = vld [vmem:[%s1 + $0x10] sm:$0xff]
  %v32 = vld [vmem:[%s1 + $0x18] sm:$0xff]
  %v33 = vld [vmem:[%s1 + $0x20] sm:$0xff]
  %v34 = vld [vmem:[%s1 + $0x28] sm:$0xff]
  %v35 = vld [vmem:[%s1 + $0x30] sm:$0xff]
  %v36 = vld [vmem:[%s1 + $0x38] sm:$0xff]
  %v37 = vld [vmem:[%s1 + $0x40] sm:$0xff]
  %v38 = vld [vmem:[%s1 + $0x48] sm:$0xff]
  %v39 = vld [vmem:[%s1 + $0x50] sm:$0xff]
  %v40 = vld [vmem:[%s1 + $0x58] sm:$0xff]
  %v41 = vld [vmem:[%s1 + $0x60] sm:$0xff]
  %v42 = vld [vmem:[%s1 + $0x68] sm:$0xff]
  %v43 = vld [vmem:[%s1 + $0x70] sm:$0xff]
  %v44 = vld [vmem:[%s1 + $0x78] sm:$0xff]
  %v45 = vld [vmem:[%s1 + $0x80] sm:$0xff]
  %v46 = vld [vmem:[%s1 + $0x88] sm:$0xff]
  %v47 = vld [vmem:[%s2] sm:$0x3]
  %v49 = vlaneseq
  %v50 = vshrl.u32 %v49, 7
  %v51 = vsub.s32 0, %v50
  %v52 = vrot.slane %v47, %v51
  %v53 = vlaneseq
  %v54 = vshrl.u32 %v53, 7
  %v55 = vsub.s32 1, %v54
  %v56 = vrot.slane %v47, %v55
  %v61 = vunpack.c.l.b16 %v27
  %v62 = vunpack.c.h.b16 %v27
  %v63 = vunpack.c.l.b16 %v28
  %v64 = vunpack.c.h.b16 %v28
  %v65 = vpack.c.b16 %v63, %v61
  %v66 = vpack.c.b16 %v64, %v62
  %v86 = vunpack.c.l.b16 %v29
  %v87 = vunpack.c.h.b16 %v29
  %v88 = vunpack.c.l.b16 %v30
  %v89 = vunpack.c.h.b16 %v30
  %v90 = vunpack.c.l.b16 %v31
  %v91 = vunpack.c.h.b16 %v31
  %v92 = vunpack.c.l.b16 %v32
  %v93 = vunpack.c.h.b16 %v32
  %v94 = vunpack.c.l.b16 %v33
  %v95 = vunpack.c.h.b16 %v33
  %v96 = vunpack.c.l.b16 %v34
  %v97 = vunpack.c.h.b16 %v34
  %v98 = vunpack.c.l.b16 %v35
  %v99 = vunpack.c.h.b16 %v35
  %v100 = vunpack.c.l.b16 %v36
  %v101 = vunpack.c.h.b16 %v36
  %v102 = vunpack.c.l.b16 %v37
  %v103 = vunpack.c.h.b16 %v37
  %v104 = vunpack.c.l.b16 %v38
  %v105 = vunpack.c.h.b16 %v38
  %v106 = vunpack.c.l.b16 %v39
  %v107 = vunpack.c.h.b16 %v39
  %v108 = vunpack.c.l.b16 %v40
  %v109 = vunpack.c.h.b16 %v40
  %v110 = vunpack.c.l.b16 %v41
  %v111 = vunpack.c.h.b16 %v41
  %v112 = vunpack.c.l.b16 %v42
  %v113 = vunpack.c.h.b16 %v42
  %v114 = vunpack.c.l.b16 %v43
  %v115 = vunpack.c.h.b16 %v43
  %v116 = vunpack.c.l.b16 %v44
  %v117 = vunpack.c.h.b16 %v44
  %v118 = vunpack.c.l.b16 %v45
  %v119 = vunpack.c.h.b16 %v45
  %v120 = vunpack.c.l.b16 %v46
  %v121 = vunpack.c.h.b16 %v46
  %v122 = vpack.c.b16 %v88, %v86
  %v123 = vpack.c.b16 %v89, %v87
  %v124 = vpack.c.b16 %v92, %v90
  %v125 = vpack.c.b16 %v93, %v91
  %v126 = vpack.c.b16 %v96, %v94
  %v127 = vpack.c.b16 %v97, %v95
  %v128 = vpack.c.b16 %v100, %v98
  %v129 = vpack.c.b16 %v101, %v99
  %v130 = vpack.c.b16 %v104, %v102
  %v131 = vpack.c.b16 %v105, %v103
  %v132 = vpack.c.b16 %v108, %v106
  %v133 = vpack.c.b16 %v109, %v107
  %v134 = vpack.c.b16 %v112, %v110
  %v135 = vpack.c.b16 %v113, %v111
  %v136 = vpack.c.b16 %v116, %v114
  %v137 = vpack.c.b16 %v117, %v115
  %v138 = vpack.c.b16 %v120, %v118
  %v139 = vpack.c.b16 %v121, %v119
  %vm158 = vcmask 130048
  %v160 = vsel %vm158, %v66, 0
  %162 = vmatprep.subr.bf16.mxu0 %v123
  %163 = vmatpush1.bf16.msra.mxu0 %v122
  %164 = vmatprep.subr.bf16.mxu0 %v125
  %165 = vmatpush1.bf16.msra.mxu0 %v124
  %166 = vmatprep.subr.bf16.mxu0 %v127
  %167 = vmatpush1.bf16.msra.mxu0 %v126
  %168 = vmatprep.subr.bf16.mxu0 %v129
  %169 = vmatpush1.bf16.msra.mxu0 %v128
  %170 = vmatprep.subr.bf16.mxu0 %v131
  %171 = vmatpush1.bf16.msra.mxu0 %v130
  %172 = vmatprep.subr.bf16.mxu0 %v133
  %173 = vmatpush1.bf16.msra.mxu0 %v132
  %174 = vmatprep.subr.bf16.mxu0 %v135
  %175 = vmatpush1.bf16.msra.mxu0 %v134
  %176 = vmatprep.subr.bf16.mxu0 %v137
  %177 = vmatpush1.bf16.msra.mxu0 %v136
  %178 = vmatprep.subr.bf16.mxu0 %v139
  %179 = vmatpush1.bf16.msra.mxu0 %v138
  %180 = vmatprep.subr.bf16.mxu0 0
  %181 = vmatpush1.bf16.msra.mxu0 0
  %182 = vmatprep.subr.bf16.mxu0 0
  %183 = vmatpush1.bf16.msra.mxu0 0
  %184 = vmatprep.subr.bf16.mxu0 0
  %185 = vmatpush1.bf16.msra.mxu0 0
  %186 = vmatprep.subr.bf16.mxu0 0
  %187 = vmatpush1.bf16.msra.mxu0 0
  %188 = vmatprep.subr.bf16.mxu0 0
  %189 = vmatpush1.bf16.msra.mxu0 0
  %190 = vmatprep.subr.bf16.mxu0 0
  %191 = vmatpush1.bf16.msra.mxu0 0
  %192 = vmatprep.subr.bf16.mxu0 0
  %193 = vmatpush1.bf16.msra.mxu0 0
  %194 = vmatprep.mubr.bf16.mxu0 %v160
  %195 = vmatmul.mubr.bf16.gmra.mrb[0].mxu0 %v65
  %v196 = vpop.f32.mrb[0].mxu0
  %v197 = vadd.f32 %v52, %v196
  %v198 = vpop.f32.mrb[0].mxu0
  %v199 = vadd.f32 %v56, %v198
  %v200 = vpop.f32.mrb[0].mxu0
  %v201 = vadd.f32 %v52, %v200
  %v202 = vpop.f32.mrb[0].mxu0
  %v203 = vadd.f32 %v56, %v202
  %204 = vdwg.mxu0
  %v205 = vpack.c.bf16 %v201, %v197
  %v206 = vpack.c.bf16 %v203, %v199
  %v207 = vld [vmem:[%s3] sm:$0xff]
  %v208 = vld [vmem:[%s3 + $0x8] sm:$0xff]
  %v209 = vld [vmem:[%s3 + $0x10] sm:$0xf]
  %v210 = vld [vmem:[%s3 + $0x14] sm:$0xff]
  %v211 = vld [vmem:[%s3 + $0x1c] sm:$0xff]
  %v212 = vld [vmem:[%s3 + $0x24] sm:$0xf]
  %v213 = vld [vmem:[%s3 + $0x28] sm:$0xff]
  %v214 = vld [vmem:[%s3 + $0x30] sm:$0xff]
  %v215 = vld [vmem:[%s3 + $0x38] sm:$0xf]
  %v216 = vld [vmem:[%s3 + $0x3c] sm:$0xff]
  %v217 = vld [vmem:[%s3 + $0x44] sm:$0xff]
  %v218 = vld [vmem:[%s3 + $0x4c] sm:$0xf]
  %v219 = vld [vmem:[%s3 + $0x50] sm:$0xff]
  %v220 = vld [vmem:[%s3 + $0x58] sm:$0xff]
  %v221 = vld [vmem:[%s3 + $0x60] sm:$0xf]
  %v222 = vld [vmem:[%s3 + $0x64] sm:$0xff]
  %v223 = vld [vmem:[%s3 + $0x6c] sm:$0xff]
  %v224 = vld [vmem:[%s3 + $0x74] sm:$0xf]
  %v225 = vld [vmem:[%s3 + $0x78] sm:$0xff]
  %v226 = vld [vmem:[%s3 + $0x80] sm:$0xff]
  %v227 = vld [vmem:[%s3 + $0x88] sm:$0xf]
  %v228 = vld [vmem:[%s3 + $0x8c] sm:$0xff]
  %v229 = vld [vmem:[%s3 + $0x94] sm:$0xff]
  %v230 = vld [vmem:[%s3 + $0x9c] sm:$0xf]
  %v231 = vld [vmem:[%s3 + $0xa0] sm:$0xff]
  %v232 = vld [vmem:[%s3 + $0xa8] sm:$0xff]
  %v233 = vld [vmem:[%s3 + $0xb0] sm:$0xf]
  %v234 = vld [vmem:[%s3 + $0xb4] sm:$0xff]
  %v235 = vld [vmem:[%s3 + $0xbc] sm:$0xff]
  %v236 = vld [vmem:[%s3 + $0xc4] sm:$0xf]
  %v237 = vld [vmem:[%s3 + $0xc8] sm:$0xff]
  %v238 = vld [vmem:[%s3 + $0xd0] sm:$0xff]
  %v239 = vld [vmem:[%s3 + $0xd8] sm:$0xf]
  %v240 = vld [vmem:[%s3 + $0xdc] sm:$0xff]
  %v241 = vld [vmem:[%s3 + $0xe4] sm:$0xff]
  %v242 = vld [vmem:[%s3 + $0xec] sm:$0xf]
  %v243 = vld [vmem:[%s3 + $0xf0] sm:$0xff]
  %v244 = vld [vmem:[%s3 + $0xf8] sm:$0xff]
  %v245 = vld [vmem:[%s3 + $0x100] sm:$0xf]
  %v246 = vld [vmem:[%s3 + $0x104] sm:$0xff]
  %v247 = vld [vmem:[%s3 + $0x10c] sm:$0xff]
  %v248 = vld [vmem:[%s3 + $0x114] sm:$0xf]
  %v249 = vld [vmem:[%s3 + $0x118] sm:$0xff]
  %v250 = vld [vmem:[%s3 + $0x120] sm:$0xff]
  %v251 = vld [vmem:[%s3 + $0x128] sm:$0xf]
  %v252 = vld [vmem:[%s3 + $0x12c] sm:$0xff]
  %v253 = vld [vmem:[%s3 + $0x134] sm:$0xff]
  %v254 = vld [vmem:[%s3 + $0x13c] sm:$0xf]
  %v255 = vld [vmem:[%s3 + $0x140] sm:$0xff]
  %v256 = vld [vmem:[%s3 + $0x148] sm:$0xff]
  %v257 = vld [vmem:[%s3 + $0x150] sm:$0xf]
  %v258 = vld [vmem:[%s3 + $0x154] sm:$0xff]
  %v259 = vld [vmem:[%s3 + $0x15c] sm:$0xff]
  %v260 = vld [vmem:[%s3 + $0x164] sm:$0xf]
  %v261 = vld [vmem:[%s4] sm:$0x1f]
  %v263 = vlaneseq
  %v264 = vshrl.u32 %v263, 7
  %v265 = vsub.s32 0, %v264
  %v266 = vrot.slane %v261, %v265
  %v267 = vlaneseq
  %v268 = vshrl.u32 %v267, 7
  %v269 = vsub.s32 1, %v268
  %v270 = vrot.slane %v261, %v269
  %v271 = vlaneseq
  %v272 = vshrl.u32 %v271, 7
  %v273 = vsub.s32 2, %v272
  %v274 = vrot.slane %v261, %v273
  %v275 = vlaneseq
  %v276 = vshrl.u32 %v275, 7
  %v277 = vsub.s32 3, %v276
  %v278 = vrot.slane %v261, %v277
  %v279 = vlaneseq
  %v280 = vshrl.u32 %v279, 7
  %v281 = vsub.s32 4, %v280
  %v282 = vrot.slane %v261, %v281
  %v342 = vunpack.c.l.b16 %v207
  %v343 = vunpack.c.h.b16 %v207
  %v344 = vunpack.c.l.b16 %v208
  %v345 = vunpack.c.h.b16 %v208
  %v346 = vunpack.c.l.b16 %v209
  %v347 = vunpack.c.l.b16 %v210
  %v348 = vunpack.c.h.b16 %v210
  %v349 = vunpack.c.l.b16 %v211
  %v350 = vunpack.c.h.b16 %v211
  %v351 = vunpack.c.l.b16 %v212
  %v352 = vunpack.c.l.b16 %v213
  %v353 = vunpack.c.h.b16 %v213
  %v354 = vunpack.c.l.b16 %v214
  %v355 = vunpack.c.h.b16 %v214
  %v356 = vunpack.c.l.b16 %v215
  %v357 = vunpack.c.l.b16 %v216
  %v358 = vunpack.c.h.b16 %v216
  %v359 = vunpack.c.l.b16 %v217
  %v360 = vunpack.c.h.b16 %v217
  %v361 = vunpack.c.l.b16 %v218
  %v362 = vunpack.c.l.b16 %v219
  %v363 = vunpack.c.h.b16 %v219
  %v364 = vunpack.c.l.b16 %v220
  %v365 = vunpack.c.h.b16 %v220
  %v366 = vunpack.c.l.b16 %v221
  %v367 = vunpack.c.l.b16 %v222
  %v368 = vunpack.c.h.b16 %v222
  %v369 = vunpack.c.l.b16 %v223
  %v370 = vunpack.c.h.b16 %v223
  %v371 = vunpack.c.l.b16 %v224
  %v372 = vunpack.c.l.b16 %v225
  %v373 = vunpack.c.h.b16 %v225
  %v374 = vunpack.c.l.b16 %v226
  %v375 = vunpack.c.h.b16 %v226
  %v376 = vunpack.c.l.b16 %v227
  %v377 = vunpack.c.l.b16 %v228
  %v378 = vunpack.c.h.b16 %v228
  %v379 = vunpack.c.l.b16 %v229
  %v380 = vunpack.c.h.b16 %v229
  %v381 = vunpack.c.l.b16 %v230
  %v382 = vunpack.c.l.b16 %v231
  %v383 = vunpack.c.h.b16 %v231
  %v384 = vunpack.c.l.b16 %v232
  %v385 = vunpack.c.h.b16 %v232
  %v386 = vunpack.c.l.b16 %v233
  %v387 = vunpack.c.l.b16 %v234
  %v388 = vunpack.c.h.b16 %v234
  %v389 = vunpack.c.l.b16 %v235
  %v390 = vunpack.c.h.b16 %v235
  %v391 = vunpack.c.l.b16 %v236
  %v392 = vunpack.c.l.b16 %v237
  %v393 = vunpack.c.h.b16 %v237
  %v394 = vunpack.c.l.b16 %v238
  %v395 = vunpack.c.h.b16 %v238
  %v396 = vunpack.c.l.b16 %v239
  %v397 = vunpack.c.l.b16 %v240
  %v398 = vunpack.c.h.b16 %v240
  %v399 = vunpack.c.l.b16 %v241
  %v400 = vunpack.c.h.b16 %v241
  %v401 = vunpack.c.l.b16 %v242
  %v402 = vunpack.c.l.b16 %v243
  %v403 = vunpack.c.h.b16 %v243
  %v404 = vunpack.c.l.b16 %v244
  %v405 = vunpack.c.h.b16 %v244
  %v406 = vunpack.c.l.b16 %v245
  %v407 = vunpack.c.l.b16 %v246
  %v408 = vunpack.c.h.b16 %v246
  %v409 = vunpack.c.l.b16 %v247
  %v410 = vunpack.c.h.b16 %v247
  %v411 = vunpack.c.l.b16 %v248
  %v412 = vunpack.c.l.b16 %v249
  %v413 = vunpack.c.h.b16 %v249
  %v414 = vunpack.c.l.b16 %v250
  %v415 = vunpack.c.h.b16 %v250
  %v416 = vunpack.c.l.b16 %v251
  %v417 = vunpack.c.l.b16 %v252
  %v418 = vunpack.c.h.b16 %v252
  %v419 = vunpack.c.l.b16 %v253
  %v420 = vunpack.c.h.b16 %v253
  %v421 = vunpack.c.l.b16 %v254
  %v422 = vunpack.c.l.b16 %v255
  %v423 = vunpack.c.h.b16 %v255
  %v424 = vunpack.c.l.b16 %v256
  %v425 = vunpack.c.h.b16 %v256
  %v426 = vunpack.c.l.b16 %v257
  %v427 = vunpack.c.l.b16 %v258
  %v428 = vunpack.c.h.b16 %v258
  %v429 = vunpack.c.l.b16 %v259
  %v430 = vunpack.c.h.b16 %v259
  %v431 = vunpack.c.l.b16 %v260
  %v432 = vpack.c.b16 %v347, %v342
  %v433 = vpack.c.b16 %v348, %v343
  %v434 = vpack.c.b16 %v349, %v344
  %v435 = vpack.c.b16 %v350, %v345
  %v436 = vpack.c.b16 %v351, %v346
  %v437 = vpack.c.b16 %v357, %v352
  %v438 = vpack.c.b16 %v358, %v353
  %v439 = vpack.c.b16 %v359, %v354
  %v440 = vpack.c.b16 %v360, %v355
  %v441 = vpack.c.b16 %v361, %v356
  %v442 = vpack.c.b16 %v367, %v362
  %v443 = vpack.c.b16 %v368, %v363
  %v444 = vpack.c.b16 %v369, %v364
  %v445 = vpack.c.b16 %v370, %v365
  %v446 = vpack.c.b16 %v371, %v366
  %v447 = vpack.c.b16 %v377, %v372
  %v448 = vpack.c.b16 %v378, %v373
  %v449 = vpack.c.b16 %v379, %v374
  %v450 = vpack.c.b16 %v380, %v375
  %v451 = vpack.c.b16 %v381, %v376
  %v452 = vpack.c.b16 %v387, %v382
  %v453 = vpack.c.b16 %v388, %v383
  %v454 = vpack.c.b16 %v389, %v384
  %v455 = vpack.c.b16 %v390, %v385
  %v456 = vpack.c.b16 %v391, %v386
  %v457 = vpack.c.b16 %v397, %v392
  %v458 = vpack.c.b16 %v398, %v393
  %v459 = vpack.c.b16 %v399, %v394
  %v460 = vpack.c.b16 %v400, %v395
  %v461 = vpack.c.b16 %v401, %v396
  %v462 = vpack.c.b16 %v407, %v402
  %v463 = vpack.c.b16 %v408, %v403
  %v464 = vpack.c.b16 %v409, %v404
  %v465 = vpack.c.b16 %v410, %v405
  %v466 = vpack.c.b16 %v411, %v406
  %v467 = vpack.c.b16 %v417, %v412
  %v468 = vpack.c.b16 %v418, %v413
  %v469 = vpack.c.b16 %v419, %v414
  %v470 = vpack.c.b16 %v420, %v415
  %v471 = vpack.c.b16 %v421, %v416
  %v472 = vpack.c.b16 %v427, %v422
  %v473 = vpack.c.b16 %v428, %v423
  %v474 = vpack.c.b16 %v429, %v424
  %v475 = vpack.c.b16 %v430, %v425
  %v476 = vpack.c.b16 %v431, %v426
  %v523 = vsel %vm158, %v206, 0
  %525 = vmatprep.subr.bf16.mxu0 %v433
  %526 = vmatpush1.bf16.msra.mxu0 %v432
  %527 = vmatprep.subr.bf16.mxu0 %v438
  %528 = vmatpush1.bf16.msra.mxu0 %v437
  %529 = vmatprep.subr.bf16.mxu0 %v443
  %530 = vmatpush1.bf16.msra.mxu0 %v442
  %531 = vmatprep.subr.bf16.mxu0 %v448
  %532 = vmatpush1.bf16.msra.mxu0 %v447
  %533 = vmatprep.subr.bf16.mxu0 %v453
  %534 = vmatpush1.bf16.msra.mxu0 %v452
  %535 = vmatprep.subr.bf16.mxu0 %v458
  %536 = vmatpush1.bf16.msra.mxu0 %v457
  %537 = vmatprep.subr.bf16.mxu0 %v463
  %538 = vmatpush1.bf16.msra.mxu0 %v462
  %539 = vmatprep.subr.bf16.mxu0 %v468
  %540 = vmatpush1.bf16.msra.mxu0 %v467
  %541 = vmatprep.subr.bf16.mxu0 %v473
  %542 = vmatpush1.bf16.msra.mxu0 %v472
  %543 = vmatprep.subr.bf16.mxu0 0
  %544 = vmatpush1.bf16.msra.mxu0 0
  %545 = vmatprep.subr.bf16.mxu0 0
  %546 = vmatpush1.bf16.msra.mxu0 0
  %547 = vmatprep.subr.bf16.mxu0 0
  %548 = vmatpush1.bf16.msra.mxu0 0
  %549 = vmatprep.subr.bf16.mxu0 0
  %550 = vmatpush1.bf16.msra.mxu0 0
  %551 = vmatprep.subr.bf16.mxu0 0
  %552 = vmatpush1.bf16.msra.mxu0 0
  %553 = vmatprep.subr.bf16.mxu0 0
  %554 = vmatpush1.bf16.msra.mxu0 0
  %555 = vmatprep.subr.bf16.mxu0 0
  %556 = vmatpush1.bf16.msra.mxu0 0
  %557 = vmatprep.mubr.bf16.mxu0 %v523
  %558 = vmatmul.mubr.bf16.gmra.mrb[0].mxu0 %v205
  %v559 = vpop.f32.mrb[0].mxu0
  %v560 = vadd.f32 %v266, %v559
  %v561 = vpop.f32.mrb[0].mxu0
  %v562 = vadd.f32 %v270, %v561
  %v563 = vpop.f32.mrb[0].mxu0
  %v564 = vadd.f32 %v266, %v563
  %v565 = vpop.f32.mrb[0].mxu0
  %v566 = vadd.f32 %v270, %v565
  %567 = vdwg.mxu0
  %568 = vmatprep.subr.bf16.mxu0 %v435
  %569 = vmatpush1.bf16.msra.mxu0 %v434
  %570 = vmatprep.subr.bf16.mxu0 %v440
  %571 = vmatpush1.bf16.msra.mxu0 %v439
  %572 = vmatprep.subr.bf16.mxu0 %v445
  %573 = vmatpush1.bf16.msra.mxu0 %v444
  %574 = vmatprep.subr.bf16.mxu0 %v450
  %575 = vmatpush1.bf16.msra.mxu0 %v449
  %576 = vmatprep.subr.bf16.mxu0 %v455
  %577 = vmatpush1.bf16.msra.mxu0 %v454
  %578 = vmatprep.subr.bf16.mxu0 %v460
  %579 = vmatpush1.bf16.msra.mxu0 %v459
  %580 = vmatprep.subr.bf16.mxu0 %v465
  %581 = vmatpush1.bf16.msra.mxu0 %v464
  %582 = vmatprep.subr.bf16.mxu0 %v470
  %583 = vmatpush1.bf16.msra.mxu0 %v469
  %584 = vmatprep.subr.bf16.mxu0 %v475
  %585 = vmatpush1.bf16.msra.mxu0 %v474
  %586 = vmatprep.subr.bf16.mxu0 0
  %587 = vmatpush1.bf16.msra.mxu0 0
  %588 = vmatprep.subr.bf16.mxu0 0
  %589 = vmatpush1.bf16.msra.mxu0 0
  %590 = vmatprep.subr.bf16.mxu0 0
  %591 = vmatpush1.bf16.msra.mxu0 0
  %592 = vmatprep.subr.bf16.mxu0 0
  %593 = vmatpush1.bf16.msra.mxu0 0
  %594 = vmatprep.subr.bf16.mxu0 0
  %595 = vmatpush1.bf16.msra.mxu0 0
  %596 = vmatprep.subr.bf16.mxu0 0
  %597 = vmatpush1.bf16.msra.mxu0 0
  %598 = vmatprep.subr.bf16.mxu0 0
  %599 = vmatpush1.bf16.msra.mxu0 0
  %600 = vmatprep.mubr.bf16.mxu0 %v523
  %601 = vmatmul.mubr.bf16.gmra.mrb[0].mxu0 %v205
  %v602 = vpop.f32.mrb[0].mxu0
  %v603 = vadd.f32 %v274, %v602
  %v604 = vpop.f32.mrb[0].mxu0
  %v605 = vadd.f32 %v278, %v604
  %v606 = vpop.f32.mrb[0].mxu0
  %v607 = vadd.f32 %v274, %v606
  %v608 = vpop.f32.mrb[0].mxu0
  %v609 = vadd.f32 %v278, %v608
  %610 = vdwg.mxu0
  %611 = vmatprep.subr.bf16.mxu0 0
  %612 = vmatpush1.bf16.msra.mxu0 %v436
  %613 = vmatprep.subr.bf16.mxu0 0
  %614 = vmatpush1.bf16.msra.mxu0 %v441
  %615 = vmatprep.subr.bf16.mxu0 0
  %616 = vmatpush1.bf16.msra.mxu0 %v446
  %617 = vmatprep.subr.bf16.mxu0 0
  %618 = vmatpush1.bf16.msra.mxu0 %v451
  %619 = vmatprep.subr.bf16.mxu0 0
  %620 = vmatpush1.bf16.msra.mxu0 %v456
  %621 = vmatprep.subr.bf16.mxu0 0
  %622 = vmatpush1.bf16.msra.mxu0 %v461
  %623 = vmatprep.subr.bf16.mxu0 0
  %624 = vmatpush1.bf16.msra.mxu0 %v466
  %625 = vmatprep.subr.bf16.mxu0 0
  %626 = vmatpush1.bf16.msra.mxu0 %v471
  %627 = vmatprep.subr.bf16.mxu0 0
  %628 = vmatpush1.bf16.msra.mxu0 %v476
  %629 = vmatprep.subr.bf16.mxu0 0
  %630 = vmatpush1.bf16.msra.mxu0 0
  %631 = vmatprep.subr.bf16.mxu0 0
  %632 = vmatpush1.bf16.msra.mxu0 0
  %633 = vmatprep.subr.bf16.mxu0 0
  %634 = vmatpush1.bf16.msra.mxu0 0
  %635 = vmatprep.subr.bf16.mxu0 0
  %636 = vmatpush1.bf16.msra.mxu0 0
  %637 = vmatprep.subr.bf16.mxu0 0
  %638 = vmatpush1.bf16.msra.mxu0 0
  %639 = vmatprep.subr.bf16.mxu0 0
  %640 = vmatpush1.bf16.msra.mxu0 0
  %641 = vmatprep.subr.bf16.mxu0 0
  %642 = vmatpush1.bf16.msra.mxu0 0
  %643 = vmatprep.mubr.bf16.mxu0 %v523
  %644 = vmatmul.mubr.bf16.gmra.mrb[0].mxu0 %v205
  %v645 = vpop.f32.mrb[0].mxu0
  %v646 = vadd.f32 %v282, %v645
  %v647 = vpop.f32.mrb[0].mxu0
  %v648 = vpop.f32.mrb[0].mxu0
  %v649 = vadd.f32 %v282, %v648
  %v650 = vpop.f32.mrb[0].mxu0
  %651 = vdwg.mxu0
  %v652 = vtanh.pop %v560
  %v653 = vtanh.pop %v562
  %v654 = vtanh.pop %v603
  %v655 = vtanh.pop %v605
  %v656 = vtanh.pop %v646
  %v657 = vtanh.pop %v564
  %v658 = vtanh.pop %v566
  %v659 = vtanh.pop %v607
  %v660 = vtanh.pop %v609
  %v661 = vtanh.pop %v649
  %v662 = vld [vmem:[%s5] sm:$0xff]
  %v663 = vld [vmem:[%s5 + $0x8] sm:$0xff]
  %v664 = vld [vmem:[%s5 + $0x10] sm:$0xf]
  %v665 = vld [vmem:[%s5 + $0x14] sm:$0xff]
  %v666 = vld [vmem:[%s5 + $0x1c] sm:$0xff]
  %v667 = vld [vmem:[%s5 + $0x24] sm:$0xf]
  %v668 = vunpack.c.l.bf16 %v662
  %v669 = vunpack.c.h.bf16 %v662
  %v670 = vunpack.c.l.bf16 %v663
  %v671 = vunpack.c.h.bf16 %v663
  %v672 = vunpack.c.l.bf16 %v664
  %v673 = vunpack.c.l.bf16 %v665
  %v674 = vunpack.c.h.bf16 %v665
  %v675 = vunpack.c.l.bf16 %v666
  %v676 = vunpack.c.h.bf16 %v666
  %v677 = vunpack.c.l.bf16 %v667
  %v678 = vmul.f32 %v652, %v668
  %v679 = vmul.f32 %v653, %v669
  %v680 = vmul.f32 %v654, %v670
  %v681 = vmul.f32 %v655, %v671
  %v682 = vmul.f32 %v656, %v672
  %v683 = vmul.f32 %v657, %v673
  %v684 = vmul.f32 %v658, %v674
  %v685 = vmul.f32 %v659, %v675
  %v686 = vmul.f32 %v660, %v676
  %v687 = vmul.f32 %v661, %v677
  %v688 = vpack.c.bf16 %v683, %v678
  %v689 = vpack.c.bf16 %v684, %v679
  %v690 = vpack.c.bf16 %v685, %v680
  %v691 = vpack.c.bf16 %v686, %v681
  %v692 = vpack.c.bf16 %v687, %v682
  %v693 = vld [vmem:[%s6] sm:$0xff]
  %v694 = vld [vmem:[%s6 + $0x8] sm:$0xff]
  %v695 = vld [vmem:[%s6 + $0x10] sm:$0xff]
  %v696 = vld [vmem:[%s6 + $0x18] sm:$0xff]
  %v697 = vld [vmem:[%s6 + $0x20] sm:$0xff]
  %v698 = vld [vmem:[%s6 + $0x28] sm:$0xff]
  %v699 = vld [vmem:[%s6 + $0x30] sm:$0xff]
  %v700 = vld [vmem:[%s6 + $0x38] sm:$0xff]
  %v701 = vld [vmem:[%s6 + $0x40] sm:$0xff]
  %v702 = vld [vmem:[%s6 + $0x48] sm:$0xff]
  %v703 = vld [vmem:[%s6 + $0x50] sm:$0xff]
  %v704 = vld [vmem:[%s6 + $0x58] sm:$0xff]
  %v705 = vld [vmem:[%s6 + $0x60] sm:$0xff]
  %v706 = vld [vmem:[%s6 + $0x68] sm:$0xff]
  %v707 = vld [vmem:[%s6 + $0x70] sm:$0xff]
  %v708 = vld [vmem:[%s6 + $0x78] sm:$0xff]
  %v709 = vld [vmem:[%s6 + $0x80] sm:$0xff]
  %v710 = vld [vmem:[%s6 + $0x88] sm:$0xff]
  %v711 = vld [vmem:[%s6 + $0x90] sm:$0xff]
  %v712 = vld [vmem:[%s6 + $0x98] sm:$0xff]
  %v713 = vld [vmem:[%s6 + $0xa0] sm:$0xff]
  %v714 = vld [vmem:[%s6 + $0xa8] sm:$0xff]
  %v715 = vld [vmem:[%s6 + $0xb0] sm:$0xff]
  %v716 = vld [vmem:[%s6 + $0xb8] sm:$0xff]
  %v717 = vld [vmem:[%s6 + $0xc0] sm:$0xff]
  %v718 = vld [vmem:[%s6 + $0xc8] sm:$0xff]
  %v719 = vld [vmem:[%s6 + $0xd0] sm:$0xff]
  %v720 = vld [vmem:[%s6 + $0xd8] sm:$0xff]
  %v721 = vld [vmem:[%s6 + $0xe0] sm:$0xff]
  %v722 = vld [vmem:[%s6 + $0xe8] sm:$0xff]
  %v723 = vld [vmem:[%s6 + $0xf0] sm:$0xff]
  %v724 = vld [vmem:[%s6 + $0xf8] sm:$0xff]
  %v725 = vld [vmem:[%s6 + $0x100] sm:$0xff]
  %v726 = vld [vmem:[%s6 + $0x108] sm:$0xff]
  %v727 = vld [vmem:[%s6 + $0x110] sm:$0xff]
  %v728 = vld [vmem:[%s6 + $0x118] sm:$0xff]
  %v729 = vld [vmem:[%s6 + $0x120] sm:$0xff]
  %v730 = vld [vmem:[%s6 + $0x128] sm:$0xff]
  %v731 = vld [vmem:[%s6 + $0x130] sm:$0xff]
  %v732 = vld [vmem:[%s6 + $0x138] sm:$0xff]
  %v733 = vld [vmem:[%s6 + $0x140] sm:$0xff]
  %v734 = vld [vmem:[%s6 + $0x148] sm:$0xff]
  %v735 = vld [vmem:[%s6 + $0x150] sm:$0xff]
  %v736 = vld [vmem:[%s6 + $0x158] sm:$0xff]
  %v737 = vld [vmem:[%s6 + $0x160] sm:$0xff]
  %v738 = vld [vmem:[%s6 + $0x168] sm:$0xff]
  %v739 = vld [vmem:[%s6 + $0x170] sm:$0xff]
  %v740 = vld [vmem:[%s6 + $0x178] sm:$0xff]
  %v741 = vld [vmem:[%s6 + $0x180] sm:$0xff]
  %v742 = vld [vmem:[%s6 + $0x188] sm:$0xff]
  %v743 = vld [vmem:[%s6 + $0x190] sm:$0xff]
  %v744 = vld [vmem:[%s6 + $0x198] sm:$0xff]
  %v745 = vld [vmem:[%s6 + $0x1a0] sm:$0xff]
  %v746 = vld [vmem:[%s6 + $0x1a8] sm:$0xff]
  %v747 = vld [vmem:[%s6 + $0x1b0] sm:$0xff]
  %v748 = vld [vmem:[%s6 + $0x1b8] sm:$0xff]
  %v749 = vld [vmem:[%s6 + $0x1c0] sm:$0xff]
  %v750 = vld [vmem:[%s6 + $0x1c8] sm:$0xff]
  %v751 = vld [vmem:[%s6 + $0x1d0] sm:$0xff]
  %v752 = vld [vmem:[%s6 + $0x1d8] sm:$0xff]
  %v753 = vld [vmem:[%s6 + $0x1e0] sm:$0xff]
  %v754 = vld [vmem:[%s6 + $0x1e8] sm:$0xff]
  %v755 = vld [vmem:[%s6 + $0x1f0] sm:$0xff]
  %v756 = vld [vmem:[%s6 + $0x1f8] sm:$0xff]
  %v757 = vld [vmem:[%s6 + $0x200] sm:$0xff]
  %v758 = vld [vmem:[%s6 + $0x208] sm:$0xff]
  %v759 = vld [vmem:[%s6 + $0x210] sm:$0xff]
  %v760 = vld [vmem:[%s6 + $0x218] sm:$0xff]
  %v761 = vld [vmem:[%s6 + $0x220] sm:$0xff]
  %v762 = vld [vmem:[%s6 + $0x228] sm:$0xff]
  %v763 = vld [vmem:[%s6 + $0x230] sm:$0xff]
  %v764 = vld [vmem:[%s6 + $0x238] sm:$0xff]
  %v765 = vld [vmem:[%s6 + $0x240] sm:$0xff]
  %v766 = vld [vmem:[%s6 + $0x248] sm:$0xff]
  %v767 = vld [vmem:[%s6 + $0x250] sm:$0xff]
  %v768 = vld [vmem:[%s6 + $0x258] sm:$0xff]
  %v769 = vld [vmem:[%s6 + $0x260] sm:$0xff]
  %v770 = vld [vmem:[%s6 + $0x268] sm:$0xff]
  %v771 = vld [vmem:[%s6 + $0x270] sm:$0xff]
  %v772 = vld [vmem:[%s6 + $0x278] sm:$0xff]
  %v773 = vld [vmem:[%s6 + $0x280] sm:$0xff]
  %v774 = vld [vmem:[%s6 + $0x288] sm:$0xff]
  %v775 = vld [vmem:[%s6 + $0x290] sm:$0xff]
  %v776 = vld [vmem:[%s6 + $0x298] sm:$0xff]
  %v777 = vld [vmem:[%s6 + $0x2a0] sm:$0xff]
  %v778 = vld [vmem:[%s6 + $0x2a8] sm:$0xff]
  %v779 = vld [vmem:[%s6 + $0x2b0] sm:$0xff]
  %v780 = vld [vmem:[%s6 + $0x2b8] sm:$0xff]
  %v781 = vld [vmem:[%s6 + $0x2c0] sm:$0xff]
  %v782 = vld [vmem:[%s6 + $0x2c8] sm:$0xff]
  %v783 = vld [vmem:[%s6 + $0x2d0] sm:$0xff]
  %v784 = vld [vmem:[%s6 + $0x2d8] sm:$0xff]
  %v785 = vld [vmem:[%s6 + $0x2e0] sm:$0xff]
  %v786 = vld [vmem:[%s6 + $0x2e8] sm:$0xff]
  %v787 = vld [vmem:[%s6 + $0x2f0] sm:$0xff]
  %v788 = vld [vmem:[%s6 + $0x2f8] sm:$0xff]
  %v789 = vld [vmem:[%s6 + $0x300] sm:$0xff]
  %v790 = vld [vmem:[%s6 + $0x308] sm:$0xff]
  %v791 = vld [vmem:[%s6 + $0x310] sm:$0xff]
  %v792 = vld [vmem:[%s6 + $0x318] sm:$0xff]
  %v793 = vld [vmem:[%s6 + $0x320] sm:$0xff]
  %v794 = vld [vmem:[%s6 + $0x328] sm:$0xff]
  %v795 = vld [vmem:[%s6 + $0x330] sm:$0xff]
  %v796 = vld [vmem:[%s6 + $0x338] sm:$0xff]
  %v797 = vld [vmem:[%s6 + $0x340] sm:$0xff]
  %v798 = vld [vmem:[%s6 + $0x348] sm:$0xff]
  %v799 = vld [vmem:[%s6 + $0x350] sm:$0xff]
  %v800 = vld [vmem:[%s6 + $0x358] sm:$0xff]
  %v801 = vld [vmem:[%s6 + $0x360] sm:$0xff]
  %v802 = vld [vmem:[%s6 + $0x368] sm:$0xff]
  %v803 = vld [vmem:[%s6 + $0x370] sm:$0xff]
  %v804 = vld [vmem:[%s6 + $0x378] sm:$0xff]
  %v805 = vld [vmem:[%s6 + $0x380] sm:$0xff]
  %v806 = vld [vmem:[%s6 + $0x388] sm:$0xff]
  %v807 = vld [vmem:[%s6 + $0x390] sm:$0xff]
  %v808 = vld [vmem:[%s6 + $0x398] sm:$0xff]
  %v809 = vld [vmem:[%s6 + $0x3a0] sm:$0xff]
  %v810 = vld [vmem:[%s6 + $0x3a8] sm:$0xff]
  %v811 = vld [vmem:[%s6 + $0x3b0] sm:$0xff]
  %v812 = vld [vmem:[%s6 + $0x3b8] sm:$0xff]
  %v813 = vld [vmem:[%s6 + $0x3c0] sm:$0xff]
  %v814 = vld [vmem:[%s6 + $0x3c8] sm:$0xff]
  %v815 = vld [vmem:[%s6 + $0x3d0] sm:$0xff]
  %v816 = vld [vmem:[%s6 + $0x3d8] sm:$0xff]
  %v817 = vld [vmem:[%s6 + $0x3e0] sm:$0xff]
  %v818 = vld [vmem:[%s6 + $0x3e8] sm:$0xff]
  %v819 = vld [vmem:[%s6 + $0x3f0] sm:$0xff]
  %v820 = vld [vmem:[%s6 + $0x3f8] sm:$0xff]
  %v821 = vld [vmem:[%s6 + $0x400] sm:$0xff]
  %v822 = vld [vmem:[%s6 + $0x408] sm:$0xff]
  %v823 = vld [vmem:[%s6 + $0x410] sm:$0xff]
  %v824 = vld [vmem:[%s6 + $0x418] sm:$0xff]
  %v825 = vld [vmem:[%s6 + $0x420] sm:$0xff]
  %v826 = vld [vmem:[%s6 + $0x428] sm:$0xff]
  %v827 = vld [vmem:[%s6 + $0x430] sm:$0xff]
  %v828 = vld [vmem:[%s6 + $0x438] sm:$0xff]
  %v829 = vld [vmem:[%s6 + $0x440] sm:$0xff]
  %v830 = vld [vmem:[%s6 + $0x448] sm:$0xff]
  %v831 = vld [vmem:[%s6 + $0x450] sm:$0xff]
  %v832 = vld [vmem:[%s6 + $0x458] sm:$0xff]
  %v833 = vld [vmem:[%s6 + $0x460] sm:$0xff]
  %v834 = vld [vmem:[%s6 + $0x468] sm:$0xff]
  %v835 = vld [vmem:[%s6 + $0x470] sm:$0xff]
  %v836 = vld [vmem:[%s6 + $0x478] sm:$0xff]
  %v837 = vld [vmem:[%s6 + $0x480] sm:$0xff]
  %v838 = vld [vmem:[%s6 + $0x488] sm:$0xff]
  %v839 = vld [vmem:[%s6 + $0x490] sm:$0xff]
  %v840 = vld [vmem:[%s6 + $0x498] sm:$0xff]
  %v841 = vld [vmem:[%s6 + $0x4a0] sm:$0xff]
  %v842 = vld [vmem:[%s6 + $0x4a8] sm:$0xff]
  %v843 = vld [vmem:[%s6 + $0x4b0] sm:$0xff]
  %v844 = vld [vmem:[%s6 + $0x4b8] sm:$0xff]
  %v845 = vld [vmem:[%s6 + $0x4c0] sm:$0xff]
  %v846 = vld [vmem:[%s6 + $0x4c8] sm:$0xff]
  %v847 = vld [vmem:[%s6 + $0x4d0] sm:$0xff]
  %v848 = vld [vmem:[%s6 + $0x4d8] sm:$0xff]
  %v849 = vld [vmem:[%s6 + $0x4e0] sm:$0xff]
  %v850 = vld [vmem:[%s6 + $0x4e8] sm:$0xff]
  %v851 = vld [vmem:[%s6 + $0x4f0] sm:$0xff]
  %v852 = vld [vmem:[%s6 + $0x4f8] sm:$0xff]
  %v1013 = vunpack.c.l.b16 %v693
  %v1014 = vunpack.c.h.b16 %v693
  %v1015 = vunpack.c.l.b16 %v694
  %v1016 = vunpack.c.h.b16 %v694
  %v1017 = vunpack.c.l.b16 %v695
  %v1018 = vunpack.c.h.b16 %v695
  %v1019 = vunpack.c.l.b16 %v696
  %v1020 = vunpack.c.h.b16 %v696
  %v1021 = vunpack.c.l.b16 %v697
  %v1022 = vunpack.c.h.b16 %v697
  %v1023 = vunpack.c.l.b16 %v698
  %v1024 = vunpack.c.h.b16 %v698
  %v1025 = vunpack.c.l.b16 %v699
  %v1026 = vunpack.c.h.b16 %v699
  %v1027 = vunpack.c.l.b16 %v700
  %v1028 = vunpack.c.h.b16 %v700
  %v1029 = vunpack.c.l.b16 %v701
  %v1030 = vunpack.c.h.b16 %v701
  %v1031 = vunpack.c.l.b16 %v702
  %v1032 = vunpack.c.h.b16 %v702
  %v1033 = vunpack.c.l.b16 %v703
  %v1034 = vunpack.c.h.b16 %v703
  %v1035 = vunpack.c.l.b16 %v704
  %v1036 = vunpack.c.h.b16 %v704
  %v1037 = vunpack.c.l.b16 %v705
  %v1038 = vunpack.c.h.b16 %v705
  %v1039 = vunpack.c.l.b16 %v706
  %v1040 = vunpack.c.h.b16 %v706
  %v1041 = vunpack.c.l.b16 %v707
  %v1042 = vunpack.c.h.b16 %v707
  %v1043 = vunpack.c.l.b16 %v708
  %v1044 = vunpack.c.h.b16 %v708
  %v1045 = vunpack.c.l.b16 %v709
  %v1046 = vunpack.c.h.b16 %v709
  %v1047 = vunpack.c.l.b16 %v710
  %v1048 = vunpack.c.h.b16 %v710
  %v1049 = vunpack.c.l.b16 %v711
  %v1050 = vunpack.c.h.b16 %v711
  %v1051 = vunpack.c.l.b16 %v712
  %v1052 = vunpack.c.h.b16 %v712
  %v1053 = vunpack.c.l.b16 %v713
  %v1054 = vunpack.c.h.b16 %v713
  %v1055 = vunpack.c.l.b16 %v714
  %v1056 = vunpack.c.h.b16 %v714
  %v1057 = vunpack.c.l.b16 %v715
  %v1058 = vunpack.c.h.b16 %v715
  %v1059 = vunpack.c.l.b16 %v716
  %v1060 = vunpack.c.h.b16 %v716
  %v1061 = vunpack.c.l.b16 %v717
  %v1062 = vunpack.c.h.b16 %v717
  %v1063 = vunpack.c.l.b16 %v718
  %v1064 = vunpack.c.h.b16 %v718
  %v1065 = vunpack.c.l.b16 %v719
  %v1066 = vunpack.c.h.b16 %v719
  %v1067 = vunpack.c.l.b16 %v720
  %v1068 = vunpack.c.h.b16 %v720
  %v1069 = vunpack.c.l.b16 %v721
  %v1070 = vunpack.c.h.b16 %v721
  %v1071 = vunpack.c.l.b16 %v722
  %v1072 = vunpack.c.h.b16 %v722
  %v1073 = vunpack.c.l.b16 %v723
  %v1074 = vunpack.c.h.b16 %v723
  %v1075 = vunpack.c.l.b16 %v724
  %v1076 = vunpack.c.h.b16 %v724
  %v1077 = vunpack.c.l.b16 %v725
  %v1078 = vunpack.c.h.b16 %v725
  %v1079 = vunpack.c.l.b16 %v726
  %v1080 = vunpack.c.h.b16 %v726
  %v1081 = vunpack.c.l.b16 %v727
  %v1082 = vunpack.c.h.b16 %v727
  %v1083 = vunpack.c.l.b16 %v728
  %v1084 = vunpack.c.h.b16 %v728
  %v1085 = vunpack.c.l.b16 %v729
  %v1086 = vunpack.c.h.b16 %v729
  %v1087 = vunpack.c.l.b16 %v730
  %v1088 = vunpack.c.h.b16 %v730
  %v1089 = vunpack.c.l.b16 %v731
  %v1090 = vunpack.c.h.b16 %v731
  %v1091 = vunpack.c.l.b16 %v732
  %v1092 = vunpack.c.h.b16 %v732
  %v1093 = vunpack.c.l.b16 %v733
  %v1094 = vunpack.c.h.b16 %v733
  %v1095 = vunpack.c.l.b16 %v734
  %v1096 = vunpack.c.h.b16 %v734
  %v1097 = vunpack.c.l.b16 %v735
  %v1098 = vunpack.c.h.b16 %v735
  %v1099 = vunpack.c.l.b16 %v736
  %v1100 = vunpack.c.h.b16 %v736
  %v1101 = vunpack.c.l.b16 %v737
  %v1102 = vunpack.c.h.b16 %v737
  %v1103 = vunpack.c.l.b16 %v738
  %v1104 = vunpack.c.h.b16 %v738
  %v1105 = vunpack.c.l.b16 %v739
  %v1106 = vunpack.c.h.b16 %v739
  %v1107 = vunpack.c.l.b16 %v740
  %v1108 = vunpack.c.h.b16 %v740
  %v1109 = vunpack.c.l.b16 %v741
  %v1110 = vunpack.c.h.b16 %v741
  %v1111 = vunpack.c.l.b16 %v742
  %v1112 = vunpack.c.h.b16 %v742
  %v1113 = vunpack.c.l.b16 %v743
  %v1114 = vunpack.c.h.b16 %v743
  %v1115 = vunpack.c.l.b16 %v744
  %v1116 = vunpack.c.h.b16 %v744
  %v1117 = vunpack.c.l.b16 %v745
  %v1118 = vunpack.c.h.b16 %v745
  %v1119 = vunpack.c.l.b16 %v746
  %v1120 = vunpack.c.h.b16 %v746
  %v1121 = vunpack.c.l.b16 %v747
  %v1122 = vunpack.c.h.b16 %v747
  %v1123 = vunpack.c.l.b16 %v748
  %v1124 = vunpack.c.h.b16 %v748
  %v1125 = vunpack.c.l.b16 %v749
  %v1126 = vunpack.c.h.b16 %v749
  %v1127 = vunpack.c.l.b16 %v750
  %v1128 = vunpack.c.h.b16 %v750
  %v1129 = vunpack.c.l.b16 %v751
  %v1130 = vunpack.c.h.b16 %v751
  %v1131 = vunpack.c.l.b16 %v752
  %v1132 = vunpack.c.h.b16 %v752
  %v1133 = vunpack.c.l.b16 %v753
  %v1134 = vunpack.c.h.b16 %v753
  %v1135 = vunpack.c.l.b16 %v754
  %v1136 = vunpack.c.h.b16 %v754
  %v1137 = vunpack.c.l.b16 %v755
  %v1138 = vunpack.c.h.b16 %v755
  %v1139 = vunpack.c.l.b16 %v756
  %v1140 = vunpack.c.h.b16 %v756
  %v1141 = vunpack.c.l.b16 %v757
  %v1142 = vunpack.c.h.b16 %v757
  %v1143 = vunpack.c.l.b16 %v758
  %v1144 = vunpack.c.h.b16 %v758
  %v1145 = vunpack.c.l.b16 %v759
  %v1146 = vunpack.c.h.b16 %v759
  %v1147 = vunpack.c.l.b16 %v760
  %v1148 = vunpack.c.h.b16 %v760
  %v1149 = vunpack.c.l.b16 %v761
  %v1150 = vunpack.c.h.b16 %v761
  %v1151 = vunpack.c.l.b16 %v762
  %v1152 = vunpack.c.h.b16 %v762
  %v1153 = vunpack.c.l.b16 %v763
  %v1154 = vunpack.c.h.b16 %v763
  %v1155 = vunpack.c.l.b16 %v764
  %v1156 = vunpack.c.h.b16 %v764
  %v1157 = vunpack.c.l.b16 %v765
  %v1158 = vunpack.c.h.b16 %v765
  %v1159 = vunpack.c.l.b16 %v766
  %v1160 = vunpack.c.h.b16 %v766
  %v1161 = vunpack.c.l.b16 %v767
  %v1162 = vunpack.c.h.b16 %v767
  %v1163 = vunpack.c.l.b16 %v768
  %v1164 = vunpack.c.h.b16 %v768
  %v1165 = vunpack.c.l.b16 %v769
  %v1166 = vunpack.c.h.b16 %v769
  %v1167 = vunpack.c.l.b16 %v770
  %v1168 = vunpack.c.h.b16 %v770
  %v1169 = vunpack.c.l.b16 %v771
  %v1170 = vunpack.c.h.b16 %v771
  %v1171 = vunpack.c.l.b16 %v772
  %v1172 = vunpack.c.h.b16 %v772
  %v1173 = vunpack.c.l.b16 %v773
  %v1174 = vunpack.c.h.b16 %v773
  %v1175 = vunpack.c.l.b16 %v774
  %v1176 = vunpack.c.h.b16 %v774
  %v1177 = vunpack.c.l.b16 %v775
  %v1178 = vunpack.c.h.b16 %v775
  %v1179 = vunpack.c.l.b16 %v776
  %v1180 = vunpack.c.h.b16 %v776
  %v1181 = vunpack.c.l.b16 %v777
  %v1182 = vunpack.c.h.b16 %v777
  %v1183 = vunpack.c.l.b16 %v778
  %v1184 = vunpack.c.h.b16 %v778
  %v1185 = vunpack.c.l.b16 %v779
  %v1186 = vunpack.c.h.b16 %v779
  %v1187 = vunpack.c.l.b16 %v780
  %v1188 = vunpack.c.h.b16 %v780
  %v1189 = vunpack.c.l.b16 %v781
  %v1190 = vunpack.c.h.b16 %v781
  %v1191 = vunpack.c.l.b16 %v782
  %v1192 = vunpack.c.h.b16 %v782
  %v1193 = vunpack.c.l.b16 %v783
  %v1194 = vunpack.c.h.b16 %v783
  %v1195 = vunpack.c.l.b16 %v784
  %v1196 = vunpack.c.h.b16 %v784
  %v1197 = vunpack.c.l.b16 %v785
  %v1198 = vunpack.c.h.b16 %v785
  %v1199 = vunpack.c.l.b16 %v786
  %v1200 = vunpack.c.h.b16 %v786
  %v1201 = vunpack.c.l.b16 %v787
  %v1202 = vunpack.c.h.b16 %v787
  %v1203 = vunpack.c.l.b16 %v788
  %v1204 = vunpack.c.h.b16 %v788
  %v1205 = vunpack.c.l.b16 %v789
  %v1206 = vunpack.c.h.b16 %v789
  %v1207 = vunpack.c.l.b16 %v790
  %v1208 = vunpack.c.h.b16 %v790
  %v1209 = vunpack.c.l.b16 %v791
  %v1210 = vunpack.c.h.b16 %v791
  %v1211 = vunpack.c.l.b16 %v792
  %v1212 = vunpack.c.h.b16 %v792
  %v1213 = vunpack.c.l.b16 %v793
  %v1214 = vunpack.c.h.b16 %v793
  %v1215 = vunpack.c.l.b16 %v794
  %v1216 = vunpack.c.h.b16 %v794
  %v1217 = vunpack.c.l.b16 %v795
  %v1218 = vunpack.c.h.b16 %v795
  %v1219 = vunpack.c.l.b16 %v796
  %v1220 = vunpack.c.h.b16 %v796
  %v1221 = vunpack.c.l.b16 %v797
  %v1222 = vunpack.c.h.b16 %v797
  %v1223 = vunpack.c.l.b16 %v798
  %v1224 = vunpack.c.h.b16 %v798
  %v1225 = vunpack.c.l.b16 %v799
  %v1226 = vunpack.c.h.b16 %v799
  %v1227 = vunpack.c.l.b16 %v800
  %v1228 = vunpack.c.h.b16 %v800
  %v1229 = vunpack.c.l.b16 %v801
  %v1230 = vunpack.c.h.b16 %v801
  %v1231 = vunpack.c.l.b16 %v802
  %v1232 = vunpack.c.h.b16 %v802
  %v1233 = vunpack.c.l.b16 %v803
  %v1234 = vunpack.c.h.b16 %v803
  %v1235 = vunpack.c.l.b16 %v804
  %v1236 = vunpack.c.h.b16 %v804
  %v1237 = vunpack.c.l.b16 %v805
  %v1238 = vunpack.c.h.b16 %v805
  %v1239 = vunpack.c.l.b16 %v806
  %v1240 = vunpack.c.h.b16 %v806
  %v1241 = vunpack.c.l.b16 %v807
  %v1242 = vunpack.c.h.b16 %v807
  %v1243 = vunpack.c.l.b16 %v808
  %v1244 = vunpack.c.h.b16 %v808
  %v1245 = vunpack.c.l.b16 %v809
  %v1246 = vunpack.c.h.b16 %v809
  %v1247 = vunpack.c.l.b16 %v810
  %v1248 = vunpack.c.h.b16 %v810
  %v1249 = vunpack.c.l.b16 %v811
  %v1250 = vunpack.c.h.b16 %v811
  %v1251 = vunpack.c.l.b16 %v812
  %v1252 = vunpack.c.h.b16 %v812
  %v1253 = vunpack.c.l.b16 %v813
  %v1254 = vunpack.c.h.b16 %v813
  %v1255 = vunpack.c.l.b16 %v814
  %v1256 = vunpack.c.h.b16 %v814
  %v1257 = vunpack.c.l.b16 %v815
  %v1258 = vunpack.c.h.b16 %v815
  %v1259 = vunpack.c.l.b16 %v816
  %v1260 = vunpack.c.h.b16 %v816
  %v1261 = vunpack.c.l.b16 %v817
  %v1262 = vunpack.c.h.b16 %v817
  %v1263 = vunpack.c.l.b16 %v818
  %v1264 = vunpack.c.h.b16 %v818
  %v1265 = vunpack.c.l.b16 %v819
  %v1266 = vunpack.c.h.b16 %v819
  %v1267 = vunpack.c.l.b16 %v820
  %v1268 = vunpack.c.h.b16 %v820
  %v1269 = vunpack.c.l.b16 %v821
  %v1270 = vunpack.c.h.b16 %v821
  %v1271 = vunpack.c.l.b16 %v822
  %v1272 = vunpack.c.h.b16 %v822
  %v1273 = vunpack.c.l.b16 %v823
  %v1274 = vunpack.c.h.b16 %v823
  %v1275 = vunpack.c.l.b16 %v824
  %v1276 = vunpack.c.h.b16 %v824
  %v1277 = vunpack.c.l.b16 %v825
  %v1278 = vunpack.c.h.b16 %v825
  %v1279 = vunpack.c.l.b16 %v826
  %v1280 = vunpack.c.h.b16 %v826
  %v1281 = vunpack.c.l.b16 %v827
  %v1282 = vunpack.c.h.b16 %v827
  %v1283 = vunpack.c.l.b16 %v828
  %v1284 = vunpack.c.h.b16 %v828
  %v1285 = vunpack.c.l.b16 %v829
  %v1286 = vunpack.c.h.b16 %v829
  %v1287 = vunpack.c.l.b16 %v830
  %v1288 = vunpack.c.h.b16 %v830
  %v1289 = vunpack.c.l.b16 %v831
  %v1290 = vunpack.c.h.b16 %v831
  %v1291 = vunpack.c.l.b16 %v832
  %v1292 = vunpack.c.h.b16 %v832
  %v1293 = vunpack.c.l.b16 %v833
  %v1294 = vunpack.c.h.b16 %v833
  %v1295 = vunpack.c.l.b16 %v834
  %v1296 = vunpack.c.h.b16 %v834
  %v1297 = vunpack.c.l.b16 %v835
  %v1298 = vunpack.c.h.b16 %v835
  %v1299 = vunpack.c.l.b16 %v836
  %v1300 = vunpack.c.h.b16 %v836
  %v1301 = vunpack.c.l.b16 %v837
  %v1302 = vunpack.c.h.b16 %v837
  %v1303 = vunpack.c.l.b16 %v838
  %v1304 = vunpack.c.h.b16 %v838
  %v1305 = vunpack.c.l.b16 %v839
  %v1306 = vunpack.c.h.b16 %v839
  %v1307 = vunpack.c.l.b16 %v840
  %v1308 = vunpack.c.h.b16 %v840
  %v1309 = vunpack.c.l.b16 %v841
  %v1310 = vunpack.c.h.b16 %v841
  %v1311 = vunpack.c.l.b16 %v842
  %v1312 = vunpack.c.h.b16 %v842
  %v1313 = vunpack.c.l.b16 %v843
  %v1314 = vunpack.c.h.b16 %v843
  %v1315 = vunpack.c.l.b16 %v844
  %v1316 = vunpack.c.h.b16 %v844
  %v1317 = vunpack.c.l.b16 %v845
  %v1318 = vunpack.c.h.b16 %v845
  %v1319 = vunpack.c.l.b16 %v846
  %v1320 = vunpack.c.h.b16 %v846
  %v1321 = vunpack.c.l.b16 %v847
  %v1322 = vunpack.c.h.b16 %v847
  %v1323 = vunpack.c.l.b16 %v848
  %v1324 = vunpack.c.h.b16 %v848
  %v1325 = vunpack.c.l.b16 %v849
  %v1326 = vunpack.c.h.b16 %v849
  %v1327 = vunpack.c.l.b16 %v850
  %v1328 = vunpack.c.h.b16 %v850
  %v1329 = vunpack.c.l.b16 %v851
  %v1330 = vunpack.c.h.b16 %v851
  %v1331 = vunpack.c.l.b16 %v852
  %v1332 = vunpack.c.h.b16 %v852
  %v1333 = vpack.c.b16 %v1017, %v1013
  %v1334 = vpack.c.b16 %v1018, %v1014
  %v1335 = vpack.c.b16 %v1019, %v1015
  %v1336 = vpack.c.b16 %v1020, %v1016
  %v1337 = vpack.c.b16 %v1025, %v1021
  %v1338 = vpack.c.b16 %v1026, %v1022
  %v1339 = vpack.c.b16 %v1027, %v1023
  %v1340 = vpack.c.b16 %v1028, %v1024
  %v1341 = vpack.c.b16 %v1033, %v1029
  %v1342 = vpack.c.b16 %v1034, %v1030
  %v1343 = vpack.c.b16 %v1035, %v1031
  %v1344 = vpack.c.b16 %v1036, %v1032
  %v1345 = vpack.c.b16 %v1041, %v1037
  %v1346 = vpack.c.b16 %v1042, %v1038
  %v1347 = vpack.c.b16 %v1043, %v1039
  %v1348 = vpack.c.b16 %v1044, %v1040
  %v1349 = vpack.c.b16 %v1049, %v1045
  %v1350 = vpack.c.b16 %v1050, %v1046
  %v1351 = vpack.c.b16 %v1051, %v1047
  %v1352 = vpack.c.b16 %v1052, %v1048
  %v1353 = vpack.c.b16 %v1057, %v1053
  %v1354 = vpack.c.b16 %v1058, %v1054
  %v1355 = vpack.c.b16 %v1059, %v1055
  %v1356 = vpack.c.b16 %v1060, %v1056
  %v1357 = vpack.c.b16 %v1065, %v1061
  %v1358 = vpack.c.b16 %v1066, %v1062
  %v1359 = vpack.c.b16 %v1067, %v1063
  %v1360 = vpack.c.b16 %v1068, %v1064
  %v1361 = vpack.c.b16 %v1073, %v1069
  %v1362 = vpack.c.b16 %v1074, %v1070
  %v1363 = vpack.c.b16 %v1075, %v1071
  %v1364 = vpack.c.b16 %v1076, %v1072
  %v1365 = vpack.c.b16 %v1081, %v1077
  %v1366 = vpack.c.b16 %v1082, %v1078
  %v1367 = vpack.c.b16 %v1083, %v1079
  %v1368 = vpack.c.b16 %v1084, %v1080
  %v1369 = vpack.c.b16 %v1089, %v1085
  %v1370 = vpack.c.b16 %v1090, %v1086
  %v1371 = vpack.c.b16 %v1091, %v1087
  %v1372 = vpack.c.b16 %v1092, %v1088
  %v1373 = vpack.c.b16 %v1097, %v1093
  %v1374 = vpack.c.b16 %v1098, %v1094
  %v1375 = vpack.c.b16 %v1099, %v1095
  %v1376 = vpack.c.b16 %v1100, %v1096
  %v1377 = vpack.c.b16 %v1105, %v1101
  %v1378 = vpack.c.b16 %v1106, %v1102
  %v1379 = vpack.c.b16 %v1107, %v1103
  %v1380 = vpack.c.b16 %v1108, %v1104
  %v1381 = vpack.c.b16 %v1113, %v1109
  %v1382 = vpack.c.b16 %v1114, %v1110
  %v1383 = vpack.c.b16 %v1115, %v1111
  %v1384 = vpack.c.b16 %v1116, %v1112
  %v1385 = vpack.c.b16 %v1121, %v1117
  %v1386 = vpack.c.b16 %v1122, %v1118
  %v1387 = vpack.c.b16 %v1123, %v1119
  %v1388 = vpack.c.b16 %v1124, %v1120
  %v1389 = vpack.c.b16 %v1129, %v1125
  %v1390 = vpack.c.b16 %v1130, %v1126
  %v1391 = vpack.c.b16 %v1131, %v1127
  %v1392 = vpack.c.b16 %v1132, %v1128
  %v1393 = vpack.c.b16 %v1137, %v1133
  %v1394 = vpack.c.b16 %v1138, %v1134
  %v1395 = vpack.c.b16 %v1139, %v1135
  %v1396 = vpack.c.b16 %v1140, %v1136
  %v1397 = vpack.c.b16 %v1145, %v1141
  %v1398 = vpack.c.b16 %v1146, %v1142
  %v1399 = vpack.c.b16 %v1147, %v1143
  %v1400 = vpack.c.b16 %v1148, %v1144
  %v1401 = vpack.c.b16 %v1153, %v1149
  %v1402 = vpack.c.b16 %v1154, %v1150
  %v1403 = vpack.c.b16 %v1155, %v1151
  %v1404 = vpack.c.b16 %v1156, %v1152
  %v1405 = vpack.c.b16 %v1161, %v1157
  %v1406 = vpack.c.b16 %v1162, %v1158
  %v1407 = vpack.c.b16 %v1163, %v1159
  %v1408 = vpack.c.b16 %v1164, %v1160
  %v1409 = vpack.c.b16 %v1169, %v1165
  %v1410 = vpack.c.b16 %v1170, %v1166
  %v1411 = vpack.c.b16 %v1171, %v1167
  %v1412 = vpack.c.b16 %v1172, %v1168
  %v1413 = vpack.c.b16 %v1177, %v1173
  %v1414 = vpack.c.b16 %v1178, %v1174
  %v1415 = vpack.c.b16 %v1179, %v1175
  %v1416 = vpack.c.b16 %v1180, %v1176
  %v1417 = vpack.c.b16 %v1185, %v1181
  %v1418 = vpack.c.b16 %v1186, %v1182
  %v1419 = vpack.c.b16 %v1187, %v1183
  %v1420 = vpack.c.b16 %v1188, %v1184
  %v1421 = vpack.c.b16 %v1193, %v1189
  %v1422 = vpack.c.b16 %v1194, %v1190
  %v1423 = vpack.c.b16 %v1195, %v1191
  %v1424 = vpack.c.b16 %v1196, %v1192
  %v1425 = vpack.c.b16 %v1201, %v1197
  %v1426 = vpack.c.b16 %v1202, %v1198
  %v1427 = vpack.c.b16 %v1203, %v1199
  %v1428 = vpack.c.b16 %v1204, %v1200
  %v1429 = vpack.c.b16 %v1209, %v1205
  %v1430 = vpack.c.b16 %v1210, %v1206
  %v1431 = vpack.c.b16 %v1211, %v1207
  %v1432 = vpack.c.b16 %v1212, %v1208
  %v1433 = vpack.c.b16 %v1217, %v1213
  %v1434 = vpack.c.b16 %v1218, %v1214
  %v1435 = vpack.c.b16 %v1219, %v1215
  %v1436 = vpack.c.b16 %v1220, %v1216
  %v1437 = vpack.c.b16 %v1225, %v1221
  %v1438 = vpack.c.b16 %v1226, %v1222
  %v1439 = vpack.c.b16 %v1227, %v1223
  %v1440 = vpack.c.b16 %v1228, %v1224
  %v1441 = vpack.c.b16 %v1233, %v1229
  %v1442 = vpack.c.b16 %v1234, %v1230
  %v1443 = vpack.c.b16 %v1235, %v1231
  %v1444 = vpack.c.b16 %v1236, %v1232
  %v1445 = vpack.c.b16 %v1241, %v1237
  %v1446 = vpack.c.b16 %v1242, %v1238
  %v1447 = vpack.c.b16 %v1243, %v1239
  %v1448 = vpack.c.b16 %v1244, %v1240
  %v1449 = vpack.c.b16 %v1249, %v1245
  %v1450 = vpack.c.b16 %v1250, %v1246
  %v1451 = vpack.c.b16 %v1251, %v1247
  %v1452 = vpack.c.b16 %v1252, %v1248
  %v1453 = vpack.c.b16 %v1257, %v1253
  %v1454 = vpack.c.b16 %v1258, %v1254
  %v1455 = vpack.c.b16 %v1259, %v1255
  %v1456 = vpack.c.b16 %v1260, %v1256
  %v1457 = vpack.c.b16 %v1265, %v1261
  %v1458 = vpack.c.b16 %v1266, %v1262
  %v1459 = vpack.c.b16 %v1267, %v1263
  %v1460 = vpack.c.b16 %v1268, %v1264
  %v1461 = vpack.c.b16 %v1273, %v1269
  %v1462 = vpack.c.b16 %v1274, %v1270
  %v1463 = vpack.c.b16 %v1275, %v1271
  %v1464 = vpack.c.b16 %v1276, %v1272
  %v1465 = vpack.c.b16 %v1281, %v1277
  %v1466 = vpack.c.b16 %v1282, %v1278
  %v1467 = vpack.c.b16 %v1283, %v1279
  %v1468 = vpack.c.b16 %v1284, %v1280
  %v1469 = vpack.c.b16 %v1289, %v1285
  %v1470 = vpack.c.b16 %v1290, %v1286
  %v1471 = vpack.c.b16 %v1291, %v1287
  %v1472 = vpack.c.b16 %v1292, %v1288
  %v1473 = vpack.c.b16 %v1297, %v1293
  %v1474 = vpack.c.b16 %v1298, %v1294
  %v1475 = vpack.c.b16 %v1299, %v1295
  %v1476 = vpack.c.b16 %v1300, %v1296
  %v1477 = vpack.c.b16 %v1305, %v1301
  %v1478 = vpack.c.b16 %v1306, %v1302
  %v1479 = vpack.c.b16 %v1307, %v1303
  %v1480 = vpack.c.b16 %v1308, %v1304
  %v1481 = vpack.c.b16 %v1313, %v1309
  %v1482 = vpack.c.b16 %v1314, %v1310
  %v1483 = vpack.c.b16 %v1315, %v1311
  %v1484 = vpack.c.b16 %v1316, %v1312
  %v1485 = vpack.c.b16 %v1321, %v1317
  %v1486 = vpack.c.b16 %v1322, %v1318
  %v1487 = vpack.c.b16 %v1323, %v1319
  %v1488 = vpack.c.b16 %v1324, %v1320
  %v1489 = vpack.c.b16 %v1329, %v1325
  %v1490 = vpack.c.b16 %v1330, %v1326
  %v1491 = vpack.c.b16 %v1331, %v1327
  %v1492 = vpack.c.b16 %v1332, %v1328
  %1653 = vmatprep.subr.bf16.mxu0 %v1334
  %1654 = vmatpush1.bf16.msra.mxu0 %v1333
  %1655 = vmatprep.subr.bf16.mxu0 %v1338
  %1656 = vmatpush1.bf16.msra.mxu0 %v1337
  %1657 = vmatprep.subr.bf16.mxu0 %v1342
  %1658 = vmatpush1.bf16.msra.mxu0 %v1341
  %1659 = vmatprep.subr.bf16.mxu0 %v1346
  %1660 = vmatpush1.bf16.msra.mxu0 %v1345
  %1661 = vmatprep.subr.bf16.mxu0 %v1350
  %1662 = vmatpush1.bf16.msra.mxu0 %v1349
  %1663 = vmatprep.subr.bf16.mxu0 %v1354
  %1664 = vmatpush1.bf16.msra.mxu0 %v1353
  %1665 = vmatprep.subr.bf16.mxu0 %v1358
  %1666 = vmatpush1.bf16.msra.mxu0 %v1357
  %1667 = vmatprep.subr.bf16.mxu0 %v1362
  %1668 = vmatpush1.bf16.msra.mxu0 %v1361
  %1669 = vmatprep.subr.bf16.mxu0 %v1366
  %1670 = vmatpush1.bf16.msra.mxu0 %v1365
  %1671 = vmatprep.subr.bf16.mxu0 %v1370
  %1672 = vmatpush1.bf16.msra.mxu0 %v1369
  %1673 = vmatprep.subr.bf16.mxu0 %v1374
  %1674 = vmatpush1.bf16.msra.mxu0 %v1373
  %1675 = vmatprep.subr.bf16.mxu0 %v1378
  %1676 = vmatpush1.bf16.msra.mxu0 %v1377
  %1677 = vmatprep.subr.bf16.mxu0 %v1382
  %1678 = vmatpush1.bf16.msra.mxu0 %v1381
  %1679 = vmatprep.subr.bf16.mxu0 %v1386
  %1680 = vmatpush1.bf16.msra.mxu0 %v1385
  %1681 = vmatprep.subr.bf16.mxu0 %v1390
  %1682 = vmatpush1.bf16.msra.mxu0 %v1389
  %1683 = vmatprep.subr.bf16.mxu0 %v1394
  %1684 = vmatpush1.bf16.msra.mxu0 %v1393
  %1685 = vmatprep.mubr.bf16.mxu0 %v689
  %1686 = vmatmul.mubr.bf16.gmra.mrb[0].mxu0 %v688
  %v1687 = vpop.f32.mrb[0].mxu0
  %v1688 = vadd.f32 0.0, %v1687
  %v1689 = vpop.f32.mrb[0].mxu0
  %v1690 = vadd.f32 0.0, %v1689
  %v1691 = vpop.f32.mrb[0].mxu0
  %v1692 = vadd.f32 0.0, %v1691
  %v1693 = vpop.f32.mrb[0].mxu0
  %v1694 = vadd.f32 0.0, %v1693
  %1695 = vdwg.mxu0
  %1696 = vmatprep.subr.bf16.mxu0 %v1398
  %1697 = vmatpush1.bf16.msra.mxu0 %v1397
  %1698 = vmatprep.subr.bf16.mxu0 %v1402
  %1699 = vmatpush1.bf16.msra.mxu0 %v1401
  %1700 = vmatprep.subr.bf16.mxu0 %v1406
  %1701 = vmatpush1.bf16.msra.mxu0 %v1405
  %1702 = vmatprep.subr.bf16.mxu0 %v1410
  %1703 = vmatpush1.bf16.msra.mxu0 %v1409
  %1704 = vmatprep.subr.bf16.mxu0 %v1414
  %1705 = vmatpush1.bf16.msra.mxu0 %v1413
  %1706 = vmatprep.subr.bf16.mxu0 %v1418
  %1707 = vmatpush1.bf16.msra.mxu0 %v1417
  %1708 = vmatprep.subr.bf16.mxu0 %v1422
  %1709 = vmatpush1.bf16.msra.mxu0 %v1421
  %1710 = vmatprep.subr.bf16.mxu0 %v1426
  %1711 = vmatpush1.bf16.msra.mxu0 %v1425
  %1712 = vmatprep.subr.bf16.mxu0 %v1430
  %1713 = vmatpush1.bf16.msra.mxu0 %v1429
  %1714 = vmatprep.subr.bf16.mxu0 %v1434
  %1715 = vmatpush1.bf16.msra.mxu0 %v1433
  %1716 = vmatprep.subr.bf16.mxu0 %v1438
  %1717 = vmatpush1.bf16.msra.mxu0 %v1437
  %1718 = vmatprep.subr.bf16.mxu0 %v1442
  %1719 = vmatpush1.bf16.msra.mxu0 %v1441
  %1720 = vmatprep.subr.bf16.mxu0 %v1446
  %1721 = vmatpush1.bf16.msra.mxu0 %v1445
  %1722 = vmatprep.subr.bf16.mxu0 %v1450
  %1723 = vmatpush1.bf16.msra.mxu0 %v1449
  %1724 = vmatprep.subr.bf16.mxu0 %v1454
  %1725 = vmatpush1.bf16.msra.mxu0 %v1453
  %1726 = vmatprep.subr.bf16.mxu0 %v1458
  %1727 = vmatpush1.bf16.msra.mxu0 %v1457
  %1728 = vmatprep.mubr.bf16.mxu0 %v691
  %1729 = vmatmul.mubr.bf16.gmra.mrb[0].mxu0 %v690
  %v1730 = vpop.f32.mrb[0].mxu0
  %v1731 = vadd.f32 %v1688, %v1730
  %v1732 = vpop.f32.mrb[0].mxu0
  %v1733 = vadd.f32 %v1690, %v1732
  %v1734 = vpop.f32.mrb[0].mxu0
  %v1735 = vadd.f32 %v1692, %v1734
  %v1736 = vpop.f32.mrb[0].mxu0
  %v1737 = vadd.f32 %v1694, %v1736
  %1738 = vdwg.mxu0
  %1739 = vmatprep.subr.bf16.mxu0 %v1462
  %1740 = vmatpush1.bf16.msra.mxu0 %v1461
  %1741 = vmatprep.subr.bf16.mxu0 %v1466
  %1742 = vmatpush1.bf16.msra.mxu0 %v1465
  %1743 = vmatprep.subr.bf16.mxu0 %v1470
  %1744 = vmatpush1.bf16.msra.mxu0 %v1469
  %1745 = vmatprep.subr.bf16.mxu0 %v1474
  %1746 = vmatpush1.bf16.msra.mxu0 %v1473
  %1747 = vmatprep.subr.bf16.mxu0 %v1478
  %1748 = vmatpush1.bf16.msra.mxu0 %v1477
  %1749 = vmatprep.subr.bf16.mxu0 %v1482
  %1750 = vmatpush1.bf16.msra.mxu0 %v1481
  %1751 = vmatprep.subr.bf16.mxu0 %v1486
  %1752 = vmatpush1.bf16.msra.mxu0 %v1485
  %1753 = vmatprep.subr.bf16.mxu0 %v1490
  %1754 = vmatpush1.bf16.msra.mxu0 %v1489
  %1755 = vmatprep.subr.bf16.mxu0 0
  %1756 = vmatpush1.bf16.msra.mxu0 0
  %1757 = vmatprep.subr.bf16.mxu0 0
  %1758 = vmatpush1.bf16.msra.mxu0 0
  %1759 = vmatprep.subr.bf16.mxu0 0
  %1760 = vmatpush1.bf16.msra.mxu0 0
  %1761 = vmatprep.subr.bf16.mxu0 0
  %1762 = vmatpush1.bf16.msra.mxu0 0
  %1763 = vmatprep.subr.bf16.mxu0 0
  %1764 = vmatpush1.bf16.msra.mxu0 0
  %1765 = vmatprep.subr.bf16.mxu0 0
  %1766 = vmatpush1.bf16.msra.mxu0 0
  %1767 = vmatprep.subr.bf16.mxu0 0
  %1768 = vmatpush1.bf16.msra.mxu0 0
  %1769 = vmatprep.subr.bf16.mxu0 0
  %1770 = vmatpush1.bf16.msra.mxu0 0
  %1771 = vmatprep.mubr.bf16.mxu0 0
  %1772 = vmatmul.mubr.bf16.gmra.mrb[0].mxu0 %v692
  %v1773 = vpop.f32.mrb[0].mxu0
  %v1774 = vadd.f32 %v1731, %v1773
  %v1775 = vpop.f32.mrb[0].mxu0
  %v1776 = vadd.f32 %v1733, %v1775
  %v1777 = vpop.f32.mrb[0].mxu0
  %v1778 = vadd.f32 %v1735, %v1777
  %v1779 = vpop.f32.mrb[0].mxu0
  %v1780 = vadd.f32 %v1737, %v1779
  %1781 = vdwg.mxu0
  %1782 = vmatprep.subr.bf16.mxu0 %v1336
  %1783 = vmatpush1.bf16.msra.mxu0 %v1335
  %1784 = vmatprep.subr.bf16.mxu0 %v1340
  %1785 = vmatpush1.bf16.msra.mxu0 %v1339
  %1786 = vmatprep.subr.bf16.mxu0 %v1344
  %1787 = vmatpush1.bf16.msra.mxu0 %v1343
  %1788 = vmatprep.subr.bf16.mxu0 %v1348
  %1789 = vmatpush1.bf16.msra.mxu0 %v1347
  %1790 = vmatprep.subr.bf16.mxu0 %v1352
  %1791 = vmatpush1.bf16.msra.mxu0 %v1351
  %1792 = vmatprep.subr.bf16.mxu0 %v1356
  %1793 = vmatpush1.bf16.msra.mxu0 %v1355
  %1794 = vmatprep.subr.bf16.mxu0 %v1360
  %1795 = vmatpush1.bf16.msra.mxu0 %v1359
  %1796 = vmatprep.subr.bf16.mxu0 %v1364
  %1797 = vmatpush1.bf16.msra.mxu0 %v1363
  %1798 = vmatprep.subr.bf16.mxu0 %v1368
  %1799 = vmatpush1.bf16.msra.mxu0 %v1367
  %1800 = vmatprep.subr.bf16.mxu0 %v1372
  %1801 = vmatpush1.bf16.msra.mxu0 %v1371
  %1802 = vmatprep.subr.bf16.mxu0 %v1376
  %1803 = vmatpush1.bf16.msra.mxu0 %v1375
  %1804 = vmatprep.subr.bf16.mxu0 %v1380
  %1805 = vmatpush1.bf16.msra.mxu0 %v1379
  %1806 = vmatprep.subr.bf16.mxu0 %v1384
  %1807 = vmatpush1.bf16.msra.mxu0 %v1383
  %1808 = vmatprep.subr.bf16.mxu0 %v1388
  %1809 = vmatpush1.bf16.msra.mxu0 %v1387
  %1810 = vmatprep.subr.bf16.mxu0 %v1392
  %1811 = vmatpush1.bf16.msra.mxu0 %v1391
  %1812 = vmatprep.subr.bf16.mxu0 %v1396
  %1813 = vmatpush1.bf16.msra.mxu0 %v1395
  %1814 = vmatprep.mubr.bf16.mxu0 %v689
  %1815 = vmatmul.mubr.bf16.gmra.mrb[0].mxu0 %v688
  %v1816 = vpop.f32.mrb[0].mxu0
  %v1817 = vadd.f32 0.0, %v1816
  %v1818 = vpop.f32.mrb[0].mxu0
  %v1819 = vadd.f32 0.0, %v1818
  %v1820 = vpop.f32.mrb[0].mxu0
  %v1821 = vadd.f32 0.0, %v1820
  %v1822 = vpop.f32.mrb[0].mxu0
  %v1823 = vadd.f32 0.0, %v1822
  %1824 = vdwg.mxu0
  %1825 = vmatprep.subr.bf16.mxu0 %v1400
  %1826 = vmatpush1.bf16.msra.mxu0 %v1399
  %1827 = vmatprep.subr.bf16.mxu0 %v1404
  %1828 = vmatpush1.bf16.msra.mxu0 %v1403
  %1829 = vmatprep.subr.bf16.mxu0 %v1408
  %1830 = vmatpush1.bf16.msra.mxu0 %v1407
  %1831 = vmatprep.subr.bf16.mxu0 %v1412
  %1832 = vmatpush1.bf16.msra.mxu0 %v1411
  %1833 = vmatprep.subr.bf16.mxu0 %v1416
  %1834 = vmatpush1.bf16.msra.mxu0 %v1415
  %1835 = vmatprep.subr.bf16.mxu0 %v1420
  %1836 = vmatpush1.bf16.msra.mxu0 %v1419
  %1837 = vmatprep.subr.bf16.mxu0 %v1424
  %1838 = vmatpush1.bf16.msra.mxu0 %v1423
  %1839 = vmatprep.subr.bf16.mxu0 %v1428
  %1840 = vmatpush1.bf16.msra.mxu0 %v1427
  %1841 = vmatprep.subr.bf16.mxu0 %v1432
  %1842 = vmatpush1.bf16.msra.mxu0 %v1431
  %1843 = vmatprep.subr.bf16.mxu0 %v1436
  %1844 = vmatpush1.bf16.msra.mxu0 %v1435
  %1845 = vmatprep.subr.bf16.mxu0 %v1440
  %1846 = vmatpush1.bf16.msra.mxu0 %v1439
  %1847 = vmatprep.subr.bf16.mxu0 %v1444
  %1848 = vmatpush1.bf16.msra.mxu0 %v1443
  %1849 = vmatprep.subr.bf16.mxu0 %v1448
  %1850 = vmatpush1.bf16.msra.mxu0 %v1447
  %1851 = vmatprep.subr.bf16.mxu0 %v1452
  %1852 = vmatpush1.bf16.msra.mxu0 %v1451
  %1853 = vmatprep.subr.bf16.mxu0 %v1456
  %1854 = vmatpush1.bf16.msra.mxu0 %v1455
  %1855 = vmatprep.subr.bf16.mxu0 %v1460
  %1856 = vmatpush1.bf16.msra.mxu0 %v1459
  %1857 = vmatprep.mubr.bf16.mxu0 %v691
  %1858 = vmatmul.mubr.bf16.gmra.mrb[0].mxu0 %v690
  %v1859 = vpop.f32.mrb[0].mxu0
  %v1860 = vadd.f32 %v1817, %v1859
  %v1861 = vpop.f32.mrb[0].mxu0
  %v1862 = vadd.f32 %v1819, %v1861
  %v1863 = vpop.f32.mrb[0].mxu0
  %v1864 = vadd.f32 %v1821, %v1863
  %v1865 = vpop.f32.mrb[0].mxu0
  %v1866 = vadd.f32 %v1823, %v1865
  %1867 = vdwg.mxu0
  %1868 = vmatprep.subr.bf16.mxu0 %v1464
  %1869 = vmatpush1.bf16.msra.mxu0 %v1463
  %1870 = vmatprep.subr.bf16.mxu0 %v1468
  %1871 = vmatpush1.bf16.msra.mxu0 %v1467
  %1872 = vmatprep.subr.bf16.mxu0 %v1472
  %1873 = vmatpush1.bf16.msra.mxu0 %v1471
  %1874 = vmatprep.subr.bf16.mxu0 %v1476
  %1875 = vmatpush1.bf16.msra.mxu0 %v1475
  %1876 = vmatprep.subr.bf16.mxu0 %v1480
  %1877 = vmatpush1.bf16.msra.mxu0 %v1479
  %1878 = vmatprep.subr.bf16.mxu0 %v1484
  %1879 = vmatpush1.bf16.msra.mxu0 %v1483
  %1880 = vmatprep.subr.bf16.mxu0 %v1488
  %1881 = vmatpush1.bf16.msra.mxu0 %v1487
  %1882 = vmatprep.subr.bf16.mxu0 %v1492
  %1883 = vmatpush1.bf16.msra.mxu0 %v1491
  %1884 = vmatprep.subr.bf16.mxu0 0
  %1885 = vmatpush1.bf16.msra.mxu0 0
  %1886 = vmatprep.subr.bf16.mxu0 0
  %1887 = vmatpush1.bf16.msra.mxu0 0
  %1888 = vmatprep.subr.bf16.mxu0 0
  %1889 = vmatpush1.bf16.msra.mxu0 0
  %1890 = vmatprep.subr.bf16.mxu0 0
  %1891 = vmatpush1.bf16.msra.mxu0 0
  %1892 = vmatprep.subr.bf16.mxu0 0
  %1893 = vmatpush1.bf16.msra.mxu0 0
  %1894 = vmatprep.subr.bf16.mxu0 0
  %1895 = vmatpush1.bf16.msra.mxu0 0
  %1896 = vmatprep.subr.bf16.mxu0 0
  %1897 = vmatpush1.bf16.msra.mxu0 0
  %1898 = vmatprep.subr.bf16.mxu0 0
  %1899 = vmatpush1.bf16.msra.mxu0 0
  %1900 = vmatprep.mubr.bf16.mxu0 0
  %1901 = vmatmul.mubr.bf16.gmra.mrb[0].mxu0 %v692
  %v1902 = vpop.f32.mrb[0].mxu0
  %v1903 = vadd.f32 %v1860, %v1902
  %v1904 = vpop.f32.mrb[0].mxu0
  %v1905 = vadd.f32 %v1862, %v1904
  %v1906 = vpop.f32.mrb[0].mxu0
  %v1907 = vadd.f32 %v1864, %v1906
  %v1908 = vpop.f32.mrb[0].mxu0
  %v1909 = vadd.f32 %v1866, %v1908
  %1910 = vdwg.mxu0
  %1911 = vst [vmem:[%s7] sm:$0xff] %v1774
  %1912 = vst [vmem:[%s7 + $0x8] sm:$0xff] %v1776
  %1913 = vst [vmem:[%s7 + $0x10] sm:$0xff] %v1903
  %1914 = vst [vmem:[%s7 + $0x18] sm:$0xff] %v1905
  %1915 = vst [vmem:[%s7 + $0x20] sm:$0xff] %v1778
  %1916 = vst [vmem:[%s7 + $0x28] sm:$0xff] %v1780
  %1917 = vst [vmem:[%s7 + $0x30] sm:$0xff] %v1907
  %1918 = vst [vmem:[%s7 + $0x38] sm:$0xff] %v1909
  // Predicated region
  $region30: #{net_helper_forward.11} parent=0 // pred_check
    _
  $region31: #{net_helper_forward.11} parent=0 // pred_check_branch
    %1920 = sbr.rel (0) target = $region33
  $region32: #{net_helper_forward.11} parent=0 // pred_region
    _
  $region33: #{net_helper_forward.11} parent=0 // pred_fallthru
    _
  // Predicated region
  $region34: #{net_helper_forward.11} parent=0 // pred_check
    _
  $region35: #{net_helper_forward.11} parent=0 // pred_check_branch
    %1922 = sbr.rel (0) target = $region37
  $region36: #{net_helper_forward.11} parent=0 // pred_region
    _
  $region37: #{net_helper_forward.11} parent=0 // pred_fallthru
    _

// kernel: net_helper_forward.8
$region0: #{net_helper_forward.8}
  #allocation0 [shape = 'u32[]', space=smem, size = 0x4, offset = 0x4, fixed_abs, tag = 'smem constant byte address 0x4 - core index']
  #allocation1 [shape = 'u32[144,128]{1,0:T(1,128)}', space=vmem, size = 0x12000, scoped, tag = 'internal scratch']
  #allocation2 [shape = 'f32[2,144]{1,0:T(2,128)}', space=vmem, size = 0x800, scoped, tag = 'scratch operand']
  %s0 = inlined_call_operand.vmem [shape: f32[2,8,432], index: 0, kind: input, shape index: {}]
  %s1 = inlined_call_operand.vmem [shape: bf16[144,432], index: 1, kind: input, shape index: {}]
  %s2 = inlined_call_operand.vmem [shape: f32[1,432], index: 2, kind: input, shape index: {}]
  %s3 = inlined_call_operand.vmem [shape: f32[2,144], index: 3, kind: input, shape index: {}]
  %s4 = inlined_call_operand.vmem [shape: bf16[2,8,144], index: 4, kind: output, shape index: {0}]
  %s5 = inlined_call_operand.hbm [shape: f32[2,144], index: 5, kind: output, shape index: {1}]
  %6 = xla_tuple %s4, %s5
  %s7 = sld [smem:[#allocation0]]
  $region42: #{net_helper_forward.8} parent=0
    _
  %s9 = ssub.s32 1, %s7
  %s10 = scalar_select 0, %s9, %s7
  $region1: #{net_helper_forward.8} parent=0
    #allocation3 [shape = 'u8[2048]{0}', space=vmem, size = 0x800, scoped, tag = 'output window, operand 1, single buffered']
    #allocation4 [shape = 's32[1]{0}', space=sflag, size = 0x4, scoped, tag = 'scoped memory for net_helper_forward.8']
    %11 = vsyncpa [#allocation4], 0
    // Predicated region
    $region2: #{net_helper_forward.8} parent=1 // pred_check
      _
    $region3: #{net_helper_forward.8} parent=1 // pred_check_branch
      %13 = sbr.rel (0) target = $region5
    $region4: #{net_helper_forward.8} parent=1 // pred_region
      _
    $region5: #{net_helper_forward.8} parent=1 // pred_fallthru
      _
    // Predicated region
    $region6: #{net_helper_forward.8} parent=1 // pred_check
      _
    $region7: #{net_helper_forward.8} parent=1 // pred_check_branch
      %15 = sbr.rel (0) target = $region9
    $region8: #{net_helper_forward.8} parent=1 // pred_region
      _
    $region9: #{net_helper_forward.8} parent=1 // pred_fallthru
      _
    // Predicated region
    $region10: #{net_helper_forward.8} parent=1 // pred_check
      _
    $region11: #{net_helper_forward.8} parent=1 // pred_check_branch
      %17 = sbr.rel (0) target = $region13
    $region12: #{net_helper_forward.8} parent=1 // pred_region
      _
    $region13: #{net_helper_forward.8} parent=1 // pred_fallthru
      _
    // Predicated region
    $region14: #{net_helper_forward.8} parent=1 // pred_check
      _
    $region15: #{net_helper_forward.8} parent=1 // pred_check_branch
      %19 = sbr.rel (0) target = $region17
    $region16: #{net_helper_forward.8} parent=1 // pred_region
      _
    $region17: #{net_helper_forward.8} parent=1 // pred_fallthru
      _
    %p21 = scmp.eq.s32.totalorder 0, 0
    // Predicated region
    $region18: #{net_helper_forward.8} parent=1 // pred_check
      %p22 = pneg %p21
    $region19: #{net_helper_forward.8} parent=1 // pred_check_branch
      %24 = sbr.rel (%p22) target = $region21
    $region20: #{net_helper_forward.8} parent=1 // pred_region
      %v25 = vld [vmem:[%s3] sm:$0xf]
      %vm26 = vcmask 1041408
      %vm27 = vcmask 125954
      %vm28 = vmor %vm27, %vm26
      %29 = vst.msk [vmem:[#allocation2] sm:$0xf] %vm28, %v25
    $region21: #{net_helper_forward.8} parent=1 // pred_fallthru
      _
    %v30 = vld [vmem:[#allocation2] sm:$0xf]
    %v31 = vld [vmem:[%s0] ss:$8 sm:$0xf]
    %s32 = scalar_lea.vmem %s0, 32
    %v33 = vld [vmem:[%s32] ss:$8 sm:$0xf]
    %v36 = vunpack.c.l.s4 1983009808
    %v37 = vunpack.c.0.s8 %v36
    %v38 = vlaneseq
    %v39 = vshrl.u32 %v38, 7
    %v40 = vsub.s32 %v37, %v39
    %v41 = vrot.slane %v30, %v40
    %v42 = vcombine.high %v41, %v41
    %v45 = vpack.c.bf16 %v41, %v41
    %v46 = vpack.c.bf16 %v42, %v42
    %v47 = vld [vmem:[%s1] sm:$0xff]
    %v48 = vld [vmem:[%s1 + $0x8] sm:$0xff]
    %v49 = vld [vmem:[%s1 + $0x10] sm:$0xff]
    %v50 = vld [vmem:[%s1 + $0x18] sm:$0xff]
    %v51 = vld [vmem:[%s1 + $0x20] sm:$0xff]
    %v52 = vld [vmem:[%s1 + $0x28] sm:$0xff]
    %v53 = vld [vmem:[%s1 + $0x30] sm:$0xff]
    %v54 = vld [vmem:[%s1 + $0x38] sm:$0xff]
    %v55 = vld [vmem:[%s1 + $0x40] sm:$0xff]
    %v56 = vld [vmem:[%s1 + $0x48] sm:$0xff]
    %v57 = vld [vmem:[%s1 + $0x50] sm:$0xff]
    %v58 = vld [vmem:[%s1 + $0x58] sm:$0xff]
    %v59 = vld [vmem:[%s1 + $0x60] sm:$0xff]
    %v60 = vld [vmem:[%s1 + $0x68] sm:$0xff]
    %v61 = vld [vmem:[%s1 + $0x70] sm:$0xff]
    %v62 = vld [vmem:[%s1 + $0x78] sm:$0xff]
    %v63 = vld [vmem:[%s1 + $0x80] sm:$0xff]
    %v64 = vld [vmem:[%s1 + $0x88] sm:$0xff]
    %v65 = vld [vmem:[%s1 + $0x90] sm:$0xff]
    %v66 = vld [vmem:[%s1 + $0x98] sm:$0xff]
    %v67 = vld [vmem:[%s1 + $0xa0] sm:$0xff]
    %v68 = vld [vmem:[%s1 + $0xa8] sm:$0xff]
    %v69 = vld [vmem:[%s1 + $0xb0] sm:$0xff]
    %v70 = vld [vmem:[%s1 + $0xb8] sm:$0xff]
    %v71 = vld [vmem:[%s1 + $0xc0] sm:$0xff]
    %v72 = vld [vmem:[%s1 + $0xc8] sm:$0xff]
    %v73 = vld [vmem:[%s1 + $0xd0] sm:$0xff]
    %v74 = vld [vmem:[%s1 + $0xd8] sm:$0xff]
    %v75 = vld [vmem:[%s1 + $0xe0] sm:$0xff]
    %v76 = vld [vmem:[%s1 + $0xe8] sm:$0xff]
    %v77 = vld [vmem:[%s1 + $0xf0] sm:$0xff]
    %v78 = vld [vmem:[%s1 + $0xf8] sm:$0xff]
    %v79 = vld [vmem:[%s1 + $0x100] sm:$0xff]
    %v80 = vld [vmem:[%s1 + $0x108] sm:$0xff]
    %v81 = vld [vmem:[%s1 + $0x110] sm:$0xff]
    %v82 = vld [vmem:[%s1 + $0x118] sm:$0xff]
    %v83 = vld [vmem:[%s2] sm:$0xf]
    %v85 = vlaneseq
    %v86 = vshrl.u32 %v85, 7
    %v87 = vsub.s32 0, %v86
    %v88 = vrot.slane %v83, %v87
    %v89 = vlaneseq
    %v90 = vshrl.u32 %v89, 7
    %v91 = vsub.s32 1, %v90
    %v92 = vrot.slane %v83, %v91
    %v93 = vlaneseq
    %v94 = vshrl.u32 %v93, 7
    %v95 = vsub.s32 2, %v94
    %v96 = vrot.slane %v83, %v95
    %v97 = vlaneseq
    %v98 = vshrl.u32 %v97, 7
    %v99 = vsub.s32 3, %v98
    %v100 = vrot.slane %v83, %v99
    %v141 = vunpack.c.l.b16 %v47
    %v142 = vunpack.c.h.b16 %v47
    %v143 = vunpack.c.l.b16 %v48
    %v144 = vunpack.c.h.b16 %v48
    %v145 = vunpack.c.l.b16 %v49
    %v146 = vunpack.c.h.b16 %v49
    %v147 = vunpack.c.l.b16 %v50
    %v148 = vunpack.c.h.b16 %v50
    %v149 = vunpack.c.l.b16 %v51
    %v150 = vunpack.c.h.b16 %v51
    %v151 = vunpack.c.l.b16 %v52
    %v152 = vunpack.c.h.b16 %v52
    %v153 = vunpack.c.l.b16 %v53
    %v154 = vunpack.c.h.b16 %v53
    %v155 = vunpack.c.l.b16 %v54
    %v156 = vunpack.c.h.b16 %v54
    %v157 = vunpack.c.l.b16 %v55
    %v158 = vunpack.c.h.b16 %v55
    %v159 = vunpack.c.l.b16 %v56
    %v160 = vunpack.c.h.b16 %v56
    %v161 = vunpack.c.l.b16 %v57
    %v162 = vunpack.c.h.b16 %v57
    %v163 = vunpack.c.l.b16 %v58
    %v164 = vunpack.c.h.b16 %v58
    %v165 = vunpack.c.l.b16 %v59
    %v166 = vunpack.c.h.b16 %v59
    %v167 = vunpack.c.l.b16 %v60
    %v168 = vunpack.c.h.b16 %v60
    %v169 = vunpack.c.l.b16 %v61
    %v170 = vunpack.c.h.b16 %v61
    %v171 = vunpack.c.l.b16 %v62
    %v172 = vunpack.c.h.b16 %v62
    %v173 = vunpack.c.l.b16 %v63
    %v174 = vunpack.c.h.b16 %v63
    %v175 = vunpack.c.l.b16 %v64
    %v176 = vunpack.c.h.b16 %v64
    %v177 = vunpack.c.l.b16 %v65
    %v178 = vunpack.c.h.b16 %v65
    %v179 = vunpack.c.l.b16 %v66
    %v180 = vunpack.c.h.b16 %v66
    %v181 = vunpack.c.l.b16 %v67
    %v182 = vunpack.c.h.b16 %v67
    %v183 = vunpack.c.l.b16 %v68
    %v184 = vunpack.c.h.b16 %v68
    %v185 = vunpack.c.l.b16 %v69
    %v186 = vunpack.c.h.b16 %v69
    %v187 = vunpack.c.l.b16 %v70
    %v188 = vunpack.c.h.b16 %v70
    %v189 = vunpack.c.l.b16 %v71
    %v190 = vunpack.c.h.b16 %v71
    %v191 = vunpack.c.l.b16 %v72
    %v192 = vunpack.c.h.b16 %v72
    %v193 = vunpack.c.l.b16 %v73
    %v194 = vunpack.c.h.b16 %v73
    %v195 = vunpack.c.l.b16 %v74
    %v196 = vunpack.c.h.b16 %v74
    %v197 = vunpack.c.l.b16 %v75
    %v198 = vunpack.c.h.b16 %v75
    %v199 = vunpack.c.l.b16 %v76
    %v200 = vunpack.c.h.b16 %v76
    %v201 = vunpack.c.l.b16 %v77
    %v202 = vunpack.c.h.b16 %v77
    %v203 = vunpack.c.l.b16 %v78
    %v204 = vunpack.c.h.b16 %v78
    %v205 = vunpack.c.l.b16 %v79
    %v206 = vunpack.c.h.b16 %v79
    %v207 = vunpack.c.l.b16 %v80
    %v208 = vunpack.c.h.b16 %v80
    %v209 = vunpack.c.l.b16 %v81
    %v210 = vunpack.c.h.b16 %v81
    %v211 = vunpack.c.l.b16 %v82
    %v212 = vunpack.c.h.b16 %v82
    %v213 = vpack.c.b16 %v145, %v141
    %v214 = vpack.c.b16 %v146, %v142
    %v215 = vpack.c.b16 %v147, %v143
    %v216 = vpack.c.b16 %v148, %v144
    %v217 = vpack.c.b16 %v153, %v149
    %v218 = vpack.c.b16 %v154, %v150
    %v219 = vpack.c.b16 %v155, %v151
    %v220 = vpack.c.b16 %v156, %v152
    %v221 = vpack.c.b16 %v161, %v157
    %v222 = vpack.c.b16 %v162, %v158
    %v223 = vpack.c.b16 %v163, %v159
    %v224 = vpack.c.b16 %v164, %v160
    %v225 = vpack.c.b16 %v169, %v165
    %v226 = vpack.c.b16 %v170, %v166
    %v227 = vpack.c.b16 %v171, %v167
    %v228 = vpack.c.b16 %v172, %v168
    %v229 = vpack.c.b16 %v177, %v173
    %v230 = vpack.c.b16 %v178, %v174
    %v231 = vpack.c.b16 %v179, %v175
    %v232 = vpack.c.b16 %v180, %v176
    %v233 = vpack.c.b16 %v185, %v181
    %v234 = vpack.c.b16 %v186, %v182
    %v235 = vpack.c.b16 %v187, %v183
    %v236 = vpack.c.b16 %v188, %v184
    %v237 = vpack.c.b16 %v193, %v189
    %v238 = vpack.c.b16 %v194, %v190
    %v239 = vpack.c.b16 %v195, %v191
    %v240 = vpack.c.b16 %v196, %v192
    %v241 = vpack.c.b16 %v201, %v197
    %v242 = vpack.c.b16 %v202, %v198
    %v243 = vpack.c.b16 %v203, %v199
    %v244 = vpack.c.b16 %v204, %v200
    %v245 = vpack.c.b16 %v209, %v205
    %v246 = vpack.c.b16 %v210, %v206
    %v247 = vpack.c.b16 %v211, %v207
    %v248 = vpack.c.b16 %v212, %v208
    %vm285 = vcmask 130048
    %v287 = vsel %vm285, %v46, 0
    %289 = vmatprep.subr.bf16.mxu0 %v214
    %290 = vmatpush1.bf16.msra.mxu0 %v213
    %291 = vmatprep.subr.bf16.mxu0 %v218
    %292 = vmatpush1.bf16.msra.mxu0 %v217
    %293 = vmatprep.subr.bf16.mxu0 %v222
    %294 = vmatpush1.bf16.msra.mxu0 %v221
    %295 = vmatprep.subr.bf16.mxu0 %v226
    %296 = vmatpush1.bf16.msra.mxu0 %v225
    %297 = vmatprep.subr.bf16.mxu0 %v230
    %298 = vmatpush1.bf16.msra.mxu0 %v229
    %299 = vmatprep.subr.bf16.mxu0 %v234
    %300 = vmatpush1.bf16.msra.mxu0 %v233
    %301 = vmatprep.subr.bf16.mxu0 %v238
    %302 = vmatpush1.bf16.msra.mxu0 %v237
    %303 = vmatprep.subr.bf16.mxu0 %v242
    %304 = vmatpush1.bf16.msra.mxu0 %v241
    %305 = vmatprep.subr.bf16.mxu0 %v246
    %306 = vmatpush1.bf16.msra.mxu0 %v245
    %307 = vmatprep.subr.bf16.mxu0 0
    %308 = vmatpush1.bf16.msra.mxu0 0
    %309 = vmatprep.subr.bf16.mxu0 0
    %310 = vmatpush1.bf16.msra.mxu0 0
    %311 = vmatprep.subr.bf16.mxu0 0
    %312 = vmatpush1.bf16.msra.mxu0 0
    %313 = vmatprep.subr.bf16.mxu0 0
    %314 = vmatpush1.bf16.msra.mxu0 0
    %315 = vmatprep.subr.bf16.mxu0 0
    %316 = vmatpush1.bf16.msra.mxu0 0
    %317 = vmatprep.subr.bf16.mxu0 0
    %318 = vmatpush1.bf16.msra.mxu0 0
    %319 = vmatprep.subr.bf16.mxu0 0
    %320 = vmatpush1.bf16.msra.mxu0 0
    %321 = vmatprep.mubr.bf16.mxu0 %v287
    %322 = vmatmul.mubr.bf16.gmra.mrb[0].mxu0 %v45
    %v323 = vpop.f32.mrb[0].mxu0
    %v324 = vadd.f32 %v88, %v323
    %v325 = vpop.f32.mrb[0].mxu0
    %v326 = vadd.f32 %v92, %v325
    %v327 = vpop.f32.mrb[0].mxu0
    %v328 = vpop.f32.mrb[0].mxu0
    %329 = vdwg.mxu0
    %330 = vmatprep.subr.bf16.mxu0 %v216
    %331 = vmatpush1.bf16.msra.mxu0 %v215
    %332 = vmatprep.subr.bf16.mxu0 %v220
    %333 = vmatpush1.bf16.msra.mxu0 %v219
    %334 = vmatprep.subr.bf16.mxu0 %v224
    %335 = vmatpush1.bf16.msra.mxu0 %v223
    %336 = vmatprep.subr.bf16.mxu0 %v228
    %337 = vmatpush1.bf16.msra.mxu0 %v227
    %338 = vmatprep.subr.bf16.mxu0 %v232
    %339 = vmatpush1.bf16.msra.mxu0 %v231
    %340 = vmatprep.subr.bf16.mxu0 %v236
    %341 = vmatpush1.bf16.msra.mxu0 %v235
    %342 = vmatprep.subr.bf16.mxu0 %v240
    %343 = vmatpush1.bf16.msra.mxu0 %v239
    %344 = vmatprep.subr.bf16.mxu0 %v244
    %345 = vmatpush1.bf16.msra.mxu0 %v243
    %346 = vmatprep.subr.bf16.mxu0 %v248
    %347 = vmatpush1.bf16.msra.mxu0 %v247
    %348 = vmatprep.subr.bf16.mxu0 0
    %349 = vmatpush1.bf16.msra.mxu0 0
    %350 = vmatprep.subr.bf16.mxu0 0
    %351 = vmatpush1.bf16.msra.mxu0 0
    %352 = vmatprep.subr.bf16.mxu0 0
    %353 = vmatpush1.bf16.msra.mxu0 0
    %354 = vmatprep.subr.bf16.mxu0 0
    %355 = vmatpush1.bf16.msra.mxu0 0
    %356 = vmatprep.subr.bf16.mxu0 0
    %357 = vmatpush1.bf16.msra.mxu0 0
    %358 = vmatprep.subr.bf16.mxu0 0
    %359 = vmatpush1.bf16.msra.mxu0 0
    %360 = vmatprep.subr.bf16.mxu0 0
    %361 = vmatpush1.bf16.msra.mxu0 0
    %362 = vmatprep.mubr.bf16.mxu0 %v287
    %363 = vmatmul.mubr.bf16.gmra.mrb[0].mxu0 %v45
    %v364 = vpop.f32.mrb[0].mxu0
    %v365 = vadd.f32 %v96, %v364
    %v366 = vpop.f32.mrb[0].mxu0
    %v367 = vadd.f32 %v100, %v366
    %v368 = vpop.f32.mrb[0].mxu0
    %v369 = vpop.f32.mrb[0].mxu0
    %370 = vdwg.mxu0
    %v373 = vcombine.low %v324, %v326
    %v375 = vunpack.c.l.s4 1966171168
    %v376 = vunpack.c.0.s8 %v375
    %v377 = vlaneseq
    %v378 = vshrl.u32 %v377, 7
    %v379 = vsub.s32 %v376, %v378
    %v380 = vrot.slane %v373, %v379
    %v381 = vcombine.high %v380, %v380
    %v383 = vunpack.c.l.s4 1966171168
    %v384 = vunpack.c.0.s8 %v383
    %v385 = vlaneseq
    %v386 = vshrl.u32 %v385, 7
    %v387 = vsub.s32 %v384, %v386
    %v388 = vrot.slane %v380, %v387
    %v390 = vunpack.c.l.s4 1966171168
    %v391 = vunpack.c.0.s8 %v390
    %v392 = vlaneseq
    %v393 = vshrl.u32 %v392, 7
    %v394 = vsub.s32 %v391, %v393
    %v395 = vrot.slane %v381, %v394
    %v398 = vadd.f32 %v31, %v388
    %v399 = vadd.f32 %v33, %v395
    %v400 = vxor.u32 %v398, 2147483648
    %v401 = vxor.u32 %v399, 2147483648
    %v402 = vmul.f32 %v400, 1.442695
    %v403 = vpow.pop %v402
    %v404 = vmul.f32 %v401, 1.442695
    %v405 = vpow.pop %v404
    %v406 = vadd.f32 %v403, 1.0
    %v407 = vadd.f32 %v405, 1.0
    %v408 = vrcp.pop %v406
    %v409 = vmul.f32 1.0, %v408
    %v410 = vrcp.pop %v407
    %v411 = vmul.f32 1.0, %v410
    %414 = vrot.lane.b32.xlu0 %v31, 112
    %v415 = vpop.permute.xlu0 %414
    %416 = vrot.lane.b32.xlu0 %v33, 112
    %v417 = vpop.permute.xlu0 %416
    %v418 = vrot.slane %v415, 1
    %v419 = vrot.slane %v417, 1
    %v420 = vrot.slane %v415, 2
    %v421 = vrot.slane %v417, 2
    %vm422 = vcmask 916480
    %v423 = vsel %vm422, %v418, %v420
    %v424 = vsel %vm422, %v419, %v421
    %v428 = vcombine.low %v326, %v365
    %v430 = vunpack.c.l.s4 1966171168
    %v431 = vunpack.c.0.s8 %v430
    %v432 = vlaneseq
    %v433 = vshrl.u32 %v432, 7
    %v434 = vsub.s32 %v431, %v433
    %v435 = vrot.slane %v428, %v434
    %v436 = vcombine.high %v435, %v435
    %v438 = vunpack.c.l.s4 1966171168
    %v439 = vunpack.c.0.s8 %v438
    %v440 = vlaneseq
    %v441 = vshrl.u32 %v440, 7
    %v442 = vsub.s32 %v439, %v441
    %v443 = vrot.slane %v435, %v442
    %v445 = vunpack.c.l.s4 1966171168
    %v446 = vunpack.c.0.s8 %v445
    %v447 = vlaneseq
    %v448 = vshrl.u32 %v447, 7
    %v449 = vsub.s32 %v446, %v448
    %v450 = vrot.slane %v436, %v449
    %451 = vrot.lane.b32.xlu0 %v443, 112
    %v452 = vpop.permute.xlu0 %451
    %453 = vrot.lane.b32.xlu0 %v450, 112
    %v454 = vpop.permute.xlu0 %453
    %v455 = vrot.slane %v452, 1
    %v456 = vrot.slane %v454, 1
    %v457 = vsel %vm422, %v452, %v455
    %v458 = vsel %vm422, %v454, %v456
    %v461 = vadd.f32 %v423, %v457
    %v462 = vadd.f32 %v424, %v458
    %v463 = vxor.u32 %v461, 2147483648
    %v464 = vxor.u32 %v462, 2147483648
    %v465 = vmul.f32 %v463, 1.442695
    %v466 = vpow.pop %v465
    %v467 = vmul.f32 %v464, 1.442695
    %v468 = vpow.pop %v467
    %v469 = vadd.f32 %v466, 1.0
    %v470 = vadd.f32 %v468, 1.0
    %v471 = vrcp.pop %v469
    %v472 = vmul.f32 1.0, %v471
    %v473 = vrcp.pop %v470
    %v474 = vmul.f32 1.0, %v473
    %v476 = vcombine.low %v365, %v367
    %v478 = vunpack.c.l.s4 1966171168
    %v479 = vunpack.c.0.s8 %v478
    %v480 = vlaneseq
    %v481 = vshrl.u32 %v480, 7
    %v482 = vsub.s32 %v479, %v481
    %v483 = vrot.slane %v476, %v482
    %v484 = vcombine.high %v483, %v483
    %v486 = vunpack.c.l.s4 1966171168
    %v487 = vunpack.c.0.s8 %v486
    %v488 = vlaneseq
    %v489 = vshrl.u32 %v488, 7
    %v490 = vsub.s32 %v487, %v489
    %v491 = vrot.slane %v483, %v490
    %v493 = vunpack.c.l.s4 1966171168
    %v494 = vunpack.c.0.s8 %v493
    %v495 = vlaneseq
    %v496 = vshrl.u32 %v495, 7
    %v497 = vsub.s32 %v494, %v496
    %v498 = vrot.slane %v484, %v497
    %499 = vrot.lane.b32.xlu0 %v491, 96
    %v500 = vpop.permute.xlu0 %499
    %501 = vrot.lane.b32.xlu0 %v498, 96
    %v502 = vpop.permute.xlu0 %501
    %v503 = vrot.slane %v500, 1
    %v504 = vrot.slane %v502, 1
    %vm505 = vcmask 785408
    %v506 = vsel %vm505, %v500, %v503
    %v507 = vsel %vm505, %v502, %v504
    %v510 = vmul.f32 %v409, %v506
    %v511 = vmul.f32 %v411, %v507
    %512 = vrot.lane.b32.xlu0 %v31, 96
    %v513 = vpop.permute.xlu0 %512
    %514 = vrot.lane.b32.xlu0 %v33, 96
    %v515 = vpop.permute.xlu0 %514
    %v516 = vrot.slane %v513, 2
    %v517 = vrot.slane %v515, 2
    %v518 = vrot.slane %v513, 3
    %v519 = vrot.slane %v515, 3
    %v520 = vsel %vm505, %v516, %v518
    %v521 = vsel %vm505, %v517, %v519
    %v524 = vadd.f32 %v520, %v510
    %v525 = vadd.f32 %v521, %v511
    %v526 = vtanh.pop %v524
    %v527 = vtanh.pop %v525
    %v528 = vsub.f32 1.0, %v472
    %v529 = vsub.f32 1.0, %v474
    %v530 = vmul.f32 %v528, %v526
    %v531 = vmul.f32 %v529, %v527
    %v533 = vunpack.c.l.s4 1966171168
    %v534 = vunpack.c.0.s8 %v533
    %v535 = vlaneseq
    %v536 = vshrl.u32 %v535, 7
    %v537 = vsub.s32 %v534, %v536
    %v538 = vrot.slane %v30, %v537
    %v539 = vcombine.high %v538, %v538
    %v542 = vmul.f32 %v472, %v538
    %v543 = vmul.f32 %v474, %v539
    %v544 = vadd.f32 %v530, %v542
    %v545 = vadd.f32 %v531, %v543
    %v548 = vcombine.low %v544, %v545
    %v550 = vunpack.c.l.s4 1935823168
    %v551 = vunpack.c.0.s8 %v550
    %v552 = vlaneseq
    %v553 = vshrl.u32 %v552, 7
    %v554 = vsub.s32 %v551, %v553
    %v555 = vrot.slane %v548, %v554
    %vm557 = vcmask 1041408
    %vm558 = vcmask 125954
    %vm559 = vmor %vm558, %vm557
    %560 = vst.msk [vmem:[#allocation2] sm:$0xf] %vm559, %v555
    %v561 = vlaneseq
    %v562 = vshrl.u32 %v561, 7
    %v563 = vsub.s32 0, %v562
    %v564 = vrot.slane %v544, %v563
    %v565 = vlaneseq
    %v566 = vshrl.u32 %v565, 7
    %v567 = vsub.s32 1, %v566
    %v568 = vrot.slane %v544, %v567
    %v569 = vlaneseq
    %v570 = vshrl.u32 %v569, 7
    %v571 = vsub.s32 0, %v570
    %v572 = vrot.slane %v545, %v571
    %v573 = vlaneseq
    %v574 = vshrl.u32 %v573, 7
    %v575 = vsub.s32 1, %v574
    %v576 = vrot.slane %v545, %v575
    %v581 = vpack.c.bf16 %v564, %v564
    %v582 = vpack.c.bf16 %v568, %v568
    %v583 = vpack.c.bf16 %v572, %v572
    %v584 = vpack.c.bf16 %v576, %v576
    %v589 = vunpack.c.l.b16 %v581
    %v590 = vunpack.c.l.b16 %v582
    %v591 = vunpack.c.l.b16 %v583
    %v592 = vunpack.c.l.b16 %v584
    %v593 = vpack.c.b16 %v590, %v589
    %v594 = vpack.c.b16 %v592, %v591
    %vm597 = vcmask 1040384
    %vm598 = vsmask.f32 256
    %vm599 = vmand %vm597, %vm598
    %vm600 = vcmask 126980
    %vm601 = vsmask.f32 4352
    %vm602 = vmand %vm600, %vm601
    %vm603 = vmor %vm602, %vm599
    %v604 = vld [vmem:[%s4] sm:$0x11]
    %v605 = vsel %vm603, %v593, %v604
    %606 = vst [vmem:[%s4] sm:$0x11] %v605
    %v607 = vld [vmem:[%s4 + $0x8] sm:$0x11]
    %v608 = vsel %vm603, %v594, %v607
    %609 = vst [vmem:[%s4 + $0x8] sm:$0x11] %v608
    %v610 = vld [vmem:[#allocation2] sm:$0xf]
    %s611 = scalar_lea.vmem %s0, 1
    %v612 = vld [vmem:[%s611] ss:$8 sm:$0xf]
    %s613 = scalar_lea.vmem %s0, 33
    %v614 = vld [vmem:[%s613] ss:$8 sm:$0xf]
    %v617 = vunpack.c.l.s4 1983009808
    %v618 = vunpack.c.0.s8 %v617
    %v619 = vlaneseq
    %v620 = vshrl.u32 %v619, 7
    %v621 = vsub.s32 %v618, %v620
    %v622 = vrot.slane %v610, %v621
    %v623 = vcombine.high %v622, %v622
    %v626 = vpack.c.bf16 %v622, %v622
    %v627 = vpack.c.bf16 %v623, %v623
    %v628 = vld [vmem:[%s1] sm:$0xff]
    %v629 = vld [vmem:[%s1 + $0x8] sm:$0xff]
    %v630 = vld [vmem:[%s1 + $0x10] sm:$0xff]
    %v631 = vld [vmem:[%s1 + $0x18] sm:$0xff]
    %v632 = vld [vmem:[%s1 + $0x20] sm:$0xff]
    %v633 = vld [vmem:[%s1 + $0x28] sm:$0xff]
    %v634 = vld [vmem:[%s1 + $0x30] sm:$0xff]
    %v635 = vld [vmem:[%s1 + $0x38] sm:$0xff]
    %v636 = vld [vmem:[%s1 + $0x40] sm:$0xff]
    %v637 = vld [vmem:[%s1 + $0x48] sm:$0xff]
    %v638 = vld [vmem:[%s1 + $0x50] sm:$0xff]
    %v639 = vld [vmem:[%s1 + $0x58] sm:$0xff]
    %v640 = vld [vmem:[%s1 + $0x60] sm:$0xff]
    %v641 = vld [vmem:[%s1 + $0x68] sm:$0xff]
    %v642 = vld [vmem:[%s1 + $0x70] sm:$0xff]
    %v643 = vld [vmem:[%s1 + $0x78] sm:$0xff]
    %v644 = vld [vmem:[%s1 + $0x80] sm:$0xff]
    %v645 = vld [vmem:[%s1 + $0x88] sm:$0xff]
    %v646 = vld [vmem:[%s1 + $0x90] sm:$0xff]
    %v647 = vld [vmem:[%s1 + $0x98] sm:$0xff]
    %v648 = vld [vmem:[%s1 + $0xa0] sm:$0xff]
    %v649 = vld [vmem:[%s1 + $0xa8] sm:$0xff]
    %v650 = vld [vmem:[%s1 + $0xb0] sm:$0xff]
    %v651 = vld [vmem:[%s1 + $0xb8] sm:$0xff]
    %v652 = vld [vmem:[%s1 + $0xc0] sm:$0xff]
    %v653 = vld [vmem:[%s1 + $0xc8] sm:$0xff]
    %v654 = vld [vmem:[%s1 + $0xd0] sm:$0xff]
    %v655 = vld [vmem:[%s1 + $0xd8] sm:$0xff]
    %v656 = vld [vmem:[%s1 + $0xe0] sm:$0xff]
    %v657 = vld [vmem:[%s1 + $0xe8] sm:$0xff]
    %v658 = vld [vmem:[%s1 + $0xf0] sm:$0xff]
    %v659 = vld [vmem:[%s1 + $0xf8] sm:$0xff]
    %v660 = vld [vmem:[%s1 + $0x100] sm:$0xff]
    %v661 = vld [vmem:[%s1 + $0x108] sm:$0xff]
    %v662 = vld [vmem:[%s1 + $0x110] sm:$0xff]
    %v663 = vld [vmem:[%s1 + $0x118] sm:$0xff]
    %v664 = vld [vmem:[%s2] sm:$0xf]
    %v666 = vlaneseq
    %v667 = vshrl.u32 %v666, 7
    %v668 = vsub.s32 0, %v667
    %v669 = vrot.slane %v664, %v668
    %v670 = vlaneseq
    %v671 = vshrl.u32 %v670, 7
    %v672 = vsub.s32 1, %v671
    %v673 = vrot.slane %v664, %v672
    %v674 = vlaneseq
    %v675 = vshrl.u32 %v674, 7
    %v676 = vsub.s32 2, %v675
    %v677 = vrot.slane %v664, %v676
    %v678 = vlaneseq
    %v679 = vshrl.u32 %v678, 7
    %v680 = vsub.s32 3, %v679
    %v681 = vrot.slane %v664, %v680
    %v722 = vunpack.c.l.b16 %v628
    %v723 = vunpack.c.h.b16 %v628
    %v724 = vunpack.c.l.b16 %v629
    %v725 = vunpack.c.h.b16 %v629
    %v726 = vunpack.c.l.b16 %v630
    %v727 = vunpack.c.h.b16 %v630
    %v728 = vunpack.c.l.b16 %v631
    %v729 = vunpack.c.h.b16 %v631
    %v730 = vunpack.c.l.b16 %v632
    %v731 = vunpack.c.h.b16 %v632
    %v732 = vunpack.c.l.b16 %v633
    %v733 = vunpack.c.h.b16 %v633
    %v734 = vunpack.c.l.b16 %v634
    %v735 = vunpack.c.h.b16 %v634
    %v736 = vunpack.c.l.b16 %v635
    %v737 = vunpack.c.h.b16 %v635
    %v738 = vunpack.c.l.b16 %v636
    %v739 = vunpack.c.h.b16 %v636
    %v740 = vunpack.c.l.b16 %v637
    %v741 = vunpack.c.h.b16 %v637
    %v742 = vunpack.c.l.b16 %v638
    %v743 = vunpack.c.h.b16 %v638
    %v744 = vunpack.c.l.b16 %v639
    %v745 = vunpack.c.h.b16 %v639
    %v746 = vunpack.c.l.b16 %v640
    %v747 = vunpack.c.h.b16 %v640
    %v748 = vunpack.c.l.b16 %v641
    %v749 = vunpack.c.h.b16 %v641
    %v750 = vunpack.c.l.b16 %v642
    %v751 = vunpack.c.h.b16 %v642
    %v752 = vunpack.c.l.b16 %v643
    %v753 = vunpack.c.h.b16 %v643
    %v754 = vunpack.c.l.b16 %v644
    %v755 = vunpack.c.h.b16 %v644
    %v756 = vunpack.c.l.b16 %v645
    %v757 = vunpack.c.h.b16 %v645
    %v758 = vunpack.c.l.b16 %v646
    %v759 = vunpack.c.h.b16 %v646
    %v760 = vunpack.c.l.b16 %v647
    %v761 = vunpack.c.h.b16 %v647
    %v762 = vunpack.c.l.b16 %v648
    %v763 = vunpack.c.h.b16 %v648
    %v764 = vunpack.c.l.b16 %v649
    %v765 = vunpack.c.h.b16 %v649
    %v766 = vunpack.c.l.b16 %v650
    %v767 = vunpack.c.h.b16 %v650
    %v768 = vunpack.c.l.b16 %v651
    %v769 = vunpack.c.h.b16 %v651
    %v770 = vunpack.c.l.b16 %v652
    %v771 = vunpack.c.h.b16 %v652
    %v772 = vunpack.c.l.b16 %v653
    %v773 = vunpack.c.h.b16 %v653
    %v774 = vunpack.c.l.b16 %v654
    %v775 = vunpack.c.h.b16 %v654
    %v776 = vunpack.c.l.b16 %v655
    %v777 = vunpack.c.h.b16 %v655
    %v778 = vunpack.c.l.b16 %v656
    %v779 = vunpack.c.h.b16 %v656
    %v780 = vunpack.c.l.b16 %v657
    %v781 = vunpack.c.h.b16 %v657
    %v782 = vunpack.c.l.b16 %v658
    %v783 = vunpack.c.h.b16 %v658
    %v784 = vunpack.c.l.b16 %v659
    %v785 = vunpack.c.h.b16 %v659
    %v786 = vunpack.c.l.b16 %v660
    %v787 = vunpack.c.h.b16 %v660
    %v788 = vunpack.c.l.b16 %v661
    %v789 = vunpack.c.h.b16 %v661
    %v790 = vunpack.c.l.b16 %v662
    %v791 = vunpack.c.h.b16 %v662
    %v792 = vunpack.c.l.b16 %v663
    %v793 = vunpack.c.h.b16 %v663
    %v794 = vpack.c.b16 %v726, %v722
    %v795 = vpack.c.b16 %v727, %v723
    %v796 = vpack.c.b16 %v728, %v724
    %v797 = vpack.c.b16 %v729, %v725
    %v798 = vpack.c.b16 %v734, %v730
    %v799 = vpack.c.b16 %v735, %v731
    %v800 = vpack.c.b16 %v736, %v732
    %v801 = vpack.c.b16 %v737, %v733
    %v802 = vpack.c.b16 %v742, %v738
    %v803 = vpack.c.b16 %v743, %v739
    %v804 = vpack.c.b16 %v744, %v740
    %v805 = vpack.c.b16 %v745, %v741
    %v806 = vpack.c.b16 %v750, %v746
    %v807 = vpack.c.b16 %v751, %v747
    %v808 = vpack.c.b16 %v752, %v748
    %v809 = vpack.c.b16 %v753, %v749
    %v810 = vpack.c.b16 %v758, %v754
    %v811 = vpack.c.b16 %v759, %v755
    %v812 = vpack.c.b16 %v760, %v756
    %v813 = vpack.c.b16 %v761, %v757
    %v814 = vpack.c.b16 %v766, %v762
    %v815 = vpack.c.b16 %v767, %v763
    %v816 = vpack.c.b16 %v768, %v764
    %v817 = vpack.c.b16 %v769, %v765
    %v818 = vpack.c.b16 %v774, %v770
    %v819 = vpack.c.b16 %v775, %v771
    %v820 = vpack.c.b16 %v776, %v772
    %v821 = vpack.c.b16 %v777, %v773
    %v822 = vpack.c.b16 %v782, %v778
    %v823 = vpack.c.b16 %v783, %v779
    %v824 = vpack.c.b16 %v784, %v780
    %v825 = vpack.c.b16 %v785, %v781
    %v826 = vpack.c.b16 %v790, %v786
    %v827 = vpack.c.b16 %v791, %v787
    %v828 = vpack.c.b16 %v792, %v788
    %v829 = vpack.c.b16 %v793, %v789
    %v867 = vsel %vm285, %v627, 0
    %869 = vmatprep.subr.bf16.mxu0 %v795
    %870 = vmatpush1.bf16.msra.mxu0 %v794
    %871 = vmatprep.subr.bf16.mxu0 %v799
    %872 = vmatpush1.bf16.msra.mxu0 %v798
    %873 = vmatprep.subr.bf16.mxu0 %v803
    %874 = vmatpush1.bf16.msra.mxu0 %v802
    %875 = vmatprep.subr.bf16.mxu0 %v807
    %876 = vmatpush1.bf16.msra.mxu0 %v806
    %877 = vmatprep.subr.bf16.mxu0 %v811
    %878 = vmatpush1.bf16.msra.mxu0 %v810
    %879 = vmatprep.subr.bf16.mxu0 %v815
    %880 = vmatpush1.bf16.msra.mxu0 %v814
    %881 = vmatprep.subr.bf16.mxu0 %v819
    %882 = vmatpush1.bf16.msra.mxu0 %v818
    %883 = vmatprep.subr.bf16.mxu0 %v823
    %884 = vmatpush1.bf16.msra.mxu0 %v822
    %885 = vmatprep.subr.bf16.mxu0 %v827
    %886 = vmatpush1.bf16.msra.mxu0 %v826
    %887 = vmatprep.subr.bf16.mxu0 0
    %888 = vmatpush1.bf16.msra.mxu0 0
    %889 = vmatprep.subr.bf16.mxu0 0
    %890 = vmatpush1.bf16.msra.mxu0 0
    %891 = vmatprep.subr.bf16.mxu0 0
    %892 = vmatpush1.bf16.msra.mxu0 0
    %893 = vmatprep.subr.bf16.mxu0 0
    %894 = vmatpush1.bf16.msra.mxu0 0
    %895 = vmatprep.subr.bf16.mxu0 0
    %896 = vmatpush1.bf16.msra.mxu0 0
    %897 = vmatprep.subr.bf16.mxu0 0
    %898 = vmatpush1.bf16.msra.mxu0 0
    %899 = vmatprep.subr.bf16.mxu0 0
    %900 = vmatpush1.bf16.msra.mxu0 0
    %901 = vmatprep.mubr.bf16.mxu0 %v867
    %902 = vmatmul.mubr.bf16.gmra.mrb[0].mxu0 %v626
    %v903 = vpop.f32.mrb[0].mxu0
    %v904 = vadd.f32 %v669, %v903
    %v905 = vpop.f32.mrb[0].mxu0
    %v906 = vadd.f32 %v673, %v905
    %v907 = vpop.f32.mrb[0].mxu0
    %v908 = vpop.f32.mrb[0].mxu0
    %909 = vdwg.mxu0
    %910 = vmatprep.subr.bf16.mxu0 %v797
    %911 = vmatpush1.bf16.msra.mxu0 %v796
    %912 = vmatprep.subr.bf16.mxu0 %v801
    %913 = vmatpush1.bf16.msra.mxu0 %v800
    %914 = vmatprep.subr.bf16.mxu0 %v805
    %915 = vmatpush1.bf16.msra.mxu0 %v804
    %916 = vmatprep.subr.bf16.mxu0 %v809
    %917 = vmatpush1.bf16.msra.mxu0 %v808
    %918 = vmatprep.subr.bf16.mxu0 %v813
    %919 = vmatpush1.bf16.msra.mxu0 %v812
    %920 = vmatprep.subr.bf16.mxu0 %v817
    %921 = vmatpush1.bf16.msra.mxu0 %v816
    %922 = vmatprep.subr.bf16.mxu0 %v821
    %923 = vmatpush1.bf16.msra.mxu0 %v820
    %924 = vmatprep.subr.bf16.mxu0 %v825
    %925 = vmatpush1.bf16.msra.mxu0 %v824
    %926 = vmatprep.subr.bf16.mxu0 %v829
    %927 = vmatpush1.bf16.msra.mxu0 %v828
    %928 = vmatprep.subr.bf16.mxu0 0
    %929 = vmatpush1.bf16.msra.mxu0 0
    %930 = vmatprep.subr.bf16.mxu0 0
    %931 = vmatpush1.bf16.msra.mxu0 0
    %932 = vmatprep.subr.bf16.mxu0 0
    %933 = vmatpush1.bf16.msra.mxu0 0
    %934 = vmatprep.subr.bf16.mxu0 0
    %935 = vmatpush1.bf16.msra.mxu0 0
    %936 = vmatprep.subr.bf16.mxu0 0
    %937 = vmatpush1.bf16.msra.mxu0 0
    %938 = vmatprep.subr.bf16.mxu0 0
    %939 = vmatpush1.bf16.msra.mxu0 0
    %940 = vmatprep.subr.bf16.mxu0 0
    %941 = vmatpush1.bf16.msra.mxu0 0
    %942 = vmatprep.mubr.bf16.mxu0 %v867
    %943 = vmatmul.mubr.bf16.gmra.mrb[0].mxu0 %v626
    %v944 = vpop.f32.mrb[0].mxu0
    %v945 = vadd.f32 %v677, %v944
    %v946 = vpop.f32.mrb[0].mxu0
    %v947 = vadd.f32 %v681, %v946
    %v948 = vpop.f32.mrb[0].mxu0
    %v949 = vpop.f32.mrb[0].mxu0
    %950 = vdwg.mxu0
    %v953 = vcombine.low %v904, %v906
    %v955 = vunpack.c.l.s4 1966171168
    %v956 = vunpack.c.0.s8 %v955
    %v957 = vlaneseq
    %v958 = vshrl.u32 %v957, 7
    %v959 = vsub.s32 %v956, %v958
    %v960 = vrot.slane %v953, %v959
    %v961 = vcombine.high %v960, %v960
    %v963 = vunpack.c.l.s4 1966171168
    %v964 = vunpack.c.0.s8 %v963
    %v965 = vlaneseq
    %v966 = vshrl.u32 %v965, 7
    %v967 = vsub.s32 %v964, %v966
    %v968 = vrot.slane %v960, %v967
    %v970 = vunpack.c.l.s4 1966171168
    %v971 = vunpack.c.0.s8 %v970
    %v972 = vlaneseq
    %v973 = vshrl.u32 %v972, 7
    %v974 = vsub.s32 %v971, %v973
    %v975 = vrot.slane %v961, %v974
    %v978 = vadd.f32 %v612, %v968
    %v979 = vadd.f32 %v614, %v975
    %v980 = vxor.u32 %v978, 2147483648
    %v981 = vxor.u32 %v979, 2147483648
    %v982 = vmul.f32 %v980, 1.442695
    %v983 = vpow.pop %v982
    %v984 = vmul.f32 %v981, 1.442695
    %v985 = vpow.pop %v984
    %v986 = vadd.f32 %v983, 1.0
    %v987 = vadd.f32 %v985, 1.0
    %v988 = vrcp.pop %v986
    %v989 = vmul.f32 1.0, %v988
    %v990 = vrcp.pop %v987
    %v991 = vmul.f32 1.0, %v990
    %994 = vrot.lane.b32.xlu0 %v612, 112
    %v995 = vpop.permute.xlu0 %994
    %996 = vrot.lane.b32.xlu0 %v614, 112
    %v997 = vpop.permute.xlu0 %996
    %v998 = vrot.slane %v995, 1
    %v999 = vrot.slane %v997, 1
    %v1000 = vrot.slane %v995, 2
    %v1001 = vrot.slane %v997, 2
    %v1002 = vsel %vm422, %v998, %v1000
    %v1003 = vsel %vm422, %v999, %v1001
    %v1007 = vcombine.low %v906, %v945
    %v1009 = vunpack.c.l.s4 1966171168
    %v1010 = vunpack.c.0.s8 %v1009
    %v1011 = vlaneseq
    %v1012 = vshrl.u32 %v1011, 7
    %v1013 = vsub.s32 %v1010, %v1012
    %v1014 = vrot.slane %v1007, %v1013
    %v1015 = vcombine.high %v1014, %v1014
    %v1017 = vunpack.c.l.s4 1966171168
    %v1018 = vunpack.c.0.s8 %v1017
    %v1019 = vlaneseq
    %v1020 = vshrl.u32 %v1019, 7
    %v1021 = vsub.s32 %v1018, %v1020
    %v1022 = vrot.slane %v1014, %v1021
    %v1024 = vunpack.c.l.s4 1966171168
    %v1025 = vunpack.c.0.s8 %v1024
    %v1026 = vlaneseq
    %v1027 = vshrl.u32 %v1026, 7
    %v1028 = vsub.s32 %v1025, %v1027
    %v1029 = vrot.slane %v1015, %v1028
    %1030 = vrot.lane.b32.xlu0 %v1022, 112
    %v1031 = vpop.permute.xlu0 %1030
    %1032 = vrot.lane.b32.xlu0 %v1029, 112
    %v1033 = vpop.permute.xlu0 %1032
    %v1034 = vrot.slane %v1031, 1
    %v1035 = vrot.slane %v1033, 1
    %v1036 = vsel %vm422, %v1031, %v1034
    %v1037 = vsel %vm422, %v1033, %v1035
    %v1040 = vadd.f32 %v1002, %v1036
    %v1041 = vadd.f32 %v1003, %v1037
    %v1042 = vxor.u32 %v1040, 2147483648
    %v1043 = vxor.u32 %v1041, 2147483648
    %v1044 = vmul.f32 %v1042, 1.442695
    %v1045 = vpow.pop %v1044
    %v1046 = vmul.f32 %v1043, 1.442695
    %v1047 = vpow.pop %v1046
    %v1048 = vadd.f32 %v1045, 1.0
    %v1049 = vadd.f32 %v1047, 1.0
    %v1050 = vrcp.pop %v1048
    %v1051 = vmul.f32 1.0, %v1050
    %v1052 = vrcp.pop %v1049
    %v1053 = vmul.f32 1.0, %v1052
    %v1055 = vcombine.low %v945, %v947
    %v1057 = vunpack.c.l.s4 1966171168
    %v1058 = vunpack.c.0.s8 %v1057
    %v1059 = vlaneseq
    %v1060 = vshrl.u32 %v1059, 7
    %v1061 = vsub.s32 %v1058, %v1060
    %v1062 = vrot.slane %v1055, %v1061
    %v1063 = vcombine.high %v1062, %v1062
    %v1065 = vunpack.c.l.s4 1966171168
    %v1066 = vunpack.c.0.s8 %v1065
    %v1067 = vlaneseq
    %v1068 = vshrl.u32 %v1067, 7
    %v1069 = vsub.s32 %v1066, %v1068
    %v1070 = vrot.slane %v1062, %v1069
    %v1072 = vunpack.c.l.s4 1966171168
    %v1073 = vunpack.c.0.s8 %v1072
    %v1074 = vlaneseq
    %v1075 = vshrl.u32 %v1074, 7
    %v1076 = vsub.s32 %v1073, %v1075
    %v1077 = vrot.slane %v1063, %v1076
    %1078 = vrot.lane.b32.xlu0 %v1070, 96
    %v1079 = vpop.permute.xlu0 %1078
    %1080 = vrot.lane.b32.xlu0 %v1077, 96
    %v1081 = vpop.permute.xlu0 %1080
    %v1082 = vrot.slane %v1079, 1
    %v1083 = vrot.slane %v1081, 1
    %v1084 = vsel %vm505, %v1079, %v1082
    %v1085 = vsel %vm505, %v1081, %v1083
    %v1088 = vmul.f32 %v989, %v1084
    %v1089 = vmul.f32 %v991, %v1085
    %1090 = vrot.lane.b32.xlu0 %v612, 96
    %v1091 = vpop.permute.xlu0 %1090
    %1092 = vrot.lane.b32.xlu0 %v614, 96
    %v1093 = vpop.permute.xlu0 %1092
    %v1094 = vrot.slane %v1091, 2
    %v1095 = vrot.slane %v1093, 2
    %v1096 = vrot.slane %v1091, 3
    %v1097 = vrot.slane %v1093, 3
    %v1098 = vsel %vm505, %v1094, %v1096
    %v1099 = vsel %vm505, %v1095, %v1097
    %v1102 = vadd.f32 %v1098, %v1088
    %v1103 = vadd.f32 %v1099, %v1089
    %v1104 = vtanh.pop %v1102
    %v1105 = vtanh.pop %v1103
    %v1106 = vsub.f32 1.0, %v1051
    %v1107 = vsub.f32 1.0, %v1053
    %v1108 = vmul.f32 %v1106, %v1104
    %v1109 = vmul.f32 %v1107, %v1105
    %v1111 = vunpack.c.l.s4 1966171168
    %v1112 = vunpack.c.0.s8 %v1111
    %v1113 = vlaneseq
    %v1114 = vshrl.u32 %v1113, 7
    %v1115 = vsub.s32 %v1112, %v1114
    %v1116 = vrot.slane %v610, %v1115
    %v1117 = vcombine.high %v1116, %v1116
    %v1120 = vmul.f32 %v1051, %v1116
    %v1121 = vmul.f32 %v1053, %v1117
    %v1122 = vadd.f32 %v1108, %v1120
    %v1123 = vadd.f32 %v1109, %v1121
    %v1126 = vcombine.low %v1122, %v1123
    %v1128 = vunpack.c.l.s4 1935823168
    %v1129 = vunpack.c.0.s8 %v1128
    %v1130 = vlaneseq
    %v1131 = vshrl.u32 %v1130, 7
    %v1132 = vsub.s32 %v1129, %v1131
    %v1133 = vrot.slane %v1126, %v1132
    %1135 = vst.msk [vmem:[#allocation2] sm:$0xf] %vm559, %v1133
    %v1136 = vlaneseq
    %v1137 = vshrl.u32 %v1136, 7
    %v1138 = vsub.s32 0, %v1137
    %v1139 = vrot.slane %v1122, %v1138
    %v1140 = vlaneseq
    %v1141 = vshrl.u32 %v1140, 7
    %v1142 = vsub.s32 1, %v1141
    %v1143 = vrot.slane %v1122, %v1142
    %v1144 = vlaneseq
    %v1145 = vshrl.u32 %v1144, 7
    %v1146 = vsub.s32 0, %v1145
    %v1147 = vrot.slane %v1123, %v1146
    %v1148 = vlaneseq
    %v1149 = vshrl.u32 %v1148, 7
    %v1150 = vsub.s32 1, %v1149
    %v1151 = vrot.slane %v1123, %v1150
    %v1156 = vpack.c.bf16 %v1139, %v1139
    %v1157 = vpack.c.bf16 %v1143, %v1143
    %v1158 = vpack.c.bf16 %v1147, %v1147
    %v1159 = vpack.c.bf16 %v1151, %v1151
    %v1164 = vunpack.c.l.b16 %v1156
    %v1165 = vunpack.c.l.b16 %v1157
    %v1166 = vunpack.c.l.b16 %v1158
    %v1167 = vunpack.c.l.b16 %v1159
    %v1168 = vpack.c.b16 %v1165, %v1164
    %v1169 = vpack.c.b16 %v1167, %v1166
    %v1171 = vshll.u32 %v1168, 16
    %v1174 = vshll.u32 %v1169, 16
    %vm1178 = vsmask.f32 7938
    %vm1179 = vmand %vm597, %vm1178
    %vm1180 = vsmask.f32 7954
    %vm1181 = vmand %vm600, %vm1180
    %vm1182 = vmor %vm1181, %vm1179
    %v1183 = vld [vmem:[%s4] sm:$0x11]
    %v1184 = vsel %vm1182, %v1171, %v1183
    %1185 = vst [vmem:[%s4] sm:$0x11] %v1184
    %v1186 = vld [vmem:[%s4 + $0x8] sm:$0x11]
    %v1187 = vsel %vm1182, %v1174, %v1186
    %1188 = vst [vmem:[%s4 + $0x8] sm:$0x11] %v1187
    %v1189 = vld [vmem:[#allocation2] sm:$0xf]
    %s1190 = scalar_lea.vmem %s0, 2
    %v1191 = vld [vmem:[%s1190] ss:$8 sm:$0xf]
    %s1192 = scalar_lea.vmem %s0, 34
    %v1193 = vld [vmem:[%s1192] ss:$8 sm:$0xf]
    %v1196 = vunpack.c.l.s4 1983009808
    %v1197 = vunpack.c.0.s8 %v1196
    %v1198 = vlaneseq
    %v1199 = vshrl.u32 %v1198, 7
    %v1200 = vsub.s32 %v1197, %v1199
    %v1201 = vrot.slane %v1189, %v1200
    %v1202 = vcombine.high %v1201, %v1201
    %v1205 = vpack.c.bf16 %v1201, %v1201
    %v1206 = vpack.c.bf16 %v1202, %v1202
    %v1207 = vld [vmem:[%s1] sm:$0xff]
    %v1208 = vld [vmem:[%s1 + $0x8] sm:$0xff]
    %v1209 = vld [vmem:[%s1 + $0x10] sm:$0xff]
    %v1210 = vld [vmem:[%s1 + $0x18] sm:$0xff]
    %v1211 = vld [vmem:[%s1 + $0x20] sm:$0xff]
    %v1212 = vld [vmem:[%s1 + $0x28] sm:$0xff]
    %v1213 = vld [vmem:[%s1 + $0x30] sm:$0xff]
    %v1214 = vld [vmem:[%s1 + $0x38] sm:$0xff]
    %v1215 = vld [vmem:[%s1 + $0x40] sm:$0xff]
    %v1216 = vld [vmem:[%s1 + $0x48] sm:$0xff]
    %v1217 = vld [vmem:[%s1 + $0x50] sm:$0xff]
    %v1218 = vld [vmem:[%s1 + $0x58] sm:$0xff]
    %v1219 = vld [vmem:[%s1 + $0x60] sm:$0xff]
    %v1220 = vld [vmem:[%s1 + $0x68] sm:$0xff]
    %v1221 = vld [vmem:[%s1 + $0x70] sm:$0xff]
    %v1222 = vld [vmem:[%s1 + $0x78] sm:$0xff]
    %v1223 = vld [vmem:[%s1 + $0x80] sm:$0xff]
    %v1224 = vld [vmem:[%s1 + $0x88] sm:$0xff]
    %v1225 = vld [vmem:[%s1 + $0x90] sm:$0xff]
    %v1226 = vld [vmem:[%s1 + $0x98] sm:$0xff]
    %v1227 = vld [vmem:[%s1 + $0xa0] sm:$0xff]
    %v1228 = vld [vmem:[%s1 + $0xa8] sm:$0xff]
    %v1229 = vld [vmem:[%s1 + $0xb0] sm:$0xff]
    %v1230 = vld [vmem:[%s1 + $0xb8] sm:$0xff]
    %v1231 = vld [vmem:[%s1 + $0xc0] sm:$0xff]
    %v1232 = vld [vmem:[%s1 + $0xc8] sm:$0xff]
    %v1233 = vld [vmem:[%s1 + $0xd0] sm:$0xff]
    %v1234 = vld [vmem:[%s1 + $0xd8] sm:$0xff]
    %v1235 = vld [vmem:[%s1 + $0xe0] sm:$0xff]
    %v1236 = vld [vmem:[%s1 + $0xe8] sm:$0xff]
    %v1237 = vld [vmem:[%s1 + $0xf0] sm:$0xff]
    %v1238 = vld [vmem:[%s1 + $0xf8] sm:$0xff]
    %v1239 = vld [vmem:[%s1 + $0x100] sm:$0xff]
    %v1240 = vld [vmem:[%s1 + $0x108] sm:$0xff]
    %v1241 = vld [vmem:[%s1 + $0x110] sm:$0xff]
    %v1242 = vld [vmem:[%s1 + $0x118] sm:$0xff]
    %v1243 = vld [vmem:[%s2] sm:$0xf]
    %v1245 = vlaneseq
    %v1246 = vshrl.u32 %v1245, 7
    %v1247 = vsub.s32 0, %v1246
    %v1248 = vrot.slane %v1243, %v1247
    %v1249 = vlaneseq
    %v1250 = vshrl.u32 %v1249, 7
    %v1251 = vsub.s32 1, %v1250
    %v1252 = vrot.slane %v1243, %v1251
    %v1253 = vlaneseq
    %v1254 = vshrl.u32 %v1253, 7
    %v1255 = vsub.s32 2, %v1254
    %v1256 = vrot.slane %v1243, %v1255
    %v1257 = vlaneseq
    %v1258 = vshrl.u32 %v1257, 7
    %v1259 = vsub.s32 3, %v1258
    %v1260 = vrot.slane %v1243, %v1259
    %v1301 = vunpack.c.l.b16 %v1207
    %v1302 = vunpack.c.h.b16 %v1207
    %v1303 = vunpack.c.l.b16 %v1208
    %v1304 = vunpack.c.h.b16 %v1208
    %v1305 = vunpack.c.l.b16 %v1209
    %v1306 = vunpack.c.h.b16 %v1209
    %v1307 = vunpack.c.l.b16 %v1210
    %v1308 = vunpack.c.h.b16 %v1210
    %v1309 = vunpack.c.l.b16 %v1211
    %v1310 = vunpack.c.h.b16 %v1211
    %v1311 = vunpack.c.l.b16 %v1212
    %v1312 = vunpack.c.h.b16 %v1212
    %v1313 = vunpack.c.l.b16 %v1213
    %v1314 = vunpack.c.h.b16 %v1213
    %v1315 = vunpack.c.l.b16 %v1214
    %v1316 = vunpack.c.h.b16 %v1214
    %v1317 = vunpack.c.l.b16 %v1215
    %v1318 = vunpack.c.h.b16 %v1215
    %v1319 = vunpack.c.l.b16 %v1216
    %v1320 = vunpack.c.h.b16 %v1216
    %v1321 = vunpack.c.l.b16 %v1217
    %v1322 = vunpack.c.h.b16 %v1217
    %v1323 = vunpack.c.l.b16 %v1218
    %v1324 = vunpack.c.h.b16 %v1218
    %v1325 = vunpack.c.l.b16 %v1219
    %v1326 = vunpack.c.h.b16 %v1219
    %v1327 = vunpack.c.l.b16 %v1220
    %v1328 = vunpack.c.h.b16 %v1220
    %v1329 = vunpack.c.l.b16 %v1221
    %v1330 = vunpack.c.h.b16 %v1221
    %v1331 = vunpack.c.l.b16 %v1222
    %v1332 = vunpack.c.h.b16 %v1222
    %v1333 = vunpack.c.l.b16 %v1223
    %v1334 = vunpack.c.h.b16 %v1223
    %v1335 = vunpack.c.l.b16 %v1224
    %v1336 = vunpack.c.h.b16 %v1224
    %v1337 = vunpack.c.l.b16 %v1225
    %v1338 = vunpack.c.h.b16 %v1225
    %v1339 = vunpack.c.l.b16 %v1226
    %v1340 = vunpack.c.h.b16 %v1226
    %v1341 = vunpack.c.l.b16 %v1227
    %v1342 = vunpack.c.h.b16 %v1227
    %v1343 = vunpack.c.l.b16 %v1228
    %v1344 = vunpack.c.h.b16 %v1228
    %v1345 = vunpack.c.l.b16 %v1229
    %v1346 = vunpack.c.h.b16 %v1229
    %v1347 = vunpack.c.l.b16 %v1230
    %v1348 = vunpack.c.h.b16 %v1230
    %v1349 = vunpack.c.l.b16 %v1231
    %v1350 = vunpack.c.h.b16 %v1231
    %v1351 = vunpack.c.l.b16 %v1232
    %v1352 = vunpack.c.h.b16 %v1232
    %v1353 = vunpack.c.l.b16 %v1233
    %v1354 = vunpack.c.h.b16 %v1233
    %v1355 = vunpack.c.l.b16 %v1234
    %v1356 = vunpack.c.h.b16 %v1234
    %v1357 = vunpack.c.l.b16 %v1235
    %v1358 = vunpack.c.h.b16 %v1235
    %v1359 = vunpack.c.l.b16 %v1236
    %v1360 = vunpack.c.h.b16 %v1236
    %v1361 = vunpack.c.l.b16 %v1237
    %v1362 = vunpack.c.h.b16 %v1237
    %v1363 = vunpack.c.l.b16 %v1238
    %v1364 = vunpack.c.h.b16 %v1238
    %v1365 = vunpack.c.l.b16 %v1239
    %v1366 = vunpack.c.h.b16 %v1239
    %v1367 = vunpack.c.l.b16 %v1240
    %v1368 = vunpack.c.h.b16 %v1240
    %v1369 = vunpack.c.l.b16 %v1241
    %v1370 = vunpack.c.h.b16 %v1241
    %v1371 = vunpack.c.l.b16 %v1242
    %v1372 = vunpack.c.h.b16 %v1242
    %v1373 = vpack.c.b16 %v1305, %v1301
    %v1374 = vpack.c.b16 %v1306, %v1302
    %v1375 = vpack.c.b16 %v1307, %v1303
    %v1376 = vpack.c.b16 %v1308, %v1304
    %v1377 = vpack.c.b16 %v1313, %v1309
    %v1378 = vpack.c.b16 %v1314, %v1310
    %v1379 = vpack.c.b16 %v1315, %v1311
    %v1380 = vpack.c.b16 %v1316, %v1312
    %v1381 = vpack.c.b16 %v1321, %v1317
    %v1382 = vpack.c.b16 %v1322, %v1318
    %v1383 = vpack.c.b16 %v1323, %v1319
    %v1384 = vpack.c.b16 %v1324, %v1320
    %v1385 = vpack.c.b16 %v1329, %v1325
    %v1386 = vpack.c.b16 %v1330, %v1326
    %v1387 = vpack.c.b16 %v1331, %v1327
    %v1388 = vpack.c.b16 %v1332, %v1328
    %v1389 = vpack.c.b16 %v1337, %v1333
    %v1390 = vpack.c.b16 %v1338, %v1334
    %v1391 = vpack.c.b16 %v1339, %v1335
    %v1392 = vpack.c.b16 %v1340, %v1336
    %v1393 = vpack.c.b16 %v1345, %v1341
    %v1394 = vpack.c.b16 %v1346, %v1342
    %v1395 = vpack.c.b16 %v1347, %v1343
    %v1396 = vpack.c.b16 %v1348, %v1344
    %v1397 = vpack.c.b16 %v1353, %v1349
    %v1398 = vpack.c.b16 %v1354, %v1350
    %v1399 = vpack.c.b16 %v1355, %v1351
    %v1400 = vpack.c.b16 %v1356, %v1352
    %v1401 = vpack.c.b16 %v1361, %v1357
    %v1402 = vpack.c.b16 %v1362, %v1358
    %v1403 = vpack.c.b16 %v1363, %v1359
    %v1404 = vpack.c.b16 %v1364, %v1360
    %v1405 = vpack.c.b16 %v1369, %v1365
    %v1406 = vpack.c.b16 %v1370, %v1366
    %v1407 = vpack.c.b16 %v1371, %v1367
    %v1408 = vpack.c.b16 %v1372, %v1368
    %v1446 = vsel %vm285, %v1206, 0
    %1448 = vmatprep.subr.bf16.mxu0 %v1374
    %1449 = vmatpush1.bf16.msra.mxu0 %v1373
    %1450 = vmatprep.subr.bf16.mxu0 %v1378
    %1451 = vmatpush1.bf16.msra.mxu0 %v1377
    %1452 = vmatprep.subr.bf16.mxu0 %v1382
    %1453 = vmatpush1.bf16.msra.mxu0 %v1381
    %1454 = vmatprep.subr.bf16.mxu0 %v1386
    %1455 = vmatpush1.bf16.msra.mxu0 %v1385
    %1456 = vmatprep.subr.bf16.mxu0 %v1390
    %1457 = vmatpush1.bf16.msra.mxu0 %v1389
    %1458 = vmatprep.subr.bf16.mxu0 %v1394
    %1459 = vmatpush1.bf16.msra.mxu0 %v1393
    %1460 = vmatprep.subr.bf16.mxu0 %v1398
    %1461 = vmatpush1.bf16.msra.mxu0 %v1397
    %1462 = vmatprep.subr.bf16.mxu0 %v1402
    %1463 = vmatpush1.bf16.msra.mxu0 %v1401
    %1464 = vmatprep.subr.bf16.mxu0 %v1406
    %1465 = vmatpush1.bf16.msra.mxu0 %v1405
    %1466 = vmatprep.subr.bf16.mxu0 0
    %1467 = vmatpush1.bf16.msra.mxu0 0
    %1468 = vmatprep.subr.bf16.mxu0 0
    %1469 = vmatpush1.bf16.msra.mxu0 0
    %1470 = vmatprep.subr.bf16.mxu0 0
    %1471 = vmatpush1.bf16.msra.mxu0 0
    %1472 = vmatprep.subr.bf16.mxu0 0
    %1473 = vmatpush1.bf16.msra.mxu0 0
    %1474 = vmatprep.subr.bf16.mxu0 0
    %1475 = vmatpush1.bf16.msra.mxu0 0
    %1476 = vmatprep.subr.bf16.mxu0 0
    %1477 = vmatpush1.bf16.msra.mxu0 0
    %1478 = vmatprep.subr.bf16.mxu0 0
    %1479 = vmatpush1.bf16.msra.mxu0 0
    %1480 = vmatprep.mubr.bf16.mxu0 %v1446
    %1481 = vmatmul.mubr.bf16.gmra.mrb[0].mxu0 %v1205
    %v1482 = vpop.f32.mrb[0].mxu0
    %v1483 = vadd.f32 %v1248, %v1482
    %v1484 = vpop.f32.mrb[0].mxu0
    %v1485 = vadd.f32 %v1252, %v1484
    %v1486 = vpop.f32.mrb[0].mxu0
    %v1487 = vpop.f32.mrb[0].mxu0
    %1488 = vdwg.mxu0
    %1489 = vmatprep.subr.bf16.mxu0 %v1376
    %1490 = vmatpush1.bf16.msra.mxu0 %v1375
    %1491 = vmatprep.subr.bf16.mxu0 %v1380
    %1492 = vmatpush1.bf16.msra.mxu0 %v1379
    %1493 = vmatprep.subr.bf16.mxu0 %v1384
    %1494 = vmatpush1.bf16.msra.mxu0 %v1383
    %1495 = vmatprep.subr.bf16.mxu0 %v1388
    %1496 = vmatpush1.bf16.msra.mxu0 %v1387
    %1497 = vmatprep.subr.bf16.mxu0 %v1392
    %1498 = vmatpush1.bf16.msra.mxu0 %v1391
    %1499 = vmatprep.subr.bf16.mxu0 %v1396
    %1500 = vmatpush1.bf16.msra.mxu0 %v1395
    %1501 = vmatprep.subr.bf16.mxu0 %v1400
    %1502 = vmatpush1.bf16.msra.mxu0 %v1399
    %1503 = vmatprep.subr.bf16.mxu0 %v1404
    %1504 = vmatpush1.bf16.msra.mxu0 %v1403
    %1505 = vmatprep.subr.bf16.mxu0 %v1408
    %1506 = vmatpush1.bf16.msra.mxu0 %v1407
    %1507 = vmatprep.subr.bf16.mxu0 0
    %1508 = vmatpush1.bf16.msra.mxu0 0
    %1509 = vmatprep.subr.bf16.mxu0 0
    %1510 = vmatpush1.bf16.msra.mxu0 0
    %1511 = vmatprep.subr.bf16.mxu0 0
    %1512 = vmatpush1.bf16.msra.mxu0 0
    %1513 = vmatprep.subr.bf16.mxu0 0
    %1514 = vmatpush1.bf16.msra.mxu0 0
    %1515 = vmatprep.subr.bf16.mxu0 0
    %1516 = vmatpush1.bf16.msra.mxu0 0
    %1517 = vmatprep.subr.bf16.mxu0 0
    %1518 = vmatpush1.bf16.msra.mxu0 0
    %1519 = vmatprep.subr.bf16.mxu0 0
    %1520 = vmatpush1.bf16.msra.mxu0 0
    %1521 = vmatprep.mubr.bf16.mxu0 %v1446
    %1522 = vmatmul.mubr.bf16.gmra.mrb[0].mxu0 %v1205
    %v1523 = vpop.f32.mrb[0].mxu0
    %v1524 = vadd.f32 %v1256, %v1523
    %v1525 = vpop.f32.mrb[0].mxu0
    %v1526 = vadd.f32 %v1260, %v1525
    %v1527 = vpop.f32.mrb[0].mxu0
    %v1528 = vpop.f32.mrb[0].mxu0
    %1529 = vdwg.mxu0
    %v1532 = vcombine.low %v1483, %v1485
    %v1534 = vunpack.c.l.s4 1966171168
    %v1535 = vunpack.c.0.s8 %v1534
    %v1536 = vlaneseq
    %v1537 = vshrl.u32 %v1536, 7
    %v1538 = vsub.s32 %v1535, %v1537
    %v1539 = vrot.slane %v1532, %v1538
    %v1540 = vcombine.high %v1539, %v1539
    %v1542 = vunpack.c.l.s4 1966171168
    %v1543 = vunpack.c.0.s8 %v1542
    %v1544 = vlaneseq
    %v1545 = vshrl.u32 %v1544, 7
    %v1546 = vsub.s32 %v1543, %v1545
    %v1547 = vrot.slane %v1539, %v1546
    %v1549 = vunpack.c.l.s4 1966171168
    %v1550 = vunpack.c.0.s8 %v1549
    %v1551 = vlaneseq
    %v1552 = vshrl.u32 %v1551, 7
    %v1553 = vsub.s32 %v1550, %v1552
    %v1554 = vrot.slane %v1540, %v1553
    %v1557 = vadd.f32 %v1191, %v1547
    %v1558 = vadd.f32 %v1193, %v1554
    %v1559 = vxor.u32 %v1557, 2147483648
    %v1560 = vxor.u32 %v1558, 2147483648
    %v1561 = vmul.f32 %v1559, 1.442695
    %v1562 = vpow.pop %v1561
    %v1563 = vmul.f32 %v1560, 1.442695
    %v1564 = vpow.pop %v1563
    %v1565 = vadd.f32 %v1562, 1.0
    %v1566 = vadd.f32 %v1564, 1.0
    %v1567 = vrcp.pop %v1565
    %v1568 = vmul.f32 1.0, %v1567
    %v1569 = vrcp.pop %v1566
    %v1570 = vmul.f32 1.0, %v1569
    %1573 = vrot.lane.b32.xlu0 %v1191, 112
    %v1574 = vpop.permute.xlu0 %1573
    %1575 = vrot.lane.b32.xlu0 %v1193, 112
    %v1576 = vpop.permute.xlu0 %1575
    %v1577 = vrot.slane %v1574, 1
    %v1578 = vrot.slane %v1576, 1
    %v1579 = vrot.slane %v1574, 2
    %v1580 = vrot.slane %v1576, 2
    %v1581 = vsel %vm422, %v1577, %v1579
    %v1582 = vsel %vm422, %v1578, %v1580
    %v1586 = vcombine.low %v1485, %v1524
    %v1588 = vunpack.c.l.s4 1966171168
    %v1589 = vunpack.c.0.s8 %v1588
    %v1590 = vlaneseq
    %v1591 = vshrl.u32 %v1590, 7
    %v1592 = vsub.s32 %v1589, %v1591
    %v1593 = vrot.slane %v1586, %v1592
    %v1594 = vcombine.high %v1593, %v1593
    %v1596 = vunpack.c.l.s4 1966171168
    %v1597 = vunpack.c.0.s8 %v1596
    %v1598 = vlaneseq
    %v1599 = vshrl.u32 %v1598, 7
    %v1600 = vsub.s32 %v1597, %v1599
    %v1601 = vrot.slane %v1593, %v1600
    %v1603 = vunpack.c.l.s4 1966171168
    %v1604 = vunpack.c.0.s8 %v1603
    %v1605 = vlaneseq
    %v1606 = vshrl.u32 %v1605, 7
    %v1607 = vsub.s32 %v1604, %v1606
    %v1608 = vrot.slane %v1594, %v1607
    %1609 = vrot.lane.b32.xlu0 %v1601, 112
    %v1610 = vpop.permute.xlu0 %1609
    %1611 = vrot.lane.b32.xlu0 %v1608, 112
    %v1612 = vpop.permute.xlu0 %1611
    %v1613 = vrot.slane %v1610, 1
    %v1614 = vrot.slane %v1612, 1
    %v1615 = vsel %vm422, %v1610, %v1613
    %v1616 = vsel %vm422, %v1612, %v1614
    %v1619 = vadd.f32 %v1581, %v1615
    %v1620 = vadd.f32 %v1582, %v1616
    %v1621 = vxor.u32 %v1619, 2147483648
    %v1622 = vxor.u32 %v1620, 2147483648
    %v1623 = vmul.f32 %v1621, 1.442695
    %v1624 = vpow.pop %v1623
    %v1625 = vmul.f32 %v1622, 1.442695
    %v1626 = vpow.pop %v1625
    %v1627 = vadd.f32 %v1624, 1.0
    %v1628 = vadd.f32 %v1626, 1.0
    %v1629 = vrcp.pop %v1627
    %v1630 = vmul.f32 1.0, %v1629
    %v1631 = vrcp.pop %v1628
    %v1632 = vmul.f32 1.0, %v1631
    %v1634 = vcombine.low %v1524, %v1526
    %v1636 = vunpack.c.l.s4 1966171168
    %v1637 = vunpack.c.0.s8 %v1636
    %v1638 = vlaneseq
    %v1639 = vshrl.u32 %v1638, 7
    %v1640 = vsub.s32 %v1637, %v1639
    %v1641 = vrot.slane %v1634, %v1640
    %v1642 = vcombine.high %v1641, %v1641
    %v1644 = vunpack.c.l.s4 1966171168
    %v1645 = vunpack.c.0.s8 %v1644
    %v1646 = vlaneseq
    %v1647 = vshrl.u32 %v1646, 7
    %v1648 = vsub.s32 %v1645, %v1647
    %v1649 = vrot.slane %v1641, %v1648
    %v1651 = vunpack.c.l.s4 1966171168
    %v1652 = vunpack.c.0.s8 %v1651
    %v1653 = vlaneseq
    %v1654 = vshrl.u32 %v1653, 7
    %v1655 = vsub.s32 %v1652, %v1654
    %v1656 = vrot.slane %v1642, %v1655
    %1657 = vrot.lane.b32.xlu0 %v1649, 96
    %v1658 = vpop.permute.xlu0 %1657
    %1659 = vrot.lane.b32.xlu0 %v1656, 96
    %v1660 = vpop.permute.xlu0 %1659
    %v1661 = vrot.slane %v1658, 1
    %v1662 = vrot.slane %v1660, 1
    %v1663 = vsel %vm505, %v1658, %v1661
    %v1664 = vsel %vm505, %v1660, %v1662
    %v1667 = vmul.f32 %v1568, %v1663
    %v1668 = vmul.f32 %v1570, %v1664
    %1669 = vrot.lane.b32.xlu0 %v1191, 96
    %v1670 = vpop.permute.xlu0 %1669
    %1671 = vrot.lane.b32.xlu0 %v1193, 96
    %v1672 = vpop.permute.xlu0 %1671
    %v1673 = vrot.slane %v1670, 2
    %v1674 = vrot.slane %v1672, 2
    %v1675 = vrot.slane %v1670, 3
    %v1676 = vrot.slane %v1672, 3
    %v1677 = vsel %vm505, %v1673, %v1675
    %v1678 = vsel %vm505, %v1674, %v1676
    %v1681 = vadd.f32 %v1677, %v1667
    %v1682 = vadd.f32 %v1678, %v1668
    %v1683 = vtanh.pop %v1681
    %v1684 = vtanh.pop %v1682
    %v1685 = vsub.f32 1.0, %v1630
    %v1686 = vsub.f32 1.0, %v1632
    %v1687 = vmul.f32 %v1685, %v1683
    %v1688 = vmul.f32 %v1686, %v1684
    %v1690 = vunpack.c.l.s4 1966171168
    %v1691 = vunpack.c.0.s8 %v1690
    %v1692 = vlaneseq
    %v1693 = vshrl.u32 %v1692, 7
    %v1694 = vsub.s32 %v1691, %v1693
    %v1695 = vrot.slane %v1189, %v1694
    %v1696 = vcombine.high %v1695, %v1695
    %v1699 = vmul.f32 %v1630, %v1695
    %v1700 = vmul.f32 %v1632, %v1696
    %v1701 = vadd.f32 %v1687, %v1699
    %v1702 = vadd.f32 %v1688, %v1700
    %v1705 = vcombine.low %v1701, %v1702
    %v1707 = vunpack.c.l.s4 1935823168
    %v1708 = vunpack.c.0.s8 %v1707
    %v1709 = vlaneseq
    %v1710 = vshrl.u32 %v1709, 7
    %v1711 = vsub.s32 %v1708, %v1710
    %v1712 = vrot.slane %v1705, %v1711
    %1714 = vst.msk [vmem:[#allocation2] sm:$0xf] %vm559, %v1712
    %v1715 = vlaneseq
    %v1716 = vshrl.u32 %v1715, 7
    %v1717 = vsub.s32 0, %v1716
    %v1718 = vrot.slane %v1701, %v1717
    %v1719 = vlaneseq
    %v1720 = vshrl.u32 %v1719, 7
    %v1721 = vsub.s32 1, %v1720
    %v1722 = vrot.slane %v1701, %v1721
    %v1723 = vlaneseq
    %v1724 = vshrl.u32 %v1723, 7
    %v1725 = vsub.s32 0, %v1724
    %v1726 = vrot.slane %v1702, %v1725
    %v1727 = vlaneseq
    %v1728 = vshrl.u32 %v1727, 7
    %v1729 = vsub.s32 1, %v1728
    %v1730 = vrot.slane %v1702, %v1729
    %v1735 = vpack.c.bf16 %v1718, %v1718
    %v1736 = vpack.c.bf16 %v1722, %v1722
    %v1737 = vpack.c.bf16 %v1726, %v1726
    %v1738 = vpack.c.bf16 %v1730, %v1730
    %v1743 = vunpack.c.l.b16 %v1735
    %v1744 = vunpack.c.l.b16 %v1736
    %v1745 = vunpack.c.l.b16 %v1737
    %v1746 = vunpack.c.l.b16 %v1738
    %v1747 = vpack.c.b16 %v1744, %v1743
    %v1748 = vpack.c.b16 %v1746, %v1745
    %v1749 = vrot.slane %v1747, 7
    %v1750 = vrot.slane %v1748, 7
    %vm1753 = vcmask 1041409
    %vm1754 = vsmask.f32 1280
    %vm1755 = vmand %vm1753, %vm1754
    %vm1756 = vcmask 128005
    %vm1757 = vsmask.f32 5376
    %vm1758 = vmand %vm1756, %vm1757
    %vm1759 = vmor %vm1758, %vm1755
    %v1760 = vld [vmem:[%s4] sm:$0x22]
    %v1761 = vsel %vm1759, %v1749, %v1760
    %1762 = vst [vmem:[%s4] sm:$0x22] %v1761
    %v1763 = vld [vmem:[%s4 + $0x8] sm:$0x22]
    %v1764 = vsel %vm1759, %v1750, %v1763
    %1765 = vst [vmem:[%s4 + $0x8] sm:$0x22] %v1764
    %v1766 = vld [vmem:[#allocation2] sm:$0xf]
    %s1767 = scalar_lea.vmem %s0, 3
    %v1768 = vld [vmem:[%s1767] ss:$8 sm:$0xf]
    %s1769 = scalar_lea.vmem %s0, 35
    %v1770 = vld [vmem:[%s1769] ss:$8 sm:$0xf]
    %v1773 = vunpack.c.l.s4 1983009808
    %v1774 = vunpack.c.0.s8 %v1773
    %v1775 = vlaneseq
    %v1776 = vshrl.u32 %v1775, 7
    %v1777 = vsub.s32 %v1774, %v1776
    %v1778 = vrot.slane %v1766, %v1777
    %v1779 = vcombine.high %v1778, %v1778
    %v1782 = vpack.c.bf16 %v1778, %v1778
    %v1783 = vpack.c.bf16 %v1779, %v1779
    %v1784 = vld [vmem:[%s1] sm:$0xff]
    %v1785 = vld [vmem:[%s1 + $0x8] sm:$0xff]
    %v1786 = vld [vmem:[%s1 + $0x10] sm:$0xff]
    %v1787 = vld [vmem:[%s1 + $0x18] sm:$0xff]
    %v1788 = vld [vmem:[%s1 + $0x20] sm:$0xff]
    %v1789 = vld [vmem:[%s1 + $0x28] sm:$0xff]
    %v1790 = vld [vmem:[%s1 + $0x30] sm:$0xff]
    %v1791 = vld [vmem:[%s1 + $0x38] sm:$0xff]
    %v1792 = vld [vmem:[%s1 + $0x40] sm:$0xff]
    %v1793 = vld [vmem:[%s1 + $0x48] sm:$0xff]
    %v1794 = vld [vmem:[%s1 + $0x50] sm:$0xff]
    %v1795 = vld [vmem:[%s1 + $0x58] sm:$0xff]
    %v1796 = vld [vmem:[%s1 + $0x60] sm:$0xff]
    %v1797 = vld [vmem:[%s1 + $0x68] sm:$0xff]
    %v1798 = vld [vmem:[%s1 + $0x70] sm:$0xff]
    %v1799 = vld [vmem:[%s1 + $0x78] sm:$0xff]
    %v1800 = vld [vmem:[%s1 + $0x80] sm:$0xff]
    %v1801 = vld [vmem:[%s1 + $0x88] sm:$0xff]
    %v1802 = vld [vmem:[%s1 + $0x90] sm:$0xff]
    %v1803 = vld [vmem:[%s1 + $0x98] sm:$0xff]
    %v1804 = vld [vmem:[%s1 + $0xa0] sm:$0xff]
    %v1805 = vld [vmem:[%s1 + $0xa8] sm:$0xff]
    %v1806 = vld [vmem:[%s1 + $0xb0] sm:$0xff]
    %v1807 = vld [vmem:[%s1 + $0xb8] sm:$0xff]
    %v1808 = vld [vmem:[%s1 + $0xc0] sm:$0xff]
    %v1809 = vld [vmem:[%s1 + $0xc8] sm:$0xff]
    %v1810 = vld [vmem:[%s1 + $0xd0] sm:$0xff]
    %v1811 = vld [vmem:[%s1 + $0xd8] sm:$0xff]
    %v1812 = vld [vmem:[%s1 + $0xe0] sm:$0xff]
    %v1813 = vld [vmem:[%s1 + $0xe8] sm:$0xff]
    %v1814 = vld [vmem:[%s1 + $0xf0] sm:$0xff]
    %v1815 = vld [vmem:[%s1 + $0xf8] sm:$0xff]
    %v1816 = vld [vmem:[%s1 + $0x100] sm:$0xff]
    %v1817 = vld [vmem:[%s1 + $0x108] sm:$0xff]
    %v1818 = vld [vmem:[%s1 + $0x110] sm:$0xff]
    %v1819 = vld [vmem:[%s1 + $0x118] sm:$0xff]
    %v1820 = vld [vmem:[%s2] sm:$0xf]
    %v1822 = vlaneseq
    %v1823 = vshrl.u32 %v1822, 7
    %v1824 = vsub.s32 0, %v1823
    %v1825 = vrot.slane %v1820, %v1824
    %v1826 = vlaneseq
    %v1827 = vshrl.u32 %v1826, 7
    %v1828 = vsub.s32 1, %v1827
    %v1829 = vrot.slane %v1820, %v1828
    %v1830 = vlaneseq
    %v1831 = vshrl.u32 %v1830, 7
    %v1832 = vsub.s32 2, %v1831
    %v1833 = vrot.slane %v1820, %v1832
    %v1834 = vlaneseq
    %v1835 = vshrl.u32 %v1834, 7
    %v1836 = vsub.s32 3, %v1835
    %v1837 = vrot.slane %v1820, %v1836
    %v1878 = vunpack.c.l.b16 %v1784
    %v1879 = vunpack.c.h.b16 %v1784
    %v1880 = vunpack.c.l.b16 %v1785
    %v1881 = vunpack.c.h.b16 %v1785
    %v1882 = vunpack.c.l.b16 %v1786
    %v1883 = vunpack.c.h.b16 %v1786
    %v1884 = vunpack.c.l.b16 %v1787
    %v1885 = vunpack.c.h.b16 %v1787
    %v1886 = vunpack.c.l.b16 %v1788
    %v1887 = vunpack.c.h.b16 %v1788
    %v1888 = vunpack.c.l.b16 %v1789
    %v1889 = vunpack.c.h.b16 %v1789
    %v1890 = vunpack.c.l.b16 %v1790
    %v1891 = vunpack.c.h.b16 %v1790
    %v1892 = vunpack.c.l.b16 %v1791
    %v1893 = vunpack.c.h.b16 %v1791
    %v1894 = vunpack.c.l.b16 %v1792
    %v1895 = vunpack.c.h.b16 %v1792
    %v1896 = vunpack.c.l.b16 %v1793
    %v1897 = vunpack.c.h.b16 %v1793
    %v1898 = vunpack.c.l.b16 %v1794
    %v1899 = vunpack.c.h.b16 %v1794
    %v1900 = vunpack.c.l.b16 %v1795
    %v1901 = vunpack.c.h.b16 %v1795
    %v1902 = vunpack.c.l.b16 %v1796
    %v1903 = vunpack.c.h.b16 %v1796
    %v1904 = vunpack.c.l.b16 %v1797
    %v1905 = vunpack.c.h.b16 %v1797
    %v1906 = vunpack.c.l.b16 %v1798
    %v1907 = vunpack.c.h.b16 %v1798
    %v1908 = vunpack.c.l.b16 %v1799
    %v1909 = vunpack.c.h.b16 %v1799
    %v1910 = vunpack.c.l.b16 %v1800
    %v1911 = vunpack.c.h.b16 %v1800
    %v1912 = vunpack.c.l.b16 %v1801
    %v1913 = vunpack.c.h.b16 %v1801
    %v1914 = vunpack.c.l.b16 %v1802
    %v1915 = vunpack.c.h.b16 %v1802
    %v1916 = vunpack.c.l.b16 %v1803
    %v1917 = vunpack.c.h.b16 %v1803
    %v1918 = vunpack.c.l.b16 %v1804
    %v1919 = vunpack.c.h.b16 %v1804
    %v1920 = vunpack.c.l.b16 %v1805
    %v1921 = vunpack.c.h.b16 %v1805
    %v1922 = vunpack.c.l.b16 %v1806
    %v1923 = vunpack.c.h.b16 %v1806
    %v1924 = vunpack.c.l.b16 %v1807
    %v1925 = vunpack.c.h.b16 %v1807
    %v1926 = vunpack.c.l.b16 %v1808
    %v1927 = vunpack.c.h.b16 %v1808
    %v1928 = vunpack.c.l.b16 %v1809
    %v1929 = vunpack.c.h.b16 %v1809
    %v1930 = vunpack.c.l.b16 %v1810
    %v1931 = vunpack.c.h.b16 %v1810
    %v1932 = vunpack.c.l.b16 %v1811
    %v1933 = vunpack.c.h.b16 %v1811
    %v1934 = vunpack.c.l.b16 %v1812
    %v1935 = vunpack.c.h.b16 %v1812
    %v1936 = vunpack.c.l.b16 %v1813
    %v1937 = vunpack.c.h.b16 %v1813
    %v1938 = vunpack.c.l.b16 %v1814
    %v1939 = vunpack.c.h.b16 %v1814
    %v1940 = vunpack.c.l.b16 %v1815
    %v1941 = vunpack.c.h.b16 %v1815
    %v1942 = vunpack.c.l.b16 %v1816
    %v1943 = vunpack.c.h.b16 %v1816
    %v1944 = vunpack.c.l.b16 %v1817
    %v1945 = vunpack.c.h.b16 %v1817
    %v1946 = vunpack.c.l.b16 %v1818
    %v1947 = vunpack.c.h.b16 %v1818
    %v1948 = vunpack.c.l.b16 %v1819
    %v1949 = vunpack.c.h.b16 %v1819
    %v1950 = vpack.c.b16 %v1882, %v1878
    %v1951 = vpack.c.b16 %v1883, %v1879
    %v1952 = vpack.c.b16 %v1884, %v1880
    %v1953 = vpack.c.b16 %v1885, %v1881
    %v1954 = vpack.c.b16 %v1890, %v1886
    %v1955 = vpack.c.b16 %v1891, %v1887
    %v1956 = vpack.c.b16 %v1892, %v1888
    %v1957 = vpack.c.b16 %v1893, %v1889
    %v1958 = vpack.c.b16 %v1898, %v1894
    %v1959 = vpack.c.b16 %v1899, %v1895
    %v1960 = vpack.c.b16 %v1900, %v1896
    %v1961 = vpack.c.b16 %v1901, %v1897
    %v1962 = vpack.c.b16 %v1906, %v1902
    %v1963 = vpack.c.b16 %v1907, %v1903
    %v1964 = vpack.c.b16 %v1908, %v1904
    %v1965 = vpack.c.b16 %v1909, %v1905
    %v1966 = vpack.c.b16 %v1914, %v1910
    %v1967 = vpack.c.b16 %v1915, %v1911
    %v1968 = vpack.c.b16 %v1916, %v1912
    %v1969 = vpack.c.b16 %v1917, %v1913
    %v1970 = vpack.c.b16 %v1922, %v1918
    %v1971 = vpack.c.b16 %v1923, %v1919
    %v1972 = vpack.c.b16 %v1924, %v1920
    %v1973 = vpack.c.b16 %v1925, %v1921
    %v1974 = vpack.c.b16 %v1930, %v1926
    %v1975 = vpack.c.b16 %v1931, %v1927
    %v1976 = vpack.c.b16 %v1932, %v1928
    %v1977 = vpack.c.b16 %v1933, %v1929
    %v1978 = vpack.c.b16 %v1938, %v1934
    %v1979 = vpack.c.b16 %v1939, %v1935
    %v1980 = vpack.c.b16 %v1940, %v1936
    %v1981 = vpack.c.b16 %v1941, %v1937
    %v1982 = vpack.c.b16 %v1946, %v1942
    %v1983 = vpack.c.b16 %v1947, %v1943
    %v1984 = vpack.c.b16 %v1948, %v1944
    %v1985 = vpack.c.b16 %v1949, %v1945
    %v2023 = vsel %vm285, %v1783, 0
    %2025 = vmatprep.subr.bf16.mxu0 %v1951
    %2026 = vmatpush1.bf16.msra.mxu0 %v1950
    %2027 = vmatprep.subr.bf16.mxu0 %v1955
    %2028 = vmatpush1.bf16.msra.mxu0 %v1954
    %2029 = vmatprep.subr.bf16.mxu0 %v1959
    %2030 = vmatpush1.bf16.msra.mxu0 %v1958
    %2031 = vmatprep.subr.bf16.mxu0 %v1963
    %2032 = vmatpush1.bf16.msra.mxu0 %v1962
    %2033 = vmatprep.subr.bf16.mxu0 %v1967
    %2034 = vmatpush1.bf16.msra.mxu0 %v1966
    %2035 = vmatprep.subr.bf16.mxu0 %v1971
    %2036 = vmatpush1.bf16.msra.mxu0 %v1970
    %2037 = vmatprep.subr.bf16.mxu0 %v1975
    %2038 = vmatpush1.bf16.msra.mxu0 %v1974
    %2039 = vmatprep.subr.bf16.mxu0 %v1979
    %2040 = vmatpush1.bf16.msra.mxu0 %v1978
    %2041 = vmatprep.subr.bf16.mxu0 %v1983
    %2042 = vmatpush1.bf16.msra.mxu0 %v1982
    %2043 = vmatprep.subr.bf16.mxu0 0
    %2044 = vmatpush1.bf16.msra.mxu0 0
    %2045 = vmatprep.subr.bf16.mxu0 0
    %2046 = vmatpush1.bf16.msra.mxu0 0
    %2047 = vmatprep.subr.bf16.mxu0 0
    %2048 = vmatpush1.bf16.msra.mxu0 0
    %2049 = vmatprep.subr.bf16.mxu0 0
    %2050 = vmatpush1.bf16.msra.mxu0 0
    %2051 = vmatprep.subr.bf16.mxu0 0
    %2052 = vmatpush1.bf16.msra.mxu0 0
    %2053 = vmatprep.subr.bf16.mxu0 0
    %2054 = vmatpush1.bf16.msra.mxu0 0
    %2055 = vmatprep.subr.bf16.mxu0 0
    %2056 = vmatpush1.bf16.msra.mxu0 0
    %2057 = vmatprep.mubr.bf16.mxu0 %v2023
    %2058 = vmatmul.mubr.bf16.gmra.mrb[0].mxu0 %v1782
    %v2059 = vpop.f32.mrb[0].mxu0
    %v2060 = vadd.f32 %v1825, %v2059
    %v2061 = vpop.f32.mrb[0].mxu0
    %v2062 = vadd.f32 %v1829, %v2061
    %v2063 = vpop.f32.mrb[0].mxu0
    %v2064 = vpop.f32.mrb[0].mxu0
    %2065 = vdwg.mxu0
    %2066 = vmatprep.subr.bf16.mxu0 %v1953
    %2067 = vmatpush1.bf16.msra.mxu0 %v1952
    %2068 = vmatprep.subr.bf16.mxu0 %v1957
    %2069 = vmatpush1.bf16.msra.mxu0 %v1956
    %2070 = vmatprep.subr.bf16.mxu0 %v1961
    %2071 = vmatpush1.bf16.msra.mxu0 %v1960
    %2072 = vmatprep.subr.bf16.mxu0 %v1965
    %2073 = vmatpush1.bf16.msra.mxu0 %v1964
    %2074 = vmatprep.subr.bf16.mxu0 %v1969
    %2075 = vmatpush1.bf16.msra.mxu0 %v1968
    %2076 = vmatprep.subr.bf16.mxu0 %v1973
    %2077 = vmatpush1.bf16.msra.mxu0 %v1972
    %2078 = vmatprep.subr.bf16.mxu0 %v1977
    %2079 = vmatpush1.bf16.msra.mxu0 %v1976
    %2080 = vmatprep.subr.bf16.mxu0 %v1981
    %2081 = vmatpush1.bf16.msra.mxu0 %v1980
    %2082 = vmatprep.subr.bf16.mxu0 %v1985
    %2083 = vmatpush1.bf16.msra.mxu0 %v1984
    %2084 = vmatprep.subr.bf16.mxu0 0
    %2085 = vmatpush1.bf16.msra.mxu0 0
    %2086 = vmatprep.subr.bf16.mxu0 0
    %2087 = vmatpush1.bf16.msra.mxu0 0
    %2088 = vmatprep.subr.bf16.mxu0 0
    %2089 = vmatpush1.bf16.msra.mxu0 0
    %2090 = vmatprep.subr.bf16.mxu0 0
    %2091 = vmatpush1.bf16.msra.mxu0 0
    %2092 = vmatprep.subr.bf16.mxu0 0
    %2093 = vmatpush1.bf16.msra.mxu0 0
    %2094 = vmatprep.subr.bf16.mxu0 0
    %2095 = vmatpush1.bf16.msra.mxu0 0
    %2096 = vmatprep.subr.bf16.mxu0 0
    %2097 = vmatpush1.bf16.msra.mxu0 0
    %2098 = vmatprep.mubr.bf16.mxu0 %v2023
    %2099 = vmatmul.mubr.bf16.gmra.mrb[0].mxu0 %v1782
    %v2100 = vpop.f32.mrb[0].mxu0
    %v2101 = vadd.f32 %v1833, %v2100
    %v2102 = vpop.f32.mrb[0].mxu0
    %v2103 = vadd.f32 %v1837, %v2102
    %v2104 = vpop.f32.mrb[0].mxu0
    %v2105 = vpop.f32.mrb[0].mxu0
    %2106 = vdwg.mxu0
    %v2109 = vcombine.low %v2060, %v2062
    %v2111 = vunpack.c.l.s4 1966171168
    %v2112 = vunpack.c.0.s8 %v2111
    %v2113 = vlaneseq
    %v2114 = vshrl.u32 %v2113, 7
    %v2115 = vsub.s32 %v2112, %v2114
    %v2116 = vrot.slane %v2109, %v2115
    %v2117 = vcombine.high %v2116, %v2116
    %v2119 = vunpack.c.l.s4 1966171168
    %v2120 = vunpack.c.0.s8 %v2119
    %v2121 = vlaneseq
    %v2122 = vshrl.u32 %v2121, 7
    %v2123 = vsub.s32 %v2120, %v2122
    %v2124 = vrot.slane %v2116, %v2123
    %v2126 = vunpack.c.l.s4 1966171168
    %v2127 = vunpack.c.0.s8 %v2126
    %v2128 = vlaneseq
    %v2129 = vshrl.u32 %v2128, 7
    %v2130 = vsub.s32 %v2127, %v2129
    %v2131 = vrot.slane %v2117, %v2130
    %v2134 = vadd.f32 %v1768, %v2124
    %v2135 = vadd.f32 %v1770, %v2131
    %v2136 = vxor.u32 %v2134, 2147483648
    %v2137 = vxor.u32 %v2135, 2147483648
    %v2138 = vmul.f32 %v2136, 1.442695
    %v2139 = vpow.pop %v2138
    %v2140 = vmul.f32 %v2137, 1.442695
    %v2141 = vpow.pop %v2140
    %v2142 = vadd.f32 %v2139, 1.0
    %v2143 = vadd.f32 %v2141, 1.0
    %v2144 = vrcp.pop %v2142
    %v2145 = vmul.f32 1.0, %v2144
    %v2146 = vrcp.pop %v2143
    %v2147 = vmul.f32 1.0, %v2146
    %2150 = vrot.lane.b32.xlu0 %v1768, 112
    %v2151 = vpop.permute.xlu0 %2150
    %2152 = vrot.lane.b32.xlu0 %v1770, 112
    %v2153 = vpop.permute.xlu0 %2152
    %v2154 = vrot.slane %v2151, 1
    %v2155 = vrot.slane %v2153, 1
    %v2156 = vrot.slane %v2151, 2
    %v2157 = vrot.slane %v2153, 2
    %v2158 = vsel %vm422, %v2154, %v2156
    %v2159 = vsel %vm422, %v2155, %v2157
    %v2163 = vcombine.low %v2062, %v2101
    %v2165 = vunpack.c.l.s4 1966171168
    %v2166 = vunpack.c.0.s8 %v2165
    %v2167 = vlaneseq
    %v2168 = vshrl.u32 %v2167, 7
    %v2169 = vsub.s32 %v2166, %v2168
    %v2170 = vrot.slane %v2163, %v2169
    %v2171 = vcombine.high %v2170, %v2170
    %v2173 = vunpack.c.l.s4 1966171168
    %v2174 = vunpack.c.0.s8 %v2173
    %v2175 = vlaneseq
    %v2176 = vshrl.u32 %v2175, 7
    %v2177 = vsub.s32 %v2174, %v2176
    %v2178 = vrot.slane %v2170, %v2177
    %v2180 = vunpack.c.l.s4 1966171168
    %v2181 = vunpack.c.0.s8 %v2180
    %v2182 = vlaneseq
    %v2183 = vshrl.u32 %v2182, 7
    %v2184 = vsub.s32 %v2181, %v2183
    %v2185 = vrot.slane %v2171, %v2184
    %2186 = vrot.lane.b32.xlu0 %v2178, 112
    %v2187 = vpop.permute.xlu0 %2186
    %2188 = vrot.lane.b32.xlu0 %v2185, 112
    %v2189 = vpop.permute.xlu0 %2188
    %v2190 = vrot.slane %v2187, 1
    %v2191 = vrot.slane %v2189, 1
    %v2192 = vsel %vm422, %v2187, %v2190
    %v2193 = vsel %vm422, %v2189, %v2191
    %v2196 = vadd.f32 %v2158, %v2192
    %v2197 = vadd.f32 %v2159, %v2193
    %v2198 = vxor.u32 %v2196, 2147483648
    %v2199 = vxor.u32 %v2197, 2147483648
    %v2200 = vmul.f32 %v2198, 1.442695
    %v2201 = vpow.pop %v2200
    %v2202 = vmul.f32 %v2199, 1.442695
    %v2203 = vpow.pop %v2202
    %v2204 = vadd.f32 %v2201, 1.0
    %v2205 = vadd.f32 %v2203, 1.0
    %v2206 = vrcp.pop %v2204
    %v2207 = vmul.f32 1.0, %v2206
    %v2208 = vrcp.pop %v2205
    %v2209 = vmul.f32 1.0, %v2208
    %v2211 = vcombine.low %v2101, %v2103
    %v2213 = vunpack.c.l.s4 1966171168
    %v2214 = vunpack.c.0.s8 %v2213
    %v2215 = vlaneseq
    %v2216 = vshrl.u32 %v2215, 7
    %v2217 = vsub.s32 %v2214, %v2216
    %v2218 = vrot.slane %v2211, %v2217
    %v2219 = vcombine.high %v2218, %v2218
    %v2221 = vunpack.c.l.s4 1966171168
    %v2222 = vunpack.c.0.s8 %v2221
    %v2223 = vlaneseq
    %v2224 = vshrl.u32 %v2223, 7
    %v2225 = vsub.s32 %v2222, %v2224
    %v2226 = vrot.slane %v2218, %v2225
    %v2228 = vunpack.c.l.s4 1966171168
    %v2229 = vunpack.c.0.s8 %v2228
    %v2230 = vlaneseq
    %v2231 = vshrl.u32 %v2230, 7
    %v2232 = vsub.s32 %v2229, %v2231
    %v2233 = vrot.slane %v2219, %v2232
    %2234 = vrot.lane.b32.xlu0 %v2226, 96
    %v2235 = vpop.permute.xlu0 %2234
    %2236 = vrot.lane.b32.xlu0 %v2233, 96
    %v2237 = vpop.permute.xlu0 %2236
    %v2238 = vrot.slane %v2235, 1
    %v2239 = vrot.slane %v2237, 1
    %v2240 = vsel %vm505, %v2235, %v2238
    %v2241 = vsel %vm505, %v2237, %v2239
    %v2244 = vmul.f32 %v2145, %v2240
    %v2245 = vmul.f32 %v2147, %v2241
    %2246 = vrot.lane.b32.xlu0 %v1768, 96
    %v2247 = vpop.permute.xlu0 %2246
    %2248 = vrot.lane.b32.xlu0 %v1770, 96
    %v2249 = vpop.permute.xlu0 %2248
    %v2250 = vrot.slane %v2247, 2
    %v2251 = vrot.slane %v2249, 2
    %v2252 = vrot.slane %v2247, 3
    %v2253 = vrot.slane %v2249, 3
    %v2254 = vsel %vm505, %v2250, %v2252
    %v2255 = vsel %vm505, %v2251, %v2253
    %v2258 = vadd.f32 %v2254, %v2244
    %v2259 = vadd.f32 %v2255, %v2245
    %v2260 = vtanh.pop %v2258
    %v2261 = vtanh.pop %v2259
    %v2262 = vsub.f32 1.0, %v2207
    %v2263 = vsub.f32 1.0, %v2209
    %v2264 = vmul.f32 %v2262, %v2260
    %v2265 = vmul.f32 %v2263, %v2261
    %v2267 = vunpack.c.l.s4 1966171168
    %v2268 = vunpack.c.0.s8 %v2267
    %v2269 = vlaneseq
    %v2270 = vshrl.u32 %v2269, 7
    %v2271 = vsub.s32 %v2268, %v2270
    %v2272 = vrot.slane %v1766, %v2271
    %v2273 = vcombine.high %v2272, %v2272
    %v2276 = vmul.f32 %v2207, %v2272
    %v2277 = vmul.f32 %v2209, %v2273
    %v2278 = vadd.f32 %v2264, %v2276
    %v2279 = vadd.f32 %v2265, %v2277
    %v2282 = vcombine.low %v2278, %v2279
    %v2284 = vunpack.c.l.s4 1935823168
    %v2285 = vunpack.c.0.s8 %v2284
    %v2286 = vlaneseq
    %v2287 = vshrl.u32 %v2286, 7
    %v2288 = vsub.s32 %v2285, %v2287
    %v2289 = vrot.slane %v2282, %v2288
    %2291 = vst.msk [vmem:[#allocation2] sm:$0xf] %vm559, %v2289
    %v2292 = vlaneseq
    %v2293 = vshrl.u32 %v2292, 7
    %v2294 = vsub.s32 0, %v2293
    %v2295 = vrot.slane %v2278, %v2294
    %v2296 = vlaneseq
    %v2297 = vshrl.u32 %v2296, 7
    %v2298 = vsub.s32 1, %v2297
    %v2299 = vrot.slane %v2278, %v2298
    %v2300 = vlaneseq
    %v2301 = vshrl.u32 %v2300, 7
    %v2302 = vsub.s32 0, %v2301
    %v2303 = vrot.slane %v2279, %v2302
    %v2304 = vlaneseq
    %v2305 = vshrl.u32 %v2304, 7
    %v2306 = vsub.s32 1, %v2305
    %v2307 = vrot.slane %v2279, %v2306
    %v2312 = vpack.c.bf16 %v2295, %v2295
    %v2313 = vpack.c.bf16 %v2299, %v2299
    %v2314 = vpack.c.bf16 %v2303, %v2303
    %v2315 = vpack.c.bf16 %v2307, %v2307
    %v2320 = vunpack.c.l.b16 %v2312
    %v2321 = vunpack.c.l.b16 %v2313
    %v2322 = vunpack.c.l.b16 %v2314
    %v2323 = vunpack.c.l.b16 %v2315
    %v2324 = vpack.c.b16 %v2321, %v2320
    %v2325 = vpack.c.b16 %v2323, %v2322
    %v2327 = vshll.u32 %v2324, 16
    %v2329 = vrot.slane %v2327, 7
    %v2331 = vshll.u32 %v2325, 16
    %v2333 = vrot.slane %v2331, 7
    %vm2336 = vsmask.f32 7942
    %vm2337 = vmand %vm1753, %vm2336
    %vm2338 = vsmask.f32 7958
    %vm2339 = vmand %vm1756, %vm2338
    %vm2340 = vmor %vm2339, %vm2337
    %v2341 = vld [vmem:[%s4] sm:$0x22]
    %v2342 = vsel %vm2340, %v2329, %v2341
    %2343 = vst [vmem:[%s4] sm:$0x22] %v2342
    %v2344 = vld [vmem:[%s4 + $0x8] sm:$0x22]
    %v2345 = vsel %vm2340, %v2333, %v2344
    %2346 = vst [vmem:[%s4 + $0x8] sm:$0x22] %v2345
    %v2347 = vld [vmem:[#allocation2] sm:$0xf]
    %s2348 = scalar_lea.vmem %s0, 4
    %v2349 = vld [vmem:[%s2348] ss:$8 sm:$0xf]
    %s2350 = scalar_lea.vmem %s0, 36
    %v2351 = vld [vmem:[%s2350] ss:$8 sm:$0xf]
    %v2354 = vunpack.c.l.s4 1983009808
    %v2355 = vunpack.c.0.s8 %v2354
    %v2356 = vlaneseq
    %v2357 = vshrl.u32 %v2356, 7
    %v2358 = vsub.s32 %v2355, %v2357
    %v2359 = vrot.slane %v2347, %v2358
    %v2360 = vcombine.high %v2359, %v2359
    %v2363 = vpack.c.bf16 %v2359, %v2359
    %v2364 = vpack.c.bf16 %v2360, %v2360
    %v2365 = vld [vmem:[%s1] sm:$0xff]
    %v2366 = vld [vmem:[%s1 + $0x8] sm:$0xff]
    %v2367 = vld [vmem:[%s1 + $0x10] sm:$0xff]
    %v2368 = vld [vmem:[%s1 + $0x18] sm:$0xff]
    %v2369 = vld [vmem:[%s1 + $0x20] sm:$0xff]
    %v2370 = vld [vmem:[%s1 + $0x28] sm:$0xff]
    %v2371 = vld [vmem:[%s1 + $0x30] sm:$0xff]
    %v2372 = vld [vmem:[%s1 + $0x38] sm:$0xff]
    %v2373 = vld [vmem:[%s1 + $0x40] sm:$0xff]
    %v2374 = vld [vmem:[%s1 + $0x48] sm:$0xff]
    %v2375 = vld [vmem:[%s1 + $0x50] sm:$0xff]
    %v2376 = vld [vmem:[%s1 + $0x58] sm:$0xff]
    %v2377 = vld [vmem:[%s1 + $0x60] sm:$0xff]
    %v2378 = vld [vmem:[%s1 + $0x68] sm:$0xff]
    %v2379 = vld [vmem:[%s1 + $0x70] sm:$0xff]
    %v2380 = vld [vmem:[%s1 + $0x78] sm:$0xff]
    %v2381 = vld [vmem:[%s1 + $0x80] sm:$0xff]
    %v2382 = vld [vmem:[%s1 + $0x88] sm:$0xff]
    %v2383 = vld [vmem:[%s1 + $0x90] sm:$0xff]
    %v2384 = vld [vmem:[%s1 + $0x98] sm:$0xff]
    %v2385 = vld [vmem:[%s1 + $0xa0] sm:$0xff]
    %v2386 = vld [vmem:[%s1 + $0xa8] sm:$0xff]
    %v2387 = vld [vmem:[%s1 + $0xb0] sm:$0xff]
    %v2388 = vld [vmem:[%s1 + $0xb8] sm:$0xff]
    %v2389 = vld [vmem:[%s1 + $0xc0] sm:$0xff]
    %v2390 = vld [vmem:[%s1 + $0xc8] sm:$0xff]
    %v2391 = vld [vmem:[%s1 + $0xd0] sm:$0xff]
    %v2392 = vld [vmem:[%s1 + $0xd8] sm:$0xff]
    %v2393 = vld [vmem:[%s1 + $0xe0] sm:$0xff]
    %v2394 = vld [vmem:[%s1 + $0xe8] sm:$0xff]
    %v2395 = vld [vmem:[%s1 + $0xf0] sm:$0xff]
    %v2396 = vld [vmem:[%s1 + $0xf8] sm:$0xff]
    %v2397 = vld [vmem:[%s1 + $0x100] sm:$0xff]
    %v2398 = vld [vmem:[%s1 + $0x108] sm:$0xff]
    %v2399 = vld [vmem:[%s1 + $0x110] sm:$0xff]
    %v2400 = vld [vmem:[%s1 + $0x118] sm:$0xff]
    %v2401 = vld [vmem:[%s2] sm:$0xf]
    %v2403 = vlaneseq
    %v2404 = vshrl.u32 %v2403, 7
    %v2405 = vsub.s32 0, %v2404
    %v2406 = vrot.slane %v2401, %v2405
    %v2407 = vlaneseq
    %v2408 = vshrl.u32 %v2407, 7
    %v2409 = vsub.s32 1, %v2408
    %v2410 = vrot.slane %v2401, %v2409
    %v2411 = vlaneseq
    %v2412 = vshrl.u32 %v2411, 7
    %v2413 = vsub.s32 2, %v2412
    %v2414 = vrot.slane %v2401, %v2413
    %v2415 = vlaneseq
    %v2416 = vshrl.u32 %v2415, 7
    %v2417 = vsub.s32 3, %v2416
    %v2418 = vrot.slane %v2401, %v2417
    %v2459 = vunpack.c.l.b16 %v2365
    %v2460 = vunpack.c.h.b16 %v2365
    %v2461 = vunpack.c.l.b16 %v2366
    %v2462 = vunpack.c.h.b16 %v2366
    %v2463 = vunpack.c.l.b16 %v2367
    %v2464 = vunpack.c.h.b16 %v2367
    %v2465 = vunpack.c.l.b16 %v2368
    %v2466 = vunpack.c.h.b16 %v2368
    %v2467 = vunpack.c.l.b16 %v2369
    %v2468 = vunpack.c.h.b16 %v2369
    %v2469 = vunpack.c.l.b16 %v2370
    %v2470 = vunpack.c.h.b16 %v2370
    %v2471 = vunpack.c.l.b16 %v2371
    %v2472 = vunpack.c.h.b16 %v2371
    %v2473 = vunpack.c.l.b16 %v2372
    %v2474 = vunpack.c.h.b16 %v2372
    %v2475 = vunpack.c.l.b16 %v2373
    %v2476 = vunpack.c.h.b16 %v2373
    %v2477 = vunpack.c.l.b16 %v2374
    %v2478 = vunpack.c.h.b16 %v2374
    %v2479 = vunpack.c.l.b16 %v2375
    %v2480 = vunpack.c.h.b16 %v2375
    %v2481 = vunpack.c.l.b16 %v2376
    %v2482 = vunpack.c.h.b16 %v2376
    %v2483 = vunpack.c.l.b16 %v2377
    %v2484 = vunpack.c.h.b16 %v2377
    %v2485 = vunpack.c.l.b16 %v2378
    %v2486 = vunpack.c.h.b16 %v2378
    %v2487 = vunpack.c.l.b16 %v2379
    %v2488 = vunpack.c.h.b16 %v2379
    %v2489 = vunpack.c.l.b16 %v2380
    %v2490 = vunpack.c.h.b16 %v2380
    %v2491 = vunpack.c.l.b16 %v2381
    %v2492 = vunpack.c.h.b16 %v2381
    %v2493 = vunpack.c.l.b16 %v2382
    %v2494 = vunpack.c.h.b16 %v2382
    %v2495 = vunpack.c.l.b16 %v2383
    %v2496 = vunpack.c.h.b16 %v2383
    %v2497 = vunpack.c.l.b16 %v2384
    %v2498 = vunpack.c.h.b16 %v2384
    %v2499 = vunpack.c.l.b16 %v2385
    %v2500 = vunpack.c.h.b16 %v2385
    %v2501 = vunpack.c.l.b16 %v2386
    %v2502 = vunpack.c.h.b16 %v2386
    %v2503 = vunpack.c.l.b16 %v2387
    %v2504 = vunpack.c.h.b16 %v2387
    %v2505 = vunpack.c.l.b16 %v2388
    %v2506 = vunpack.c.h.b16 %v2388
    %v2507 = vunpack.c.l.b16 %v2389
    %v2508 = vunpack.c.h.b16 %v2389
    %v2509 = vunpack.c.l.b16 %v2390
    %v2510 = vunpack.c.h.b16 %v2390
    %v2511 = vunpack.c.l.b16 %v2391
    %v2512 = vunpack.c.h.b16 %v2391
    %v2513 = vunpack.c.l.b16 %v2392
    %v2514 = vunpack.c.h.b16 %v2392
    %v2515 = vunpack.c.l.b16 %v2393
    %v2516 = vunpack.c.h.b16 %v2393
    %v2517 = vunpack.c.l.b16 %v2394
    %v2518 = vunpack.c.h.b16 %v2394
    %v2519 = vunpack.c.l.b16 %v2395
    %v2520 = vunpack.c.h.b16 %v2395
    %v2521 = vunpack.c.l.b16 %v2396
    %v2522 = vunpack.c.h.b16 %v2396
    %v2523 = vunpack.c.l.b16 %v2397
    %v2524 = vunpack.c.h.b16 %v2397
    %v2525 = vunpack.c.l.b16 %v2398
    %v2526 = vunpack.c.h.b16 %v2398
    %v2527 = vunpack.c.l.b16 %v2399
    %v2528 = vunpack.c.h.b16 %v2399
    %v2529 = vunpack.c.l.b16 %v2400
    %v2530 = vunpack.c.h.b16 %v2400
    %v2531 = vpack.c.b16 %v2463, %v2459
    %v2532 = vpack.c.b16 %v2464, %v2460
    %v2533 = vpack.c.b16 %v2465, %v2461
    %v2534 = vpack.c.b16 %v2466, %v2462
    %v2535 = vpack.c.b16 %v2471, %v2467
    %v2536 = vpack.c.b16 %v2472, %v2468
    %v2537 = vpack.c.b16 %v2473, %v2469
    %v2538 = vpack.c.b16 %v2474, %v2470
    %v2539 = vpack.c.b16 %v2479, %v2475
    %v2540 = vpack.c.b16 %v2480, %v2476
    %v2541 = vpack.c.b16 %v2481, %v2477
    %v2542 = vpack.c.b16 %v2482, %v2478
    %v2543 = vpack.c.b16 %v2487, %v2483
    %v2544 = vpack.c.b16 %v2488, %v2484
    %v2545 = vpack.c.b16 %v2489, %v2485
    %v2546 = vpack.c.b16 %v2490, %v2486
    %v2547 = vpack.c.b16 %v2495, %v2491
    %v2548 = vpack.c.b16 %v2496, %v2492
    %v2549 = vpack.c.b16 %v2497, %v2493
    %v2550 = vpack.c.b16 %v2498, %v2494
    %v2551 = vpack.c.b16 %v2503, %v2499
    %v2552 = vpack.c.b16 %v2504, %v2500
    %v2553 = vpack.c.b16 %v2505, %v2501
    %v2554 = vpack.c.b16 %v2506, %v2502
    %v2555 = vpack.c.b16 %v2511, %v2507
    %v2556 = vpack.c.b16 %v2512, %v2508
    %v2557 = vpack.c.b16 %v2513, %v2509
    %v2558 = vpack.c.b16 %v2514, %v2510
    %v2559 = vpack.c.b16 %v2519, %v2515
    %v2560 = vpack.c.b16 %v2520, %v2516
    %v2561 = vpack.c.b16 %v2521, %v2517
    %v2562 = vpack.c.b16 %v2522, %v2518
    %v2563 = vpack.c.b16 %v2527, %v2523
    %v2564 = vpack.c.b16 %v2528, %v2524
    %v2565 = vpack.c.b16 %v2529, %v2525
    %v2566 = vpack.c.b16 %v2530, %v2526
    %v2604 = vsel %vm285, %v2364, 0
    %2606 = vmatprep.subr.bf16.mxu0 %v2532
    %2607 = vmatpush1.bf16.msra.mxu0 %v2531
    %2608 = vmatprep.subr.bf16.mxu0 %v2536
    %2609 = vmatpush1.bf16.msra.mxu0 %v2535
    %2610 = vmatprep.subr.bf16.mxu0 %v2540
    %2611 = vmatpush1.bf16.msra.mxu0 %v2539
    %2612 = vmatprep.subr.bf16.mxu0 %v2544
    %2613 = vmatpush1.bf16.msra.mxu0 %v2543
    %2614 = vmatprep.subr.bf16.mxu0 %v2548
    %2615 = vmatpush1.bf16.msra.mxu0 %v2547
    %2616 = vmatprep.subr.bf16.mxu0 %v2552
    %2617 = vmatpush1.bf16.msra.mxu0 %v2551
    %2618 = vmatprep.subr.bf16.mxu0 %v2556
    %2619 = vmatpush1.bf16.msra.mxu0 %v2555
    %2620 = vmatprep.subr.bf16.mxu0 %v2560
    %2621 = vmatpush1.bf16.msra.mxu0 %v2559
    %2622 = vmatprep.subr.bf16.mxu0 %v2564
    %2623 = vmatpush1.bf16.msra.mxu0 %v2563
    %2624 = vmatprep.subr.bf16.mxu0 0
    %2625 = vmatpush1.bf16.msra.mxu0 0
    %2626 = vmatprep.subr.bf16.mxu0 0
    %2627 = vmatpush1.bf16.msra.mxu0 0
    %2628 = vmatprep.subr.bf16.mxu0 0
    %2629 = vmatpush1.bf16.msra.mxu0 0
    %2630 = vmatprep.subr.bf16.mxu0 0
    %2631 = vmatpush1.bf16.msra.mxu0 0
    %2632 = vmatprep.subr.bf16.mxu0 0
    %2633 = vmatpush1.bf16.msra.mxu0 0
    %2634 = vmatprep.subr.bf16.mxu0 0
    %2635 = vmatpush1.bf16.msra.mxu0 0
    %2636 = vmatprep.subr.bf16.mxu0 0
    %2637 = vmatpush1.bf16.msra.mxu0 0
    %2638 = vmatprep.mubr.bf16.mxu0 %v2604
    %2639 = vmatmul.mubr.bf16.gmra.mrb[0].mxu0 %v2363
    %v2640 = vpop.f32.mrb[0].mxu0
    %v2641 = vadd.f32 %v2406, %v2640
    %v2642 = vpop.f32.mrb[0].mxu0
    %v2643 = vadd.f32 %v2410, %v2642
    %v2644 = vpop.f32.mrb[0].mxu0
    %v2645 = vpop.f32.mrb[0].mxu0
    %2646 = vdwg.mxu0
    %2647 = vmatprep.subr.bf16.mxu0 %v2534
    %2648 = vmatpush1.bf16.msra.mxu0 %v2533
    %2649 = vmatprep.subr.bf16.mxu0 %v2538
    %2650 = vmatpush1.bf16.msra.mxu0 %v2537
    %2651 = vmatprep.subr.bf16.mxu0 %v2542
    %2652 = vmatpush1.bf16.msra.mxu0 %v2541
    %2653 = vmatprep.subr.bf16.mxu0 %v2546
    %2654 = vmatpush1.bf16.msra.mxu0 %v2545
    %2655 = vmatprep.subr.bf16.mxu0 %v2550
    %2656 = vmatpush1.bf16.msra.mxu0 %v2549
    %2657 = vmatprep.subr.bf16.mxu0 %v2554
    %2658 = vmatpush1.bf16.msra.mxu0 %v2553
    %2659 = vmatprep.subr.bf16.mxu0 %v2558
    %2660 = vmatpush1.bf16.msra.mxu0 %v2557
    %2661 = vmatprep.subr.bf16.mxu0 %v2562
    %2662 = vmatpush1.bf16.msra.mxu0 %v2561
    %2663 = vmatprep.subr.bf16.mxu0 %v2566
    %2664 = vmatpush1.bf16.msra.mxu0 %v2565
    %2665 = vmatprep.subr.bf16.mxu0 0
    %2666 = vmatpush1.bf16.msra.mxu0 0
    %2667 = vmatprep.subr.bf16.mxu0 0
    %2668 = vmatpush1.bf16.msra.mxu0 0
    %2669 = vmatprep.subr.bf16.mxu0 0
    %2670 = vmatpush1.bf16.msra.mxu0 0
    %2671 = vmatprep.subr.bf16.mxu0 0
    %2672 = vmatpush1.bf16.msra.mxu0 0
    %2673 = vmatprep.subr.bf16.mxu0 0
    %2674 = vmatpush1.bf16.msra.mxu0 0
    %2675 = vmatprep.subr.bf16.mxu0 0
    %2676 = vmatpush1.bf16.msra.mxu0 0
    %2677 = vmatprep.subr.bf16.mxu0 0
    %2678 = vmatpush1.bf16.msra.mxu0 0
    %2679 = vmatprep.mubr.bf16.mxu0 %v2604
    %2680 = vmatmul.mubr.bf16.gmra.mrb[0].mxu0 %v2363
    %v2681 = vpop.f32.mrb[0].mxu0
    %v2682 = vadd.f32 %v2414, %v2681
    %v2683 = vpop.f32.mrb[0].mxu0
    %v2684 = vadd.f32 %v2418, %v2683
    %v2685 = vpop.f32.mrb[0].mxu0
    %v2686 = vpop.f32.mrb[0].mxu0
    %2687 = vdwg.mxu0
    %v2690 = vcombine.low %v2641, %v2643
    %v2692 = vunpack.c.l.s4 1966171168
    %v2693 = vunpack.c.0.s8 %v2692
    %v2694 = vlaneseq
    %v2695 = vshrl.u32 %v2694, 7
    %v2696 = vsub.s32 %v2693, %v2695
    %v2697 = vrot.slane %v2690, %v2696
    %v2698 = vcombine.high %v2697, %v2697
    %v2700 = vunpack.c.l.s4 1966171168
    %v2701 = vunpack.c.0.s8 %v2700
    %v2702 = vlaneseq
    %v2703 = vshrl.u32 %v2702, 7
    %v2704 = vsub.s32 %v2701, %v2703
    %v2705 = vrot.slane %v2697, %v2704
    %v2707 = vunpack.c.l.s4 1966171168
    %v2708 = vunpack.c.0.s8 %v2707
    %v2709 = vlaneseq
    %v2710 = vshrl.u32 %v2709, 7
    %v2711 = vsub.s32 %v2708, %v2710
    %v2712 = vrot.slane %v2698, %v2711
    %v2715 = vadd.f32 %v2349, %v2705
    %v2716 = vadd.f32 %v2351, %v2712
    %v2717 = vxor.u32 %v2715, 2147483648
    %v2718 = vxor.u32 %v2716, 2147483648
    %v2719 = vmul.f32 %v2717, 1.442695
    %v2720 = vpow.pop %v2719
    %v2721 = vmul.f32 %v2718, 1.442695
    %v2722 = vpow.pop %v2721
    %v2723 = vadd.f32 %v2720, 1.0
    %v2724 = vadd.f32 %v2722, 1.0
    %v2725 = vrcp.pop %v2723
    %v2726 = vmul.f32 1.0, %v2725
    %v2727 = vrcp.pop %v2724
    %v2728 = vmul.f32 1.0, %v2727
    %2731 = vrot.lane.b32.xlu0 %v2349, 112
    %v2732 = vpop.permute.xlu0 %2731
    %2733 = vrot.lane.b32.xlu0 %v2351, 112
    %v2734 = vpop.permute.xlu0 %2733
    %v2735 = vrot.slane %v2732, 1
    %v2736 = vrot.slane %v2734, 1
    %v2737 = vrot.slane %v2732, 2
    %v2738 = vrot.slane %v2734, 2
    %v2739 = vsel %vm422, %v2735, %v2737
    %v2740 = vsel %vm422, %v2736, %v2738
    %v2744 = vcombine.low %v2643, %v2682
    %v2746 = vunpack.c.l.s4 1966171168
    %v2747 = vunpack.c.0.s8 %v2746
    %v2748 = vlaneseq
    %v2749 = vshrl.u32 %v2748, 7
    %v2750 = vsub.s32 %v2747, %v2749
    %v2751 = vrot.slane %v2744, %v2750
    %v2752 = vcombine.high %v2751, %v2751
    %v2754 = vunpack.c.l.s4 1966171168
    %v2755 = vunpack.c.0.s8 %v2754
    %v2756 = vlaneseq
    %v2757 = vshrl.u32 %v2756, 7
    %v2758 = vsub.s32 %v2755, %v2757
    %v2759 = vrot.slane %v2751, %v2758
    %v2761 = vunpack.c.l.s4 1966171168
    %v2762 = vunpack.c.0.s8 %v2761
    %v2763 = vlaneseq
    %v2764 = vshrl.u32 %v2763, 7
    %v2765 = vsub.s32 %v2762, %v2764
    %v2766 = vrot.slane %v2752, %v2765
    %2767 = vrot.lane.b32.xlu0 %v2759, 112
    %v2768 = vpop.permute.xlu0 %2767
    %2769 = vrot.lane.b32.xlu0 %v2766, 112
    %v2770 = vpop.permute.xlu0 %2769
    %v2771 = vrot.slane %v2768, 1
    %v2772 = vrot.slane %v2770, 1
    %v2773 = vsel %vm422, %v2768, %v2771
    %v2774 = vsel %vm422, %v2770, %v2772
    %v2777 = vadd.f32 %v2739, %v2773
    %v2778 = vadd.f32 %v2740, %v2774
    %v2779 = vxor.u32 %v2777, 2147483648
    %v2780 = vxor.u32 %v2778, 2147483648
    %v2781 = vmul.f32 %v2779, 1.442695
    %v2782 = vpow.pop %v2781
    %v2783 = vmul.f32 %v2780, 1.442695
    %v2784 = vpow.pop %v2783
    %v2785 = vadd.f32 %v2782, 1.0
    %v2786 = vadd.f32 %v2784, 1.0
    %v2787 = vrcp.pop %v2785
    %v2788 = vmul.f32 1.0, %v2787
    %v2789 = vrcp.pop %v2786
    %v2790 = vmul.f32 1.0, %v2789
    %v2792 = vcombine.low %v2682, %v2684
    %v2794 = vunpack.c.l.s4 1966171168
    %v2795 = vunpack.c.0.s8 %v2794
    %v2796 = vlaneseq
    %v2797 = vshrl.u32 %v2796, 7
    %v2798 = vsub.s32 %v2795, %v2797
    %v2799 = vrot.slane %v2792, %v2798
    %v2800 = vcombine.high %v2799, %v2799
    %v2802 = vunpack.c.l.s4 1966171168
    %v2803 = vunpack.c.0.s8 %v2802
    %v2804 = vlaneseq
    %v2805 = vshrl.u32 %v2804, 7
    %v2806 = vsub.s32 %v2803, %v2805
    %v2807 = vrot.slane %v2799, %v2806
    %v2809 = vunpack.c.l.s4 1966171168
    %v2810 = vunpack.c.0.s8 %v2809
    %v2811 = vlaneseq
    %v2812 = vshrl.u32 %v2811, 7
    %v2813 = vsub.s32 %v2810, %v2812
    %v2814 = vrot.slane %v2800, %v2813
    %2815 = vrot.lane.b32.xlu0 %v2807, 96
    %v2816 = vpop.permute.xlu0 %2815
    %2817 = vrot.lane.b32.xlu0 %v2814, 96
    %v2818 = vpop.permute.xlu0 %2817
    %v2819 = vrot.slane %v2816, 1
    %v2820 = vrot.slane %v2818, 1
    %v2821 = vsel %vm505, %v2816, %v2819
    %v2822 = vsel %vm505, %v2818, %v2820
    %v2825 = vmul.f32 %v2726, %v2821
    %v2826 = vmul.f32 %v2728, %v2822
    %2827 = vrot.lane.b32.xlu0 %v2349, 96
    %v2828 = vpop.permute.xlu0 %2827
    %2829 = vrot.lane.b32.xlu0 %v2351, 96
    %v2830 = vpop.permute.xlu0 %2829
    %v2831 = vrot.slane %v2828, 2
    %v2832 = vrot.slane %v2830, 2
    %v2833 = vrot.slane %v2828, 3
    %v2834 = vrot.slane %v2830, 3
    %v2835 = vsel %vm505, %v2831, %v2833
    %v2836 = vsel %vm505, %v2832, %v2834
    %v2839 = vadd.f32 %v2835, %v2825
    %v2840 = vadd.f32 %v2836, %v2826
    %v2841 = vtanh.pop %v2839
    %v2842 = vtanh.pop %v2840
    %v2843 = vsub.f32 1.0, %v2788
    %v2844 = vsub.f32 1.0, %v2790
    %v2845 = vmul.f32 %v2843, %v2841
    %v2846 = vmul.f32 %v2844, %v2842
    %v2848 = vunpack.c.l.s4 1966171168
    %v2849 = vunpack.c.0.s8 %v2848
    %v2850 = vlaneseq
    %v2851 = vshrl.u32 %v2850, 7
    %v2852 = vsub.s32 %v2849, %v2851
    %v2853 = vrot.slane %v2347, %v2852
    %v2854 = vcombine.high %v2853, %v2853
    %v2857 = vmul.f32 %v2788, %v2853
    %v2858 = vmul.f32 %v2790, %v2854
    %v2859 = vadd.f32 %v2845, %v2857
    %v2860 = vadd.f32 %v2846, %v2858
    %v2863 = vcombine.low %v2859, %v2860
    %v2865 = vunpack.c.l.s4 1935823168
    %v2866 = vunpack.c.0.s8 %v2865
    %v2867 = vlaneseq
    %v2868 = vshrl.u32 %v2867, 7
    %v2869 = vsub.s32 %v2866, %v2868
    %v2870 = vrot.slane %v2863, %v2869
    %2872 = vst.msk [vmem:[#allocation2] sm:$0xf] %vm559, %v2870
    %v2873 = vlaneseq
    %v2874 = vshrl.u32 %v2873, 7
    %v2875 = vsub.s32 0, %v2874
    %v2876 = vrot.slane %v2859, %v2875
    %v2877 = vlaneseq
    %v2878 = vshrl.u32 %v2877, 7
    %v2879 = vsub.s32 1, %v2878
    %v2880 = vrot.slane %v2859, %v2879
    %v2881 = vlaneseq
    %v2882 = vshrl.u32 %v2881, 7
    %v2883 = vsub.s32 0, %v2882
    %v2884 = vrot.slane %v2860, %v2883
    %v2885 = vlaneseq
    %v2886 = vshrl.u32 %v2885, 7
    %v2887 = vsub.s32 1, %v2886
    %v2888 = vrot.slane %v2860, %v2887
    %v2893 = vpack.c.bf16 %v2876, %v2876
    %v2894 = vpack.c.bf16 %v2880, %v2880
    %v2895 = vpack.c.bf16 %v2884, %v2884
    %v2896 = vpack.c.bf16 %v2888, %v2888
    %v2901 = vunpack.c.l.b16 %v2893
    %v2902 = vunpack.c.l.b16 %v2894
    %v2903 = vunpack.c.l.b16 %v2895
    %v2904 = vunpack.c.l.b16 %v2896
    %v2905 = vpack.c.b16 %v2902, %v2901
    %v2906 = vpack.c.b16 %v2904, %v2903
    %v2907 = vrot.slane %v2905, 6
    %v2908 = vrot.slane %v2906, 6
    %vm2911 = vcmask 1042434
    %vm2912 = vsmask.f32 2304
    %vm2913 = vmand %vm2911, %vm2912
    %vm2914 = vcmask 129030
    %vm2915 = vsmask.f32 6400
    %vm2916 = vmand %vm2914, %vm2915
    %vm2917 = vmor %vm2916, %vm2913
    %v2918 = vld [vmem:[%s4] sm:$0x44]
    %v2919 = vsel %vm2917, %v2907, %v2918
    %2920 = vst [vmem:[%s4] sm:$0x44] %v2919
    %v2921 = vld [vmem:[%s4 + $0x8] sm:$0x44]
    %v2922 = vsel %vm2917, %v2908, %v2921
    %2923 = vst [vmem:[%s4 + $0x8] sm:$0x44] %v2922
    %v2924 = vld [vmem:[#allocation2] sm:$0xf]
    %s2925 = scalar_lea.vmem %s0, 5
    %v2926 = vld [vmem:[%s2925] ss:$8 sm:$0xf]
    %s2927 = scalar_lea.vmem %s0, 37
    %v2928 = vld [vmem:[%s2927] ss:$8 sm:$0xf]
    %v2931 = vunpack.c.l.s4 1983009808
    %v2932 = vunpack.c.0.s8 %v2931
    %v2933 = vlaneseq
    %v2934 = vshrl.u32 %v2933, 7
    %v2935 = vsub.s32 %v2932, %v2934
    %v2936 = vrot.slane %v2924, %v2935
    %v2937 = vcombine.high %v2936, %v2936
    %v2940 = vpack.c.bf16 %v2936, %v2936
    %v2941 = vpack.c.bf16 %v2937, %v2937
    %v2942 = vld [vmem:[%s1] sm:$0xff]
    %v2943 = vld [vmem:[%s1 + $0x8] sm:$0xff]
    %v2944 = vld [vmem:[%s1 + $0x10] sm:$0xff]
    %v2945 = vld [vmem:[%s1 + $0x18] sm:$0xff]
    %v2946 = vld [vmem:[%s1 + $0x20] sm:$0xff]
    %v2947 = vld [vmem:[%s1 + $0x28] sm:$0xff]
    %v2948 = vld [vmem:[%s1 + $0x30] sm:$0xff]
    %v2949 = vld [vmem:[%s1 + $0x38] sm:$0xff]
    %v2950 = vld [vmem:[%s1 + $0x40] sm:$0xff]
    %v2951 = vld [vmem:[%s1 + $0x48] sm:$0xff]
    %v2952 = vld [vmem:[%s1 + $0x50] sm:$0xff]
    %v2953 = vld [vmem:[%s1 + $0x58] sm:$0xff]
    %v2954 = vld [vmem:[%s1 + $0x60] sm:$0xff]
    %v2955 = vld [vmem:[%s1 + $0x68] sm:$0xff]
    %v2956 = vld [vmem:[%s1 + $0x70] sm:$0xff]
    %v2957 = vld [vmem:[%s1 + $0x78] sm:$0xff]
    %v2958 = vld [vmem:[%s1 + $0x80] sm:$0xff]
    %v2959 = vld [vmem:[%s1 + $0x88] sm:$0xff]
    %v2960 = vld [vmem:[%s1 + $0x90] sm:$0xff]
    %v2961 = vld [vmem:[%s1 + $0x98] sm:$0xff]
    %v2962 = vld [vmem:[%s1 + $0xa0] sm:$0xff]
    %v2963 = vld [vmem:[%s1 + $0xa8] sm:$0xff]
    %v2964 = vld [vmem:[%s1 + $0xb0] sm:$0xff]
    %v2965 = vld [vmem:[%s1 + $0xb8] sm:$0xff]
    %v2966 = vld [vmem:[%s1 + $0xc0] sm:$0xff]
    %v2967 = vld [vmem:[%s1 + $0xc8] sm:$0xff]
    %v2968 = vld [vmem:[%s1 + $0xd0] sm:$0xff]
    %v2969 = vld [vmem:[%s1 + $0xd8] sm:$0xff]
    %v2970 = vld [vmem:[%s1 + $0xe0] sm:$0xff]
    %v2971 = vld [vmem:[%s1 + $0xe8] sm:$0xff]
    %v2972 = vld [vmem:[%s1 + $0xf0] sm:$0xff]
    %v2973 = vld [vmem:[%s1 + $0xf8] sm:$0xff]
    %v2974 = vld [vmem:[%s1 + $0x100] sm:$0xff]
    %v2975 = vld [vmem:[%s1 + $0x108] sm:$0xff]
    %v2976 = vld [vmem:[%s1 + $0x110] sm:$0xff]
    %v2977 = vld [vmem:[%s1 + $0x118] sm:$0xff]
    %v2978 = vld [vmem:[%s2] sm:$0xf]
    %v2980 = vlaneseq
    %v2981 = vshrl.u32 %v2980, 7
    %v2982 = vsub.s32 0, %v2981
    %v2983 = vrot.slane %v2978, %v2982
    %v2984 = vlaneseq
    %v2985 = vshrl.u32 %v2984, 7
    %v2986 = vsub.s32 1, %v2985
    %v2987 = vrot.slane %v2978, %v2986
    %v2988 = vlaneseq
    %v2989 = vshrl.u32 %v2988, 7
    %v2990 = vsub.s32 2, %v2989
    %v2991 = vrot.slane %v2978, %v2990
    %v2992 = vlaneseq
    %v2993 = vshrl.u32 %v2992, 7
    %v2994 = vsub.s32 3, %v2993
    %v2995 = vrot.slane %v2978, %v2994
    %v3036 = vunpack.c.l.b16 %v2942
    %v3037 = vunpack.c.h.b16 %v2942
    %v3038 = vunpack.c.l.b16 %v2943
    %v3039 = vunpack.c.h.b16 %v2943
    %v3040 = vunpack.c.l.b16 %v2944
    %v3041 = vunpack.c.h.b16 %v2944
    %v3042 = vunpack.c.l.b16 %v2945
    %v3043 = vunpack.c.h.b16 %v2945
    %v3044 = vunpack.c.l.b16 %v2946
    %v3045 = vunpack.c.h.b16 %v2946
    %v3046 = vunpack.c.l.b16 %v2947
    %v3047 = vunpack.c.h.b16 %v2947
    %v3048 = vunpack.c.l.b16 %v2948
    %v3049 = vunpack.c.h.b16 %v2948
    %v3050 = vunpack.c.l.b16 %v2949
    %v3051 = vunpack.c.h.b16 %v2949
    %v3052 = vunpack.c.l.b16 %v2950
    %v3053 = vunpack.c.h.b16 %v2950
    %v3054 = vunpack.c.l.b16 %v2951
    %v3055 = vunpack.c.h.b16 %v2951
    %v3056 = vunpack.c.l.b16 %v2952
    %v3057 = vunpack.c.h.b16 %v2952
    %v3058 = vunpack.c.l.b16 %v2953
    %v3059 = vunpack.c.h.b16 %v2953
    %v3060 = vunpack.c.l.b16 %v2954
    %v3061 = vunpack.c.h.b16 %v2954
    %v3062 = vunpack.c.l.b16 %v2955
    %v3063 = vunpack.c.h.b16 %v2955
    %v3064 = vunpack.c.l.b16 %v2956
    %v3065 = vunpack.c.h.b16 %v2956
    %v3066 = vunpack.c.l.b16 %v2957
    %v3067 = vunpack.c.h.b16 %v2957
    %v3068 = vunpack.c.l.b16 %v2958
    %v3069 = vunpack.c.h.b16 %v2958
    %v3070 = vunpack.c.l.b16 %v2959
    %v3071 = vunpack.c.h.b16 %v2959
    %v3072 = vunpack.c.l.b16 %v2960
    %v3073 = vunpack.c.h.b16 %v2960
    %v3074 = vunpack.c.l.b16 %v2961
    %v3075 = vunpack.c.h.b16 %v2961
    %v3076 = vunpack.c.l.b16 %v2962
    %v3077 = vunpack.c.h.b16 %v2962
    %v3078 = vunpack.c.l.b16 %v2963
    %v3079 = vunpack.c.h.b16 %v2963
    %v3080 = vunpack.c.l.b16 %v2964
    %v3081 = vunpack.c.h.b16 %v2964
    %v3082 = vunpack.c.l.b16 %v2965
    %v3083 = vunpack.c.h.b16 %v2965
    %v3084 = vunpack.c.l.b16 %v2966
    %v3085 = vunpack.c.h.b16 %v2966
    %v3086 = vunpack.c.l.b16 %v2967
    %v3087 = vunpack.c.h.b16 %v2967
    %v3088 = vunpack.c.l.b16 %v2968
    %v3089 = vunpack.c.h.b16 %v2968
    %v3090 = vunpack.c.l.b16 %v2969
    %v3091 = vunpack.c.h.b16 %v2969
    %v3092 = vunpack.c.l.b16 %v2970
    %v3093 = vunpack.c.h.b16 %v2970
    %v3094 = vunpack.c.l.b16 %v2971
    %v3095 = vunpack.c.h.b16 %v2971
    %v3096 = vunpack.c.l.b16 %v2972
    %v3097 = vunpack.c.h.b16 %v2972
    %v3098 = vunpack.c.l.b16 %v2973
    %v3099 = vunpack.c.h.b16 %v2973
    %v3100 = vunpack.c.l.b16 %v2974
    %v3101 = vunpack.c.h.b16 %v2974
    %v3102 = vunpack.c.l.b16 %v2975
    %v3103 = vunpack.c.h.b16 %v2975
    %v3104 = vunpack.c.l.b16 %v2976
    %v3105 = vunpack.c.h.b16 %v2976
    %v3106 = vunpack.c.l.b16 %v2977
    %v3107 = vunpack.c.h.b16 %v2977
    %v3108 = vpack.c.b16 %v3040, %v3036
    %v3109 = vpack.c.b16 %v3041, %v3037
    %v3110 = vpack.c.b16 %v3042, %v3038
    %v3111 = vpack.c.b16 %v3043, %v3039
    %v3112 = vpack.c.b16 %v3048, %v3044
    %v3113 = vpack.c.b16 %v3049, %v3045
    %v3114 = vpack.c.b16 %v3050, %v3046
    %v3115 = vpack.c.b16 %v3051, %v3047
    %v3116 = vpack.c.b16 %v3056, %v3052
    %v3117 = vpack.c.b16 %v3057, %v3053
    %v3118 = vpack.c.b16 %v3058, %v3054
    %v3119 = vpack.c.b16 %v3059, %v3055
    %v3120 = vpack.c.b16 %v3064, %v3060
    %v3121 = vpack.c.b16 %v3065, %v3061
    %v3122 = vpack.c.b16 %v3066, %v3062
    %v3123 = vpack.c.b16 %v3067, %v3063
    %v3124 = vpack.c.b16 %v3072, %v3068
    %v3125 = vpack.c.b16 %v3073, %v3069
    %v3126 = vpack.c.b16 %v3074, %v3070
    %v3127 = vpack.c.b16 %v3075, %v3071
    %v3128 = vpack.c.b16 %v3080, %v3076
    %v3129 = vpack.c.b16 %v3081, %v3077
    %v3130 = vpack.c.b16 %v3082, %v3078
    %v3131 = vpack.c.b16 %v3083, %v3079
    %v3132 = vpack.c.b16 %v3088, %v3084
    %v3133 = vpack.c.b16 %v3089, %v3085
    %v3134 = vpack.c.b16 %v3090, %v3086
    %v3135 = vpack.c.b16 %v3091, %v3087
    %v3136 = vpack.c.b16 %v3096, %v3092
    %v3137 = vpack.c.b16 %v3097, %v3093
    %v3138 = vpack.c.b16 %v3098, %v3094
    %v3139 = vpack.c.b16 %v3099, %v3095
    %v3140 = vpack.c.b16 %v3104, %v3100
    %v3141 = vpack.c.b16 %v3105, %v3101
    %v3142 = vpack.c.b16 %v3106, %v3102
    %v3143 = vpack.c.b16 %v3107, %v3103
    %v3181 = vsel %vm285, %v2941, 0
    %3183 = vmatprep.subr.bf16.mxu0 %v3109
    %3184 = vmatpush1.bf16.msra.mxu0 %v3108
    %3185 = vmatprep.subr.bf16.mxu0 %v3113
    %3186 = vmatpush1.bf16.msra.mxu0 %v3112
    %3187 = vmatprep.subr.bf16.mxu0 %v3117
    %3188 = vmatpush1.bf16.msra.mxu0 %v3116
    %3189 = vmatprep.subr.bf16.mxu0 %v3121
    %3190 = vmatpush1.bf16.msra.mxu0 %v3120
    %3191 = vmatprep.subr.bf16.mxu0 %v3125
    %3192 = vmatpush1.bf16.msra.mxu0 %v3124
    %3193 = vmatprep.subr.bf16.mxu0 %v3129
    %3194 = vmatpush1.bf16.msra.mxu0 %v3128
    %3195 = vmatprep.subr.bf16.mxu0 %v3133
    %3196 = vmatpush1.bf16.msra.mxu0 %v3132
    %3197 = vmatprep.subr.bf16.mxu0 %v3137
    %3198 = vmatpush1.bf16.msra.mxu0 %v3136
    %3199 = vmatprep.subr.bf16.mxu0 %v3141
    %3200 = vmatpush1.bf16.msra.mxu0 %v3140
    %3201 = vmatprep.subr.bf16.mxu0 0
    %3202 = vmatpush1.bf16.msra.mxu0 0
    %3203 = vmatprep.subr.bf16.mxu0 0
    %3204 = vmatpush1.bf16.msra.mxu0 0
    %3205 = vmatprep.subr.bf16.mxu0 0
    %3206 = vmatpush1.bf16.msra.mxu0 0
    %3207 = vmatprep.subr.bf16.mxu0 0
    %3208 = vmatpush1.bf16.msra.mxu0 0
    %3209 = vmatprep.subr.bf16.mxu0 0
    %3210 = vmatpush1.bf16.msra.mxu0 0
    %3211 = vmatprep.subr.bf16.mxu0 0
    %3212 = vmatpush1.bf16.msra.mxu0 0
    %3213 = vmatprep.subr.bf16.mxu0 0
    %3214 = vmatpush1.bf16.msra.mxu0 0
    %3215 = vmatprep.mubr.bf16.mxu0 %v3181
    %3216 = vmatmul.mubr.bf16.gmra.mrb[0].mxu0 %v2940
    %v3217 = vpop.f32.mrb[0].mxu0
    %v3218 = vadd.f32 %v2983, %v3217
    %v3219 = vpop.f32.mrb[0].mxu0
    %v3220 = vadd.f32 %v2987, %v3219
    %v3221 = vpop.f32.mrb[0].mxu0
    %v3222 = vpop.f32.mrb[0].mxu0
    %3223 = vdwg.mxu0
    %3224 = vmatprep.subr.bf16.mxu0 %v3111
    %3225 = vmatpush1.bf16.msra.mxu0 %v3110
    %3226 = vmatprep.subr.bf16.mxu0 %v3115
    %3227 = vmatpush1.bf16.msra.mxu0 %v3114
    %3228 = vmatprep.subr.bf16.mxu0 %v3119
    %3229 = vmatpush1.bf16.msra.mxu0 %v3118
    %3230 = vmatprep.subr.bf16.mxu0 %v3123
    %3231 = vmatpush1.bf16.msra.mxu0 %v3122
    %3232 = vmatprep.subr.bf16.mxu0 %v3127
    %3233 = vmatpush1.bf16.msra.mxu0 %v3126
    %3234 = vmatprep.subr.bf16.mxu0 %v3131
    %3235 = vmatpush1.bf16.msra.mxu0 %v3130
    %3236 = vmatprep.subr.bf16.mxu0 %v3135
    %3237 = vmatpush1.bf16.msra.mxu0 %v3134
    %3238 = vmatprep.subr.bf16.mxu0 %v3139
    %3239 = vmatpush1.bf16.msra.mxu0 %v3138
    %3240 = vmatprep.subr.bf16.mxu0 %v3143
    %3241 = vmatpush1.bf16.msra.mxu0 %v3142
    %3242 = vmatprep.subr.bf16.mxu0 0
    %3243 = vmatpush1.bf16.msra.mxu0 0
    %3244 = vmatprep.subr.bf16.mxu0 0
    %3245 = vmatpush1.bf16.msra.mxu0 0
    %3246 = vmatprep.subr.bf16.mxu0 0
    %3247 = vmatpush1.bf16.msra.mxu0 0
    %3248 = vmatprep.subr.bf16.mxu0 0
    %3249 = vmatpush1.bf16.msra.mxu0 0
    %3250 = vmatprep.subr.bf16.mxu0 0
    %3251 = vmatpush1.bf16.msra.mxu0 0
    %3252 = vmatprep.subr.bf16.mxu0 0
    %3253 = vmatpush1.bf16.msra.mxu0 0
    %3254 = vmatprep.subr.bf16.mxu0 0
    %3255 = vmatpush1.bf16.msra.mxu0 0
    %3256 = vmatprep.mubr.bf16.mxu0 %v3181
    %3257 = vmatmul.mubr.bf16.gmra.mrb[0].mxu0 %v2940
    %v3258 = vpop.f32.mrb[0].mxu0
    %v3259 = vadd.f32 %v2991, %v3258
    %v3260 = vpop.f32.mrb[0].mxu0
    %v3261 = vadd.f32 %v2995, %v3260
    %v3262 = vpop.f32.mrb[0].mxu0
    %v3263 = vpop.f32.mrb[0].mxu0
    %3264 = vdwg.mxu0
    %v3267 = vcombine.low %v3218, %v3220
    %v3269 = vunpack.c.l.s4 1966171168
    %v3270 = vunpack.c.0.s8 %v3269
    %v3271 = vlaneseq
    %v3272 = vshrl.u32 %v3271, 7
    %v3273 = vsub.s32 %v3270, %v3272
    %v3274 = vrot.slane %v3267, %v3273
    %v3275 = vcombine.high %v3274, %v3274
    %v3277 = vunpack.c.l.s4 1966171168
    %v3278 = vunpack.c.0.s8 %v3277
    %v3279 = vlaneseq
    %v3280 = vshrl.u32 %v3279, 7
    %v3281 = vsub.s32 %v3278, %v3280
    %v3282 = vrot.slane %v3274, %v3281
    %v3284 = vunpack.c.l.s4 1966171168
    %v3285 = vunpack.c.0.s8 %v3284
    %v3286 = vlaneseq
    %v3287 = vshrl.u32 %v3286, 7
    %v3288 = vsub.s32 %v3285, %v3287
    %v3289 = vrot.slane %v3275, %v3288
    %v3292 = vadd.f32 %v2926, %v3282
    %v3293 = vadd.f32 %v2928, %v3289
    %v3294 = vxor.u32 %v3292, 2147483648
    %v3295 = vxor.u32 %v3293, 2147483648
    %v3296 = vmul.f32 %v3294, 1.442695
    %v3297 = vpow.pop %v3296
    %v3298 = vmul.f32 %v3295, 1.442695
    %v3299 = vpow.pop %v3298
    %v3300 = vadd.f32 %v3297, 1.0
    %v3301 = vadd.f32 %v3299, 1.0
    %v3302 = vrcp.pop %v3300
    %v3303 = vmul.f32 1.0, %v3302
    %v3304 = vrcp.pop %v3301
    %v3305 = vmul.f32 1.0, %v3304
    %3308 = vrot.lane.b32.xlu0 %v2926, 112
    %v3309 = vpop.permute.xlu0 %3308
    %3310 = vrot.lane.b32.xlu0 %v2928, 112
    %v3311 = vpop.permute.xlu0 %3310
    %v3312 = vrot.slane %v3309, 1
    %v3313 = vrot.slane %v3311, 1
    %v3314 = vrot.slane %v3309, 2
    %v3315 = vrot.slane %v3311, 2
    %v3316 = vsel %vm422, %v3312, %v3314
    %v3317 = vsel %vm422, %v3313, %v3315
    %v3321 = vcombine.low %v3220, %v3259
    %v3323 = vunpack.c.l.s4 1966171168
    %v3324 = vunpack.c.0.s8 %v3323
    %v3325 = vlaneseq
    %v3326 = vshrl.u32 %v3325, 7
    %v3327 = vsub.s32 %v3324, %v3326
    %v3328 = vrot.slane %v3321, %v3327
    %v3329 = vcombine.high %v3328, %v3328
    %v3331 = vunpack.c.l.s4 1966171168
    %v3332 = vunpack.c.0.s8 %v3331
    %v3333 = vlaneseq
    %v3334 = vshrl.u32 %v3333, 7
    %v3335 = vsub.s32 %v3332, %v3334
    %v3336 = vrot.slane %v3328, %v3335
    %v3338 = vunpack.c.l.s4 1966171168
    %v3339 = vunpack.c.0.s8 %v3338
    %v3340 = vlaneseq
    %v3341 = vshrl.u32 %v3340, 7
    %v3342 = vsub.s32 %v3339, %v3341
    %v3343 = vrot.slane %v3329, %v3342
    %3344 = vrot.lane.b32.xlu0 %v3336, 112
    %v3345 = vpop.permute.xlu0 %3344
    %3346 = vrot.lane.b32.xlu0 %v3343, 112
    %v3347 = vpop.permute.xlu0 %3346
    %v3348 = vrot.slane %v3345, 1
    %v3349 = vrot.slane %v3347, 1
    %v3350 = vsel %vm422, %v3345, %v3348
    %v3351 = vsel %vm422, %v3347, %v3349
    %v3354 = vadd.f32 %v3316, %v3350
    %v3355 = vadd.f32 %v3317, %v3351
    %v3356 = vxor.u32 %v3354, 2147483648
    %v3357 = vxor.u32 %v3355, 2147483648
    %v3358 = vmul.f32 %v3356, 1.442695
    %v3359 = vpow.pop %v3358
    %v3360 = vmul.f32 %v3357, 1.442695
    %v3361 = vpow.pop %v3360
    %v3362 = vadd.f32 %v3359, 1.0
    %v3363 = vadd.f32 %v3361, 1.0
    %v3364 = vrcp.pop %v3362
    %v3365 = vmul.f32 1.0, %v3364
    %v3366 = vrcp.pop %v3363
    %v3367 = vmul.f32 1.0, %v3366
    %v3369 = vcombine.low %v3259, %v3261
    %v3371 = vunpack.c.l.s4 1966171168
    %v3372 = vunpack.c.0.s8 %v3371
    %v3373 = vlaneseq
    %v3374 = vshrl.u32 %v3373, 7
    %v3375 = vsub.s32 %v3372, %v3374
    %v3376 = vrot.slane %v3369, %v3375
    %v3377 = vcombine.high %v3376, %v3376
    %v3379 = vunpack.c.l.s4 1966171168
    %v3380 = vunpack.c.0.s8 %v3379
    %v3381 = vlaneseq
    %v3382 = vshrl.u32 %v3381, 7
    %v3383 = vsub.s32 %v3380, %v3382
    %v3384 = vrot.slane %v3376, %v3383
    %v3386 = vunpack.c.l.s4 1966171168
    %v3387 = vunpack.c.0.s8 %v3386
    %v3388 = vlaneseq
    %v3389 = vshrl.u32 %v3388, 7
    %v3390 = vsub.s32 %v3387, %v3389
    %v3391 = vrot.slane %v3377, %v3390
    %3392 = vrot.lane.b32.xlu0 %v3384, 96
    %v3393 = vpop.permute.xlu0 %3392
    %3394 = vrot.lane.b32.xlu0 %v3391, 96
    %v3395 = vpop.permute.xlu0 %3394
    %v3396 = vrot.slane %v3393, 1
    %v3397 = vrot.slane %v3395, 1
    %v3398 = vsel %vm505, %v3393, %v3396
    %v3399 = vsel %vm505, %v3395, %v3397
    %v3402 = vmul.f32 %v3303, %v3398
    %v3403 = vmul.f32 %v3305, %v3399
    %3404 = vrot.lane.b32.xlu0 %v2926, 96
    %v3405 = vpop.permute.xlu0 %3404
    %3406 = vrot.lane.b32.xlu0 %v2928, 96
    %v3407 = vpop.permute.xlu0 %3406
    %v3408 = vrot.slane %v3405, 2
    %v3409 = vrot.slane %v3407, 2
    %v3410 = vrot.slane %v3405, 3
    %v3411 = vrot.slane %v3407, 3
    %v3412 = vsel %vm505, %v3408, %v3410
    %v3413 = vsel %vm505, %v3409, %v3411
    %v3416 = vadd.f32 %v3412, %v3402
    %v3417 = vadd.f32 %v3413, %v3403
    %v3418 = vtanh.pop %v3416
    %v3419 = vtanh.pop %v3417
    %v3420 = vsub.f32 1.0, %v3365
    %v3421 = vsub.f32 1.0, %v3367
    %v3422 = vmul.f32 %v3420, %v3418
    %v3423 = vmul.f32 %v3421, %v3419
    %v3425 = vunpack.c.l.s4 1966171168
    %v3426 = vunpack.c.0.s8 %v3425
    %v3427 = vlaneseq
    %v3428 = vshrl.u32 %v3427, 7
    %v3429 = vsub.s32 %v3426, %v3428
    %v3430 = vrot.slane %v2924, %v3429
    %v3431 = vcombine.high %v3430, %v3430
    %v3434 = vmul.f32 %v3365, %v3430
    %v3435 = vmul.f32 %v3367, %v3431
    %v3436 = vadd.f32 %v3422, %v3434
    %v3437 = vadd.f32 %v3423, %v3435
    %v3440 = vcombine.low %v3436, %v3437
    %v3442 = vunpack.c.l.s4 1935823168
    %v3443 = vunpack.c.0.s8 %v3442
    %v3444 = vlaneseq
    %v3445 = vshrl.u32 %v3444, 7
    %v3446 = vsub.s32 %v3443, %v3445
    %v3447 = vrot.slane %v3440, %v3446
    %3449 = vst.msk [vmem:[#allocation2] sm:$0xf] %vm559, %v3447
    %v3450 = vlaneseq
    %v3451 = vshrl.u32 %v3450, 7
    %v3452 = vsub.s32 0, %v3451
    %v3453 = vrot.slane %v3436, %v3452
    %v3454 = vlaneseq
    %v3455 = vshrl.u32 %v3454, 7
    %v3456 = vsub.s32 1, %v3455
    %v3457 = vrot.slane %v3436, %v3456
    %v3458 = vlaneseq
    %v3459 = vshrl.u32 %v3458, 7
    %v3460 = vsub.s32 0, %v3459
    %v3461 = vrot.slane %v3437, %v3460
    %v3462 = vlaneseq
    %v3463 = vshrl.u32 %v3462, 7
    %v3464 = vsub.s32 1, %v3463
    %v3465 = vrot.slane %v3437, %v3464
    %v3470 = vpack.c.bf16 %v3453, %v3453
    %v3471 = vpack.c.bf16 %v3457, %v3457
    %v3472 = vpack.c.bf16 %v3461, %v3461
    %v3473 = vpack.c.bf16 %v3465, %v3465
    %v3478 = vunpack.c.l.b16 %v3470
    %v3479 = vunpack.c.l.b16 %v3471
    %v3480 = vunpack.c.l.b16 %v3472
    %v3481 = vunpack.c.l.b16 %v3473
    %v3482 = vpack.c.b16 %v3479, %v3478
    %v3483 = vpack.c.b16 %v3481, %v3480
    %v3485 = vshll.u32 %v3482, 16
    %v3487 = vrot.slane %v3485, 6
    %v3489 = vshll.u32 %v3483, 16
    %v3491 = vrot.slane %v3489, 6
    %vm3494 = vsmask.f32 7946
    %vm3495 = vmand %vm2911, %vm3494
    %vm3496 = vsmask.f32 7962
    %vm3497 = vmand %vm2914, %vm3496
    %vm3498 = vmor %vm3497, %vm3495
    %v3499 = vld [vmem:[%s4] sm:$0x44]
    %v3500 = vsel %vm3498, %v3487, %v3499
    %3501 = vst [vmem:[%s4] sm:$0x44] %v3500
    %v3502 = vld [vmem:[%s4 + $0x8] sm:$0x44]
    %v3503 = vsel %vm3498, %v3491, %v3502
    %3504 = vst [vmem:[%s4 + $0x8] sm:$0x44] %v3503
    %v3505 = vld [vmem:[#allocation2] sm:$0xf]
    %s3506 = scalar_lea.vmem %s0, 6
    %v3507 = vld [vmem:[%s3506] ss:$8 sm:$0xf]
    %s3508 = scalar_lea.vmem %s0, 38
    %v3509 = vld [vmem:[%s3508] ss:$8 sm:$0xf]
    %v3512 = vunpack.c.l.s4 1983009808
    %v3513 = vunpack.c.0.s8 %v3512
    %v3514 = vlaneseq
    %v3515 = vshrl.u32 %v3514, 7
    %v3516 = vsub.s32 %v3513, %v3515
    %v3517 = vrot.slane %v3505, %v3516
    %v3518 = vcombine.high %v3517, %v3517
    %v3521 = vpack.c.bf16 %v3517, %v3517
    %v3522 = vpack.c.bf16 %v3518, %v3518
    %v3523 = vld [vmem:[%s1] sm:$0xff]
    %v3524 = vld [vmem:[%s1 + $0x8] sm:$0xff]
    %v3525 = vld [vmem:[%s1 + $0x10] sm:$0xff]
    %v3526 = vld [vmem:[%s1 + $0x18] sm:$0xff]
    %v3527 = vld [vmem:[%s1 + $0x20] sm:$0xff]
    %v3528 = vld [vmem:[%s1 + $0x28] sm:$0xff]
    %v3529 = vld [vmem:[%s1 + $0x30] sm:$0xff]
    %v3530 = vld [vmem:[%s1 + $0x38] sm:$0xff]
    %v3531 = vld [vmem:[%s1 + $0x40] sm:$0xff]
    %v3532 = vld [vmem:[%s1 + $0x48] sm:$0xff]
    %v3533 = vld [vmem:[%s1 + $0x50] sm:$0xff]
    %v3534 = vld [vmem:[%s1 + $0x58] sm:$0xff]
    %v3535 = vld [vmem:[%s1 + $0x60] sm:$0xff]
    %v3536 = vld [vmem:[%s1 + $0x68] sm:$0xff]
    %v3537 = vld [vmem:[%s1 + $0x70] sm:$0xff]
    %v3538 = vld [vmem:[%s1 + $0x78] sm:$0xff]
    %v3539 = vld [vmem:[%s1 + $0x80] sm:$0xff]
    %v3540 = vld [vmem:[%s1 + $0x88] sm:$0xff]
    %v3541 = vld [vmem:[%s1 + $0x90] sm:$0xff]
    %v3542 = vld [vmem:[%s1 + $0x98] sm:$0xff]
    %v3543 = vld [vmem:[%s1 + $0xa0] sm:$0xff]
    %v3544 = vld [vmem:[%s1 + $0xa8] sm:$0xff]
    %v3545 = vld [vmem:[%s1 + $0xb0] sm:$0xff]
    %v3546 = vld [vmem:[%s1 + $0xb8] sm:$0xff]
    %v3547 = vld [vmem:[%s1 + $0xc0] sm:$0xff]
    %v3548 = vld [vmem:[%s1 + $0xc8] sm:$0xff]
    %v3549 = vld [vmem:[%s1 + $0xd0] sm:$0xff]
    %v3550 = vld [vmem:[%s1 + $0xd8] sm:$0xff]
    %v3551 = vld [vmem:[%s1 + $0xe0] sm:$0xff]
    %v3552 = vld [vmem:[%s1 + $0xe8] sm:$0xff]
    %v3553 = vld [vmem:[%s1 + $0xf0] sm:$0xff]
    %v3554 = vld [vmem:[%s1 + $0xf8] sm:$0xff]
    %v3555 = vld [vmem:[%s1 + $0x100] sm:$0xff]
    %v3556 = vld [vmem:[%s1 + $0x108] sm:$0xff]
    %v3557 = vld [vmem:[%s1 + $0x110] sm:$0xff]
    %v3558 = vld [vmem:[%s1 + $0x118] sm:$0xff]
    %v3559 = vld [vmem:[%s2] sm:$0xf]
    %v3561 = vlaneseq
    %v3562 = vshrl.u32 %v3561, 7
    %v3563 = vsub.s32 0, %v3562
    %v3564 = vrot.slane %v3559, %v3563
    %v3565 = vlaneseq
    %v3566 = vshrl.u32 %v3565, 7
    %v3567 = vsub.s32 1, %v3566
    %v3568 = vrot.slane %v3559, %v3567
    %v3569 = vlaneseq
    %v3570 = vshrl.u32 %v3569, 7
    %v3571 = vsub.s32 2, %v3570
    %v3572 = vrot.slane %v3559, %v3571
    %v3573 = vlaneseq
    %v3574 = vshrl.u32 %v3573, 7
    %v3575 = vsub.s32 3, %v3574
    %v3576 = vrot.slane %v3559, %v3575
    %v3617 = vunpack.c.l.b16 %v3523
    %v3618 = vunpack.c.h.b16 %v3523
    %v3619 = vunpack.c.l.b16 %v3524
    %v3620 = vunpack.c.h.b16 %v3524
    %v3621 = vunpack.c.l.b16 %v3525
    %v3622 = vunpack.c.h.b16 %v3525
    %v3623 = vunpack.c.l.b16 %v3526
    %v3624 = vunpack.c.h.b16 %v3526
    %v3625 = vunpack.c.l.b16 %v3527
    %v3626 = vunpack.c.h.b16 %v3527
    %v3627 = vunpack.c.l.b16 %v3528
    %v3628 = vunpack.c.h.b16 %v3528
    %v3629 = vunpack.c.l.b16 %v3529
    %v3630 = vunpack.c.h.b16 %v3529
    %v3631 = vunpack.c.l.b16 %v3530
    %v3632 = vunpack.c.h.b16 %v3530
    %v3633 = vunpack.c.l.b16 %v3531
    %v3634 = vunpack.c.h.b16 %v3531
    %v3635 = vunpack.c.l.b16 %v3532
    %v3636 = vunpack.c.h.b16 %v3532
    %v3637 = vunpack.c.l.b16 %v3533
    %v3638 = vunpack.c.h.b16 %v3533
    %v3639 = vunpack.c.l.b16 %v3534
    %v3640 = vunpack.c.h.b16 %v3534
    %v3641 = vunpack.c.l.b16 %v3535
    %v3642 = vunpack.c.h.b16 %v3535
    %v3643 = vunpack.c.l.b16 %v3536
    %v3644 = vunpack.c.h.b16 %v3536
    %v3645 = vunpack.c.l.b16 %v3537
    %v3646 = vunpack.c.h.b16 %v3537
    %v3647 = vunpack.c.l.b16 %v3538
    %v3648 = vunpack.c.h.b16 %v3538
    %v3649 = vunpack.c.l.b16 %v3539
    %v3650 = vunpack.c.h.b16 %v3539
    %v3651 = vunpack.c.l.b16 %v3540
    %v3652 = vunpack.c.h.b16 %v3540
    %v3653 = vunpack.c.l.b16 %v3541
    %v3654 = vunpack.c.h.b16 %v3541
    %v3655 = vunpack.c.l.b16 %v3542
    %v3656 = vunpack.c.h.b16 %v3542
    %v3657 = vunpack.c.l.b16 %v3543
    %v3658 = vunpack.c.h.b16 %v3543
    %v3659 = vunpack.c.l.b16 %v3544
    %v3660 = vunpack.c.h.b16 %v3544
    %v3661 = vunpack.c.l.b16 %v3545
    %v3662 = vunpack.c.h.b16 %v3545
    %v3663 = vunpack.c.l.b16 %v3546
    %v3664 = vunpack.c.h.b16 %v3546
    %v3665 = vunpack.c.l.b16 %v3547
    %v3666 = vunpack.c.h.b16 %v3547
    %v3667 = vunpack.c.l.b16 %v3548
    %v3668 = vunpack.c.h.b16 %v3548
    %v3669 = vunpack.c.l.b16 %v3549
    %v3670 = vunpack.c.h.b16 %v3549
    %v3671 = vunpack.c.l.b16 %v3550
    %v3672 = vunpack.c.h.b16 %v3550
    %v3673 = vunpack.c.l.b16 %v3551
    %v3674 = vunpack.c.h.b16 %v3551
    %v3675 = vunpack.c.l.b16 %v3552
    %v3676 = vunpack.c.h.b16 %v3552
    %v3677 = vunpack.c.l.b16 %v3553
    %v3678 = vunpack.c.h.b16 %v3553
    %v3679 = vunpack.c.l.b16 %v3554
    %v3680 = vunpack.c.h.b16 %v3554
    %v3681 = vunpack.c.l.b16 %v3555
    %v3682 = vunpack.c.h.b16 %v3555
    %v3683 = vunpack.c.l.b16 %v3556
    %v3684 = vunpack.c.h.b16 %v3556
    %v3685 = vunpack.c.l.b16 %v3557
    %v3686 = vunpack.c.h.b16 %v3557
    %v3687 = vunpack.c.l.b16 %v3558
    %v3688 = vunpack.c.h.b16 %v3558
    %v3689 = vpack.c.b16 %v3621, %v3617
    %v3690 = vpack.c.b16 %v3622, %v3618
    %v3691 = vpack.c.b16 %v3623, %v3619
    %v3692 = vpack.c.b16 %v3624, %v3620
    %v3693 = vpack.c.b16 %v3629, %v3625
    %v3694 = vpack.c.b16 %v3630, %v3626
    %v3695 = vpack.c.b16 %v3631, %v3627
    %v3696 = vpack.c.b16 %v3632, %v3628
    %v3697 = vpack.c.b16 %v3637, %v3633
    %v3698 = vpack.c.b16 %v3638, %v3634
    %v3699 = vpack.c.b16 %v3639, %v3635
    %v3700 = vpack.c.b16 %v3640, %v3636
    %v3701 = vpack.c.b16 %v3645, %v3641
    %v3702 = vpack.c.b16 %v3646, %v3642
    %v3703 = vpack.c.b16 %v3647, %v3643
    %v3704 = vpack.c.b16 %v3648, %v3644
    %v3705 = vpack.c.b16 %v3653, %v3649
    %v3706 = vpack.c.b16 %v3654, %v3650
    %v3707 = vpack.c.b16 %v3655, %v3651
    %v3708 = vpack.c.b16 %v3656, %v3652
    %v3709 = vpack.c.b16 %v3661, %v3657
    %v3710 = vpack.c.b16 %v3662, %v3658
    %v3711 = vpack.c.b16 %v3663, %v3659
    %v3712 = vpack.c.b16 %v3664, %v3660
    %v3713 = vpack.c.b16 %v3669, %v3665
    %v3714 = vpack.c.b16 %v3670, %v3666
    %v3715 = vpack.c.b16 %v3671, %v3667
    %v3716 = vpack.c.b16 %v3672, %v3668
    %v3717 = vpack.c.b16 %v3677, %v3673
    %v3718 = vpack.c.b16 %v3678, %v3674
    %v3719 = vpack.c.b16 %v3679, %v3675
    %v3720 = vpack.c.b16 %v3680, %v3676
    %v3721 = vpack.c.b16 %v3685, %v3681
    %v3722 = vpack.c.b16 %v3686, %v3682
    %v3723 = vpack.c.b16 %v3687, %v3683
    %v3724 = vpack.c.b16 %v3688, %v3684
    %v3762 = vsel %vm285, %v3522, 0
    %3764 = vmatprep.subr.bf16.mxu0 %v3690
    %3765 = vmatpush1.bf16.msra.mxu0 %v3689
    %3766 = vmatprep.subr.bf16.mxu0 %v3694
    %3767 = vmatpush1.bf16.msra.mxu0 %v3693
    %3768 = vmatprep.subr.bf16.mxu0 %v3698
    %3769 = vmatpush1.bf16.msra.mxu0 %v3697
    %3770 = vmatprep.subr.bf16.mxu0 %v3702
    %3771 = vmatpush1.bf16.msra.mxu0 %v3701
    %3772 = vmatprep.subr.bf16.mxu0 %v3706
    %3773 = vmatpush1.bf16.msra.mxu0 %v3705
    %3774 = vmatprep.subr.bf16.mxu0 %v3710
    %3775 = vmatpush1.bf16.msra.mxu0 %v3709
    %3776 = vmatprep.subr.bf16.mxu0 %v3714
    %3777 = vmatpush1.bf16.msra.mxu0 %v3713
    %3778 = vmatprep.subr.bf16.mxu0 %v3718
    %3779 = vmatpush1.bf16.msra.mxu0 %v3717
    %3780 = vmatprep.subr.bf16.mxu0 %v3722
    %3781 = vmatpush1.bf16.msra.mxu0 %v3721
    %3782 = vmatprep.subr.bf16.mxu0 0
    %3783 = vmatpush1.bf16.msra.mxu0 0
    %3784 = vmatprep.subr.bf16.mxu0 0
    %3785 = vmatpush1.bf16.msra.mxu0 0
    %3786 = vmatprep.subr.bf16.mxu0 0
    %3787 = vmatpush1.bf16.msra.mxu0 0
    %3788 = vmatprep.subr.bf16.mxu0 0
    %3789 = vmatpush1.bf16.msra.mxu0 0
    %3790 = vmatprep.subr.bf16.mxu0 0
    %3791 = vmatpush1.bf16.msra.mxu0 0
    %3792 = vmatprep.subr.bf16.mxu0 0
    %3793 = vmatpush1.bf16.msra.mxu0 0
    %3794 = vmatprep.subr.bf16.mxu0 0
    %3795 = vmatpush1.bf16.msra.mxu0 0
    %3796 = vmatprep.mubr.bf16.mxu0 %v3762
    %3797 = vmatmul.mubr.bf16.gmra.mrb[0].mxu0 %v3521
    %v3798 = vpop.f32.mrb[0].mxu0
    %v3799 = vadd.f32 %v3564, %v3798
    %v3800 = vpop.f32.mrb[0].mxu0
    %v3801 = vadd.f32 %v3568, %v3800
    %v3802 = vpop.f32.mrb[0].mxu0
    %v3803 = vpop.f32.mrb[0].mxu0
    %3804 = vdwg.mxu0
    %3805 = vmatprep.subr.bf16.mxu0 %v3692
    %3806 = vmatpush1.bf16.msra.mxu0 %v3691
    %3807 = vmatprep.subr.bf16.mxu0 %v3696
    %3808 = vmatpush1.bf16.msra.mxu0 %v3695
    %3809 = vmatprep.subr.bf16.mxu0 %v3700
    %3810 = vmatpush1.bf16.msra.mxu0 %v3699
    %3811 = vmatprep.subr.bf16.mxu0 %v3704
    %3812 = vmatpush1.bf16.msra.mxu0 %v3703
    %3813 = vmatprep.subr.bf16.mxu0 %v3708
    %3814 = vmatpush1.bf16.msra.mxu0 %v3707
    %3815 = vmatprep.subr.bf16.mxu0 %v3712
    %3816 = vmatpush1.bf16.msra.mxu0 %v3711
    %3817 = vmatprep.subr.bf16.mxu0 %v3716
    %3818 = vmatpush1.bf16.msra.mxu0 %v3715
    %3819 = vmatprep.subr.bf16.mxu0 %v3720
    %3820 = vmatpush1.bf16.msra.mxu0 %v3719
    %3821 = vmatprep.subr.bf16.mxu0 %v3724
    %3822 = vmatpush1.bf16.msra.mxu0 %v3723
    %3823 = vmatprep.subr.bf16.mxu0 0
    %3824 = vmatpush1.bf16.msra.mxu0 0
    %3825 = vmatprep.subr.bf16.mxu0 0
    %3826 = vmatpush1.bf16.msra.mxu0 0
    %3827 = vmatprep.subr.bf16.mxu0 0
    %3828 = vmatpush1.bf16.msra.mxu0 0
    %3829 = vmatprep.subr.bf16.mxu0 0
    %3830 = vmatpush1.bf16.msra.mxu0 0
    %3831 = vmatprep.subr.bf16.mxu0 0
    %3832 = vmatpush1.bf16.msra.mxu0 0
    %3833 = vmatprep.subr.bf16.mxu0 0
    %3834 = vmatpush1.bf16.msra.mxu0 0
    %3835 = vmatprep.subr.bf16.mxu0 0
    %3836 = vmatpush1.bf16.msra.mxu0 0
    %3837 = vmatprep.mubr.bf16.mxu0 %v3762
    %3838 = vmatmul.mubr.bf16.gmra.mrb[0].mxu0 %v3521
    %v3839 = vpop.f32.mrb[0].mxu0
    %v3840 = vadd.f32 %v3572, %v3839
    %v3841 = vpop.f32.mrb[0].mxu0
    %v3842 = vadd.f32 %v3576, %v3841
    %v3843 = vpop.f32.mrb[0].mxu0
    %v3844 = vpop.f32.mrb[0].mxu0
    %3845 = vdwg.mxu0
    %v3848 = vcombine.low %v3799, %v3801
    %v3850 = vunpack.c.l.s4 1966171168
    %v3851 = vunpack.c.0.s8 %v3850
    %v3852 = vlaneseq
    %v3853 = vshrl.u32 %v3852, 7
    %v3854 = vsub.s32 %v3851, %v3853
    %v3855 = vrot.slane %v3848, %v3854
    %v3856 = vcombine.high %v3855, %v3855
    %v3858 = vunpack.c.l.s4 1966171168
    %v3859 = vunpack.c.0.s8 %v3858
    %v3860 = vlaneseq
    %v3861 = vshrl.u32 %v3860, 7
    %v3862 = vsub.s32 %v3859, %v3861
    %v3863 = vrot.slane %v3855, %v3862
    %v3865 = vunpack.c.l.s4 1966171168
    %v3866 = vunpack.c.0.s8 %v3865
    %v3867 = vlaneseq
    %v3868 = vshrl.u32 %v3867, 7
    %v3869 = vsub.s32 %v3866, %v3868
    %v3870 = vrot.slane %v3856, %v3869
    %v3873 = vadd.f32 %v3507, %v3863
    %v3874 = vadd.f32 %v3509, %v3870
    %v3875 = vxor.u32 %v3873, 2147483648
    %v3876 = vxor.u32 %v3874, 2147483648
    %v3877 = vmul.f32 %v3875, 1.442695
    %v3878 = vpow.pop %v3877
    %v3879 = vmul.f32 %v3876, 1.442695
    %v3880 = vpow.pop %v3879
    %v3881 = vadd.f32 %v3878, 1.0
    %v3882 = vadd.f32 %v3880, 1.0
    %v3883 = vrcp.pop %v3881
    %v3884 = vmul.f32 1.0, %v3883
    %v3885 = vrcp.pop %v3882
    %v3886 = vmul.f32 1.0, %v3885
    %3889 = vrot.lane.b32.xlu0 %v3507, 112
    %v3890 = vpop.permute.xlu0 %3889
    %3891 = vrot.lane.b32.xlu0 %v3509, 112
    %v3892 = vpop.permute.xlu0 %3891
    %v3893 = vrot.slane %v3890, 1
    %v3894 = vrot.slane %v3892, 1
    %v3895 = vrot.slane %v3890, 2
    %v3896 = vrot.slane %v3892, 2
    %v3897 = vsel %vm422, %v3893, %v3895
    %v3898 = vsel %vm422, %v3894, %v3896
    %v3902 = vcombine.low %v3801, %v3840
    %v3904 = vunpack.c.l.s4 1966171168
    %v3905 = vunpack.c.0.s8 %v3904
    %v3906 = vlaneseq
    %v3907 = vshrl.u32 %v3906, 7
    %v3908 = vsub.s32 %v3905, %v3907
    %v3909 = vrot.slane %v3902, %v3908
    %v3910 = vcombine.high %v3909, %v3909
    %v3912 = vunpack.c.l.s4 1966171168
    %v3913 = vunpack.c.0.s8 %v3912
    %v3914 = vlaneseq
    %v3915 = vshrl.u32 %v3914, 7
    %v3916 = vsub.s32 %v3913, %v3915
    %v3917 = vrot.slane %v3909, %v3916
    %v3919 = vunpack.c.l.s4 1966171168
    %v3920 = vunpack.c.0.s8 %v3919
    %v3921 = vlaneseq
    %v3922 = vshrl.u32 %v3921, 7
    %v3923 = vsub.s32 %v3920, %v3922
    %v3924 = vrot.slane %v3910, %v3923
    %3925 = vrot.lane.b32.xlu0 %v3917, 112
    %v3926 = vpop.permute.xlu0 %3925
    %3927 = vrot.lane.b32.xlu0 %v3924, 112
    %v3928 = vpop.permute.xlu0 %3927
    %v3929 = vrot.slane %v3926, 1
    %v3930 = vrot.slane %v3928, 1
    %v3931 = vsel %vm422, %v3926, %v3929
    %v3932 = vsel %vm422, %v3928, %v3930
    %v3935 = vadd.f32 %v3897, %v3931
    %v3936 = vadd.f32 %v3898, %v3932
    %v3937 = vxor.u32 %v3935, 2147483648
    %v3938 = vxor.u32 %v3936, 2147483648
    %v3939 = vmul.f32 %v3937, 1.442695
    %v3940 = vpow.pop %v3939
    %v3941 = vmul.f32 %v3938, 1.442695
    %v3942 = vpow.pop %v3941
    %v3943 = vadd.f32 %v3940, 1.0
    %v3944 = vadd.f32 %v3942, 1.0
    %v3945 = vrcp.pop %v3943
    %v3946 = vmul.f32 1.0, %v3945
    %v3947 = vrcp.pop %v3944
    %v3948 = vmul.f32 1.0, %v3947
    %v3950 = vcombine.low %v3840, %v3842
    %v3952 = vunpack.c.l.s4 1966171168
    %v3953 = vunpack.c.0.s8 %v3952
    %v3954 = vlaneseq
    %v3955 = vshrl.u32 %v3954, 7
    %v3956 = vsub.s32 %v3953, %v3955
    %v3957 = vrot.slane %v3950, %v3956
    %v3958 = vcombine.high %v3957, %v3957
    %v3960 = vunpack.c.l.s4 1966171168
    %v3961 = vunpack.c.0.s8 %v3960
    %v3962 = vlaneseq
    %v3963 = vshrl.u32 %v3962, 7
    %v3964 = vsub.s32 %v3961, %v3963
    %v3965 = vrot.slane %v3957, %v3964
    %v3967 = vunpack.c.l.s4 1966171168
    %v3968 = vunpack.c.0.s8 %v3967
    %v3969 = vlaneseq
    %v3970 = vshrl.u32 %v3969, 7
    %v3971 = vsub.s32 %v3968, %v3970
    %v3972 = vrot.slane %v3958, %v3971
    %3973 = vrot.lane.b32.xlu0 %v3965, 96
    %v3974 = vpop.permute.xlu0 %3973
    %3975 = vrot.lane.b32.xlu0 %v3972, 96
    %v3976 = vpop.permute.xlu0 %3975
    %v3977 = vrot.slane %v3974, 1
    %v3978 = vrot.slane %v3976, 1
    %v3979 = vsel %vm505, %v3974, %v3977
    %v3980 = vsel %vm505, %v3976, %v3978
    %v3983 = vmul.f32 %v3884, %v3979
    %v3984 = vmul.f32 %v3886, %v3980
    %3985 = vrot.lane.b32.xlu0 %v3507, 96
    %v3986 = vpop.permute.xlu0 %3985
    %3987 = vrot.lane.b32.xlu0 %v3509, 96
    %v3988 = vpop.permute.xlu0 %3987
    %v3989 = vrot.slane %v3986, 2
    %v3990 = vrot.slane %v3988, 2
    %v3991 = vrot.slane %v3986, 3
    %v3992 = vrot.slane %v3988, 3
    %v3993 = vsel %vm505, %v3989, %v3991
    %v3994 = vsel %vm505, %v3990, %v3992
    %v3997 = vadd.f32 %v3993, %v3983
    %v3998 = vadd.f32 %v3994, %v3984
    %v3999 = vtanh.pop %v3997
    %v4000 = vtanh.pop %v3998
    %v4001 = vsub.f32 1.0, %v3946
    %v4002 = vsub.f32 1.0, %v3948
    %v4003 = vmul.f32 %v4001, %v3999
    %v4004 = vmul.f32 %v4002, %v4000
    %v4006 = vunpack.c.l.s4 1966171168
    %v4007 = vunpack.c.0.s8 %v4006
    %v4008 = vlaneseq
    %v4009 = vshrl.u32 %v4008, 7
    %v4010 = vsub.s32 %v4007, %v4009
    %v4011 = vrot.slane %v3505, %v4010
    %v4012 = vcombine.high %v4011, %v4011
    %v4015 = vmul.f32 %v3946, %v4011
    %v4016 = vmul.f32 %v3948, %v4012
    %v4017 = vadd.f32 %v4003, %v4015
    %v4018 = vadd.f32 %v4004, %v4016
    %v4021 = vcombine.low %v4017, %v4018
    %v4023 = vunpack.c.l.s4 1935823168
    %v4024 = vunpack.c.0.s8 %v4023
    %v4025 = vlaneseq
    %v4026 = vshrl.u32 %v4025, 7
    %v4027 = vsub.s32 %v4024, %v4026
    %v4028 = vrot.slane %v4021, %v4027
    %4030 = vst.msk [vmem:[#allocation2] sm:$0xf] %vm559, %v4028
    %v4031 = vlaneseq
    %v4032 = vshrl.u32 %v4031, 7
    %v4033 = vsub.s32 0, %v4032
    %v4034 = vrot.slane %v4017, %v4033
    %v4035 = vlaneseq
    %v4036 = vshrl.u32 %v4035, 7
    %v4037 = vsub.s32 1, %v4036
    %v4038 = vrot.slane %v4017, %v4037
    %v4039 = vlaneseq
    %v4040 = vshrl.u32 %v4039, 7
    %v4041 = vsub.s32 0, %v4040
    %v4042 = vrot.slane %v4018, %v4041
    %v4043 = vlaneseq
    %v4044 = vshrl.u32 %v4043, 7
    %v4045 = vsub.s32 1, %v4044
    %v4046 = vrot.slane %v4018, %v4045
    %v4051 = vpack.c.bf16 %v4034, %v4034
    %v4052 = vpack.c.bf16 %v4038, %v4038
    %v4053 = vpack.c.bf16 %v4042, %v4042
    %v4054 = vpack.c.bf16 %v4046, %v4046
    %v4059 = vunpack.c.l.b16 %v4051
    %v4060 = vunpack.c.l.b16 %v4052
    %v4061 = vunpack.c.l.b16 %v4053
    %v4062 = vunpack.c.l.b16 %v4054
    %v4063 = vpack.c.b16 %v4060, %v4059
    %v4064 = vpack.c.b16 %v4062, %v4061
    %v4065 = vrot.slane %v4063, 5
    %v4066 = vrot.slane %v4064, 5
    %vm4069 = vcmask 1043459
    %vm4070 = vsmask.f32 3328
    %vm4071 = vmand %vm4069, %vm4070
    %vm4072 = vcmask 130055
    %vm4073 = vsmask.f32 7424
    %vm4074 = vmand %vm4072, %vm4073
    %vm4075 = vmor %vm4074, %vm4071
    %v4076 = vld [vmem:[%s4] sm:$0x88]
    %v4077 = vsel %vm4075, %v4065, %v4076
    %4078 = vst [vmem:[%s4] sm:$0x88] %v4077
    %v4079 = vld [vmem:[%s4 + $0x8] sm:$0x88]
    %v4080 = vsel %vm4075, %v4066, %v4079
    %4081 = vst [vmem:[%s4 + $0x8] sm:$0x88] %v4080
    %v4082 = vld [vmem:[#allocation2] sm:$0xf]
    %s4083 = scalar_lea.vmem %s0, 7
    %v4084 = vld [vmem:[%s4083] ss:$8 sm:$0xf]
    %s4085 = scalar_lea.vmem %s0, 39
    %v4086 = vld [vmem:[%s4085] ss:$8 sm:$0xf]
    %v4089 = vunpack.c.l.s4 1983009808
    %v4090 = vunpack.c.0.s8 %v4089
    %v4091 = vlaneseq
    %v4092 = vshrl.u32 %v4091, 7
    %v4093 = vsub.s32 %v4090, %v4092
    %v4094 = vrot.slane %v4082, %v4093
    %v4095 = vcombine.high %v4094, %v4094
    %v4098 = vpack.c.bf16 %v4094, %v4094
    %v4099 = vpack.c.bf16 %v4095, %v4095
    %v4100 = vld [vmem:[%s1] sm:$0xff]
    %v4101 = vld [vmem:[%s1 + $0x8] sm:$0xff]
    %v4102 = vld [vmem:[%s1 + $0x10] sm:$0xff]
    %v4103 = vld [vmem:[%s1 + $0x18] sm:$0xff]
    %v4104 = vld [vmem:[%s1 + $0x20] sm:$0xff]
    %v4105 = vld [vmem:[%s1 + $0x28] sm:$0xff]
    %v4106 = vld [vmem:[%s1 + $0x30] sm:$0xff]
    %v4107 = vld [vmem:[%s1 + $0x38] sm:$0xff]
    %v4108 = vld [vmem:[%s1 + $0x40] sm:$0xff]
    %v4109 = vld [vmem:[%s1 + $0x48] sm:$0xff]
    %v4110 = vld [vmem:[%s1 + $0x50] sm:$0xff]
    %v4111 = vld [vmem:[%s1 + $0x58] sm:$0xff]
    %v4112 = vld [vmem:[%s1 + $0x60] sm:$0xff]
    %v4113 = vld [vmem:[%s1 + $0x68] sm:$0xff]
    %v4114 = vld [vmem:[%s1 + $0x70] sm:$0xff]
    %v4115 = vld [vmem:[%s1 + $0x78] sm:$0xff]
    %v4116 = vld [vmem:[%s1 + $0x80] sm:$0xff]
    %v4117 = vld [vmem:[%s1 + $0x88] sm:$0xff]
    %v4118 = vld [vmem:[%s1 + $0x90] sm:$0xff]
    %v4119 = vld [vmem:[%s1 + $0x98] sm:$0xff]
    %v4120 = vld [vmem:[%s1 + $0xa0] sm:$0xff]
    %v4121 = vld [vmem:[%s1 + $0xa8] sm:$0xff]
    %v4122 = vld [vmem:[%s1 + $0xb0] sm:$0xff]
    %v4123 = vld [vmem:[%s1 + $0xb8] sm:$0xff]
    %v4124 = vld [vmem:[%s1 + $0xc0] sm:$0xff]
    %v4125 = vld [vmem:[%s1 + $0xc8] sm:$0xff]
    %v4126 = vld [vmem:[%s1 + $0xd0] sm:$0xff]
    %v4127 = vld [vmem:[%s1 + $0xd8] sm:$0xff]
    %v4128 = vld [vmem:[%s1 + $0xe0] sm:$0xff]
    %v4129 = vld [vmem:[%s1 + $0xe8] sm:$0xff]
    %v4130 = vld [vmem:[%s1 + $0xf0] sm:$0xff]
    %v4131 = vld [vmem:[%s1 + $0xf8] sm:$0xff]
    %v4132 = vld [vmem:[%s1 + $0x100] sm:$0xff]
    %v4133 = vld [vmem:[%s1 + $0x108] sm:$0xff]
    %v4134 = vld [vmem:[%s1 + $0x110] sm:$0xff]
    %v4135 = vld [vmem:[%s1 + $0x118] sm:$0xff]
    %v4136 = vld [vmem:[%s2] sm:$0xf]
    %v4138 = vlaneseq
    %v4139 = vshrl.u32 %v4138, 7
    %v4140 = vsub.s32 0, %v4139
    %v4141 = vrot.slane %v4136, %v4140
    %v4142 = vlaneseq
    %v4143 = vshrl.u32 %v4142, 7
    %v4144 = vsub.s32 1, %v4143
    %v4145 = vrot.slane %v4136, %v4144
    %v4146 = vlaneseq
    %v4147 = vshrl.u32 %v4146, 7
    %v4148 = vsub.s32 2, %v4147
    %v4149 = vrot.slane %v4136, %v4148
    %v4150 = vlaneseq
    %v4151 = vshrl.u32 %v4150, 7
    %v4152 = vsub.s32 3, %v4151
    %v4153 = vrot.slane %v4136, %v4152
    %v4194 = vunpack.c.l.b16 %v4100
    %v4195 = vunpack.c.h.b16 %v4100
    %v4196 = vunpack.c.l.b16 %v4101
    %v4197 = vunpack.c.h.b16 %v4101
    %v4198 = vunpack.c.l.b16 %v4102
    %v4199 = vunpack.c.h.b16 %v4102
    %v4200 = vunpack.c.l.b16 %v4103
    %v4201 = vunpack.c.h.b16 %v4103
    %v4202 = vunpack.c.l.b16 %v4104
    %v4203 = vunpack.c.h.b16 %v4104
    %v4204 = vunpack.c.l.b16 %v4105
    %v4205 = vunpack.c.h.b16 %v4105
    %v4206 = vunpack.c.l.b16 %v4106
    %v4207 = vunpack.c.h.b16 %v4106
    %v4208 = vunpack.c.l.b16 %v4107
    %v4209 = vunpack.c.h.b16 %v4107
    %v4210 = vunpack.c.l.b16 %v4108
    %v4211 = vunpack.c.h.b16 %v4108
    %v4212 = vunpack.c.l.b16 %v4109
    %v4213 = vunpack.c.h.b16 %v4109
    %v4214 = vunpack.c.l.b16 %v4110
    %v4215 = vunpack.c.h.b16 %v4110
    %v4216 = vunpack.c.l.b16 %v4111
    %v4217 = vunpack.c.h.b16 %v4111
    %v4218 = vunpack.c.l.b16 %v4112
    %v4219 = vunpack.c.h.b16 %v4112
    %v4220 = vunpack.c.l.b16 %v4113
    %v4221 = vunpack.c.h.b16 %v4113
    %v4222 = vunpack.c.l.b16 %v4114
    %v4223 = vunpack.c.h.b16 %v4114
    %v4224 = vunpack.c.l.b16 %v4115
    %v4225 = vunpack.c.h.b16 %v4115
    %v4226 = vunpack.c.l.b16 %v4116
    %v4227 = vunpack.c.h.b16 %v4116
    %v4228 = vunpack.c.l.b16 %v4117
    %v4229 = vunpack.c.h.b16 %v4117
    %v4230 = vunpack.c.l.b16 %v4118
    %v4231 = vunpack.c.h.b16 %v4118
    %v4232 = vunpack.c.l.b16 %v4119
    %v4233 = vunpack.c.h.b16 %v4119
    %v4234 = vunpack.c.l.b16 %v4120
    %v4235 = vunpack.c.h.b16 %v4120
    %v4236 = vunpack.c.l.b16 %v4121
    %v4237 = vunpack.c.h.b16 %v4121
    %v4238 = vunpack.c.l.b16 %v4122
    %v4239 = vunpack.c.h.b16 %v4122
    %v4240 = vunpack.c.l.b16 %v4123
    %v4241 = vunpack.c.h.b16 %v4123
    %v4242 = vunpack.c.l.b16 %v4124
    %v4243 = vunpack.c.h.b16 %v4124
    %v4244 = vunpack.c.l.b16 %v4125
    %v4245 = vunpack.c.h.b16 %v4125
    %v4246 = vunpack.c.l.b16 %v4126
    %v4247 = vunpack.c.h.b16 %v4126
    %v4248 = vunpack.c.l.b16 %v4127
    %v4249 = vunpack.c.h.b16 %v4127
    %v4250 = vunpack.c.l.b16 %v4128
    %v4251 = vunpack.c.h.b16 %v4128
    %v4252 = vunpack.c.l.b16 %v4129
    %v4253 = vunpack.c.h.b16 %v4129
    %v4254 = vunpack.c.l.b16 %v4130
    %v4255 = vunpack.c.h.b16 %v4130
    %v4256 = vunpack.c.l.b16 %v4131
    %v4257 = vunpack.c.h.b16 %v4131
    %v4258 = vunpack.c.l.b16 %v4132
    %v4259 = vunpack.c.h.b16 %v4132
    %v4260 = vunpack.c.l.b16 %v4133
    %v4261 = vunpack.c.h.b16 %v4133
    %v4262 = vunpack.c.l.b16 %v4134
    %v4263 = vunpack.c.h.b16 %v4134
    %v4264 = vunpack.c.l.b16 %v4135
    %v4265 = vunpack.c.h.b16 %v4135
    %v4266 = vpack.c.b16 %v4198, %v4194
    %v4267 = vpack.c.b16 %v4199, %v4195
    %v4268 = vpack.c.b16 %v4200, %v4196
    %v4269 = vpack.c.b16 %v4201, %v4197
    %v4270 = vpack.c.b16 %v4206, %v4202
    %v4271 = vpack.c.b16 %v4207, %v4203
    %v4272 = vpack.c.b16 %v4208, %v4204
    %v4273 = vpack.c.b16 %v4209, %v4205
    %v4274 = vpack.c.b16 %v4214, %v4210
    %v4275 = vpack.c.b16 %v4215, %v4211
    %v4276 = vpack.c.b16 %v4216, %v4212
    %v4277 = vpack.c.b16 %v4217, %v4213
    %v4278 = vpack.c.b16 %v4222, %v4218
    %v4279 = vpack.c.b16 %v4223, %v4219
    %v4280 = vpack.c.b16 %v4224, %v4220
    %v4281 = vpack.c.b16 %v4225, %v4221
    %v4282 = vpack.c.b16 %v4230, %v4226
    %v4283 = vpack.c.b16 %v4231, %v4227
    %v4284 = vpack.c.b16 %v4232, %v4228
    %v4285 = vpack.c.b16 %v4233, %v4229
    %v4286 = vpack.c.b16 %v4238, %v4234
    %v4287 = vpack.c.b16 %v4239, %v4235
    %v4288 = vpack.c.b16 %v4240, %v4236
    %v4289 = vpack.c.b16 %v4241, %v4237
    %v4290 = vpack.c.b16 %v4246, %v4242
    %v4291 = vpack.c.b16 %v4247, %v4243
    %v4292 = vpack.c.b16 %v4248, %v4244
    %v4293 = vpack.c.b16 %v4249, %v4245
    %v4294 = vpack.c.b16 %v4254, %v4250
    %v4295 = vpack.c.b16 %v4255, %v4251
    %v4296 = vpack.c.b16 %v4256, %v4252
    %v4297 = vpack.c.b16 %v4257, %v4253
    %v4298 = vpack.c.b16 %v4262, %v4258
    %v4299 = vpack.c.b16 %v4263, %v4259
    %v4300 = vpack.c.b16 %v4264, %v4260
    %v4301 = vpack.c.b16 %v4265, %v4261
    %v4339 = vsel %vm285, %v4099, 0
    %4341 = vmatprep.subr.bf16.mxu0 %v4267
    %4342 = vmatpush1.bf16.msra.mxu0 %v4266
    %4343 = vmatprep.subr.bf16.mxu0 %v4271
    %4344 = vmatpush1.bf16.msra.mxu0 %v4270
    %4345 = vmatprep.subr.bf16.mxu0 %v4275
    %4346 = vmatpush1.bf16.msra.mxu0 %v4274
    %4347 = vmatprep.subr.bf16.mxu0 %v4279
    %4348 = vmatpush1.bf16.msra.mxu0 %v4278
    %4349 = vmatprep.subr.bf16.mxu0 %v4283
    %4350 = vmatpush1.bf16.msra.mxu0 %v4282
    %4351 = vmatprep.subr.bf16.mxu0 %v4287
    %4352 = vmatpush1.bf16.msra.mxu0 %v4286
    %4353 = vmatprep.subr.bf16.mxu0 %v4291
    %4354 = vmatpush1.bf16.msra.mxu0 %v4290
    %4355 = vmatprep.subr.bf16.mxu0 %v4295
    %4356 = vmatpush1.bf16.msra.mxu0 %v4294
    %4357 = vmatprep.subr.bf16.mxu0 %v4299
    %4358 = vmatpush1.bf16.msra.mxu0 %v4298
    %4359 = vmatprep.subr.bf16.mxu0 0
    %4360 = vmatpush1.bf16.msra.mxu0 0
    %4361 = vmatprep.subr.bf16.mxu0 0
    %4362 = vmatpush1.bf16.msra.mxu0 0
    %4363 = vmatprep.subr.bf16.mxu0 0
    %4364 = vmatpush1.bf16.msra.mxu0 0
    %4365 = vmatprep.subr.bf16.mxu0 0
    %4366 = vmatpush1.bf16.msra.mxu0 0
    %4367 = vmatprep.subr.bf16.mxu0 0
    %4368 = vmatpush1.bf16.msra.mxu0 0
    %4369 = vmatprep.subr.bf16.mxu0 0
    %4370 = vmatpush1.bf16.msra.mxu0 0
    %4371 = vmatprep.subr.bf16.mxu0 0
    %4372 = vmatpush1.bf16.msra.mxu0 0
    %4373 = vmatprep.mubr.bf16.mxu0 %v4339
    %4374 = vmatmul.mubr.bf16.gmra.mrb[0].mxu0 %v4098
    %v4375 = vpop.f32.mrb[0].mxu0
    %v4376 = vadd.f32 %v4141, %v4375
    %v4377 = vpop.f32.mrb[0].mxu0
    %v4378 = vadd.f32 %v4145, %v4377
    %v4379 = vpop.f32.mrb[0].mxu0
    %v4380 = vpop.f32.mrb[0].mxu0
    %4381 = vdwg.mxu0
    %4382 = vmatprep.subr.bf16.mxu0 %v4269
    %4383 = vmatpush1.bf16.msra.mxu0 %v4268
    %4384 = vmatprep.subr.bf16.mxu0 %v4273
    %4385 = vmatpush1.bf16.msra.mxu0 %v4272
    %4386 = vmatprep.subr.bf16.mxu0 %v4277
    %4387 = vmatpush1.bf16.msra.mxu0 %v4276
    %4388 = vmatprep.subr.bf16.mxu0 %v4281
    %4389 = vmatpush1.bf16.msra.mxu0 %v4280
    %4390 = vmatprep.subr.bf16.mxu0 %v4285
    %4391 = vmatpush1.bf16.msra.mxu0 %v4284
    %4392 = vmatprep.subr.bf16.mxu0 %v4289
    %4393 = vmatpush1.bf16.msra.mxu0 %v4288
    %4394 = vmatprep.subr.bf16.mxu0 %v4293
    %4395 = vmatpush1.bf16.msra.mxu0 %v4292
    %4396 = vmatprep.subr.bf16.mxu0 %v4297
    %4397 = vmatpush1.bf16.msra.mxu0 %v4296
    %4398 = vmatprep.subr.bf16.mxu0 %v4301
    %4399 = vmatpush1.bf16.msra.mxu0 %v4300
    %4400 = vmatprep.subr.bf16.mxu0 0
    %4401 = vmatpush1.bf16.msra.mxu0 0
    %4402 = vmatprep.subr.bf16.mxu0 0
    %4403 = vmatpush1.bf16.msra.mxu0 0
    %4404 = vmatprep.subr.bf16.mxu0 0
    %4405 = vmatpush1.bf16.msra.mxu0 0
    %4406 = vmatprep.subr.bf16.mxu0 0
    %4407 = vmatpush1.bf16.msra.mxu0 0
    %4408 = vmatprep.subr.bf16.mxu0 0
    %4409 = vmatpush1.bf16.msra.mxu0 0
    %4410 = vmatprep.subr.bf16.mxu0 0
    %4411 = vmatpush1.bf16.msra.mxu0 0
    %4412 = vmatprep.subr.bf16.mxu0 0
    %4413 = vmatpush1.bf16.msra.mxu0 0
    %4414 = vmatprep.mubr.bf16.mxu0 %v4339
    %4415 = vmatmul.mubr.bf16.gmra.mrb[0].mxu0 %v4098
    %v4416 = vpop.f32.mrb[0].mxu0
    %v4417 = vadd.f32 %v4149, %v4416
    %v4418 = vpop.f32.mrb[0].mxu0
    %v4419 = vadd.f32 %v4153, %v4418
    %v4420 = vpop.f32.mrb[0].mxu0
    %v4421 = vpop.f32.mrb[0].mxu0
    %4422 = vdwg.mxu0
    %v4425 = vcombine.low %v4376, %v4378
    %v4427 = vunpack.c.l.s4 1966171168
    %v4428 = vunpack.c.0.s8 %v4427
    %v4429 = vlaneseq
    %v4430 = vshrl.u32 %v4429, 7
    %v4431 = vsub.s32 %v4428, %v4430
    %v4432 = vrot.slane %v4425, %v4431
    %v4433 = vcombine.high %v4432, %v4432
    %v4435 = vunpack.c.l.s4 1966171168
    %v4436 = vunpack.c.0.s8 %v4435
    %v4437 = vlaneseq
    %v4438 = vshrl.u32 %v4437, 7
    %v4439 = vsub.s32 %v4436, %v4438
    %v4440 = vrot.slane %v4432, %v4439
    %v4442 = vunpack.c.l.s4 1966171168
    %v4443 = vunpack.c.0.s8 %v4442
    %v4444 = vlaneseq
    %v4445 = vshrl.u32 %v4444, 7
    %v4446 = vsub.s32 %v4443, %v4445
    %v4447 = vrot.slane %v4433, %v4446
    %v4450 = vadd.f32 %v4084, %v4440
    %v4451 = vadd.f32 %v4086, %v4447
    %v4452 = vxor.u32 %v4450, 2147483648
    %v4453 = vxor.u32 %v4451, 2147483648
    %v4454 = vmul.f32 %v4452, 1.442695
    %v4455 = vpow.pop %v4454
    %v4456 = vmul.f32 %v4453, 1.442695
    %v4457 = vpow.pop %v4456
    %v4458 = vadd.f32 %v4455, 1.0
    %v4459 = vadd.f32 %v4457, 1.0
    %v4460 = vrcp.pop %v4458
    %v4461 = vmul.f32 1.0, %v4460
    %v4462 = vrcp.pop %v4459
    %v4463 = vmul.f32 1.0, %v4462
    %4466 = vrot.lane.b32.xlu0 %v4084, 112
    %v4467 = vpop.permute.xlu0 %4466
    %4468 = vrot.lane.b32.xlu0 %v4086, 112
    %v4469 = vpop.permute.xlu0 %4468
    %v4470 = vrot.slane %v4467, 1
    %v4471 = vrot.slane %v4469, 1
    %v4472 = vrot.slane %v4467, 2
    %v4473 = vrot.slane %v4469, 2
    %v4474 = vsel %vm422, %v4470, %v4472
    %v4475 = vsel %vm422, %v4471, %v4473
    %v4479 = vcombine.low %v4378, %v4417
    %v4481 = vunpack.c.l.s4 1966171168
    %v4482 = vunpack.c.0.s8 %v4481
    %v4483 = vlaneseq
    %v4484 = vshrl.u32 %v4483, 7
    %v4485 = vsub.s32 %v4482, %v4484
    %v4486 = vrot.slane %v4479, %v4485
    %v4487 = vcombine.high %v4486, %v4486
    %v4489 = vunpack.c.l.s4 1966171168
    %v4490 = vunpack.c.0.s8 %v4489
    %v4491 = vlaneseq
    %v4492 = vshrl.u32 %v4491, 7
    %v4493 = vsub.s32 %v4490, %v4492
    %v4494 = vrot.slane %v4486, %v4493
    %v4496 = vunpack.c.l.s4 1966171168
    %v4497 = vunpack.c.0.s8 %v4496
    %v4498 = vlaneseq
    %v4499 = vshrl.u32 %v4498, 7
    %v4500 = vsub.s32 %v4497, %v4499
    %v4501 = vrot.slane %v4487, %v4500
    %4502 = vrot.lane.b32.xlu0 %v4494, 112
    %v4503 = vpop.permute.xlu0 %4502
    %4504 = vrot.lane.b32.xlu0 %v4501, 112
    %v4505 = vpop.permute.xlu0 %4504
    %v4506 = vrot.slane %v4503, 1
    %v4507 = vrot.slane %v4505, 1
    %v4508 = vsel %vm422, %v4503, %v4506
    %v4509 = vsel %vm422, %v4505, %v4507
    %v4512 = vadd.f32 %v4474, %v4508
    %v4513 = vadd.f32 %v4475, %v4509
    %v4514 = vxor.u32 %v4512, 2147483648
    %v4515 = vxor.u32 %v4513, 2147483648
    %v4516 = vmul.f32 %v4514, 1.442695
    %v4517 = vpow.pop %v4516
    %v4518 = vmul.f32 %v4515, 1.442695
    %v4519 = vpow.pop %v4518
    %v4520 = vadd.f32 %v4517, 1.0
    %v4521 = vadd.f32 %v4519, 1.0
    %v4522 = vrcp.pop %v4520
    %v4523 = vmul.f32 1.0, %v4522
    %v4524 = vrcp.pop %v4521
    %v4525 = vmul.f32 1.0, %v4524
    %v4527 = vcombine.low %v4417, %v4419
    %v4529 = vunpack.c.l.s4 1966171168
    %v4530 = vunpack.c.0.s8 %v4529
    %v4531 = vlaneseq
    %v4532 = vshrl.u32 %v4531, 7
    %v4533 = vsub.s32 %v4530, %v4532
    %v4534 = vrot.slane %v4527, %v4533
    %v4535 = vcombine.high %v4534, %v4534
    %v4537 = vunpack.c.l.s4 1966171168
    %v4538 = vunpack.c.0.s8 %v4537
    %v4539 = vlaneseq
    %v4540 = vshrl.u32 %v4539, 7
    %v4541 = vsub.s32 %v4538, %v4540
    %v4542 = vrot.slane %v4534, %v4541
    %v4544 = vunpack.c.l.s4 1966171168
    %v4545 = vunpack.c.0.s8 %v4544
    %v4546 = vlaneseq
    %v4547 = vshrl.u32 %v4546, 7
    %v4548 = vsub.s32 %v4545, %v4547
    %v4549 = vrot.slane %v4535, %v4548
    %4550 = vrot.lane.b32.xlu0 %v4542, 96
    %v4551 = vpop.permute.xlu0 %4550
    %4552 = vrot.lane.b32.xlu0 %v4549, 96
    %v4553 = vpop.permute.xlu0 %4552
    %v4554 = vrot.slane %v4551, 1
    %v4555 = vrot.slane %v4553, 1
    %v4556 = vsel %vm505, %v4551, %v4554
    %v4557 = vsel %vm505, %v4553, %v4555
    %v4560 = vmul.f32 %v4461, %v4556
    %v4561 = vmul.f32 %v4463, %v4557
    %4562 = vrot.lane.b32.xlu0 %v4084, 96
    %v4563 = vpop.permute.xlu0 %4562
    %4564 = vrot.lane.b32.xlu0 %v4086, 96
    %v4565 = vpop.permute.xlu0 %4564
    %v4566 = vrot.slane %v4563, 2
    %v4567 = vrot.slane %v4565, 2
    %v4568 = vrot.slane %v4563, 3
    %v4569 = vrot.slane %v4565, 3
    %v4570 = vsel %vm505, %v4566, %v4568
    %v4571 = vsel %vm505, %v4567, %v4569
    %v4574 = vadd.f32 %v4570, %v4560
    %v4575 = vadd.f32 %v4571, %v4561
    %v4576 = vtanh.pop %v4574
    %v4577 = vtanh.pop %v4575
    %v4578 = vsub.f32 1.0, %v4523
    %v4579 = vsub.f32 1.0, %v4525
    %v4580 = vmul.f32 %v4578, %v4576
    %v4581 = vmul.f32 %v4579, %v4577
    %v4583 = vunpack.c.l.s4 1966171168
    %v4584 = vunpack.c.0.s8 %v4583
    %v4585 = vlaneseq
    %v4586 = vshrl.u32 %v4585, 7
    %v4587 = vsub.s32 %v4584, %v4586
    %v4588 = vrot.slane %v4082, %v4587
    %v4589 = vcombine.high %v4588, %v4588
    %v4592 = vmul.f32 %v4523, %v4588
    %v4593 = vmul.f32 %v4525, %v4589
    %v4594 = vadd.f32 %v4580, %v4592
    %v4595 = vadd.f32 %v4581, %v4593
    %v4598 = vcombine.low %v4594, %v4595
    %v4600 = vunpack.c.l.s4 1935823168
    %v4601 = vunpack.c.0.s8 %v4600
    %v4602 = vlaneseq
    %v4603 = vshrl.u32 %v4602, 7
    %v4604 = vsub.s32 %v4601, %v4603
    %v4605 = vrot.slane %v4598, %v4604
    %4607 = vst.msk [vmem:[#allocation2] sm:$0xf] %vm559, %v4605
    %v4608 = vlaneseq
    %v4609 = vshrl.u32 %v4608, 7
    %v4610 = vsub.s32 0, %v4609
    %v4611 = vrot.slane %v4594, %v4610
    %v4612 = vlaneseq
    %v4613 = vshrl.u32 %v4612, 7
    %v4614 = vsub.s32 1, %v4613
    %v4615 = vrot.slane %v4594, %v4614
    %v4616 = vlaneseq
    %v4617 = vshrl.u32 %v4616, 7
    %v4618 = vsub.s32 0, %v4617
    %v4619 = vrot.slane %v4595, %v4618
    %v4620 = vlaneseq
    %v4621 = vshrl.u32 %v4620, 7
    %v4622 = vsub.s32 1, %v4621
    %v4623 = vrot.slane %v4595, %v4622
    %v4628 = vpack.c.bf16 %v4611, %v4611
    %v4629 = vpack.c.bf16 %v4615, %v4615
    %v4630 = vpack.c.bf16 %v4619, %v4619
    %v4631 = vpack.c.bf16 %v4623, %v4623
    %v4636 = vunpack.c.l.b16 %v4628
    %v4637 = vunpack.c.l.b16 %v4629
    %v4638 = vunpack.c.l.b16 %v4630
    %v4639 = vunpack.c.l.b16 %v4631
    %v4640 = vpack.c.b16 %v4637, %v4636
    %v4641 = vpack.c.b16 %v4639, %v4638
    %v4643 = vshll.u32 %v4640, 16
    %v4645 = vrot.slane %v4643, 5
    %v4647 = vshll.u32 %v4641, 16
    %v4649 = vrot.slane %v4647, 5
    %vm4652 = vsmask.f32 7950
    %vm4653 = vmand %vm4069, %vm4652
    %vm4654 = vsmask.f32 7966
    %vm4655 = vmand %vm4072, %vm4654
    %vm4656 = vmor %vm4655, %vm4653
    %v4657 = vld [vmem:[%s4] sm:$0x88]
    %v4658 = vsel %vm4656, %v4645, %v4657
    %4659 = vst [vmem:[%s4] sm:$0x88] %v4658
    %v4660 = vld [vmem:[%s4 + $0x8] sm:$0x88]
    %v4661 = vsel %vm4656, %v4649, %v4660
    %4662 = vst [vmem:[%s4 + $0x8] sm:$0x88] %v4661
    // Predicated region
    $region22: #{net_helper_forward.8} parent=1 // pred_check
      %p4663 = pneg %p21
    $region23: #{net_helper_forward.8} parent=1 // pred_check_branch
      %4665 = sbr.rel (%p4663) target = $region25
    $region24: #{net_helper_forward.8} parent=1 // pred_region
      %v4666 = vld [vmem:[#allocation2] sm:$0xf]
      %4667 = vst.msk [vmem:[#allocation3] sm:$0xf] %vm559, %v4666
    $region25: #{net_helper_forward.8} parent=1 // pred_fallthru
      _
    // Predicated region
    $region26: #{net_helper_forward.8} parent=1 // pred_check
      _
    $region27: #{net_helper_forward.8} parent=1 // pred_check_branch
      %4669 = sbr.rel (0) target = $region29
    $region28: #{net_helper_forward.8} parent=1 // pred_region
      _
    $region29: #{net_helper_forward.8} parent=1 // pred_fallthru
      _
    // Predicated region
    $region30: #{net_helper_forward.8} parent=1 // pred_check
      _
    $region31: #{net_helper_forward.8} parent=1 // pred_check_branch
      %4671 = sbr.rel (0) target = $region33
    $region32: #{net_helper_forward.8} parent=1 // pred_region
      %s4673 = ssub.s32 64, 64
      %4674 = vsyncadd [#allocation4], %s4673
      %s4676 = sshll.u32 [#allocation3], 4
      %s4677 = int_to_ptr.vmem [resolvable:$true] %s4676
      %4679 = dma.vmem_to_hbm [thread:$0]  %s4677, 64, %s5, [#allocation4]
    $region33: #{net_helper_forward.8} parent=1 // pred_fallthru
      _
    // Predicated region
    $region34: #{net_helper_forward.8} parent=1 // pred_check
      _
    $region35: #{net_helper_forward.8} parent=1 // pred_check_branch
      %4681 = sbr.rel (0) target = $region37
    $region36: #{net_helper_forward.8} parent=1 // pred_region
      _
    $region37: #{net_helper_forward.8} parent=1 // pred_fallthru
      _
    // Predicated region
    $region38: #{net_helper_forward.8} parent=1 // pred_check
      _
    $region39: #{net_helper_forward.8} parent=1 // pred_check_branch
      %4683 = sbr.rel (0) target = $region41
    $region40: #{net_helper_forward.8} parent=1 // pred_region
      %4684 = dma.done [#allocation4], 64
    $region41: #{net_helper_forward.8} parent=1 // pred_fallthru
      _
    %4685 = vsyncpa [#allocation4], 1

</llo_original>
